<compile_context>
chip_gen: v7x
topology: tpu7x:2x2x1
jax: 0.10.0
libtpu: 0.0.40
codegen_flags: <defaults>
</compile_context>

<pallas_src>
import functools

import jax
import jax.numpy as jnp
from jax import lax
from jax.experimental import pallas as pl
from jax.experimental.pallas import tpu as pltpu


# ----------------------------- Pallas kernel --------------------------------


def _fused_attention_kernel(*refs, num_heads, scale, n_valid, has_qkv_bias):
    # refs = (x, w_qkv, [b_qkv], w_proj, b_proj, out, qkv_scratch)
    if has_qkv_bias:
        x_ref, wqkv_ref, bqkv_ref, wproj_ref, bproj_ref, o_ref, qkv_ref = refs
    else:
        x_ref, wqkv_ref, wproj_ref, bproj_ref, o_ref, qkv_ref = refs
        bqkv_ref = None

    N, C3 = qkv_ref.shape            # (N_pad, 3C) bf16 scratch
    C = C3 // 3
    D = C // num_heads

    # ---- qkv projection: (N, C) @ (C, 3C) on the MXU, fp32 accumulation ----
    qkv = jnp.dot(x_ref[...], wqkv_ref[...], preferred_element_type=jnp.float32)
    if has_qkv_bias:
        qkv = qkv + bqkv_ref[...].astype(jnp.float32)

    # Fold the softmax scale into q in fp32 (exact, N*C mults once), then stage
    # the whole slab as bf16 in VMEM: per-head q/k/v become bf16 loads and the
    # fp32 qkv value's live range ends here (half the spill/reload bytes).
    qkv_ref[:, :C] = (qkv[:, :C] * scale).astype(jnp.bfloat16)
    qkv_ref[:, C:] = qkv[:, C:].astype(jnp.bfloat16)

    # Key-padding mask (hoisted out of the head loop). Only emitted when the
    # wrapper actually padded N.
    if n_valid < N:
        key_valid = lax.broadcasted_iota(jnp.int32, (1, N), 1) < n_valid

    head_outs = []
    for h in range(num_heads):
        q = qkv_ref[:, h * D:(h + 1) * D]                  # (N, D) bf16 (pre-scaled)
        k = qkv_ref[:, C + h * D:C + (h + 1) * D]          # (N, D) bf16
        v = qkv_ref[:, 2 * C + h * D:2 * C + (h + 1) * D]  # (N, D) bf16

        # q @ k^T via dot_general contracting the last dims (no XLU transpose)
        s = lax.dot_general(q, k, (((1,), (1,)), ((), ())),
                            preferred_element_type=jnp.float32)     # (N, N) f32

        if n_valid < N:
            s = jnp.where(key_valid, s, jnp.float32(-1e30))          # mask padded keys

        # softmax in fp32 (VPU/XLU); reciprocal on the EUP slot
        s = s - jnp.max(s, axis=-1, keepdims=True)
        p = jnp.exp(s)
        p = p * pl.reciprocal(jnp.sum(p, axis=-1, keepdims=True), approx=True)

        o_h = jnp.dot(p.astype(jnp.bfloat16), v,
                      preferred_element_type=jnp.float32)            # (N, D) f32
        head_outs.append(o_h.astype(jnp.bfloat16))

    # Lane-dense (N, H*D) == (N, C) bf16 slab, exactly PyTorch's
    # (attn @ v).transpose(1, 2).reshape(B, N, C) layout — no scratch round trip.
    attn_out = jnp.concatenate(head_outs, axis=-1)

    # ---- output projection, single lane-dense (N, C) store ----
    out = jnp.dot(attn_out, wproj_ref[...], preferred_element_type=jnp.float32)
    out = out + bproj_ref[...].astype(jnp.float32)
    o_ref[...] = out.astype(o_ref.dtype)


# ----------------------------- wrapper ---------------------------------------


def attention_forward(x, params, num_heads, *, qkv_bias=False, qk_scale=None,
                      lane_pad=128):
    """Equivalent of Attention.forward (register_hook=False, eval mode).

    x: (B, N, C) float32.  Weights stored as (in_features, out_features), so
    the kernel computes y = x @ W + b  ==  nn.Linear(x).
    `lane_pad`: pad N to this multiple (128; 256 recommended on v6e/v7x so the
    (N,N) scores / p@v matmuls fill full MXU rows).  Padded keys are masked.
    """
    B, N, C = x.shape
    assert C % num_heads == 0
    D = C // num_heads
    scale = qk_scale if qk_scale is not None else D ** (-0.5)

    N_pad = ((N + lane_pad - 1) // lane_pad) * lane_pad
    if N_pad != N:
        x = jnp.pad(x, ((0, 0), (0, N_pad - N), (0, 0)))

    # bf16 operands for the MXU matmuls (halves DMA bytes); fp32 accumulate and
    # fp32 softmax are kept inside the kernel.
    x_bf16 = x.astype(jnp.bfloat16)
    w_qkv = params["w_qkv"].astype(jnp.bfloat16)
    w_proj = params["w_proj"].astype(jnp.bfloat16)
    b_proj = params["b_proj"].reshape(1, C).astype(jnp.float32)

    inputs = [x_bf16, w_qkv]
    if qkv_bias:
        inputs.append(params["b_qkv"].reshape(1, 3 * C).astype(jnp.float32))
    inputs += [w_proj, b_proj]

    kern = functools.partial(_fused_attention_kernel, num_heads=num_heads,
                             scale=scale, n_valid=N, has_qkv_bias=qkv_bias)

    # Advisory cost estimate for XLA's scheduler (padded sizes).
    flops = (2 * B * N_pad * C * (3 * C)          # qkv projection
             + 4 * B * N_pad * N_pad * C          # q@k^T and p@v over all heads
             + 2 * B * N_pad * C * C)             # output projection
    bytes_accessed = (B * N_pad * C * 2           # x (bf16)
                      + C * 3 * C * 2             # w_qkv (bf16)
                      + C * C * 2                 # w_proj (bf16)
                      + (3 * C + C) * 4           # biases (f32)
                      + B * N_pad * C * 4)        # output (f32)
    cost = pl.CostEstimate(flops=flops,
                           transcendentals=B * num_heads * N_pad * N_pad,
                           bytes_accessed=bytes_accessed)

    def _call(single_buffer_weights):
        def wspec(shape):
            # Weights/biases: constant block index -> never re-fetched; request
            # single buffering so the pipeline does not allocate a useless
            # second buffer (VMEM headroom, matters on v7x).
            if single_buffer_weights:
                return pl.BlockSpec(shape, lambda b: (0, 0),
                                    pipeline_mode=pl.Buffered(1))
            return pl.BlockSpec(shape, lambda b: (0, 0))

        in_specs = [
            # per-batch token block; leading batch dim squeezed out of the ref
            pl.BlockSpec((pl.Squeezed(), N_pad, C), lambda b: (b, 0, 0)),
            wspec((C, 3 * C)),
        ]
        if qkv_bias:
            in_specs.append(wspec((1, 3 * C)))
        in_specs += [wspec((C, C)), wspec((1, C))]

        return pl.pallas_call(
            kern,
            # TODO(synk): emit bf16 output here if the downstream consumer
            # accepts it (halves HBM writeback); kept fp32 to match nn.Linear.
            out_shape=jax.ShapeDtypeStruct((B, N_pad, C), jnp.float32),
            grid=(B,),
            in_specs=in_specs,
            out_specs=pl.BlockSpec((pl.Squeezed(), N_pad, C), lambda b: (b, 0, 0)),
            scratch_shapes=[pltpu.VMEM((N_pad, 3 * C), jnp.bfloat16)],
            compiler_params=pltpu.CompilerParams(
                dimension_semantics=("parallel",),      # shards over v7x's 2 TCs
                vmem_limit_bytes=32 * 1024 * 1024,
            ),
            cost_estimate=cost,
        )(*inputs)

    try:
        out = jax.block_until_ready(_call(True))
    except Exception:
        # pipeline_mode=pl.Buffered(1) unsupported on this jax version/backend:
        # retry with default (double-buffered) weight specs; genuine errors
        # still surface from this call.
        out = _call(False)

    return out[:, :N, :] if N_pad != N else out


def reference_forward(x, params, num_heads, *, qkv_bias=False):
    """Pure-JAX fp32 reference mirroring the PyTorch forward."""
    B, N, C = x.shape
    H = num_heads
    D = C // H
    scale = D ** (-0.5)
    qkv = x @ params["w_qkv"]
    if qkv_bias:
        qkv = qkv + params["b_qkv"]
    qkv = qkv.reshape(B, N, 3, H, D).transpose(2, 0, 3, 1, 4)
    q, k, v = qkv[0], qkv[1], qkv[2]
    attn = jnp.einsum("bhnd,bhmd->bhnm", q, k) * scale
    attn = jax.nn.softmax(attn, axis=-1)
    o = jnp.einsum("bhnm,bhmd->bhnd", attn, v)
    o = o.transpose(0, 2, 1, 3).reshape(B, N, C)
    return o @ params["w_proj"] + params["b_proj"]


# ----------------------------- main ------------------------------------------

if __name__ == "__main__":
    B, N, C = 2, 8, 32
    num_heads = 8

    key = jax.random.PRNGKey(0)
    k_x, k_qkv, k_proj, k_bp = jax.random.split(key, 4)

    x = jax.random.normal(k_x, (B, N, C), dtype=jnp.float32)

    # shapes from nn.Linear(dim, dim*3, bias=False) and nn.Linear(dim, dim)
    params = {
        "w_qkv": jax.random.normal(k_qkv, (C, 3 * C), dtype=jnp.float32) * 0.05,
        "w_proj": jax.random.normal(k_proj, (C, C), dtype=jnp.float32) * 0.05,
        "b_proj": jax.random.normal(k_bp, (C,), dtype=jnp.float32) * 0.05,
    }

    out = attention_forward(x, params, num_heads, qkv_bias=False)
    out = jax.block_until_ready(out)

    ref = reference_forward(x, params, num_heads, qkv_bias=False)
    assert out.shape == (B, N, C)
    # bf16 MXU operands + approx reciprocal (fp32 accumulation / fp32 softmax)
    # -> loosened tolerance vs. the fp32 reference.
    max_err = float(jnp.max(jnp.abs(out - ref)))
    assert jnp.allclose(out, ref, atol=2e-2, rtol=2e-2), f"mismatch vs reference: {max_err}"

    print("KERNEL_OK")
</pallas_src>

<mosaic_0001>
module attributes {stable_mosaic.version = 11 : i64} {
  func.func @_fused_attention_kernel(%arg0: i32, %arg1: memref<1x128x32xbf16, #tpu.memory_space<vmem>>, %arg2: memref<32x96xbf16, #tpu.memory_space<vmem>>, %arg3: memref<32x32xbf16, #tpu.memory_space<vmem>>, %arg4: memref<1x32xf32, #tpu.memory_space<vmem>>, %arg5: memref<1x128x32xf32, #tpu.memory_space<vmem>>, %arg6: memref<128x96xbf16, #tpu.memory_space<vmem>>) attributes {dimension_semantics = [#tpu.dimension_semantics<parallel>], iteration_bounds = array<i64: 2>, scalar_prefetch = 0 : i64, scratch_operands = 1 : i64, tpu.core_type = #tpu.core_type<tc>, window_params = [{transform_indices = @transform_0, window_bounds = array<i64: 1, 128, 32>}, {pipeline_mode = #tpu.pipeline_mode<synchronous>, transform_indices = @transform_1, window_bounds = array<i64: 32, 96>}, {pipeline_mode = #tpu.pipeline_mode<synchronous>, transform_indices = @transform_2, window_bounds = array<i64: 32, 32>}, {pipeline_mode = #tpu.pipeline_mode<synchronous>, transform_indices = @transform_3, window_bounds = array<i64: 1, 32>}, {transform_indices = @transform_4, window_bounds = array<i64: 1, 128, 32>}]} {
    %c0 = arith.constant 0 : index
    %c0_0 = arith.constant 0 : index
    %c0_1 = arith.constant 0 : index
    %0 = vector.load %arg1[%c0, %c0_0, %c0_1] : memref<1x128x32xbf16, #tpu.memory_space<vmem>>, vector<1x128x32xbf16>
    %1 = vector.shape_cast %0 : vector<1x128x32xbf16> to vector<128x32xbf16>
    %c0_2 = arith.constant 0 : index
    %c0_3 = arith.constant 0 : index
    %2 = vector.load %arg2[%c0_2, %c0_3] : memref<32x96xbf16, #tpu.memory_space<vmem>>, vector<32x96xbf16>
    %cst = arith.constant dense<0.000000e+00> : vector<128x96xf32>
    %3 = tpu.matmul %1, %2, %cst {dimension_numbers = #tpu.dot_dimension_numbers<[1], [0], [0], [1], [0, 0, 1, 1], [], []>} : vector<128x32xbf16>, vector<32x96xbf16>, vector<128x96xf32> -> vector<128x96xf32>
    %4 = vector.extract_strided_slice %3 {offsets = [0, 0], sizes = [128, 32], strides = [1, 1]} : vector<128x96xf32> to vector<128x32xf32>
    %cst_4 = arith.constant 5.000000e-01 : f32
    %5 = vector.broadcast %cst_4 : f32 to vector<128x32xf32>
    %6 = arith.mulf %4, %5 : vector<128x32xf32>
    %7 = arith.truncf %6 : vector<128x32xf32> to vector<128x32xbf16>
    %c0_5 = arith.constant 0 : index
    %c0_6 = arith.constant 0 : index
    %8 = vector.load %arg6[%c0_5, %c0_6] : memref<128x96xbf16, #tpu.memory_space<vmem>>, vector<128x32xbf16>
    tpu.vector_store %arg6[%c0_5, %c0_6], %7 {strides = array<i32>} : memref<128x96xbf16, #tpu.memory_space<vmem>>, vector<128x32xbf16>,
    %9 = vector.extract_strided_slice %3 {offsets = [0, 32], sizes = [128, 64], strides = [1, 1]} : vector<128x96xf32> to vector<128x64xf32>
    %10 = arith.truncf %9 : vector<128x64xf32> to vector<128x64xbf16>
    %c0_7 = arith.constant 0 : index
    %c32 = arith.constant 32 : index
    %11 = vector.load %arg6[%c0_7, %c32] : memref<128x96xbf16, #tpu.memory_space<vmem>>, vector<128x64xbf16>
    tpu.vector_store %arg6[%c0_7, %c32], %10 {strides = array<i32>} : memref<128x96xbf16, #tpu.memory_space<vmem>>, vector<128x64xbf16>,
    %12 = tpu.iota {dimensions = array<i32: 1>} : vector<1x128xi32>
    %c8_i32 = arith.constant 8 : i32
    %13 = vector.broadcast %c8_i32 : i32 to vector<1x128xi32>
    %14 = arith.cmpi slt, %12, %13 : vector<1x128xi32>
    %c0_8 = arith.constant 0 : index
    %c0_9 = arith.constant 0 : index
    %15 = vector.load %arg6[%c0_8, %c0_9] : memref<128x96xbf16, #tpu.memory_space<vmem>>, vector<128x4xbf16>
    %c0_10 = arith.constant 0 : index
    %c32_11 = arith.constant 32 : index
    %16 = vector.load %arg6[%c0_10, %c32_11] : memref<128x96xbf16, #tpu.memory_space<vmem>>, vector<128x4xbf16>
    %c0_12 = arith.constant 0 : index
    %c64 = arith.constant 64 : index
    %17 = vector.load %arg6[%c0_12, %c64] : memref<128x96xbf16, #tpu.memory_space<vmem>>, vector<128x4xbf16>
    %cst_13 = arith.constant dense<0.000000e+00> : vector<128x128xf32>
    %18 = tpu.matmul %15, %16, %cst_13 {dimension_numbers = #tpu.dot_dimension_numbers<[1], [1], [0], [0], [0, 0, 1, 0], [], []>} : vector<128x4xbf16>, vector<128x4xbf16>, vector<128x128xf32> -> vector<128x128xf32>
    %cst_14 = arith.constant -1.000000e+30 : f32
    %19 = vector.shape_cast %14 : vector<1x128xi1> to vector<1x128xi1>
    %20 = vector.broadcast %19 : vector<1x128xi1> to vector<128x128xi1>
    %21 = vector.broadcast %cst_14 : f32 to vector<128x128xf32>
    %22 = arith.select %20, %18, %21 : vector<128x128xi1>, vector<128x128xf32>
    %cst_15 = arith.constant dense<0xFF800000> : vector<128xf32>
    %23 = vector.multi_reduction <maximumf>, %22, %cst_15 [1] : vector<128x128xf32> to vector<128xf32>
    %24 = vector.shape_cast %23 : vector<128xf32> to vector<128x1xf32>
    %25 = vector.broadcast %24 : vector<128x1xf32> to vector<128x128xf32>
    %26 = arith.subf %22, %25 : vector<128x128xf32>
    %27 = math.exp %26 : vector<128x128xf32>
    %cst_16 = arith.constant dense<0.000000e+00> : vector<128xf32>
    %28 = vector.multi_reduction <add>, %27, %cst_16 [1] : vector<128x128xf32> to vector<128xf32>
    %29 = vector.shape_cast %28 : vector<128xf32> to vector<128x1xf32>
    %30 = tpu.reciprocal %29 {approx = true} : vector<128x1xf32> -> vector<128x1xf32>
    %31 = vector.broadcast %30 : vector<128x1xf32> to vector<128x128xf32>
    %32 = arith.mulf %27, %31 : vector<128x128xf32>
    %33 = arith.truncf %32 : vector<128x128xf32> to vector<128x128xbf16>
    %cst_17 = arith.constant dense<0.000000e+00> : vector<128x4xf32>
    %34 = tpu.matmul %33, %17, %cst_17 {dimension_numbers = #tpu.dot_dimension_numbers<[1], [0], [0], [1], [0, 0, 1, 1], [], []>} : vector<128x128xbf16>, vector<128x4xbf16>, vector<128x4xf32> -> vector<128x4xf32>
    %35 = arith.truncf %34 : vector<128x4xf32> to vector<128x4xbf16>
    %c0_18 = arith.constant 0 : index
    %c4 = arith.constant 4 : index
    %36 = vector.load %arg6[%c0_18, %c4] : memref<128x96xbf16, #tpu.memory_space<vmem>>, vector<128x4xbf16>
    %c0_19 = arith.constant 0 : index
    %c36 = arith.constant 36 : index
    %37 = vector.load %arg6[%c0_19, %c36] : memref<128x96xbf16, #tpu.memory_space<vmem>>, vector<128x4xbf16>
    %c0_20 = arith.constant 0 : index
    %c68 = arith.constant 68 : index
    %38 = vector.load %arg6[%c0_20, %c68] : memref<128x96xbf16, #tpu.memory_space<vmem>>, vector<128x4xbf16>
    %cst_21 = arith.constant dense<0.000000e+00> : vector<128x128xf32>
    %39 = tpu.matmul %36, %37, %cst_21 {dimension_numbers = #tpu.dot_dimension_numbers<[1], [1], [0], [0], [0, 0, 1, 0], [], []>} : vector<128x4xbf16>, vector<128x4xbf16>, vector<128x128xf32> -> vector<128x128xf32>
    %cst_22 = arith.constant -1.000000e+30 : f32
    %40 = vector.shape_cast %14 : vector<1x128xi1> to vector<1x128xi1>
    %41 = vector.broadcast %40 : vector<1x128xi1> to vector<128x128xi1>
    %42 = vector.broadcast %cst_22 : f32 to vector<128x128xf32>
    %43 = arith.select %41, %39, %42 : vector<128x128xi1>, vector<128x128xf32>
    %cst_23 = arith.constant dense<0xFF800000> : vector<128xf32>
    %44 = vector.multi_reduction <maximumf>, %43, %cst_23 [1] : vector<128x128xf32> to vector<128xf32>
    %45 = vector.shape_cast %44 : vector<128xf32> to vector<128x1xf32>
    %46 = vector.broadcast %45 : vector<128x1xf32> to vector<128x128xf32>
    %47 = arith.subf %43, %46 : vector<128x128xf32>
    %48 = math.exp %47 : vector<128x128xf32>
    %cst_24 = arith.constant dense<0.000000e+00> : vector<128xf32>
    %49 = vector.multi_reduction <add>, %48, %cst_24 [1] : vector<128x128xf32> to vector<128xf32>
    %50 = vector.shape_cast %49 : vector<128xf32> to vector<128x1xf32>
    %51 = tpu.reciprocal %50 {approx = true} : vector<128x1xf32> -> vector<128x1xf32>
    %52 = vector.broadcast %51 : vector<128x1xf32> to vector<128x128xf32>
    %53 = arith.mulf %48, %52 : vector<128x128xf32>
    %54 = arith.truncf %53 : vector<128x128xf32> to vector<128x128xbf16>
    %cst_25 = arith.constant dense<0.000000e+00> : vector<128x4xf32>
    %55 = tpu.matmul %54, %38, %cst_25 {dimension_numbers = #tpu.dot_dimension_numbers<[1], [0], [0], [1], [0, 0, 1, 1], [], []>} : vector<128x128xbf16>, vector<128x4xbf16>, vector<128x4xf32> -> vector<128x4xf32>
    %56 = arith.truncf %55 : vector<128x4xf32> to vector<128x4xbf16>
    %c0_26 = arith.constant 0 : index
    %c8 = arith.constant 8 : index
    %57 = vector.load %arg6[%c0_26, %c8] : memref<128x96xbf16, #tpu.memory_space<vmem>>, vector<128x4xbf16>
    %c0_27 = arith.constant 0 : index
    %c40 = arith.constant 40 : index
    %58 = vector.load %arg6[%c0_27, %c40] : memref<128x96xbf16, #tpu.memory_space<vmem>>, vector<128x4xbf16>
    %c0_28 = arith.constant 0 : index
    %c72 = arith.constant 72 : index
    %59 = vector.load %arg6[%c0_28, %c72] : memref<128x96xbf16, #tpu.memory_space<vmem>>, vector<128x4xbf16>
    %cst_29 = arith.constant dense<0.000000e+00> : vector<128x128xf32>
    %60 = tpu.matmul %57, %58, %cst_29 {dimension_numbers = #tpu.dot_dimension_numbers<[1], [1], [0], [0], [0, 0, 1, 0], [], []>} : vector<128x4xbf16>, vector<128x4xbf16>, vector<128x128xf32> -> vector<128x128xf32>
    %cst_30 = arith.constant -1.000000e+30 : f32
    %61 = vector.shape_cast %14 : vector<1x128xi1> to vector<1x128xi1>
    %62 = vector.broadcast %61 : vector<1x128xi1> to vector<128x128xi1>
    %63 = vector.broadcast %cst_30 : f32 to vector<128x128xf32>
    %64 = arith.select %62, %60, %63 : vector<128x128xi1>, vector<128x128xf32>
    %cst_31 = arith.constant dense<0xFF800000> : vector<128xf32>
    %65 = vector.multi_reduction <maximumf>, %64, %cst_31 [1] : vector<128x128xf32> to vector<128xf32>
    %66 = vector.shape_cast %65 : vector<128xf32> to vector<128x1xf32>
    %67 = vector.broadcast %66 : vector<128x1xf32> to vector<128x128xf32>
    %68 = arith.subf %64, %67 : vector<128x128xf32>
    %69 = math.exp %68 : vector<128x128xf32>
    %cst_32 = arith.constant dense<0.000000e+00> : vector<128xf32>
    %70 = vector.multi_reduction <add>, %69, %cst_32 [1] : vector<128x128xf32> to vector<128xf32>
    %71 = vector.shape_cast %70 : vector<128xf32> to vector<128x1xf32>
    %72 = tpu.reciprocal %71 {approx = true} : vector<128x1xf32> -> vector<128x1xf32>
    %73 = vector.broadcast %72 : vector<128x1xf32> to vector<128x128xf32>
    %74 = arith.mulf %69, %73 : vector<128x128xf32>
    %75 = arith.truncf %74 : vector<128x128xf32> to vector<128x128xbf16>
    %cst_33 = arith.constant dense<0.000000e+00> : vector<128x4xf32>
    %76 = tpu.matmul %75, %59, %cst_33 {dimension_numbers = #tpu.dot_dimension_numbers<[1], [0], [0], [1], [0, 0, 1, 1], [], []>} : vector<128x128xbf16>, vector<128x4xbf16>, vector<128x4xf32> -> vector<128x4xf32>
    %77 = arith.truncf %76 : vector<128x4xf32> to vector<128x4xbf16>
    %c0_34 = arith.constant 0 : index
    %c12 = arith.constant 12 : index
    %78 = vector.load %arg6[%c0_34, %c12] : memref<128x96xbf16, #tpu.memory_space<vmem>>, vector<128x4xbf16>
    %c0_35 = arith.constant 0 : index
    %c44 = arith.constant 44 : index
    %79 = vector.load %arg6[%c0_35, %c44] : memref<128x96xbf16, #tpu.memory_space<vmem>>, vector<128x4xbf16>
    %c0_36 = arith.constant 0 : index
    %c76 = arith.constant 76 : index
    %80 = vector.load %arg6[%c0_36, %c76] : memref<128x96xbf16, #tpu.memory_space<vmem>>, vector<128x4xbf16>
    %cst_37 = arith.constant dense<0.000000e+00> : vector<128x128xf32>
    %81 = tpu.matmul %78, %79, %cst_37 {dimension_numbers = #tpu.dot_dimension_numbers<[1], [1], [0], [0], [0, 0, 1, 0], [], []>} : vector<128x4xbf16>, vector<128x4xbf16>, vector<128x128xf32> -> vector<128x128xf32>
    %cst_38 = arith.constant -1.000000e+30 : f32
    %82 = vector.shape_cast %14 : vector<1x128xi1> to vector<1x128xi1>
    %83 = vector.broadcast %82 : vector<1x128xi1> to vector<128x128xi1>
    %84 = vector.broadcast %cst_38 : f32 to vector<128x128xf32>
    %85 = arith.select %83, %81, %84 : vector<128x128xi1>, vector<128x128xf32>
    %cst_39 = arith.constant dense<0xFF800000> : vector<128xf32>
    %86 = vector.multi_reduction <maximumf>, %85, %cst_39 [1] : vector<128x128xf32> to vector<128xf32>
    %87 = vector.shape_cast %86 : vector<128xf32> to vector<128x1xf32>
    %88 = vector.broadcast %87 : vector<128x1xf32> to vector<128x128xf32>
    %89 = arith.subf %85, %88 : vector<128x128xf32>
    %90 = math.exp %89 : vector<128x128xf32>
    %cst_40 = arith.constant dense<0.000000e+00> : vector<128xf32>
    %91 = vector.multi_reduction <add>, %90, %cst_40 [1] : vector<128x128xf32> to vector<128xf32>
    %92 = vector.shape_cast %91 : vector<128xf32> to vector<128x1xf32>
    %93 = tpu.reciprocal %92 {approx = true} : vector<128x1xf32> -> vector<128x1xf32>
    %94 = vector.broadcast %93 : vector<128x1xf32> to vector<128x128xf32>
    %95 = arith.mulf %90, %94 : vector<128x128xf32>
    %96 = arith.truncf %95 : vector<128x128xf32> to vector<128x128xbf16>
    %cst_41 = arith.constant dense<0.000000e+00> : vector<128x4xf32>
    %97 = tpu.matmul %96, %80, %cst_41 {dimension_numbers = #tpu.dot_dimension_numbers<[1], [0], [0], [1], [0, 0, 1, 1], [], []>} : vector<128x128xbf16>, vector<128x4xbf16>, vector<128x4xf32> -> vector<128x4xf32>
    %98 = arith.truncf %97 : vector<128x4xf32> to vector<128x4xbf16>
    %c0_42 = arith.constant 0 : index
    %c16 = arith.constant 16 : index
    %99 = vector.load %arg6[%c0_42, %c16] : memref<128x96xbf16, #tpu.memory_space<vmem>>, vector<128x4xbf16>
    %c0_43 = arith.constant 0 : index
    %c48 = arith.constant 48 : index
    %100 = vector.load %arg6[%c0_43, %c48] : memref<128x96xbf16, #tpu.memory_space<vmem>>, vector<128x4xbf16>
    %c0_44 = arith.constant 0 : index
    %c80 = arith.constant 80 : index
    %101 = vector.load %arg6[%c0_44, %c80] : memref<128x96xbf16, #tpu.memory_space<vmem>>, vector<128x4xbf16>
    %cst_45 = arith.constant dense<0.000000e+00> : vector<128x128xf32>
    %102 = tpu.matmul %99, %100, %cst_45 {dimension_numbers = #tpu.dot_dimension_numbers<[1], [1], [0], [0], [0, 0, 1, 0], [], []>} : vector<128x4xbf16>, vector<128x4xbf16>, vector<128x128xf32> -> vector<128x128xf32>
    %cst_46 = arith.constant -1.000000e+30 : f32
    %103 = vector.shape_cast %14 : vector<1x128xi1> to vector<1x128xi1>
    %104 = vector.broadcast %103 : vector<1x128xi1> to vector<128x128xi1>
    %105 = vector.broadcast %cst_46 : f32 to vector<128x128xf32>
    %106 = arith.select %104, %102, %105 : vector<128x128xi1>, vector<128x128xf32>
    %cst_47 = arith.constant dense<0xFF800000> : vector<128xf32>
    %107 = vector.multi_reduction <maximumf>, %106, %cst_47 [1] : vector<128x128xf32> to vector<128xf32>
    %108 = vector.shape_cast %107 : vector<128xf32> to vector<128x1xf32>
    %109 = vector.broadcast %108 : vector<128x1xf32> to vector<128x128xf32>
    %110 = arith.subf %106, %109 : vector<128x128xf32>
    %111 = math.exp %110 : vector<128x128xf32>
    %cst_48 = arith.constant dense<0.000000e+00> : vector<128xf32>
    %112 = vector.multi_reduction <add>, %111, %cst_48 [1] : vector<128x128xf32> to vector<128xf32>
    %113 = vector.shape_cast %112 : vector<128xf32> to vector<128x1xf32>
    %114 = tpu.reciprocal %113 {approx = true} : vector<128x1xf32> -> vector<128x1xf32>
    %115 = vector.broadcast %114 : vector<128x1xf32> to vector<128x128xf32>
    %116 = arith.mulf %111, %115 : vector<128x128xf32>
    %117 = arith.truncf %116 : vector<128x128xf32> to vector<128x128xbf16>
    %cst_49 = arith.constant dense<0.000000e+00> : vector<128x4xf32>
    %118 = tpu.matmul %117, %101, %cst_49 {dimension_numbers = #tpu.dot_dimension_numbers<[1], [0], [0], [1], [0, 0, 1, 1], [], []>} : vector<128x128xbf16>, vector<128x4xbf16>, vector<128x4xf32> -> vector<128x4xf32>
    %119 = arith.truncf %118 : vector<128x4xf32> to vector<128x4xbf16>
    %c0_50 = arith.constant 0 : index
    %c20 = arith.constant 20 : index
    %120 = vector.load %arg6[%c0_50, %c20] : memref<128x96xbf16, #tpu.memory_space<vmem>>, vector<128x4xbf16>
    %c0_51 = arith.constant 0 : index
    %c52 = arith.constant 52 : index
    %121 = vector.load %arg6[%c0_51, %c52] : memref<128x96xbf16, #tpu.memory_space<vmem>>, vector<128x4xbf16>
    %c0_52 = arith.constant 0 : index
    %c84 = arith.constant 84 : index
    %122 = vector.load %arg6[%c0_52, %c84] : memref<128x96xbf16, #tpu.memory_space<vmem>>, vector<128x4xbf16>
    %cst_53 = arith.constant dense<0.000000e+00> : vector<128x128xf32>
    %123 = tpu.matmul %120, %121, %cst_53 {dimension_numbers = #tpu.dot_dimension_numbers<[1], [1], [0], [0], [0, 0, 1, 0], [], []>} : vector<128x4xbf16>, vector<128x4xbf16>, vector<128x128xf32> -> vector<128x128xf32>
    %cst_54 = arith.constant -1.000000e+30 : f32
    %124 = vector.shape_cast %14 : vector<1x128xi1> to vector<1x128xi1>
    %125 = vector.broadcast %124 : vector<1x128xi1> to vector<128x128xi1>
    %126 = vector.broadcast %cst_54 : f32 to vector<128x128xf32>
    %127 = arith.select %125, %123, %126 : vector<128x128xi1>, vector<128x128xf32>
    %cst_55 = arith.constant dense<0xFF800000> : vector<128xf32>
    %128 = vector.multi_reduction <maximumf>, %127, %cst_55 [1] : vector<128x128xf32> to vector<128xf32>
    %129 = vector.shape_cast %128 : vector<128xf32> to vector<128x1xf32>
    %130 = vector.broadcast %129 : vector<128x1xf32> to vector<128x128xf32>
    %131 = arith.subf %127, %130 : vector<128x128xf32>
    %132 = math.exp %131 : vector<128x128xf32>
    %cst_56 = arith.constant dense<0.000000e+00> : vector<128xf32>
    %133 = vector.multi_reduction <add>, %132, %cst_56 [1] : vector<128x128xf32> to vector<128xf32>
    %134 = vector.shape_cast %133 : vector<128xf32> to vector<128x1xf32>
    %135 = tpu.reciprocal %134 {approx = true} : vector<128x1xf32> -> vector<128x1xf32>
    %136 = vector.broadcast %135 : vector<128x1xf32> to vector<128x128xf32>
    %137 = arith.mulf %132, %136 : vector<128x128xf32>
    %138 = arith.truncf %137 : vector<128x128xf32> to vector<128x128xbf16>
    %cst_57 = arith.constant dense<0.000000e+00> : vector<128x4xf32>
    %139 = tpu.matmul %138, %122, %cst_57 {dimension_numbers = #tpu.dot_dimension_numbers<[1], [0], [0], [1], [0, 0, 1, 1], [], []>} : vector<128x128xbf16>, vector<128x4xbf16>, vector<128x4xf32> -> vector<128x4xf32>
    %140 = arith.truncf %139 : vector<128x4xf32> to vector<128x4xbf16>
    %c0_58 = arith.constant 0 : index
    %c24 = arith.constant 24 : index
    %141 = vector.load %arg6[%c0_58, %c24] : memref<128x96xbf16, #tpu.memory_space<vmem>>, vector<128x4xbf16>
    %c0_59 = arith.constant 0 : index
    %c56 = arith.constant 56 : index
    %142 = vector.load %arg6[%c0_59, %c56] : memref<128x96xbf16, #tpu.memory_space<vmem>>, vector<128x4xbf16>
    %c0_60 = arith.constant 0 : index
    %c88 = arith.constant 88 : index
    %143 = vector.load %arg6[%c0_60, %c88] : memref<128x96xbf16, #tpu.memory_space<vmem>>, vector<128x4xbf16>
    %cst_61 = arith.constant dense<0.000000e+00> : vector<128x128xf32>
    %144 = tpu.matmul %141, %142, %cst_61 {dimension_numbers = #tpu.dot_dimension_numbers<[1], [1], [0], [0], [0, 0, 1, 0], [], []>} : vector<128x4xbf16>, vector<128x4xbf16>, vector<128x128xf32> -> vector<128x128xf32>
    %cst_62 = arith.constant -1.000000e+30 : f32
    %145 = vector.shape_cast %14 : vector<1x128xi1> to vector<1x128xi1>
    %146 = vector.broadcast %145 : vector<1x128xi1> to vector<128x128xi1>
    %147 = vector.broadcast %cst_62 : f32 to vector<128x128xf32>
    %148 = arith.select %146, %144, %147 : vector<128x128xi1>, vector<128x128xf32>
    %cst_63 = arith.constant dense<0xFF800000> : vector<128xf32>
    %149 = vector.multi_reduction <maximumf>, %148, %cst_63 [1] : vector<128x128xf32> to vector<128xf32>
    %150 = vector.shape_cast %149 : vector<128xf32> to vector<128x1xf32>
    %151 = vector.broadcast %150 : vector<128x1xf32> to vector<128x128xf32>
    %152 = arith.subf %148, %151 : vector<128x128xf32>
    %153 = math.exp %152 : vector<128x128xf32>
    %cst_64 = arith.constant dense<0.000000e+00> : vector<128xf32>
    %154 = vector.multi_reduction <add>, %153, %cst_64 [1] : vector<128x128xf32> to vector<128xf32>
    %155 = vector.shape_cast %154 : vector<128xf32> to vector<128x1xf32>
    %156 = tpu.reciprocal %155 {approx = true} : vector<128x1xf32> -> vector<128x1xf32>
    %157 = vector.broadcast %156 : vector<128x1xf32> to vector<128x128xf32>
    %158 = arith.mulf %153, %157 : vector<128x128xf32>
    %159 = arith.truncf %158 : vector<128x128xf32> to vector<128x128xbf16>
    %cst_65 = arith.constant dense<0.000000e+00> : vector<128x4xf32>
    %160 = tpu.matmul %159, %143, %cst_65 {dimension_numbers = #tpu.dot_dimension_numbers<[1], [0], [0], [1], [0, 0, 1, 1], [], []>} : vector<128x128xbf16>, vector<128x4xbf16>, vector<128x4xf32> -> vector<128x4xf32>
    %161 = arith.truncf %160 : vector<128x4xf32> to vector<128x4xbf16>
    %c0_66 = arith.constant 0 : index
    %c28 = arith.constant 28 : index
    %162 = vector.load %arg6[%c0_66, %c28] : memref<128x96xbf16, #tpu.memory_space<vmem>>, vector<128x4xbf16>
    %c0_67 = arith.constant 0 : index
    %c60 = arith.constant 60 : index
    %163 = vector.load %arg6[%c0_67, %c60] : memref<128x96xbf16, #tpu.memory_space<vmem>>, vector<128x4xbf16>
    %c0_68 = arith.constant 0 : index
    %c92 = arith.constant 92 : index
    %164 = vector.load %arg6[%c0_68, %c92] : memref<128x96xbf16, #tpu.memory_space<vmem>>, vector<128x4xbf16>
    %cst_69 = arith.constant dense<0.000000e+00> : vector<128x128xf32>
    %165 = tpu.matmul %162, %163, %cst_69 {dimension_numbers = #tpu.dot_dimension_numbers<[1], [1], [0], [0], [0, 0, 1, 0], [], []>} : vector<128x4xbf16>, vector<128x4xbf16>, vector<128x128xf32> -> vector<128x128xf32>
    %cst_70 = arith.constant -1.000000e+30 : f32
    %166 = vector.shape_cast %14 : vector<1x128xi1> to vector<1x128xi1>
    %167 = vector.broadcast %166 : vector<1x128xi1> to vector<128x128xi1>
    %168 = vector.broadcast %cst_70 : f32 to vector<128x128xf32>
    %169 = arith.select %167, %165, %168 : vector<128x128xi1>, vector<128x128xf32>
    %cst_71 = arith.constant dense<0xFF800000> : vector<128xf32>
    %170 = vector.multi_reduction <maximumf>, %169, %cst_71 [1] : vector<128x128xf32> to vector<128xf32>
    %171 = vector.shape_cast %170 : vector<128xf32> to vector<128x1xf32>
    %172 = vector.broadcast %171 : vector<128x1xf32> to vector<128x128xf32>
    %173 = arith.subf %169, %172 : vector<128x128xf32>
    %174 = math.exp %173 : vector<128x128xf32>
    %cst_72 = arith.constant dense<0.000000e+00> : vector<128xf32>
    %175 = vector.multi_reduction <add>, %174, %cst_72 [1] : vector<128x128xf32> to vector<128xf32>
    %176 = vector.shape_cast %175 : vector<128xf32> to vector<128x1xf32>
    %177 = tpu.reciprocal %176 {approx = true} : vector<128x1xf32> -> vector<128x1xf32>
    %178 = vector.broadcast %177 : vector<128x1xf32> to vector<128x128xf32>
    %179 = arith.mulf %174, %178 : vector<128x128xf32>
    %180 = arith.truncf %179 : vector<128x128xf32> to vector<128x128xbf16>
    %cst_73 = arith.constant dense<0.000000e+00> : vector<128x4xf32>
    %181 = tpu.matmul %180, %164, %cst_73 {dimension_numbers = #tpu.dot_dimension_numbers<[1], [0], [0], [1], [0, 0, 1, 1], [], []>} : vector<128x128xbf16>, vector<128x4xbf16>, vector<128x4xf32> -> vector<128x4xf32>
    %182 = arith.truncf %181 : vector<128x4xf32> to vector<128x4xbf16>
    %183 = tpu.concatenate %35, %56, %77, %98, %119, %140, %161, %182 in 1 : vector<128x4xbf16>, vector<128x4xbf16>, vector<128x4xbf16>, vector<128x4xbf16>, vector<128x4xbf16>, vector<128x4xbf16>, vector<128x4xbf16>, vector<128x4xbf16> -> vector<128x32xbf16>
    %c0_74 = arith.constant 0 : index
    %c0_75 = arith.constant 0 : index
    %184 = vector.load %arg3[%c0_74, %c0_75] : memref<32x32xbf16, #tpu.memory_space<vmem>>, vector<32x32xbf16>
    %cst_76 = arith.constant dense<0.000000e+00> : vector<128x32xf32>
    %185 = tpu.matmul %183, %184, %cst_76 {dimension_numbers = #tpu.dot_dimension_numbers<[1], [0], [0], [1], [0, 0, 1, 1], [], []>} : vector<128x32xbf16>, vector<32x32xbf16>, vector<128x32xf32> -> vector<128x32xf32>
    %c0_77 = arith.constant 0 : index
    %c0_78 = arith.constant 0 : index
    %186 = vector.load %arg4[%c0_77, %c0_78] : memref<1x32xf32, #tpu.memory_space<vmem>>, vector<1x32xf32>
    %187 = vector.broadcast %186 : vector<1x32xf32> to vector<128x32xf32>
    %188 = arith.addf %185, %187 : vector<128x32xf32>
    %c0_79 = arith.constant 0 : index
    %c0_80 = arith.constant 0 : index
    %c0_81 = arith.constant 0 : index
    %189 = vector.load %arg5[%c0_79, %c0_80, %c0_81] : memref<1x128x32xf32, #tpu.memory_space<vmem>>, vector<1x128x32xf32>
    %190 = vector.shape_cast %189 : vector<1x128x32xf32> to vector<128x32xf32>
    %191 = vector.shape_cast %188 : vector<128x32xf32> to vector<1x128x32xf32>
    tpu.vector_store %arg5[%c0_79, %c0_80, %c0_81], %191 {strides = array<i32>} : memref<1x128x32xf32, #tpu.memory_space<vmem>>, vector<1x128x32xf32>,
    return
  }
  func.func @transform_0(%arg0: i32) -> (i32, i32, i32) {
    %c0_i32 = arith.constant 0 : i32
    %c0_i32_0 = arith.constant 0 : i32
    %c0_i32_1 = arith.constant 0 : i32
    return %arg0, %c0_i32, %c0_i32_0 : i32, i32, i32
  }
  func.func @transform_1(%arg0: i32) -> (i32, i32) {
    %c0_i32 = arith.constant 0 : i32
    %c0_i32_0 = arith.constant 0 : i32
    %c0_i32_1 = arith.constant 0 : i32
    return %c0_i32, %c0_i32_0 : i32, i32
  }
  func.func @transform_2(%arg0: i32) -> (i32, i32) {
    %c0_i32 = arith.constant 0 : i32
    %c0_i32_0 = arith.constant 0 : i32
    %c0_i32_1 = arith.constant 0 : i32
    return %c0_i32, %c0_i32_0 : i32, i32
  }
  func.func @transform_3(%arg0: i32) -> (i32, i32) {
    %c0_i32 = arith.constant 0 : i32
    %c0_i32_0 = arith.constant 0 : i32
    %c0_i32_1 = arith.constant 0 : i32
    return %c0_i32, %c0_i32_0 : i32, i32
  }
  func.func @transform_4(%arg0: i32) -> (i32, i32, i32) {
    %c0_i32 = arith.constant 0 : i32
    %c0_i32_0 = arith.constant 0 : i32
    %c0_i32_1 = arith.constant 0 : i32
    return %arg0, %c0_i32, %c0_i32_0 : i32, i32, i32
  }
}

module attributes {stable_mosaic.version = 11 : i64} {
  func.func @_fused_attention_kernel(%arg0: i32, %arg1: memref<1x128x32xbf16, #tpu.memory_space<vmem>>, %arg2: memref<32x96xbf16, #tpu.memory_space<vmem>>, %arg3: memref<32x32xbf16, #tpu.memory_space<vmem>>, %arg4: memref<1x32xf32, #tpu.memory_space<vmem>>, %arg5: memref<1x128x32xf32, #tpu.memory_space<vmem>>, %arg6: memref<128x96xbf16, #tpu.memory_space<vmem>>) attributes {dimension_semantics = [#tpu.dimension_semantics<parallel>], iteration_bounds = array<i64: 2>, scalar_prefetch = 0 : i64, scratch_operands = 1 : i64, tpu.core_type = #tpu.core_type<tc>, window_params = [{transform_indices = @transform_0, window_bounds = array<i64: 1, 128, 32>}, {pipeline_mode = #tpu.pipeline_mode<synchronous>, transform_indices = @transform_1, window_bounds = array<i64: 32, 96>}, {pipeline_mode = #tpu.pipeline_mode<synchronous>, transform_indices = @transform_2, window_bounds = array<i64: 32, 32>}, {pipeline_mode = #tpu.pipeline_mode<synchronous>, transform_indices = @transform_3, window_bounds = array<i64: 1, 32>}, {transform_indices = @transform_4, window_bounds = array<i64: 1, 128, 32>}]} {
    %c0 = arith.constant 0 : index
    %c0_0 = arith.constant 0 : index
    %c0_1 = arith.constant 0 : index
    %0 = vector.load %arg1[%c0, %c0_0, %c0_1] : memref<1x128x32xbf16, #tpu.memory_space<vmem>>, vector<1x128x32xbf16>
    %1 = vector.shape_cast %0 : vector<1x128x32xbf16> to vector<128x32xbf16>
    %c0_2 = arith.constant 0 : index
    %c0_3 = arith.constant 0 : index
    %2 = vector.load %arg2[%c0_2, %c0_3] : memref<32x96xbf16, #tpu.memory_space<vmem>>, vector<32x96xbf16>
    %cst = arith.constant dense<0.000000e+00> : vector<128x96xf32>
    %3 = tpu.matmul %1, %2, %cst {dimension_numbers = #tpu.dot_dimension_numbers<[1], [0], [0], [1], [0, 0, 1, 1], [], []>} : vector<128x32xbf16>, vector<32x96xbf16>, vector<128x96xf32> -> vector<128x96xf32>
    %4 = vector.extract_strided_slice %3 {offsets = [0, 0], sizes = [128, 32], strides = [1, 1]} : vector<128x96xf32> to vector<128x32xf32>
    %cst_4 = arith.constant 5.000000e-01 : f32
    %5 = vector.broadcast %cst_4 : f32 to vector<128x32xf32>
    %6 = arith.mulf %4, %5 : vector<128x32xf32>
    %7 = arith.truncf %6 : vector<128x32xf32> to vector<128x32xbf16>
    %c0_5 = arith.constant 0 : index
    %c0_6 = arith.constant 0 : index
    %8 = vector.load %arg6[%c0_5, %c0_6] : memref<128x96xbf16, #tpu.memory_space<vmem>>, vector<128x32xbf16>
    tpu.vector_store %arg6[%c0_5, %c0_6], %7 {strides = array<i32>} : memref<128x96xbf16, #tpu.memory_space<vmem>>, vector<128x32xbf16>,
    %9 = vector.extract_strided_slice %3 {offsets = [0, 32], sizes = [128, 64], strides = [1, 1]} : vector<128x96xf32> to vector<128x64xf32>
    %10 = arith.truncf %9 : vector<128x64xf32> to vector<128x64xbf16>
    %c0_7 = arith.constant 0 : index
    %c32 = arith.constant 32 : index
    %11 = vector.load %arg6[%c0_7, %c32] : memref<128x96xbf16, #tpu.memory_space<vmem>>, vector<128x64xbf16>
    tpu.vector_store %arg6[%c0_7, %c32], %10 {strides = array<i32>} : memref<128x96xbf16, #tpu.memory_space<vmem>>, vector<128x64xbf16>,
    %12 = tpu.iota {dimensions = array<i32: 1>} : vector<1x128xi32>
    %c8_i32 = arith.constant 8 : i32
    %13 = vector.broadcast %c8_i32 : i32 to vector<1x128xi32>
    %14 = arith.cmpi slt, %12, %13 : vector<1x128xi32>
    %c0_8 = arith.constant 0 : index
    %c0_9 = arith.constant 0 : index
    %15 = vector.load %arg6[%c0_8, %c0_9] : memref<128x96xbf16, #tpu.memory_space<vmem>>, vector<128x4xbf16>
    %c0_10 = arith.constant 0 : index
    %c32_11 = arith.constant 32 : index
    %16 = vector.load %arg6[%c0_10, %c32_11] : memref<128x96xbf16, #tpu.memory_space<vmem>>, vector<128x4xbf16>
    %c0_12 = arith.constant 0 : index
    %c64 = arith.constant 64 : index
    %17 = vector.load %arg6[%c0_12, %c64] : memref<128x96xbf16, #tpu.memory_space<vmem>>, vector<128x4xbf16>
    %cst_13 = arith.constant dense<0.000000e+00> : vector<128x128xf32>
    %18 = tpu.matmul %15, %16, %cst_13 {dimension_numbers = #tpu.dot_dimension_numbers<[1], [1], [0], [0], [0, 0, 1, 0], [], []>} : vector<128x4xbf16>, vector<128x4xbf16>, vector<128x128xf32> -> vector<128x128xf32>
    %cst_14 = arith.constant -1.000000e+30 : f32
    %19 = vector.shape_cast %14 : vector<1x128xi1> to vector<1x128xi1>
    %20 = vector.broadcast %19 : vector<1x128xi1> to vector<128x128xi1>
    %21 = vector.broadcast %cst_14 : f32 to vector<128x128xf32>
    %22 = arith.select %20, %18, %21 : vector<128x128xi1>, vector<128x128xf32>
    %cst_15 = arith.constant dense<0xFF800000> : vector<128xf32>
    %23 = vector.multi_reduction <maximumf>, %22, %cst_15 [1] : vector<128x128xf32> to vector<128xf32>
    %24 = vector.shape_cast %23 : vector<128xf32> to vector<128x1xf32>
    %25 = vector.broadcast %24 : vector<128x1xf32> to vector<128x128xf32>
    %26 = arith.subf %22, %25 : vector<128x128xf32>
    %27 = math.exp %26 : vector<128x128xf32>
    %cst_16 = arith.constant dense<0.000000e+00> : vector<128xf32>
    %28 = vector.multi_reduction <add>, %27, %cst_16 [1] : vector<128x128xf32> to vector<128xf32>
    %29 = vector.shape_cast %28 : vector<128xf32> to vector<128x1xf32>
    %30 = tpu.reciprocal %29 {approx = true} : vector<128x1xf32> -> vector<128x1xf32>
    %31 = vector.broadcast %30 : vector<128x1xf32> to vector<128x128xf32>
    %32 = arith.mulf %27, %31 : vector<128x128xf32>
    %33 = arith.truncf %32 : vector<128x128xf32> to vector<128x128xbf16>
    %cst_17 = arith.constant dense<0.000000e+00> : vector<128x4xf32>
    %34 = tpu.matmul %33, %17, %cst_17 {dimension_numbers = #tpu.dot_dimension_numbers<[1], [0], [0], [1], [0, 0, 1, 1], [], []>} : vector<128x128xbf16>, vector<128x4xbf16>, vector<128x4xf32> -> vector<128x4xf32>
    %35 = arith.truncf %34 : vector<128x4xf32> to vector<128x4xbf16>
    %c0_18 = arith.constant 0 : index
    %c4 = arith.constant 4 : index
    %36 = vector.load %arg6[%c0_18, %c4] : memref<128x96xbf16, #tpu.memory_space<vmem>>, vector<128x4xbf16>
    %c0_19 = arith.constant 0 : index
    %c36 = arith.constant 36 : index
    %37 = vector.load %arg6[%c0_19, %c36] : memref<128x96xbf16, #tpu.memory_space<vmem>>, vector<128x4xbf16>
    %c0_20 = arith.constant 0 : index
    %c68 = arith.constant 68 : index
    %38 = vector.load %arg6[%c0_20, %c68] : memref<128x96xbf16, #tpu.memory_space<vmem>>, vector<128x4xbf16>
    %cst_21 = arith.constant dense<0.000000e+00> : vector<128x128xf32>
    %39 = tpu.matmul %36, %37, %cst_21 {dimension_numbers = #tpu.dot_dimension_numbers<[1], [1], [0], [0], [0, 0, 1, 0], [], []>} : vector<128x4xbf16>, vector<128x4xbf16>, vector<128x128xf32> -> vector<128x128xf32>
    %cst_22 = arith.constant -1.000000e+30 : f32
    %40 = vector.shape_cast %14 : vector<1x128xi1> to vector<1x128xi1>
    %41 = vector.broadcast %40 : vector<1x128xi1> to vector<128x128xi1>
    %42 = vector.broadcast %cst_22 : f32 to vector<128x128xf32>
    %43 = arith.select %41, %39, %42 : vector<128x128xi1>, vector<128x128xf32>
    %cst_23 = arith.constant dense<0xFF800000> : vector<128xf32>
    %44 = vector.multi_reduction <maximumf>, %43, %cst_23 [1] : vector<128x128xf32> to vector<128xf32>
    %45 = vector.shape_cast %44 : vector<128xf32> to vector<128x1xf32>
    %46 = vector.broadcast %45 : vector<128x1xf32> to vector<128x128xf32>
    %47 = arith.subf %43, %46 : vector<128x128xf32>
    %48 = math.exp %47 : vector<128x128xf32>
    %cst_24 = arith.constant dense<0.000000e+00> : vector<128xf32>
    %49 = vector.multi_reduction <add>, %48, %cst_24 [1] : vector<128x128xf32> to vector<128xf32>
    %50 = vector.shape_cast %49 : vector<128xf32> to vector<128x1xf32>
    %51 = tpu.reciprocal %50 {approx = true} : vector<128x1xf32> -> vector<128x1xf32>
    %52 = vector.broadcast %51 : vector<128x1xf32> to vector<128x128xf32>
    %53 = arith.mulf %48, %52 : vector<128x128xf32>
    %54 = arith.truncf %53 : vector<128x128xf32> to vector<128x128xbf16>
    %cst_25 = arith.constant dense<0.000000e+00> : vector<128x4xf32>
    %55 = tpu.matmul %54, %38, %cst_25 {dimension_numbers = #tpu.dot_dimension_numbers<[1], [0], [0], [1], [0, 0, 1, 1], [], []>} : vector<128x128xbf16>, vector<128x4xbf16>, vector<128x4xf32> -> vector<128x4xf32>
    %56 = arith.truncf %55 : vector<128x4xf32> to vector<128x4xbf16>
    %c0_26 = arith.constant 0 : index
    %c8 = arith.constant 8 : index
    %57 = vector.load %arg6[%c0_26, %c8] : memref<128x96xbf16, #tpu.memory_space<vmem>>, vector<128x4xbf16>
    %c0_27 = arith.constant 0 : index
    %c40 = arith.constant 40 : index
    %58 = vector.load %arg6[%c0_27, %c40] : memref<128x96xbf16, #tpu.memory_space<vmem>>, vector<128x4xbf16>
    %c0_28 = arith.constant 0 : index
    %c72 = arith.constant 72 : index
    %59 = vector.load %arg6[%c0_28, %c72] : memref<128x96xbf16, #tpu.memory_space<vmem>>, vector<128x4xbf16>
    %cst_29 = arith.constant dense<0.000000e+00> : vector<128x128xf32>
    %60 = tpu.matmul %57, %58, %cst_29 {dimension_numbers = #tpu.dot_dimension_numbers<[1], [1], [0], [0], [0, 0, 1, 0], [], []>} : vector<128x4xbf16>, vector<128x4xbf16>, vector<128x128xf32> -> vector<128x128xf32>
    %cst_30 = arith.constant -1.000000e+30 : f32
    %61 = vector.shape_cast %14 : vector<1x128xi1> to vector<1x128xi1>
    %62 = vector.broadcast %61 : vector<1x128xi1> to vector<128x128xi1>
    %63 = vector.broadcast %cst_30 : f32 to vector<128x128xf32>
    %64 = arith.select %62, %60, %63 : vector<128x128xi1>, vector<128x128xf32>
    %cst_31 = arith.constant dense<0xFF800000> : vector<128xf32>
    %65 = vector.multi_reduction <maximumf>, %64, %cst_31 [1] : vector<128x128xf32> to vector<128xf32>
    %66 = vector.shape_cast %65 : vector<128xf32> to vector<128x1xf32>
    %67 = vector.broadcast %66 : vector<128x1xf32> to vector<128x128xf32>
    %68 = arith.subf %64, %67 : vector<128x128xf32>
    %69 = math.exp %68 : vector<128x128xf32>
    %cst_32 = arith.constant dense<0.000000e+00> : vector<128xf32>
    %70 = vector.multi_reduction <add>, %69, %cst_32 [1] : vector<128x128xf32> to vector<128xf32>
    %71 = vector.shape_cast %70 : vector<128xf32> to vector<128x1xf32>
    %72 = tpu.reciprocal %71 {approx = true} : vector<128x1xf32> -> vector<128x1xf32>
    %73 = vector.broadcast %72 : vector<128x1xf32> to vector<128x128xf32>
    %74 = arith.mulf %69, %73 : vector<128x128xf32>
    %75 = arith.truncf %74 : vector<128x128xf32> to vector<128x128xbf16>
    %cst_33 = arith.constant dense<0.000000e+00> : vector<128x4xf32>
    %76 = tpu.matmul %75, %59, %cst_33 {dimension_numbers = #tpu.dot_dimension_numbers<[1], [0], [0], [1], [0, 0, 1, 1], [], []>} : vector<128x128xbf16>, vector<128x4xbf16>, vector<128x4xf32> -> vector<128x4xf32>
    %77 = arith.truncf %76 : vector<128x4xf32> to vector<128x4xbf16>
    %c0_34 = arith.constant 0 : index
    %c12 = arith.constant 12 : index
    %78 = vector.load %arg6[%c0_34, %c12] : memref<128x96xbf16, #tpu.memory_space<vmem>>, vector<128x4xbf16>
    %c0_35 = arith.constant 0 : index
    %c44 = arith.constant 44 : index
    %79 = vector.load %arg6[%c0_35, %c44] : memref<128x96xbf16, #tpu.memory_space<vmem>>, vector<128x4xbf16>
    %c0_36 = arith.constant 0 : index
    %c76 = arith.constant 76 : index
    %80 = vector.load %arg6[%c0_36, %c76] : memref<128x96xbf16, #tpu.memory_space<vmem>>, vector<128x4xbf16>
    %cst_37 = arith.constant dense<0.000000e+00> : vector<128x128xf32>
    %81 = tpu.matmul %78, %79, %cst_37 {dimension_numbers = #tpu.dot_dimension_numbers<[1], [1], [0], [0], [0, 0, 1, 0], [], []>} : vector<128x4xbf16>, vector<128x4xbf16>, vector<128x128xf32> -> vector<128x128xf32>
    %cst_38 = arith.constant -1.000000e+30 : f32
    %82 = vector.shape_cast %14 : vector<1x128xi1> to vector<1x128xi1>
    %83 = vector.broadcast %82 : vector<1x128xi1> to vector<128x128xi1>
    %84 = vector.broadcast %cst_38 : f32 to vector<128x128xf32>
    %85 = arith.select %83, %81, %84 : vector<128x128xi1>, vector<128x128xf32>
    %cst_39 = arith.constant dense<0xFF800000> : vector<128xf32>
    %86 = vector.multi_reduction <maximumf>, %85, %cst_39 [1] : vector<128x128xf32> to vector<128xf32>
    %87 = vector.shape_cast %86 : vector<128xf32> to vector<128x1xf32>
    %88 = vector.broadcast %87 : vector<128x1xf32> to vector<128x128xf32>
    %89 = arith.subf %85, %88 : vector<128x128xf32>
    %90 = math.exp %89 : vector<128x128xf32>
    %cst_40 = arith.constant dense<0.000000e+00> : vector<128xf32>
    %91 = vector.multi_reduction <add>, %90, %cst_40 [1] : vector<128x128xf32> to vector<128xf32>
    %92 = vector.shape_cast %91 : vector<128xf32> to vector<128x1xf32>
    %93 = tpu.reciprocal %92 {approx = true} : vector<128x1xf32> -> vector<128x1xf32>
    %94 = vector.broadcast %93 : vector<128x1xf32> to vector<128x128xf32>
    %95 = arith.mulf %90, %94 : vector<128x128xf32>
    %96 = arith.truncf %95 : vector<128x128xf32> to vector<128x128xbf16>
    %cst_41 = arith.constant dense<0.000000e+00> : vector<128x4xf32>
    %97 = tpu.matmul %96, %80, %cst_41 {dimension_numbers = #tpu.dot_dimension_numbers<[1], [0], [0], [1], [0, 0, 1, 1], [], []>} : vector<128x128xbf16>, vector<128x4xbf16>, vector<128x4xf32> -> vector<128x4xf32>
    %98 = arith.truncf %97 : vector<128x4xf32> to vector<128x4xbf16>
    %c0_42 = arith.constant 0 : index
    %c16 = arith.constant 16 : index
    %99 = vector.load %arg6[%c0_42, %c16] : memref<128x96xbf16, #tpu.memory_space<vmem>>, vector<128x4xbf16>
    %c0_43 = arith.constant 0 : index
    %c48 = arith.constant 48 : index
    %100 = vector.load %arg6[%c0_43, %c48] : memref<128x96xbf16, #tpu.memory_space<vmem>>, vector<128x4xbf16>
    %c0_44 = arith.constant 0 : index
    %c80 = arith.constant 80 : index
    %101 = vector.load %arg6[%c0_44, %c80] : memref<128x96xbf16, #tpu.memory_space<vmem>>, vector<128x4xbf16>
    %cst_45 = arith.constant dense<0.000000e+00> : vector<128x128xf32>
    %102 = tpu.matmul %99, %100, %cst_45 {dimension_numbers = #tpu.dot_dimension_numbers<[1], [1], [0], [0], [0, 0, 1, 0], [], []>} : vector<128x4xbf16>, vector<128x4xbf16>, vector<128x128xf32> -> vector<128x128xf32>
    %cst_46 = arith.constant -1.000000e+30 : f32
    %103 = vector.shape_cast %14 : vector<1x128xi1> to vector<1x128xi1>
    %104 = vector.broadcast %103 : vector<1x128xi1> to vector<128x128xi1>
    %105 = vector.broadcast %cst_46 : f32 to vector<128x128xf32>
    %106 = arith.select %104, %102, %105 : vector<128x128xi1>, vector<128x128xf32>
    %cst_47 = arith.constant dense<0xFF800000> : vector<128xf32>
    %107 = vector.multi_reduction <maximumf>, %106, %cst_47 [1] : vector<128x128xf32> to vector<128xf32>
    %108 = vector.shape_cast %107 : vector<128xf32> to vector<128x1xf32>
    %109 = vector.broadcast %108 : vector<128x1xf32> to vector<128x128xf32>
    %110 = arith.subf %106, %109 : vector<128x128xf32>
    %111 = math.exp %110 : vector<128x128xf32>
    %cst_48 = arith.constant dense<0.000000e+00> : vector<128xf32>
    %112 = vector.multi_reduction <add>, %111, %cst_48 [1] : vector<128x128xf32> to vector<128xf32>
    %113 = vector.shape_cast %112 : vector<128xf32> to vector<128x1xf32>
    %114 = tpu.reciprocal %113 {approx = true} : vector<128x1xf32> -> vector<128x1xf32>
    %115 = vector.broadcast %114 : vector<128x1xf32> to vector<128x128xf32>
    %116 = arith.mulf %111, %115 : vector<128x128xf32>
    %117 = arith.truncf %116 : vector<128x128xf32> to vector<128x128xbf16>
    %cst_49 = arith.constant dense<0.000000e+00> : vector<128x4xf32>
    %118 = tpu.matmul %117, %101, %cst_49 {dimension_numbers = #tpu.dot_dimension_numbers<[1], [0], [0], [1], [0, 0, 1, 1], [], []>} : vector<128x128xbf16>, vector<128x4xbf16>, vector<128x4xf32> -> vector<128x4xf32>
    %119 = arith.truncf %118 : vector<128x4xf32> to vector<128x4xbf16>
    %c0_50 = arith.constant 0 : index
    %c20 = arith.constant 20 : index
    %120 = vector.load %arg6[%c0_50, %c20] : memref<128x96xbf16, #tpu.memory_space<vmem>>, vector<128x4xbf16>
    %c0_51 = arith.constant 0 : index
    %c52 = arith.constant 52 : index
    %121 = vector.load %arg6[%c0_51, %c52] : memref<128x96xbf16, #tpu.memory_space<vmem>>, vector<128x4xbf16>
    %c0_52 = arith.constant 0 : index
    %c84 = arith.constant 84 : index
    %122 = vector.load %arg6[%c0_52, %c84] : memref<128x96xbf16, #tpu.memory_space<vmem>>, vector<128x4xbf16>
    %cst_53 = arith.constant dense<0.000000e+00> : vector<128x128xf32>
    %123 = tpu.matmul %120, %121, %cst_53 {dimension_numbers = #tpu.dot_dimension_numbers<[1], [1], [0], [0], [0, 0, 1, 0], [], []>} : vector<128x4xbf16>, vector<128x4xbf16>, vector<128x128xf32> -> vector<128x128xf32>
    %cst_54 = arith.constant -1.000000e+30 : f32
    %124 = vector.shape_cast %14 : vector<1x128xi1> to vector<1x128xi1>
    %125 = vector.broadcast %124 : vector<1x128xi1> to vector<128x128xi1>
    %126 = vector.broadcast %cst_54 : f32 to vector<128x128xf32>
    %127 = arith.select %125, %123, %126 : vector<128x128xi1>, vector<128x128xf32>
    %cst_55 = arith.constant dense<0xFF800000> : vector<128xf32>
    %128 = vector.multi_reduction <maximumf>, %127, %cst_55 [1] : vector<128x128xf32> to vector<128xf32>
    %129 = vector.shape_cast %128 : vector<128xf32> to vector<128x1xf32>
    %130 = vector.broadcast %129 : vector<128x1xf32> to vector<128x128xf32>
    %131 = arith.subf %127, %130 : vector<128x128xf32>
    %132 = math.exp %131 : vector<128x128xf32>
    %cst_56 = arith.constant dense<0.000000e+00> : vector<128xf32>
    %133 = vector.multi_reduction <add>, %132, %cst_56 [1] : vector<128x128xf32> to vector<128xf32>
    %134 = vector.shape_cast %133 : vector<128xf32> to vector<128x1xf32>
    %135 = tpu.reciprocal %134 {approx = true} : vector<128x1xf32> -> vector<128x1xf32>
    %136 = vector.broadcast %135 : vector<128x1xf32> to vector<128x128xf32>
    %137 = arith.mulf %132, %136 : vector<128x128xf32>
    %138 = arith.truncf %137 : vector<128x128xf32> to vector<128x128xbf16>
    %cst_57 = arith.constant dense<0.000000e+00> : vector<128x4xf32>
    %139 = tpu.matmul %138, %122, %cst_57 {dimension_numbers = #tpu.dot_dimension_numbers<[1], [0], [0], [1], [0, 0, 1, 1], [], []>} : vector<128x128xbf16>, vector<128x4xbf16>, vector<128x4xf32> -> vector<128x4xf32>
    %140 = arith.truncf %139 : vector<128x4xf32> to vector<128x4xbf16>
    %c0_58 = arith.constant 0 : index
    %c24 = arith.constant 24 : index
    %141 = vector.load %arg6[%c0_58, %c24] : memref<128x96xbf16, #tpu.memory_space<vmem>>, vector<128x4xbf16>
    %c0_59 = arith.constant 0 : index
    %c56 = arith.constant 56 : index
    %142 = vector.load %arg6[%c0_59, %c56] : memref<128x96xbf16, #tpu.memory_space<vmem>>, vector<128x4xbf16>
    %c0_60 = arith.constant 0 : index
    %c88 = arith.constant 88 : index
    %143 = vector.load %arg6[%c0_60, %c88] : memref<128x96xbf16, #tpu.memory_space<vmem>>, vector<128x4xbf16>
    %cst_61 = arith.constant dense<0.000000e+00> : vector<128x128xf32>
    %144 = tpu.matmul %141, %142, %cst_61 {dimension_numbers = #tpu.dot_dimension_numbers<[1], [1], [0], [0], [0, 0, 1, 0], [], []>} : vector<128x4xbf16>, vector<128x4xbf16>, vector<128x128xf32> -> vector<128x128xf32>
    %cst_62 = arith.constant -1.000000e+30 : f32
    %145 = vector.shape_cast %14 : vector<1x128xi1> to vector<1x128xi1>
    %146 = vector.broadcast %145 : vector<1x128xi1> to vector<128x128xi1>
    %147 = vector.broadcast %cst_62 : f32 to vector<128x128xf32>
    %148 = arith.select %146, %144, %147 : vector<128x128xi1>, vector<128x128xf32>
    %cst_63 = arith.constant dense<0xFF800000> : vector<128xf32>
    %149 = vector.multi_reduction <maximumf>, %148, %cst_63 [1] : vector<128x128xf32> to vector<128xf32>
    %150 = vector.shape_cast %149 : vector<128xf32> to vector<128x1xf32>
    %151 = vector.broadcast %150 : vector<128x1xf32> to vector<128x128xf32>
    %152 = arith.subf %148, %151 : vector<128x128xf32>
    %153 = math.exp %152 : vector<128x128xf32>
    %cst_64 = arith.constant dense<0.000000e+00> : vector<128xf32>
    %154 = vector.multi_reduction <add>, %153, %cst_64 [1] : vector<128x128xf32> to vector<128xf32>
    %155 = vector.shape_cast %154 : vector<128xf32> to vector<128x1xf32>
    %156 = tpu.reciprocal %155 {approx = true} : vector<128x1xf32> -> vector<128x1xf32>
    %157 = vector.broadcast %156 : vector<128x1xf32> to vector<128x128xf32>
    %158 = arith.mulf %153, %157 : vector<128x128xf32>
    %159 = arith.truncf %158 : vector<128x128xf32> to vector<128x128xbf16>
    %cst_65 = arith.constant dense<0.000000e+00> : vector<128x4xf32>
    %160 = tpu.matmul %159, %143, %cst_65 {dimension_numbers = #tpu.dot_dimension_numbers<[1], [0], [0], [1], [0, 0, 1, 1], [], []>} : vector<128x128xbf16>, vector<128x4xbf16>, vector<128x4xf32> -> vector<128x4xf32>
    %161 = arith.truncf %160 : vector<128x4xf32> to vector<128x4xbf16>
    %c0_66 = arith.constant 0 : index
    %c28 = arith.constant 28 : index
    %162 = vector.load %arg6[%c0_66, %c28] : memref<128x96xbf16, #tpu.memory_space<vmem>>, vector<128x4xbf16>
    %c0_67 = arith.constant 0 : index
    %c60 = arith.constant 60 : index
    %163 = vector.load %arg6[%c0_67, %c60] : memref<128x96xbf16, #tpu.memory_space<vmem>>, vector<128x4xbf16>
    %c0_68 = arith.constant 0 : index
    %c92 = arith.constant 92 : index
    %164 = vector.load %arg6[%c0_68, %c92] : memref<128x96xbf16, #tpu.memory_space<vmem>>, vector<128x4xbf16>
    %cst_69 = arith.constant dense<0.000000e+00> : vector<128x128xf32>
    %165 = tpu.matmul %162, %163, %cst_69 {dimension_numbers = #tpu.dot_dimension_numbers<[1], [1], [0], [0], [0, 0, 1, 0], [], []>} : vector<128x4xbf16>, vector<128x4xbf16>, vector<128x128xf32> -> vector<128x128xf32>
    %cst_70 = arith.constant -1.000000e+30 : f32
    %166 = vector.shape_cast %14 : vector<1x128xi1> to vector<1x128xi1>
    %167 = vector.broadcast %166 : vector<1x128xi1> to vector<128x128xi1>
    %168 = vector.broadcast %cst_70 : f32 to vector<128x128xf32>
    %169 = arith.select %167, %165, %168 : vector<128x128xi1>, vector<128x128xf32>
    %cst_71 = arith.constant dense<0xFF800000> : vector<128xf32>
    %170 = vector.multi_reduction <maximumf>, %169, %cst_71 [1] : vector<128x128xf32> to vector<128xf32>
    %171 = vector.shape_cast %170 : vector<128xf32> to vector<128x1xf32>
    %172 = vector.broadcast %171 : vector<128x1xf32> to vector<128x128xf32>
    %173 = arith.subf %169, %172 : vector<128x128xf32>
    %174 = math.exp %173 : vector<128x128xf32>
    %cst_72 = arith.constant dense<0.000000e+00> : vector<128xf32>
    %175 = vector.multi_reduction <add>, %174, %cst_72 [1] : vector<128x128xf32> to vector<128xf32>
    %176 = vector.shape_cast %175 : vector<128xf32> to vector<128x1xf32>
    %177 = tpu.reciprocal %176 {approx = true} : vector<128x1xf32> -> vector<128x1xf32>
    %178 = vector.broadcast %177 : vector<128x1xf32> to vector<128x128xf32>
    %179 = arith.mulf %174, %178 : vector<128x128xf32>
    %180 = arith.truncf %179 : vector<128x128xf32> to vector<128x128xbf16>
    %cst_73 = arith.constant dense<0.000000e+00> : vector<128x4xf32>
    %181 = tpu.matmul %180, %164, %cst_73 {dimension_numbers = #tpu.dot_dimension_numbers<[1], [0], [0], [1], [0, 0, 1, 1], [], []>} : vector<128x128xbf16>, vector<128x4xbf16>, vector<128x4xf32> -> vector<128x4xf32>
    %182 = arith.truncf %181 : vector<128x4xf32> to vector<128x4xbf16>
    %183 = tpu.concatenate %35, %56, %77, %98, %119, %140, %161, %182 in 1 : vector<128x4xbf16>, vector<128x4xbf16>, vector<128x4xbf16>, vector<128x4xbf16>, vector<128x4xbf16>, vector<128x4xbf16>, vector<128x4xbf16>, vector<128x4xbf16> -> vector<128x32xbf16>
    %c0_74 = arith.constant 0 : index
    %c0_75 = arith.constant 0 : index
    %184 = vector.load %arg3[%c0_74, %c0_75] : memref<32x32xbf16, #tpu.memory_space<vmem>>, vector<32x32xbf16>
    %cst_76 = arith.constant dense<0.000000e+00> : vector<128x32xf32>
    %185 = tpu.matmul %183, %184, %cst_76 {dimension_numbers = #tpu.dot_dimension_numbers<[1], [0], [0], [1], [0, 0, 1, 1], [], []>} : vector<128x32xbf16>, vector<32x32xbf16>, vector<128x32xf32> -> vector<128x32xf32>
    %c0_77 = arith.constant 0 : index
    %c0_78 = arith.constant 0 : index
    %186 = vector.load %arg4[%c0_77, %c0_78] : memref<1x32xf32, #tpu.memory_space<vmem>>, vector<1x32xf32>
    %187 = vector.broadcast %186 : vector<1x32xf32> to vector<128x32xf32>
    %188 = arith.addf %185, %187 : vector<128x32xf32>
    %c0_79 = arith.constant 0 : index
    %c0_80 = arith.constant 0 : index
    %c0_81 = arith.constant 0 : index
    %189 = vector.load %arg5[%c0_79, %c0_80, %c0_81] : memref<1x128x32xf32, #tpu.memory_space<vmem>>, vector<1x128x32xf32>
    %190 = vector.shape_cast %189 : vector<1x128x32xf32> to vector<128x32xf32>
    %191 = vector.shape_cast %188 : vector<128x32xf32> to vector<1x128x32xf32>
    tpu.vector_store %arg5[%c0_79, %c0_80, %c0_81], %191 {strides = array<i32>} : memref<1x128x32xf32, #tpu.memory_space<vmem>>, vector<1x128x32xf32>,
    return
  }
  func.func @transform_0(%arg0: i32) -> (i32, i32, i32) {
    %c0_i32 = arith.constant 0 : i32
    %c0_i32_0 = arith.constant 0 : i32
    %c0_i32_1 = arith.constant 0 : i32
    return %arg0, %c0_i32, %c0_i32_0 : i32, i32, i32
  }
  func.func @transform_1(%arg0: i32) -> (i32, i32) {
    %c0_i32 = arith.constant 0 : i32
    %c0_i32_0 = arith.constant 0 : i32
    %c0_i32_1 = arith.constant 0 : i32
    return %c0_i32, %c0_i32_0 : i32, i32
  }
  func.func @transform_2(%arg0: i32) -> (i32, i32) {
    %c0_i32 = arith.constant 0 : i32
    %c0_i32_0 = arith.constant 0 : i32
    %c0_i32_1 = arith.constant 0 : i32
    return %c0_i32, %c0_i32_0 : i32, i32
  }
  func.func @transform_3(%arg0: i32) -> (i32, i32) {
    %c0_i32 = arith.constant 0 : i32
    %c0_i32_0 = arith.constant 0 : i32
    %c0_i32_1 = arith.constant 0 : i32
    return %c0_i32, %c0_i32_0 : i32, i32
  }
  func.func @transform_4(%arg0: i32) -> (i32, i32, i32) {
    %c0_i32 = arith.constant 0 : i32
    %c0_i32_0 = arith.constant 0 : i32
    %c0_i32_1 = arith.constant 0 : i32
    return %arg0, %c0_i32, %c0_i32_0 : i32, i32, i32
  }
}

</mosaic_0001>

<llo_original>
// kernel: tpu_custom_call.1
$region0: #{tpu_custom_call.1}
  #allocation0 [shape = 'u32[]', space=smem, size = 0x4, offset = 0x4, fixed_abs, tag = 'smem constant byte address 0x4 - core index']
  #allocation1 [shape = 'u32[144,128]{1,0:T(1,128)}', space=vmem, size = 0x12000, scoped, tag = 'internal scratch']
  #allocation2 [shape = 'bf16[128,96]{1,0:T(16,128)(2,1)}', space=vmem, size = 0x8000, scoped, tag = 'scratch operand']
  %s0 = inlined_call_operand.vmem [shape: bf16[2,128,32], index: 0, kind: input, shape index: {}]
  %s1 = inlined_call_operand.vmem [shape: bf16[32,96], index: 1, kind: input, shape index: {}]
  %s2 = inlined_call_operand.vmem [shape: bf16[32,32], index: 2, kind: input, shape index: {}]
  %s3 = inlined_call_operand.vmem [shape: f32[1,32], index: 3, kind: input, shape index: {}]
  %s4 = inlined_call_operand.vmem [shape: f32[2,128,32], index: 4, kind: output, shape index: {}]
  %s5 = sld [smem:[#allocation0]]
  $region49: #{tpu_custom_call.1} parent=0
    _
  %s7 = ssub.s32 1, %s5
  %s8 = scalar_select 0, %s7, %s5
  loop: start=0, step=1, limit=4
  $region2: #{tpu_custom_call.1} parent=0 // loop_pre_header
    _
  $region3: #{tpu_custom_call.1} parent=0 // loop_header
    %s10 = sphi 0, %s14
    %p11 = scmp.ge.s32.totalorder %s10, 4
    %s20 = sphi 0, %s22
    %s23 = sphi 0, %s20
    %s24 = sphi 0, %s23
    %s40 = sphi 0, %s24
    %s44 = sphi 0, %s44
    %s46 = sphi 0, %s44
    %s47 = sphi 0, %s46
    %s61 = sphi 0, %s47
    %s65 = sphi 0, %s65
    %s67 = sphi 0, %s65
    %s68 = sphi 0, %s67
    %s82 = sphi 0, %s68
    %s86 = sphi 0, %s86
    %s88 = sphi 0, %s86
    %s89 = sphi 0, %s88
    %s103 = sphi 0, %s89
    %s109 = sphi 0, %s111
    %s112 = sphi 0, %s109
    %s113 = sphi 0, %s112
    %s129 = sphi 0, %s113
  $region4: #{tpu_custom_call.1} parent=0 // loop_header_branch
    %13 = sbr.rel (%p11) target = $region8
  $region5: #{tpu_custom_call.1} parent=0 // loop_body
    %s15 = ssub.s32 %s10, 1
    %s16 = ssub.s32 %s10, 2
    %s17 = sadd.s32 %s10, 1
    %s18 = ssub.s32 %s10, %s17
    %p19 = scmp.eq.s32.totalorder %s18, 0
    %s21 = sadd.s32 %s20, 1
    %s22 = scalar_select %p19, %s20, %s21
    %p25 = pneg %p19
    %p26 = scmp.eq.s32.totalorder %s10, 1
    %p27 = por %p25, %p26
    %p28 = scmp.ne.s32.totalorder %s20, %s23
    %p29 = scmp.eq.s32.totalorder %s10, 0
    %p30 = por %p28, %p29
    %p31 = scmp.ne.s32.totalorder %s20, %s23
    %p32 = scmp.eq.s32.totalorder %s15, 1
    %p33 = por %p31, %p32
    %p34 = scmp.ne.s32.totalorder %s23, %s24
    %p35 = scmp.eq.s32.totalorder %s15, 0
    %p36 = por %p34, %p35
    %p37 = scmp.ne.s32.totalorder %s23, %s24
    %p38 = scmp.eq.s32.totalorder %s16, 1
    %p39 = por %p37, %p38
    %p41 = scmp.ne.s32.totalorder %s24, %s40
    %p42 = scmp.eq.s32.totalorder %s16, 0
    %p43 = por %p41, %p42
    %s45 = sadd.s32 %s44, 1
    %p48 = scmp.eq.s32.totalorder %s10, 1
    %p49 = scmp.ne.s32.totalorder %s44, %s46
    %p50 = scmp.eq.s32.totalorder %s10, 0
    %p51 = por %p49, %p50
    %p52 = scmp.ne.s32.totalorder %s44, %s46
    %p53 = scmp.eq.s32.totalorder %s15, 1
    %p54 = por %p52, %p53
    %p55 = scmp.ne.s32.totalorder %s46, %s47
    %p56 = scmp.eq.s32.totalorder %s15, 0
    %p57 = por %p55, %p56
    %p58 = scmp.ne.s32.totalorder %s46, %s47
    %p59 = scmp.eq.s32.totalorder %s16, 1
    %p60 = por %p58, %p59
    %p62 = scmp.ne.s32.totalorder %s47, %s61
    %p63 = scmp.eq.s32.totalorder %s16, 0
    %p64 = por %p62, %p63
    %s66 = sadd.s32 %s65, 1
    %p69 = scmp.eq.s32.totalorder %s10, 1
    %p70 = scmp.ne.s32.totalorder %s65, %s67
    %p71 = scmp.eq.s32.totalorder %s10, 0
    %p72 = por %p70, %p71
    %p73 = scmp.ne.s32.totalorder %s65, %s67
    %p74 = scmp.eq.s32.totalorder %s15, 1
    %p75 = por %p73, %p74
    %p76 = scmp.ne.s32.totalorder %s67, %s68
    %p77 = scmp.eq.s32.totalorder %s15, 0
    %p78 = por %p76, %p77
    %p79 = scmp.ne.s32.totalorder %s67, %s68
    %p80 = scmp.eq.s32.totalorder %s16, 1
    %p81 = por %p79, %p80
    %p83 = scmp.ne.s32.totalorder %s68, %s82
    %p84 = scmp.eq.s32.totalorder %s16, 0
    %p85 = por %p83, %p84
    %s87 = sadd.s32 %s86, 1
    %p90 = scmp.eq.s32.totalorder %s10, 1
    %p91 = scmp.ne.s32.totalorder %s86, %s88
    %p92 = scmp.eq.s32.totalorder %s10, 0
    %p93 = por %p91, %p92
    %p94 = scmp.ne.s32.totalorder %s86, %s88
    %p95 = scmp.eq.s32.totalorder %s15, 1
    %p96 = por %p94, %p95
    %p97 = scmp.ne.s32.totalorder %s88, %s89
    %p98 = scmp.eq.s32.totalorder %s15, 0
    %p99 = por %p97, %p98
    %p100 = scmp.ne.s32.totalorder %s88, %s89
    %p101 = scmp.eq.s32.totalorder %s16, 1
    %p102 = por %p100, %p101
    %p104 = scmp.ne.s32.totalorder %s89, %s103
    %p105 = scmp.eq.s32.totalorder %s16, 0
    %p106 = por %p104, %p105
    %s107 = ssub.s32 %s10, %s17
    %p108 = scmp.eq.s32.totalorder %s107, 0
    %s110 = sadd.s32 %s109, 1
    %s111 = scalar_select %p108, %s109, %s110
    %p114 = pneg %p108
    %p115 = scmp.eq.s32.totalorder %s10, 1
    %p116 = por %p114, %p115
    %p117 = scmp.ne.s32.totalorder %s109, %s112
    %p118 = scmp.eq.s32.totalorder %s10, 0
    %p119 = por %p117, %p118
    %p120 = scmp.ne.s32.totalorder %s109, %s112
    %p121 = scmp.eq.s32.totalorder %s15, 1
    %p122 = por %p120, %p121
    %p123 = scmp.ne.s32.totalorder %s112, %s113
    %p124 = scmp.eq.s32.totalorder %s15, 0
    %p125 = por %p123, %p124
    %p126 = scmp.ne.s32.totalorder %s112, %s113
    %p127 = scmp.eq.s32.totalorder %s16, 1
    %p128 = por %p126, %p127
    %p130 = scmp.ne.s32.totalorder %s113, %s129
    %p131 = scmp.eq.s32.totalorder %s16, 0
    %p132 = por %p130, %p131
    %p133 = scmp.le.s32.totalorder 1, %s10
    %p134 = scmp.lt.s32.totalorder %s10, 3
    %p135 = pnand %p133, %p134
    %p136 = pneg %p135
    // Predicated region
    $region9: #{tpu_custom_call.1} parent=5 // pred_check
      _
    $region10: #{tpu_custom_call.1} parent=5 // pred_check_branch
      %138 = sbr.rel (%p135) target = $region12
    $region11: #{tpu_custom_call.1} parent=5 // pred_region
      %s139 = ssub.s32 %s10, 1
      // Predicated region
      $region13: #{tpu_custom_call.1} parent=11 // pred_check
        %p140 = pneg %p57
      $region14: #{tpu_custom_call.1} parent=11 // pred_check_branch
        %142 = sbr.rel (%p140) target = $region16
      $region15: #{tpu_custom_call.1} parent=11 // pred_region
        _
      $region16: #{tpu_custom_call.1} parent=11 // pred_fallthru
        _
      // Predicated region
      $region17: #{tpu_custom_call.1} parent=11 // pred_check
        %p143 = pneg %p78
      $region18: #{tpu_custom_call.1} parent=11 // pred_check_branch
        %145 = sbr.rel (%p143) target = $region20
      $region19: #{tpu_custom_call.1} parent=11 // pred_region
        _
      $region20: #{tpu_custom_call.1} parent=11 // pred_fallthru
        _
      // Predicated region
      $region21: #{tpu_custom_call.1} parent=11 // pred_check
        %p146 = pneg %p99
      $region22: #{tpu_custom_call.1} parent=11 // pred_check_branch
        %148 = sbr.rel (%p146) target = $region24
      $region23: #{tpu_custom_call.1} parent=11 // pred_region
        _
      $region24: #{tpu_custom_call.1} parent=11 // pred_fallthru
        _
    $region12: #{tpu_custom_call.1} parent=5 // pred_fallthru
      _
    %p149 = scmp.lt.s32.totalorder %s10, 2
    // Predicated region
    $region25: #{tpu_custom_call.1} parent=5 // pred_check
      %p150 = pneg %p149
    $region26: #{tpu_custom_call.1} parent=5 // pred_check_branch
      %152 = sbr.rel (%p150) target = $region28
    $region27: #{tpu_custom_call.1} parent=5 // pred_region
      // Predicated region
      $region29: #{tpu_custom_call.1} parent=27 // pred_check
        %p153 = pneg %p30
      $region30: #{tpu_custom_call.1} parent=27 // pred_check_branch
        %155 = sbr.rel (%p153) target = $region32
      $region31: #{tpu_custom_call.1} parent=27 // pred_region
        %p156 = scmp.lt.s32.totalorder %s10, 1
        %s157 = scalar_select %p156, %s10, 1
        %s158 = smul.addr %s157, 16
        %s159 = smul.addr %s158, 4
        %s160 = scalar_lea.vmem %s0, %s159
      $region32: #{tpu_custom_call.1} parent=27 // pred_fallthru
        _
    $region28: #{tpu_custom_call.1} parent=5 // pred_fallthru
      _
    %p161 = scmp.le.s32.totalorder 1, %s10
    %p162 = scmp.lt.s32.totalorder %s10, 3
    %p163 = pnand %p161, %p162
    %p164 = pneg %p163
    // Predicated region
    $region33: #{tpu_custom_call.1} parent=5 // pred_check
      _
    $region34: #{tpu_custom_call.1} parent=5 // pred_check_branch
      %166 = sbr.rel (%p163) target = $region36
    $region35: #{tpu_custom_call.1} parent=5 // pred_region
      %s167 = ssub.s32 %s10, 1
      %p168 = scmp.lt.s32.totalorder %s15, 1
      %s169 = scalar_select %p168, %s15, 1
      %s170 = smul.addr %s169, 16
      %s171 = smul.addr %s170, 4
      %s172 = scalar_lea.vmem %s0, %s171
      %p173 = pneg %p36
      %p174 = pneg %p33
      %p175 = pneg %p57
      %p176 = pneg %p54
      %p177 = pneg %p78
      %p178 = pneg %p75
      %p179 = pneg %p99
      %p180 = pneg %p96
      %p181 = pneg %p125
      %p182 = pneg %p122
      %p183 = scmp.lt.s32.totalorder %s15, 1
      %s184 = scalar_select %p183, %s15, 1
      %s185 = smul.addr %s184, 16
      %s186 = smul.addr %s185, 8
      %s187 = scalar_lea.vmem %s4, %s186
      %p188 = scmp.lt.s32.totalorder %s15, 1
      %s189 = scalar_select %p188, %s15, 1
      %s190 = smul.addr %s189, 16
      %s191 = smul.addr %s190, 4
      %s192 = scalar_lea.vmem %s0, %s191
      %p193 = scmp.lt.s32.totalorder %s15, 1
      %s194 = scalar_select %p193, %s15, 1
      %s195 = smul.addr %s194, 16
      %s196 = smul.addr %s195, 8
      %s197 = scalar_lea.vmem %s4, %s196
      %v199 = vld [vmem:[%s192] sm:$0xf]
      %v200 = vld [vmem:[%s192 + $0x4] sm:$0xf]
      %v201 = vld [vmem:[%s192 + $0x8] sm:$0xf]
      %v202 = vld [vmem:[%s192 + $0xc] sm:$0xf]
      %v203 = vld [vmem:[%s192 + $0x10] sm:$0xf]
      %v204 = vld [vmem:[%s192 + $0x14] sm:$0xf]
      %v205 = vld [vmem:[%s192 + $0x18] sm:$0xf]
      %v206 = vld [vmem:[%s192 + $0x1c] sm:$0xf]
      %v207 = vld [vmem:[%s192 + $0x20] sm:$0xf]
      %v208 = vld [vmem:[%s192 + $0x24] sm:$0xf]
      %v209 = vld [vmem:[%s192 + $0x28] sm:$0xf]
      %v210 = vld [vmem:[%s192 + $0x2c] sm:$0xf]
      %v211 = vld [vmem:[%s192 + $0x30] sm:$0xf]
      %v212 = vld [vmem:[%s192 + $0x34] sm:$0xf]
      %v213 = vld [vmem:[%s192 + $0x38] sm:$0xf]
      %v214 = vld [vmem:[%s192 + $0x3c] sm:$0xf]
      %v215 = vld [vmem:[%s1] sm:$0xf]
      %v216 = vld [vmem:[%s1 + $0x4] sm:$0xf]
      %v217 = vld [vmem:[%s1 + $0x8] sm:$0xf]
      %v218 = vld [vmem:[%s1 + $0xc] sm:$0xf]
      %v235 = vunpack.c.l.b16 %v199
      %v236 = vunpack.c.l.b16 %v200
      %v237 = vunpack.c.l.b16 %v201
      %v238 = vunpack.c.l.b16 %v202
      %v239 = vunpack.c.l.b16 %v203
      %v240 = vunpack.c.l.b16 %v204
      %v241 = vunpack.c.l.b16 %v205
      %v242 = vunpack.c.l.b16 %v206
      %v243 = vunpack.c.l.b16 %v207
      %v244 = vunpack.c.l.b16 %v208
      %v245 = vunpack.c.l.b16 %v209
      %v246 = vunpack.c.l.b16 %v210
      %v247 = vunpack.c.l.b16 %v211
      %v248 = vunpack.c.l.b16 %v212
      %v249 = vunpack.c.l.b16 %v213
      %v250 = vunpack.c.l.b16 %v214
      %v251 = vpack.c.b16 %v236, %v235
      %v252 = vpack.c.b16 %v238, %v237
      %v253 = vpack.c.b16 %v240, %v239
      %v254 = vpack.c.b16 %v242, %v241
      %v255 = vpack.c.b16 %v244, %v243
      %v256 = vpack.c.b16 %v246, %v245
      %v257 = vpack.c.b16 %v248, %v247
      %v258 = vpack.c.b16 %v250, %v249
      %v263 = vunpack.c.l.b16 %v215
      %v264 = vunpack.c.l.b16 %v216
      %v265 = vunpack.c.l.b16 %v217
      %v266 = vunpack.c.l.b16 %v218
      %v267 = vpack.c.b16 %v264, %v263
      %v268 = vpack.c.b16 %v266, %v265
      %vm271 = vcmask 261120
      %v273 = vsel %vm271, %v251, 0
      %v276 = vsel %vm271, %v252, 0
      %v279 = vsel %vm271, %v253, 0
      %v282 = vsel %vm271, %v254, 0
      %v285 = vsel %vm271, %v255, 0
      %v288 = vsel %vm271, %v256, 0
      %v291 = vsel %vm271, %v257, 0
      %v294 = vsel %vm271, %v258, 0
      %296 = vmatprep.subr.bf16.mxu0 0
      %297 = vmatpush1.bf16.msra.mxu0 %v267
      %298 = vmatprep.subr.bf16.mxu0 0
      %299 = vmatpush1.bf16.msra.mxu0 %v268
      %300 = vmatprep.subr.bf16.mxu0 0
      %301 = vmatpush1.bf16.msra.mxu0 0
      %302 = vmatprep.subr.bf16.mxu0 0
      %303 = vmatpush1.bf16.msra.mxu0 0
      %304 = vmatprep.subr.bf16.mxu0 0
      %305 = vmatpush1.bf16.msra.mxu0 0
      %306 = vmatprep.subr.bf16.mxu0 0
      %307 = vmatpush1.bf16.msra.mxu0 0
      %308 = vmatprep.subr.bf16.mxu0 0
      %309 = vmatpush1.bf16.msra.mxu0 0
      %310 = vmatprep.subr.bf16.mxu0 0
      %311 = vmatpush1.bf16.msra.mxu0 0
      %312 = vmatprep.subr.bf16.mxu0 0
      %313 = vmatpush1.bf16.msra.mxu0 0
      %314 = vmatprep.subr.bf16.mxu0 0
      %315 = vmatpush1.bf16.msra.mxu0 0
      %316 = vmatprep.subr.bf16.mxu0 0
      %317 = vmatpush1.bf16.msra.mxu0 0
      %318 = vmatprep.subr.bf16.mxu0 0
      %319 = vmatpush1.bf16.msra.mxu0 0
      %320 = vmatprep.subr.bf16.mxu0 0
      %321 = vmatpush1.bf16.msra.mxu0 0
      %322 = vmatprep.subr.bf16.mxu0 0
      %323 = vmatpush1.bf16.msra.mxu0 0
      %324 = vmatprep.subr.bf16.mxu0 0
      %325 = vmatpush1.bf16.msra.mxu0 0
      %326 = vmatprep.subr.bf16.mxu0 0
      %327 = vmatpush1.bf16.msra.mxu0 0
      %328 = vmatprep.mubr.bf16.mxu0 0
      %329 = vmatmul.mubr.bf16.gmra.mrb[0].mxu0 %v273
      %v330 = vpop.f32.mrb[0].mxu0
      %v331 = vadd.f32 0.0, %v330
      %v332 = vpop.f32.mrb[0].mxu0
      %v333 = vpop.f32.mrb[0].mxu0
      %v334 = vadd.f32 0.0, %v333
      %v335 = vpop.f32.mrb[0].mxu0
      %336 = vmatprep.mubr.bf16.mxu0 0
      %337 = vmatmul.mubr.bf16.gmra.mrb[0].mxu0 %v276
      %v338 = vpop.f32.mrb[0].mxu0
      %v339 = vadd.f32 0.0, %v338
      %v340 = vpop.f32.mrb[0].mxu0
      %v341 = vpop.f32.mrb[0].mxu0
      %v342 = vadd.f32 0.0, %v341
      %v343 = vpop.f32.mrb[0].mxu0
      %344 = vmatprep.mubr.bf16.mxu0 0
      %345 = vmatmul.mubr.bf16.gmra.mrb[0].mxu0 %v279
      %v346 = vpop.f32.mrb[0].mxu0
      %v347 = vadd.f32 0.0, %v346
      %v348 = vpop.f32.mrb[0].mxu0
      %v349 = vpop.f32.mrb[0].mxu0
      %v350 = vadd.f32 0.0, %v349
      %v351 = vpop.f32.mrb[0].mxu0
      %352 = vmatprep.mubr.bf16.mxu0 0
      %353 = vmatmul.mubr.bf16.gmra.mrb[0].mxu0 %v282
      %v354 = vpop.f32.mrb[0].mxu0
      %v355 = vadd.f32 0.0, %v354
      %v356 = vpop.f32.mrb[0].mxu0
      %v357 = vpop.f32.mrb[0].mxu0
      %v358 = vadd.f32 0.0, %v357
      %v359 = vpop.f32.mrb[0].mxu0
      %360 = vmatprep.mubr.bf16.mxu0 0
      %361 = vmatmul.mubr.bf16.gmra.mrb[0].mxu0 %v285
      %v362 = vpop.f32.mrb[0].mxu0
      %v363 = vadd.f32 0.0, %v362
      %v364 = vpop.f32.mrb[0].mxu0
      %v365 = vpop.f32.mrb[0].mxu0
      %v366 = vadd.f32 0.0, %v365
      %v367 = vpop.f32.mrb[0].mxu0
      %368 = vmatprep.mubr.bf16.mxu0 0
      %369 = vmatmul.mubr.bf16.gmra.mrb[0].mxu0 %v288
      %v370 = vpop.f32.mrb[0].mxu0
      %v371 = vadd.f32 0.0, %v370
      %v372 = vpop.f32.mrb[0].mxu0
      %v373 = vpop.f32.mrb[0].mxu0
      %v374 = vadd.f32 0.0, %v373
      %v375 = vpop.f32.mrb[0].mxu0
      %376 = vmatprep.mubr.bf16.mxu0 0
      %377 = vmatmul.mubr.bf16.gmra.mrb[0].mxu0 %v291
      %v378 = vpop.f32.mrb[0].mxu0
      %v379 = vadd.f32 0.0, %v378
      %v380 = vpop.f32.mrb[0].mxu0
      %v381 = vpop.f32.mrb[0].mxu0
      %v382 = vadd.f32 0.0, %v381
      %v383 = vpop.f32.mrb[0].mxu0
      %384 = vmatprep.mubr.bf16.mxu0 0
      %385 = vmatmul.mubr.bf16.gmra.mrb[0].mxu0 %v294
      %v386 = vpop.f32.mrb[0].mxu0
      %v387 = vadd.f32 0.0, %v386
      %v388 = vpop.f32.mrb[0].mxu0
      %v389 = vpop.f32.mrb[0].mxu0
      %v390 = vadd.f32 0.0, %v389
      %v391 = vpop.f32.mrb[0].mxu0
      %392 = vdwg.mxu0
      %v393 = vmul.f32 %v331, 0.5
      %v394 = vmul.f32 %v334, 0.5
      %v395 = vmul.f32 %v339, 0.5
      %v396 = vmul.f32 %v342, 0.5
      %v397 = vmul.f32 %v347, 0.5
      %v398 = vmul.f32 %v350, 0.5
      %v399 = vmul.f32 %v355, 0.5
      %v400 = vmul.f32 %v358, 0.5
      %v401 = vmul.f32 %v363, 0.5
      %v402 = vmul.f32 %v366, 0.5
      %v403 = vmul.f32 %v371, 0.5
      %v404 = vmul.f32 %v374, 0.5
      %v405 = vmul.f32 %v379, 0.5
      %v406 = vmul.f32 %v382, 0.5
      %v407 = vmul.f32 %v387, 0.5
      %v408 = vmul.f32 %v390, 0.5
      %v409 = vpack.c.bf16 %v394, %v393
      %v410 = vpack.c.bf16 %v396, %v395
      %v411 = vpack.c.bf16 %v398, %v397
      %v412 = vpack.c.bf16 %v400, %v399
      %v413 = vpack.c.bf16 %v402, %v401
      %v414 = vpack.c.bf16 %v404, %v403
      %v415 = vpack.c.bf16 %v406, %v405
      %v416 = vpack.c.bf16 %v408, %v407
      %417 = vst.msk [vmem:[#allocation2] sm:$0xff] %vm271, %v409
      %418 = vst.msk [vmem:[#allocation2 + $0x8] sm:$0xff] %vm271, %v410
      %419 = vst.msk [vmem:[#allocation2 + $0x10] sm:$0xff] %vm271, %v411
      %420 = vst.msk [vmem:[#allocation2 + $0x18] sm:$0xff] %vm271, %v412
      %421 = vst.msk [vmem:[#allocation2 + $0x20] sm:$0xff] %vm271, %v413
      %422 = vst.msk [vmem:[#allocation2 + $0x28] sm:$0xff] %vm271, %v414
      %423 = vst.msk [vmem:[#allocation2 + $0x30] sm:$0xff] %vm271, %v415
      %424 = vst.msk [vmem:[#allocation2 + $0x38] sm:$0xff] %vm271, %v416
      %v425 = vpack.c.bf16 %v334, %v331
      %v426 = vpack.c.bf16 %v342, %v339
      %v427 = vpack.c.bf16 %v350, %v347
      %v428 = vpack.c.bf16 %v358, %v355
      %v429 = vpack.c.bf16 %v366, %v363
      %v430 = vpack.c.bf16 %v374, %v371
      %v431 = vpack.c.bf16 %v382, %v379
      %v432 = vpack.c.bf16 %v390, %v387
      %vm433 = vcmask 785664
      %434 = vst.msk [vmem:[#allocation2] sm:$0xff] %vm433, %v425
      %435 = vst.msk [vmem:[#allocation2 + $0x8] sm:$0xff] %vm433, %v426
      %436 = vst.msk [vmem:[#allocation2 + $0x10] sm:$0xff] %vm433, %v427
      %437 = vst.msk [vmem:[#allocation2 + $0x18] sm:$0xff] %vm433, %v428
      %438 = vst.msk [vmem:[#allocation2 + $0x20] sm:$0xff] %vm433, %v429
      %439 = vst.msk [vmem:[#allocation2 + $0x28] sm:$0xff] %vm433, %v430
      %440 = vst.msk [vmem:[#allocation2 + $0x30] sm:$0xff] %vm433, %v431
      %441 = vst.msk [vmem:[#allocation2 + $0x38] sm:$0xff] %vm433, %v432
      %v442 = vlaneseq
      %v443 = vand.u32 %v442, 127
      %vm444 = vcmp.lt.s32.totalorder %v443, 8
      %v445 = vld [vmem:[#allocation2] sm:$0xff]
      %v446 = vld [vmem:[#allocation2 + $0x8] sm:$0xff]
      %v447 = vld [vmem:[#allocation2 + $0x10] sm:$0xff]
      %v448 = vld [vmem:[#allocation2 + $0x18] sm:$0xff]
      %v449 = vld [vmem:[#allocation2 + $0x20] sm:$0xff]
      %v450 = vld [vmem:[#allocation2 + $0x28] sm:$0xff]
      %v451 = vld [vmem:[#allocation2 + $0x30] sm:$0xff]
      %v452 = vld [vmem:[#allocation2 + $0x38] sm:$0xff]
      %461 = vrot.lane.b32.xlu0 %v445, 96
      %v462 = vpop.permute.xlu0 %461
      %463 = vrot.lane.b32.xlu0 %v446, 96
      %v464 = vpop.permute.xlu0 %463
      %465 = vrot.lane.b32.xlu0 %v447, 96
      %v466 = vpop.permute.xlu0 %465
      %467 = vrot.lane.b32.xlu0 %v448, 96
      %v468 = vpop.permute.xlu0 %467
      %469 = vrot.lane.b32.xlu0 %v449, 96
      %v470 = vpop.permute.xlu0 %469
      %471 = vrot.lane.b32.xlu0 %v450, 96
      %v472 = vpop.permute.xlu0 %471
      %473 = vrot.lane.b32.xlu0 %v451, 96
      %v474 = vpop.permute.xlu0 %473
      %475 = vrot.lane.b32.xlu0 %v452, 96
      %v476 = vpop.permute.xlu0 %475
      %vm477 = vcmask 31744
      %v479 = vsel %vm477, %v445, 0
      %v482 = vsel %vm477, %v446, 0
      %v485 = vsel %vm477, %v447, 0
      %v488 = vsel %vm477, %v448, 0
      %v491 = vsel %vm477, %v449, 0
      %v494 = vsel %vm477, %v450, 0
      %v497 = vsel %vm477, %v451, 0
      %v500 = vsel %vm477, %v452, 0
      %v503 = vsel %vm477, %v462, 0
      %v506 = vsel %vm477, %v464, 0
      %v509 = vsel %vm477, %v466, 0
      %v512 = vsel %vm477, %v468, 0
      %v515 = vsel %vm477, %v470, 0
      %v518 = vsel %vm477, %v472, 0
      %v521 = vsel %vm477, %v474, 0
      %v524 = vsel %vm477, %v476, 0
      %526 = vmatprep.subr.bf16.mxu0 0
      %527 = vmatpush1.bf16.xpose.msra.mxu0 %v503
      %528 = vmatprep.subr.bf16.mxu0 0
      %529 = vmatpush1.bf16.xpose.msra.mxu0 %v506
      %530 = vmatprep.subr.bf16.mxu0 0
      %531 = vmatpush1.bf16.xpose.msra.mxu0 %v509
      %532 = vmatprep.subr.bf16.mxu0 0
      %533 = vmatpush1.bf16.xpose.msra.mxu0 %v512
      %534 = vmatprep.subr.bf16.mxu0 0
      %535 = vmatpush1.bf16.xpose.msra.mxu0 %v515
      %536 = vmatprep.subr.bf16.mxu0 0
      %537 = vmatpush1.bf16.xpose.msra.mxu0 %v518
      %538 = vmatprep.subr.bf16.mxu0 0
      %539 = vmatpush1.bf16.xpose.msra.mxu0 %v521
      %540 = vmatprep.subr.bf16.mxu0 0
      %541 = vmatpush1.bf16.xpose.msra.mxu0 %v524
      %542 = vmatprep.subr.bf16.mxu0 0
      %543 = vmatpush1.bf16.xpose.msra.mxu0 0
      %544 = vmatprep.subr.bf16.mxu0 0
      %545 = vmatpush1.bf16.xpose.msra.mxu0 0
      %546 = vmatprep.subr.bf16.mxu0 0
      %547 = vmatpush1.bf16.xpose.msra.mxu0 0
      %548 = vmatprep.subr.bf16.mxu0 0
      %549 = vmatpush1.bf16.xpose.msra.mxu0 0
      %550 = vmatprep.subr.bf16.mxu0 0
      %551 = vmatpush1.bf16.xpose.msra.mxu0 0
      %552 = vmatprep.subr.bf16.mxu0 0
      %553 = vmatpush1.bf16.xpose.msra.mxu0 0
      %554 = vmatprep.subr.bf16.mxu0 0
      %555 = vmatpush1.bf16.xpose.msra.mxu0 0
      %556 = vmatprep.subr.bf16.mxu0 0
      %557 = vmatpush1.bf16.xpose.msra.mxu0 0
      %558 = vmatprep.mubr.bf16.mxu0 0
      %559 = vmatmul.mubr.bf16.gmra.mrb[0].mxu0 %v479
      %v560 = vpop.f32.mrb[0].mxu0
      %v561 = vadd.f32 0.0, %v560
      %v562 = vpop.f32.mrb[0].mxu0
      %v563 = vpop.f32.mrb[0].mxu0
      %v564 = vadd.f32 0.0, %v563
      %v565 = vpop.f32.mrb[0].mxu0
      %566 = vmatprep.mubr.bf16.mxu0 0
      %567 = vmatmul.mubr.bf16.gmra.mrb[0].mxu0 %v482
      %v568 = vpop.f32.mrb[0].mxu0
      %v569 = vadd.f32 0.0, %v568
      %v570 = vpop.f32.mrb[0].mxu0
      %v571 = vpop.f32.mrb[0].mxu0
      %v572 = vadd.f32 0.0, %v571
      %v573 = vpop.f32.mrb[0].mxu0
      %574 = vmatprep.mubr.bf16.mxu0 0
      %575 = vmatmul.mubr.bf16.gmra.mrb[0].mxu0 %v485
      %v576 = vpop.f32.mrb[0].mxu0
      %v577 = vadd.f32 0.0, %v576
      %v578 = vpop.f32.mrb[0].mxu0
      %v579 = vpop.f32.mrb[0].mxu0
      %v580 = vadd.f32 0.0, %v579
      %v581 = vpop.f32.mrb[0].mxu0
      %582 = vmatprep.mubr.bf16.mxu0 0
      %583 = vmatmul.mubr.bf16.gmra.mrb[0].mxu0 %v488
      %v584 = vpop.f32.mrb[0].mxu0
      %v585 = vadd.f32 0.0, %v584
      %v586 = vpop.f32.mrb[0].mxu0
      %v587 = vpop.f32.mrb[0].mxu0
      %v588 = vadd.f32 0.0, %v587
      %v589 = vpop.f32.mrb[0].mxu0
      %590 = vmatprep.mubr.bf16.mxu0 0
      %591 = vmatmul.mubr.bf16.gmra.mrb[0].mxu0 %v491
      %v592 = vpop.f32.mrb[0].mxu0
      %v593 = vadd.f32 0.0, %v592
      %v594 = vpop.f32.mrb[0].mxu0
      %v595 = vpop.f32.mrb[0].mxu0
      %v596 = vadd.f32 0.0, %v595
      %v597 = vpop.f32.mrb[0].mxu0
      %598 = vmatprep.mubr.bf16.mxu0 0
      %599 = vmatmul.mubr.bf16.gmra.mrb[0].mxu0 %v494
      %v600 = vpop.f32.mrb[0].mxu0
      %v601 = vadd.f32 0.0, %v600
      %v602 = vpop.f32.mrb[0].mxu0
      %v603 = vpop.f32.mrb[0].mxu0
      %v604 = vadd.f32 0.0, %v603
      %v605 = vpop.f32.mrb[0].mxu0
      %606 = vmatprep.mubr.bf16.mxu0 0
      %607 = vmatmul.mubr.bf16.gmra.mrb[0].mxu0 %v497
      %v608 = vpop.f32.mrb[0].mxu0
      %v609 = vadd.f32 0.0, %v608
      %v610 = vpop.f32.mrb[0].mxu0
      %v611 = vpop.f32.mrb[0].mxu0
      %v612 = vadd.f32 0.0, %v611
      %v613 = vpop.f32.mrb[0].mxu0
      %614 = vmatprep.mubr.bf16.mxu0 0
      %615 = vmatmul.mubr.bf16.gmra.mrb[0].mxu0 %v500
      %v616 = vpop.f32.mrb[0].mxu0
      %v617 = vadd.f32 0.0, %v616
      %v618 = vpop.f32.mrb[0].mxu0
      %v619 = vpop.f32.mrb[0].mxu0
      %v620 = vadd.f32 0.0, %v619
      %v621 = vpop.f32.mrb[0].mxu0
      %622 = vdwg.mxu0
      %v623 = vsel %vm444, 1, 0
      %vm624 = vcmp.eq.s32.totalorder %v623, 1
      %v625 = vsel %vm624, %v561, -1e+30
      %v626 = vsel %vm624, %v564, -1e+30
      %v627 = vsel %vm624, %v569, -1e+30
      %v628 = vsel %vm624, %v572, -1e+30
      %v629 = vsel %vm624, %v577, -1e+30
      %v630 = vsel %vm624, %v580, -1e+30
      %v631 = vsel %vm624, %v585, -1e+30
      %v632 = vsel %vm624, %v588, -1e+30
      %v633 = vsel %vm624, %v593, -1e+30
      %v634 = vsel %vm624, %v596, -1e+30
      %v635 = vsel %vm624, %v601, -1e+30
      %v636 = vsel %vm624, %v604, -1e+30
      %v637 = vsel %vm624, %v609, -1e+30
      %v638 = vsel %vm624, %v612, -1e+30
      %v639 = vsel %vm624, %v617, -1e+30
      %v640 = vsel %vm624, %v620, -1e+30
      %641 = vmax.xlane.f32.xlu0 %v625
      %v642 = vpop.xlane.xlu0 %641
      %643 = vmax.xlane.f32.xlu0 %v626
      %v644 = vpop.xlane.xlu0 %643
      %645 = vmax.xlane.f32.xlu0 %v627
      %v646 = vpop.xlane.xlu0 %645
      %647 = vmax.xlane.f32.xlu0 %v628
      %v648 = vpop.xlane.xlu0 %647
      %649 = vmax.xlane.f32.xlu0 %v629
      %v650 = vpop.xlane.xlu0 %649
      %651 = vmax.xlane.f32.xlu0 %v630
      %v652 = vpop.xlane.xlu0 %651
      %653 = vmax.xlane.f32.xlu0 %v631
      %v654 = vpop.xlane.xlu0 %653
      %655 = vmax.xlane.f32.xlu0 %v632
      %v656 = vpop.xlane.xlu0 %655
      %657 = vmax.xlane.f32.xlu0 %v633
      %v658 = vpop.xlane.xlu0 %657
      %659 = vmax.xlane.f32.xlu0 %v634
      %v660 = vpop.xlane.xlu0 %659
      %661 = vmax.xlane.f32.xlu0 %v635
      %v662 = vpop.xlane.xlu0 %661
      %663 = vmax.xlane.f32.xlu0 %v636
      %v664 = vpop.xlane.xlu0 %663
      %665 = vmax.xlane.f32.xlu0 %v637
      %v666 = vpop.xlane.xlu0 %665
      %667 = vmax.xlane.f32.xlu0 %v638
      %v668 = vpop.xlane.xlu0 %667
      %669 = vmax.xlane.f32.xlu0 %v639
      %v670 = vpop.xlane.xlu0 %669
      %671 = vmax.xlane.f32.xlu0 %v640
      %v672 = vpop.xlane.xlu0 %671
      %v673 = vsub.f32 %v625, %v642
      %v674 = vsub.f32 %v626, %v644
      %v675 = vsub.f32 %v627, %v646
      %v676 = vsub.f32 %v628, %v648
      %v677 = vsub.f32 %v629, %v650
      %v678 = vsub.f32 %v630, %v652
      %v679 = vsub.f32 %v631, %v654
      %v680 = vsub.f32 %v632, %v656
      %v681 = vsub.f32 %v633, %v658
      %v682 = vsub.f32 %v634, %v660
      %v683 = vsub.f32 %v635, %v662
      %v684 = vsub.f32 %v636, %v664
      %v685 = vsub.f32 %v637, %v666
      %v686 = vsub.f32 %v638, %v668
      %v687 = vsub.f32 %v639, %v670
      %v688 = vsub.f32 %v640, %v672
      %v689 = vmul.f32 %v673, 1.442695
      %v690 = vpow.pop %v689
      %v691 = vmul.f32 %v674, 1.442695
      %v692 = vpow.pop %v691
      %v693 = vmul.f32 %v675, 1.442695
      %v694 = vpow.pop %v693
      %v695 = vmul.f32 %v676, 1.442695
      %v696 = vpow.pop %v695
      %v697 = vmul.f32 %v677, 1.442695
      %v698 = vpow.pop %v697
      %v699 = vmul.f32 %v678, 1.442695
      %v700 = vpow.pop %v699
      %v701 = vmul.f32 %v679, 1.442695
      %v702 = vpow.pop %v701
      %v703 = vmul.f32 %v680, 1.442695
      %v704 = vpow.pop %v703
      %v705 = vmul.f32 %v681, 1.442695
      %v706 = vpow.pop %v705
      %v707 = vmul.f32 %v682, 1.442695
      %v708 = vpow.pop %v707
      %v709 = vmul.f32 %v683, 1.442695
      %v710 = vpow.pop %v709
      %v711 = vmul.f32 %v684, 1.442695
      %v712 = vpow.pop %v711
      %v713 = vmul.f32 %v685, 1.442695
      %v714 = vpow.pop %v713
      %v715 = vmul.f32 %v686, 1.442695
      %v716 = vpow.pop %v715
      %v717 = vmul.f32 %v687, 1.442695
      %v718 = vpow.pop %v717
      %v719 = vmul.f32 %v688, 1.442695
      %v720 = vpow.pop %v719
      %721 = vadd.xlane.f32.xlu0 %v690
      %v722 = vpop.xlane.xlu0 %721
      %723 = vadd.xlane.f32.xlu0 %v692
      %v724 = vpop.xlane.xlu0 %723
      %725 = vadd.xlane.f32.xlu0 %v694
      %v726 = vpop.xlane.xlu0 %725
      %727 = vadd.xlane.f32.xlu0 %v696
      %v728 = vpop.xlane.xlu0 %727
      %729 = vadd.xlane.f32.xlu0 %v698
      %v730 = vpop.xlane.xlu0 %729
      %731 = vadd.xlane.f32.xlu0 %v700
      %v732 = vpop.xlane.xlu0 %731
      %733 = vadd.xlane.f32.xlu0 %v702
      %v734 = vpop.xlane.xlu0 %733
      %735 = vadd.xlane.f32.xlu0 %v704
      %v736 = vpop.xlane.xlu0 %735
      %737 = vadd.xlane.f32.xlu0 %v706
      %v738 = vpop.xlane.xlu0 %737
      %739 = vadd.xlane.f32.xlu0 %v708
      %v740 = vpop.xlane.xlu0 %739
      %741 = vadd.xlane.f32.xlu0 %v710
      %v742 = vpop.xlane.xlu0 %741
      %743 = vadd.xlane.f32.xlu0 %v712
      %v744 = vpop.xlane.xlu0 %743
      %745 = vadd.xlane.f32.xlu0 %v714
      %v746 = vpop.xlane.xlu0 %745
      %747 = vadd.xlane.f32.xlu0 %v716
      %v748 = vpop.xlane.xlu0 %747
      %749 = vadd.xlane.f32.xlu0 %v718
      %v750 = vpop.xlane.xlu0 %749
      %751 = vadd.xlane.f32.xlu0 %v720
      %v752 = vpop.xlane.xlu0 %751
      %v753 = vrcp.pop %v722
      %v754 = vrcp.pop %v724
      %v755 = vrcp.pop %v726
      %v756 = vrcp.pop %v728
      %v757 = vrcp.pop %v730
      %v758 = vrcp.pop %v732
      %v759 = vrcp.pop %v734
      %v760 = vrcp.pop %v736
      %v761 = vrcp.pop %v738
      %v762 = vrcp.pop %v740
      %v763 = vrcp.pop %v742
      %v764 = vrcp.pop %v744
      %v765 = vrcp.pop %v746
      %v766 = vrcp.pop %v748
      %v767 = vrcp.pop %v750
      %v768 = vrcp.pop %v752
      %v769 = vmul.f32 %v690, %v753
      %v770 = vmul.f32 %v692, %v754
      %v771 = vmul.f32 %v694, %v755
      %v772 = vmul.f32 %v696, %v756
      %v773 = vmul.f32 %v698, %v757
      %v774 = vmul.f32 %v700, %v758
      %v775 = vmul.f32 %v702, %v759
      %v776 = vmul.f32 %v704, %v760
      %v777 = vmul.f32 %v706, %v761
      %v778 = vmul.f32 %v708, %v762
      %v779 = vmul.f32 %v710, %v763
      %v780 = vmul.f32 %v712, %v764
      %v781 = vmul.f32 %v714, %v765
      %v782 = vmul.f32 %v716, %v766
      %v783 = vmul.f32 %v718, %v767
      %v784 = vmul.f32 %v720, %v768
      %v785 = vpack.c.bf16 %v770, %v769
      %v786 = vpack.c.bf16 %v772, %v771
      %v787 = vpack.c.bf16 %v774, %v773
      %v788 = vpack.c.bf16 %v776, %v775
      %v789 = vpack.c.bf16 %v778, %v777
      %v790 = vpack.c.bf16 %v780, %v779
      %v791 = vpack.c.bf16 %v782, %v781
      %v792 = vpack.c.bf16 %v784, %v783
      %793 = vrot.lane.b32.xlu0 %v445, 64
      %v794 = vpop.permute.xlu0 %793
      %795 = vrot.lane.b32.xlu0 %v446, 64
      %v796 = vpop.permute.xlu0 %795
      %797 = vrot.lane.b32.xlu0 %v447, 64
      %v798 = vpop.permute.xlu0 %797
      %799 = vrot.lane.b32.xlu0 %v448, 64
      %v800 = vpop.permute.xlu0 %799
      %801 = vrot.lane.b32.xlu0 %v449, 64
      %v802 = vpop.permute.xlu0 %801
      %803 = vrot.lane.b32.xlu0 %v450, 64
      %v804 = vpop.permute.xlu0 %803
      %805 = vrot.lane.b32.xlu0 %v451, 64
      %v806 = vpop.permute.xlu0 %805
      %807 = vrot.lane.b32.xlu0 %v452, 64
      %v808 = vpop.permute.xlu0 %807
      %817 = vmatprep.subr.bf16.mxu0 0
      %818 = vmatpush1.bf16.msra.mxu0 %v794
      %819 = vmatprep.subr.bf16.mxu0 0
      %820 = vmatpush1.bf16.msra.mxu0 %v796
      %821 = vmatprep.subr.bf16.mxu0 0
      %822 = vmatpush1.bf16.msra.mxu0 %v798
      %823 = vmatprep.subr.bf16.mxu0 0
      %824 = vmatpush1.bf16.msra.mxu0 %v800
      %825 = vmatprep.subr.bf16.mxu0 0
      %826 = vmatpush1.bf16.msra.mxu0 %v802
      %827 = vmatprep.subr.bf16.mxu0 0
      %828 = vmatpush1.bf16.msra.mxu0 %v804
      %829 = vmatprep.subr.bf16.mxu0 0
      %830 = vmatpush1.bf16.msra.mxu0 %v806
      %831 = vmatprep.subr.bf16.mxu0 0
      %832 = vmatpush1.bf16.msra.mxu0 %v808
      %833 = vmatprep.subr.bf16.mxu0 0
      %834 = vmatpush1.bf16.msra.mxu0 0
      %835 = vmatprep.subr.bf16.mxu0 0
      %836 = vmatpush1.bf16.msra.mxu0 0
      %837 = vmatprep.subr.bf16.mxu0 0
      %838 = vmatpush1.bf16.msra.mxu0 0
      %839 = vmatprep.subr.bf16.mxu0 0
      %840 = vmatpush1.bf16.msra.mxu0 0
      %841 = vmatprep.subr.bf16.mxu0 0
      %842 = vmatpush1.bf16.msra.mxu0 0
      %843 = vmatprep.subr.bf16.mxu0 0
      %844 = vmatpush1.bf16.msra.mxu0 0
      %845 = vmatprep.subr.bf16.mxu0 0
      %846 = vmatpush1.bf16.msra.mxu0 0
      %847 = vmatprep.subr.bf16.mxu0 0
      %848 = vmatpush1.bf16.msra.mxu0 0
      %849 = vmatprep.mubr.bf16.mxu0 0
      %850 = vmatmul.mubr.bf16.gmra.mrb[0].mxu0 %v785
      %v851 = vpop.f32.mrb[0].mxu0
      %v852 = vadd.f32 0.0, %v851
      %v853 = vpop.f32.mrb[0].mxu0
      %v854 = vpop.f32.mrb[0].mxu0
      %v855 = vadd.f32 0.0, %v854
      %v856 = vpop.f32.mrb[0].mxu0
      %857 = vmatprep.mubr.bf16.mxu0 0
      %858 = vmatmul.mubr.bf16.gmra.mrb[0].mxu0 %v786
      %v859 = vpop.f32.mrb[0].mxu0
      %v860 = vadd.f32 0.0, %v859
      %v861 = vpop.f32.mrb[0].mxu0
      %v862 = vpop.f32.mrb[0].mxu0
      %v863 = vadd.f32 0.0, %v862
      %v864 = vpop.f32.mrb[0].mxu0
      %865 = vmatprep.mubr.bf16.mxu0 0
      %866 = vmatmul.mubr.bf16.gmra.mrb[0].mxu0 %v787
      %v867 = vpop.f32.mrb[0].mxu0
      %v868 = vadd.f32 0.0, %v867
      %v869 = vpop.f32.mrb[0].mxu0
      %v870 = vpop.f32.mrb[0].mxu0
      %v871 = vadd.f32 0.0, %v870
      %v872 = vpop.f32.mrb[0].mxu0
      %873 = vmatprep.mubr.bf16.mxu0 0
      %874 = vmatmul.mubr.bf16.gmra.mrb[0].mxu0 %v788
      %v875 = vpop.f32.mrb[0].mxu0
      %v876 = vadd.f32 0.0, %v875
      %v877 = vpop.f32.mrb[0].mxu0
      %v878 = vpop.f32.mrb[0].mxu0
      %v879 = vadd.f32 0.0, %v878
      %v880 = vpop.f32.mrb[0].mxu0
      %881 = vmatprep.mubr.bf16.mxu0 0
      %882 = vmatmul.mubr.bf16.gmra.mrb[0].mxu0 %v789
      %v883 = vpop.f32.mrb[0].mxu0
      %v884 = vadd.f32 0.0, %v883
      %v885 = vpop.f32.mrb[0].mxu0
      %v886 = vpop.f32.mrb[0].mxu0
      %v887 = vadd.f32 0.0, %v886
      %v888 = vpop.f32.mrb[0].mxu0
      %889 = vmatprep.mubr.bf16.mxu0 0
      %890 = vmatmul.mubr.bf16.gmra.mrb[0].mxu0 %v790
      %v891 = vpop.f32.mrb[0].mxu0
      %v892 = vadd.f32 0.0, %v891
      %v893 = vpop.f32.mrb[0].mxu0
      %v894 = vpop.f32.mrb[0].mxu0
      %v895 = vadd.f32 0.0, %v894
      %v896 = vpop.f32.mrb[0].mxu0
      %897 = vmatprep.mubr.bf16.mxu0 0
      %898 = vmatmul.mubr.bf16.gmra.mrb[0].mxu0 %v791
      %v899 = vpop.f32.mrb[0].mxu0
      %v900 = vadd.f32 0.0, %v899
      %v901 = vpop.f32.mrb[0].mxu0
      %v902 = vpop.f32.mrb[0].mxu0
      %v903 = vadd.f32 0.0, %v902
      %v904 = vpop.f32.mrb[0].mxu0
      %905 = vmatprep.mubr.bf16.mxu0 0
      %906 = vmatmul.mubr.bf16.gmra.mrb[0].mxu0 %v792
      %v907 = vpop.f32.mrb[0].mxu0
      %v908 = vadd.f32 0.0, %v907
      %v909 = vpop.f32.mrb[0].mxu0
      %v910 = vpop.f32.mrb[0].mxu0
      %v911 = vadd.f32 0.0, %v910
      %v912 = vpop.f32.mrb[0].mxu0
      %913 = vdwg.mxu0
      %v914 = vpack.c.bf16 %v855, %v852
      %v915 = vpack.c.bf16 %v863, %v860
      %v916 = vpack.c.bf16 %v871, %v868
      %v917 = vpack.c.bf16 %v879, %v876
      %v918 = vpack.c.bf16 %v887, %v884
      %v919 = vpack.c.bf16 %v895, %v892
      %v920 = vpack.c.bf16 %v903, %v900
      %v921 = vpack.c.bf16 %v911, %v908
      %922 = vrot.lane.b32.xlu0 %v445, 124
      %v923 = vpop.permute.xlu0 %922
      %924 = vrot.lane.b32.xlu0 %v446, 124
      %v925 = vpop.permute.xlu0 %924
      %926 = vrot.lane.b32.xlu0 %v447, 124
      %v927 = vpop.permute.xlu0 %926
      %928 = vrot.lane.b32.xlu0 %v448, 124
      %v929 = vpop.permute.xlu0 %928
      %930 = vrot.lane.b32.xlu0 %v449, 124
      %v931 = vpop.permute.xlu0 %930
      %932 = vrot.lane.b32.xlu0 %v450, 124
      %v933 = vpop.permute.xlu0 %932
      %934 = vrot.lane.b32.xlu0 %v451, 124
      %v935 = vpop.permute.xlu0 %934
      %936 = vrot.lane.b32.xlu0 %v452, 124
      %v937 = vpop.permute.xlu0 %936
      %938 = vrot.lane.b32.xlu0 %v445, 92
      %v939 = vpop.permute.xlu0 %938
      %940 = vrot.lane.b32.xlu0 %v446, 92
      %v941 = vpop.permute.xlu0 %940
      %942 = vrot.lane.b32.xlu0 %v447, 92
      %v943 = vpop.permute.xlu0 %942
      %944 = vrot.lane.b32.xlu0 %v448, 92
      %v945 = vpop.permute.xlu0 %944
      %946 = vrot.lane.b32.xlu0 %v449, 92
      %v947 = vpop.permute.xlu0 %946
      %948 = vrot.lane.b32.xlu0 %v450, 92
      %v949 = vpop.permute.xlu0 %948
      %950 = vrot.lane.b32.xlu0 %v451, 92
      %v951 = vpop.permute.xlu0 %950
      %952 = vrot.lane.b32.xlu0 %v452, 92
      %v953 = vpop.permute.xlu0 %952
      %v955 = vsel %vm477, %v923, 0
      %v958 = vsel %vm477, %v925, 0
      %v961 = vsel %vm477, %v927, 0
      %v964 = vsel %vm477, %v929, 0
      %v967 = vsel %vm477, %v931, 0
      %v970 = vsel %vm477, %v933, 0
      %v973 = vsel %vm477, %v935, 0
      %v976 = vsel %vm477, %v937, 0
      %v979 = vsel %vm477, %v939, 0
      %v982 = vsel %vm477, %v941, 0
      %v985 = vsel %vm477, %v943, 0
      %v988 = vsel %vm477, %v945, 0
      %v991 = vsel %vm477, %v947, 0
      %v994 = vsel %vm477, %v949, 0
      %v997 = vsel %vm477, %v951, 0
      %v1000 = vsel %vm477, %v953, 0
      %1002 = vmatprep.subr.bf16.mxu0 0
      %1003 = vmatpush1.bf16.xpose.msra.mxu0 %v979
      %1004 = vmatprep.subr.bf16.mxu0 0
      %1005 = vmatpush1.bf16.xpose.msra.mxu0 %v982
      %1006 = vmatprep.subr.bf16.mxu0 0
      %1007 = vmatpush1.bf16.xpose.msra.mxu0 %v985
      %1008 = vmatprep.subr.bf16.mxu0 0
      %1009 = vmatpush1.bf16.xpose.msra.mxu0 %v988
      %1010 = vmatprep.subr.bf16.mxu0 0
      %1011 = vmatpush1.bf16.xpose.msra.mxu0 %v991
      %1012 = vmatprep.subr.bf16.mxu0 0
      %1013 = vmatpush1.bf16.xpose.msra.mxu0 %v994
      %1014 = vmatprep.subr.bf16.mxu0 0
      %1015 = vmatpush1.bf16.xpose.msra.mxu0 %v997
      %1016 = vmatprep.subr.bf16.mxu0 0
      %1017 = vmatpush1.bf16.xpose.msra.mxu0 %v1000
      %1018 = vmatprep.subr.bf16.mxu0 0
      %1019 = vmatpush1.bf16.xpose.msra.mxu0 0
      %1020 = vmatprep.subr.bf16.mxu0 0
      %1021 = vmatpush1.bf16.xpose.msra.mxu0 0
      %1022 = vmatprep.subr.bf16.mxu0 0
      %1023 = vmatpush1.bf16.xpose.msra.mxu0 0
      %1024 = vmatprep.subr.bf16.mxu0 0
      %1025 = vmatpush1.bf16.xpose.msra.mxu0 0
      %1026 = vmatprep.subr.bf16.mxu0 0
      %1027 = vmatpush1.bf16.xpose.msra.mxu0 0
      %1028 = vmatprep.subr.bf16.mxu0 0
      %1029 = vmatpush1.bf16.xpose.msra.mxu0 0
      %1030 = vmatprep.subr.bf16.mxu0 0
      %1031 = vmatpush1.bf16.xpose.msra.mxu0 0
      %1032 = vmatprep.subr.bf16.mxu0 0
      %1033 = vmatpush1.bf16.xpose.msra.mxu0 0
      %1034 = vmatprep.mubr.bf16.mxu0 0
      %1035 = vmatmul.mubr.bf16.gmra.mrb[0].mxu0 %v955
      %v1036 = vpop.f32.mrb[0].mxu0
      %v1037 = vadd.f32 0.0, %v1036
      %v1038 = vpop.f32.mrb[0].mxu0
      %v1039 = vpop.f32.mrb[0].mxu0
      %v1040 = vadd.f32 0.0, %v1039
      %v1041 = vpop.f32.mrb[0].mxu0
      %1042 = vmatprep.mubr.bf16.mxu0 0
      %1043 = vmatmul.mubr.bf16.gmra.mrb[0].mxu0 %v958
      %v1044 = vpop.f32.mrb[0].mxu0
      %v1045 = vadd.f32 0.0, %v1044
      %v1046 = vpop.f32.mrb[0].mxu0
      %v1047 = vpop.f32.mrb[0].mxu0
      %v1048 = vadd.f32 0.0, %v1047
      %v1049 = vpop.f32.mrb[0].mxu0
      %1050 = vmatprep.mubr.bf16.mxu0 0
      %1051 = vmatmul.mubr.bf16.gmra.mrb[0].mxu0 %v961
      %v1052 = vpop.f32.mrb[0].mxu0
      %v1053 = vadd.f32 0.0, %v1052
      %v1054 = vpop.f32.mrb[0].mxu0
      %v1055 = vpop.f32.mrb[0].mxu0
      %v1056 = vadd.f32 0.0, %v1055
      %v1057 = vpop.f32.mrb[0].mxu0
      %1058 = vmatprep.mubr.bf16.mxu0 0
      %1059 = vmatmul.mubr.bf16.gmra.mrb[0].mxu0 %v964
      %v1060 = vpop.f32.mrb[0].mxu0
      %v1061 = vadd.f32 0.0, %v1060
      %v1062 = vpop.f32.mrb[0].mxu0
      %v1063 = vpop.f32.mrb[0].mxu0
      %v1064 = vadd.f32 0.0, %v1063
      %v1065 = vpop.f32.mrb[0].mxu0
      %1066 = vmatprep.mubr.bf16.mxu0 0
      %1067 = vmatmul.mubr.bf16.gmra.mrb[0].mxu0 %v967
      %v1068 = vpop.f32.mrb[0].mxu0
      %v1069 = vadd.f32 0.0, %v1068
      %v1070 = vpop.f32.mrb[0].mxu0
      %v1071 = vpop.f32.mrb[0].mxu0
      %v1072 = vadd.f32 0.0, %v1071
      %v1073 = vpop.f32.mrb[0].mxu0
      %1074 = vmatprep.mubr.bf16.mxu0 0
      %1075 = vmatmul.mubr.bf16.gmra.mrb[0].mxu0 %v970
      %v1076 = vpop.f32.mrb[0].mxu0
      %v1077 = vadd.f32 0.0, %v1076
      %v1078 = vpop.f32.mrb[0].mxu0
      %v1079 = vpop.f32.mrb[0].mxu0
      %v1080 = vadd.f32 0.0, %v1079
      %v1081 = vpop.f32.mrb[0].mxu0
      %1082 = vmatprep.mubr.bf16.mxu0 0
      %1083 = vmatmul.mubr.bf16.gmra.mrb[0].mxu0 %v973
      %v1084 = vpop.f32.mrb[0].mxu0
      %v1085 = vadd.f32 0.0, %v1084
      %v1086 = vpop.f32.mrb[0].mxu0
      %v1087 = vpop.f32.mrb[0].mxu0
      %v1088 = vadd.f32 0.0, %v1087
      %v1089 = vpop.f32.mrb[0].mxu0
      %1090 = vmatprep.mubr.bf16.mxu0 0
      %1091 = vmatmul.mubr.bf16.gmra.mrb[0].mxu0 %v976
      %v1092 = vpop.f32.mrb[0].mxu0
      %v1093 = vadd.f32 0.0, %v1092
      %v1094 = vpop.f32.mrb[0].mxu0
      %v1095 = vpop.f32.mrb[0].mxu0
      %v1096 = vadd.f32 0.0, %v1095
      %v1097 = vpop.f32.mrb[0].mxu0
      %1098 = vdwg.mxu0
      %v1099 = vsel %vm624, %v1037, -1e+30
      %v1100 = vsel %vm624, %v1040, -1e+30
      %v1101 = vsel %vm624, %v1045, -1e+30
      %v1102 = vsel %vm624, %v1048, -1e+30
      %v1103 = vsel %vm624, %v1053, -1e+30
      %v1104 = vsel %vm624, %v1056, -1e+30
      %v1105 = vsel %vm624, %v1061, -1e+30
      %v1106 = vsel %vm624, %v1064, -1e+30
      %v1107 = vsel %vm624, %v1069, -1e+30
      %v1108 = vsel %vm624, %v1072, -1e+30
      %v1109 = vsel %vm624, %v1077, -1e+30
      %v1110 = vsel %vm624, %v1080, -1e+30
      %v1111 = vsel %vm624, %v1085, -1e+30
      %v1112 = vsel %vm624, %v1088, -1e+30
      %v1113 = vsel %vm624, %v1093, -1e+30
      %v1114 = vsel %vm624, %v1096, -1e+30
      %1115 = vmax.xlane.f32.xlu0 %v1099
      %v1116 = vpop.xlane.xlu0 %1115
      %1117 = vmax.xlane.f32.xlu0 %v1100
      %v1118 = vpop.xlane.xlu0 %1117
      %1119 = vmax.xlane.f32.xlu0 %v1101
      %v1120 = vpop.xlane.xlu0 %1119
      %1121 = vmax.xlane.f32.xlu0 %v1102
      %v1122 = vpop.xlane.xlu0 %1121
      %1123 = vmax.xlane.f32.xlu0 %v1103
      %v1124 = vpop.xlane.xlu0 %1123
      %1125 = vmax.xlane.f32.xlu0 %v1104
      %v1126 = vpop.xlane.xlu0 %1125
      %1127 = vmax.xlane.f32.xlu0 %v1105
      %v1128 = vpop.xlane.xlu0 %1127
      %1129 = vmax.xlane.f32.xlu0 %v1106
      %v1130 = vpop.xlane.xlu0 %1129
      %1131 = vmax.xlane.f32.xlu0 %v1107
      %v1132 = vpop.xlane.xlu0 %1131
      %1133 = vmax.xlane.f32.xlu0 %v1108
      %v1134 = vpop.xlane.xlu0 %1133
      %1135 = vmax.xlane.f32.xlu0 %v1109
      %v1136 = vpop.xlane.xlu0 %1135
      %1137 = vmax.xlane.f32.xlu0 %v1110
      %v1138 = vpop.xlane.xlu0 %1137
      %1139 = vmax.xlane.f32.xlu0 %v1111
      %v1140 = vpop.xlane.xlu0 %1139
      %1141 = vmax.xlane.f32.xlu0 %v1112
      %v1142 = vpop.xlane.xlu0 %1141
      %1143 = vmax.xlane.f32.xlu0 %v1113
      %v1144 = vpop.xlane.xlu0 %1143
      %1145 = vmax.xlane.f32.xlu0 %v1114
      %v1146 = vpop.xlane.xlu0 %1145
      %v1147 = vsub.f32 %v1099, %v1116
      %v1148 = vsub.f32 %v1100, %v1118
      %v1149 = vsub.f32 %v1101, %v1120
      %v1150 = vsub.f32 %v1102, %v1122
      %v1151 = vsub.f32 %v1103, %v1124
      %v1152 = vsub.f32 %v1104, %v1126
      %v1153 = vsub.f32 %v1105, %v1128
      %v1154 = vsub.f32 %v1106, %v1130
      %v1155 = vsub.f32 %v1107, %v1132
      %v1156 = vsub.f32 %v1108, %v1134
      %v1157 = vsub.f32 %v1109, %v1136
      %v1158 = vsub.f32 %v1110, %v1138
      %v1159 = vsub.f32 %v1111, %v1140
      %v1160 = vsub.f32 %v1112, %v1142
      %v1161 = vsub.f32 %v1113, %v1144
      %v1162 = vsub.f32 %v1114, %v1146
      %v1163 = vmul.f32 %v1147, 1.442695
      %v1164 = vpow.pop %v1163
      %v1165 = vmul.f32 %v1148, 1.442695
      %v1166 = vpow.pop %v1165
      %v1167 = vmul.f32 %v1149, 1.442695
      %v1168 = vpow.pop %v1167
      %v1169 = vmul.f32 %v1150, 1.442695
      %v1170 = vpow.pop %v1169
      %v1171 = vmul.f32 %v1151, 1.442695
      %v1172 = vpow.pop %v1171
      %v1173 = vmul.f32 %v1152, 1.442695
      %v1174 = vpow.pop %v1173
      %v1175 = vmul.f32 %v1153, 1.442695
      %v1176 = vpow.pop %v1175
      %v1177 = vmul.f32 %v1154, 1.442695
      %v1178 = vpow.pop %v1177
      %v1179 = vmul.f32 %v1155, 1.442695
      %v1180 = vpow.pop %v1179
      %v1181 = vmul.f32 %v1156, 1.442695
      %v1182 = vpow.pop %v1181
      %v1183 = vmul.f32 %v1157, 1.442695
      %v1184 = vpow.pop %v1183
      %v1185 = vmul.f32 %v1158, 1.442695
      %v1186 = vpow.pop %v1185
      %v1187 = vmul.f32 %v1159, 1.442695
      %v1188 = vpow.pop %v1187
      %v1189 = vmul.f32 %v1160, 1.442695
      %v1190 = vpow.pop %v1189
      %v1191 = vmul.f32 %v1161, 1.442695
      %v1192 = vpow.pop %v1191
      %v1193 = vmul.f32 %v1162, 1.442695
      %v1194 = vpow.pop %v1193
      %1195 = vadd.xlane.f32.xlu0 %v1164
      %v1196 = vpop.xlane.xlu0 %1195
      %1197 = vadd.xlane.f32.xlu0 %v1166
      %v1198 = vpop.xlane.xlu0 %1197
      %1199 = vadd.xlane.f32.xlu0 %v1168
      %v1200 = vpop.xlane.xlu0 %1199
      %1201 = vadd.xlane.f32.xlu0 %v1170
      %v1202 = vpop.xlane.xlu0 %1201
      %1203 = vadd.xlane.f32.xlu0 %v1172
      %v1204 = vpop.xlane.xlu0 %1203
      %1205 = vadd.xlane.f32.xlu0 %v1174
      %v1206 = vpop.xlane.xlu0 %1205
      %1207 = vadd.xlane.f32.xlu0 %v1176
      %v1208 = vpop.xlane.xlu0 %1207
      %1209 = vadd.xlane.f32.xlu0 %v1178
      %v1210 = vpop.xlane.xlu0 %1209
      %1211 = vadd.xlane.f32.xlu0 %v1180
      %v1212 = vpop.xlane.xlu0 %1211
      %1213 = vadd.xlane.f32.xlu0 %v1182
      %v1214 = vpop.xlane.xlu0 %1213
      %1215 = vadd.xlane.f32.xlu0 %v1184
      %v1216 = vpop.xlane.xlu0 %1215
      %1217 = vadd.xlane.f32.xlu0 %v1186
      %v1218 = vpop.xlane.xlu0 %1217
      %1219 = vadd.xlane.f32.xlu0 %v1188
      %v1220 = vpop.xlane.xlu0 %1219
      %1221 = vadd.xlane.f32.xlu0 %v1190
      %v1222 = vpop.xlane.xlu0 %1221
      %1223 = vadd.xlane.f32.xlu0 %v1192
      %v1224 = vpop.xlane.xlu0 %1223
      %1225 = vadd.xlane.f32.xlu0 %v1194
      %v1226 = vpop.xlane.xlu0 %1225
      %v1227 = vrcp.pop %v1196
      %v1228 = vrcp.pop %v1198
      %v1229 = vrcp.pop %v1200
      %v1230 = vrcp.pop %v1202
      %v1231 = vrcp.pop %v1204
      %v1232 = vrcp.pop %v1206
      %v1233 = vrcp.pop %v1208
      %v1234 = vrcp.pop %v1210
      %v1235 = vrcp.pop %v1212
      %v1236 = vrcp.pop %v1214
      %v1237 = vrcp.pop %v1216
      %v1238 = vrcp.pop %v1218
      %v1239 = vrcp.pop %v1220
      %v1240 = vrcp.pop %v1222
      %v1241 = vrcp.pop %v1224
      %v1242 = vrcp.pop %v1226
      %v1243 = vmul.f32 %v1164, %v1227
      %v1244 = vmul.f32 %v1166, %v1228
      %v1245 = vmul.f32 %v1168, %v1229
      %v1246 = vmul.f32 %v1170, %v1230
      %v1247 = vmul.f32 %v1172, %v1231
      %v1248 = vmul.f32 %v1174, %v1232
      %v1249 = vmul.f32 %v1176, %v1233
      %v1250 = vmul.f32 %v1178, %v1234
      %v1251 = vmul.f32 %v1180, %v1235
      %v1252 = vmul.f32 %v1182, %v1236
      %v1253 = vmul.f32 %v1184, %v1237
      %v1254 = vmul.f32 %v1186, %v1238
      %v1255 = vmul.f32 %v1188, %v1239
      %v1256 = vmul.f32 %v1190, %v1240
      %v1257 = vmul.f32 %v1192, %v1241
      %v1258 = vmul.f32 %v1194, %v1242
      %v1259 = vpack.c.bf16 %v1244, %v1243
      %v1260 = vpack.c.bf16 %v1246, %v1245
      %v1261 = vpack.c.bf16 %v1248, %v1247
      %v1262 = vpack.c.bf16 %v1250, %v1249
      %v1263 = vpack.c.bf16 %v1252, %v1251
      %v1264 = vpack.c.bf16 %v1254, %v1253
      %v1265 = vpack.c.bf16 %v1256, %v1255
      %v1266 = vpack.c.bf16 %v1258, %v1257
      %1267 = vrot.lane.b32.xlu0 %v445, 60
      %v1268 = vpop.permute.xlu0 %1267
      %1269 = vrot.lane.b32.xlu0 %v446, 60
      %v1270 = vpop.permute.xlu0 %1269
      %1271 = vrot.lane.b32.xlu0 %v447, 60
      %v1272 = vpop.permute.xlu0 %1271
      %1273 = vrot.lane.b32.xlu0 %v448, 60
      %v1274 = vpop.permute.xlu0 %1273
      %1275 = vrot.lane.b32.xlu0 %v449, 60
      %v1276 = vpop.permute.xlu0 %1275
      %1277 = vrot.lane.b32.xlu0 %v450, 60
      %v1278 = vpop.permute.xlu0 %1277
      %1279 = vrot.lane.b32.xlu0 %v451, 60
      %v1280 = vpop.permute.xlu0 %1279
      %1281 = vrot.lane.b32.xlu0 %v452, 60
      %v1282 = vpop.permute.xlu0 %1281
      %1291 = vmatprep.subr.bf16.mxu0 0
      %1292 = vmatpush1.bf16.msra.mxu0 %v1268
      %1293 = vmatprep.subr.bf16.mxu0 0
      %1294 = vmatpush1.bf16.msra.mxu0 %v1270
      %1295 = vmatprep.subr.bf16.mxu0 0
      %1296 = vmatpush1.bf16.msra.mxu0 %v1272
      %1297 = vmatprep.subr.bf16.mxu0 0
      %1298 = vmatpush1.bf16.msra.mxu0 %v1274
      %1299 = vmatprep.subr.bf16.mxu0 0
      %1300 = vmatpush1.bf16.msra.mxu0 %v1276
      %1301 = vmatprep.subr.bf16.mxu0 0
      %1302 = vmatpush1.bf16.msra.mxu0 %v1278
      %1303 = vmatprep.subr.bf16.mxu0 0
      %1304 = vmatpush1.bf16.msra.mxu0 %v1280
      %1305 = vmatprep.subr.bf16.mxu0 0
      %1306 = vmatpush1.bf16.msra.mxu0 %v1282
      %1307 = vmatprep.subr.bf16.mxu0 0
      %1308 = vmatpush1.bf16.msra.mxu0 0
      %1309 = vmatprep.subr.bf16.mxu0 0
      %1310 = vmatpush1.bf16.msra.mxu0 0
      %1311 = vmatprep.subr.bf16.mxu0 0
      %1312 = vmatpush1.bf16.msra.mxu0 0
      %1313 = vmatprep.subr.bf16.mxu0 0
      %1314 = vmatpush1.bf16.msra.mxu0 0
      %1315 = vmatprep.subr.bf16.mxu0 0
      %1316 = vmatpush1.bf16.msra.mxu0 0
      %1317 = vmatprep.subr.bf16.mxu0 0
      %1318 = vmatpush1.bf16.msra.mxu0 0
      %1319 = vmatprep.subr.bf16.mxu0 0
      %1320 = vmatpush1.bf16.msra.mxu0 0
      %1321 = vmatprep.subr.bf16.mxu0 0
      %1322 = vmatpush1.bf16.msra.mxu0 0
      %1323 = vmatprep.mubr.bf16.mxu0 0
      %1324 = vmatmul.mubr.bf16.gmra.mrb[0].mxu0 %v1259
      %v1325 = vpop.f32.mrb[0].mxu0
      %v1326 = vadd.f32 0.0, %v1325
      %v1327 = vpop.f32.mrb[0].mxu0
      %v1328 = vpop.f32.mrb[0].mxu0
      %v1329 = vadd.f32 0.0, %v1328
      %v1330 = vpop.f32.mrb[0].mxu0
      %1331 = vmatprep.mubr.bf16.mxu0 0
      %1332 = vmatmul.mubr.bf16.gmra.mrb[0].mxu0 %v1260
      %v1333 = vpop.f32.mrb[0].mxu0
      %v1334 = vadd.f32 0.0, %v1333
      %v1335 = vpop.f32.mrb[0].mxu0
      %v1336 = vpop.f32.mrb[0].mxu0
      %v1337 = vadd.f32 0.0, %v1336
      %v1338 = vpop.f32.mrb[0].mxu0
      %1339 = vmatprep.mubr.bf16.mxu0 0
      %1340 = vmatmul.mubr.bf16.gmra.mrb[0].mxu0 %v1261
      %v1341 = vpop.f32.mrb[0].mxu0
      %v1342 = vadd.f32 0.0, %v1341
      %v1343 = vpop.f32.mrb[0].mxu0
      %v1344 = vpop.f32.mrb[0].mxu0
      %v1345 = vadd.f32 0.0, %v1344
      %v1346 = vpop.f32.mrb[0].mxu0
      %1347 = vmatprep.mubr.bf16.mxu0 0
      %1348 = vmatmul.mubr.bf16.gmra.mrb[0].mxu0 %v1262
      %v1349 = vpop.f32.mrb[0].mxu0
      %v1350 = vadd.f32 0.0, %v1349
      %v1351 = vpop.f32.mrb[0].mxu0
      %v1352 = vpop.f32.mrb[0].mxu0
      %v1353 = vadd.f32 0.0, %v1352
      %v1354 = vpop.f32.mrb[0].mxu0
      %1355 = vmatprep.mubr.bf16.mxu0 0
      %1356 = vmatmul.mubr.bf16.gmra.mrb[0].mxu0 %v1263
      %v1357 = vpop.f32.mrb[0].mxu0
      %v1358 = vadd.f32 0.0, %v1357
      %v1359 = vpop.f32.mrb[0].mxu0
      %v1360 = vpop.f32.mrb[0].mxu0
      %v1361 = vadd.f32 0.0, %v1360
      %v1362 = vpop.f32.mrb[0].mxu0
      %1363 = vmatprep.mubr.bf16.mxu0 0
      %1364 = vmatmul.mubr.bf16.gmra.mrb[0].mxu0 %v1264
      %v1365 = vpop.f32.mrb[0].mxu0
      %v1366 = vadd.f32 0.0, %v1365
      %v1367 = vpop.f32.mrb[0].mxu0
      %v1368 = vpop.f32.mrb[0].mxu0
      %v1369 = vadd.f32 0.0, %v1368
      %v1370 = vpop.f32.mrb[0].mxu0
      %1371 = vmatprep.mubr.bf16.mxu0 0
      %1372 = vmatmul.mubr.bf16.gmra.mrb[0].mxu0 %v1265
      %v1373 = vpop.f32.mrb[0].mxu0
      %v1374 = vadd.f32 0.0, %v1373
      %v1375 = vpop.f32.mrb[0].mxu0
      %v1376 = vpop.f32.mrb[0].mxu0
      %v1377 = vadd.f32 0.0, %v1376
      %v1378 = vpop.f32.mrb[0].mxu0
      %1379 = vmatprep.mubr.bf16.mxu0 0
      %1380 = vmatmul.mubr.bf16.gmra.mrb[0].mxu0 %v1266
      %v1381 = vpop.f32.mrb[0].mxu0
      %v1382 = vadd.f32 0.0, %v1381
      %v1383 = vpop.f32.mrb[0].mxu0
      %v1384 = vpop.f32.mrb[0].mxu0
      %v1385 = vadd.f32 0.0, %v1384
      %v1386 = vpop.f32.mrb[0].mxu0
      %1387 = vdwg.mxu0
      %v1388 = vpack.c.bf16 %v1329, %v1326
      %v1389 = vpack.c.bf16 %v1337, %v1334
      %v1390 = vpack.c.bf16 %v1345, %v1342
      %v1391 = vpack.c.bf16 %v1353, %v1350
      %v1392 = vpack.c.bf16 %v1361, %v1358
      %v1393 = vpack.c.bf16 %v1369, %v1366
      %v1394 = vpack.c.bf16 %v1377, %v1374
      %v1395 = vpack.c.bf16 %v1385, %v1382
      %1396 = vrot.lane.b32.xlu0 %v445, 120
      %v1397 = vpop.permute.xlu0 %1396
      %1398 = vrot.lane.b32.xlu0 %v446, 120
      %v1399 = vpop.permute.xlu0 %1398
      %1400 = vrot.lane.b32.xlu0 %v447, 120
      %v1401 = vpop.permute.xlu0 %1400
      %1402 = vrot.lane.b32.xlu0 %v448, 120
      %v1403 = vpop.permute.xlu0 %1402
      %1404 = vrot.lane.b32.xlu0 %v449, 120
      %v1405 = vpop.permute.xlu0 %1404
      %1406 = vrot.lane.b32.xlu0 %v450, 120
      %v1407 = vpop.permute.xlu0 %1406
      %1408 = vrot.lane.b32.xlu0 %v451, 120
      %v1409 = vpop.permute.xlu0 %1408
      %1410 = vrot.lane.b32.xlu0 %v452, 120
      %v1411 = vpop.permute.xlu0 %1410
      %1412 = vrot.lane.b32.xlu0 %v445, 88
      %v1413 = vpop.permute.xlu0 %1412
      %1414 = vrot.lane.b32.xlu0 %v446, 88
      %v1415 = vpop.permute.xlu0 %1414
      %1416 = vrot.lane.b32.xlu0 %v447, 88
      %v1417 = vpop.permute.xlu0 %1416
      %1418 = vrot.lane.b32.xlu0 %v448, 88
      %v1419 = vpop.permute.xlu0 %1418
      %1420 = vrot.lane.b32.xlu0 %v449, 88
      %v1421 = vpop.permute.xlu0 %1420
      %1422 = vrot.lane.b32.xlu0 %v450, 88
      %v1423 = vpop.permute.xlu0 %1422
      %1424 = vrot.lane.b32.xlu0 %v451, 88
      %v1425 = vpop.permute.xlu0 %1424
      %1426 = vrot.lane.b32.xlu0 %v452, 88
      %v1427 = vpop.permute.xlu0 %1426
      %v1429 = vsel %vm477, %v1397, 0
      %v1432 = vsel %vm477, %v1399, 0
      %v1435 = vsel %vm477, %v1401, 0
      %v1438 = vsel %vm477, %v1403, 0
      %v1441 = vsel %vm477, %v1405, 0
      %v1444 = vsel %vm477, %v1407, 0
      %v1447 = vsel %vm477, %v1409, 0
      %v1450 = vsel %vm477, %v1411, 0
      %v1453 = vsel %vm477, %v1413, 0
      %v1456 = vsel %vm477, %v1415, 0
      %v1459 = vsel %vm477, %v1417, 0
      %v1462 = vsel %vm477, %v1419, 0
      %v1465 = vsel %vm477, %v1421, 0
      %v1468 = vsel %vm477, %v1423, 0
      %v1471 = vsel %vm477, %v1425, 0
      %v1474 = vsel %vm477, %v1427, 0
      %1476 = vmatprep.subr.bf16.mxu0 0
      %1477 = vmatpush1.bf16.xpose.msra.mxu0 %v1453
      %1478 = vmatprep.subr.bf16.mxu0 0
      %1479 = vmatpush1.bf16.xpose.msra.mxu0 %v1456
      %1480 = vmatprep.subr.bf16.mxu0 0
      %1481 = vmatpush1.bf16.xpose.msra.mxu0 %v1459
      %1482 = vmatprep.subr.bf16.mxu0 0
      %1483 = vmatpush1.bf16.xpose.msra.mxu0 %v1462
      %1484 = vmatprep.subr.bf16.mxu0 0
      %1485 = vmatpush1.bf16.xpose.msra.mxu0 %v1465
      %1486 = vmatprep.subr.bf16.mxu0 0
      %1487 = vmatpush1.bf16.xpose.msra.mxu0 %v1468
      %1488 = vmatprep.subr.bf16.mxu0 0
      %1489 = vmatpush1.bf16.xpose.msra.mxu0 %v1471
      %1490 = vmatprep.subr.bf16.mxu0 0
      %1491 = vmatpush1.bf16.xpose.msra.mxu0 %v1474
      %1492 = vmatprep.subr.bf16.mxu0 0
      %1493 = vmatpush1.bf16.xpose.msra.mxu0 0
      %1494 = vmatprep.subr.bf16.mxu0 0
      %1495 = vmatpush1.bf16.xpose.msra.mxu0 0
      %1496 = vmatprep.subr.bf16.mxu0 0
      %1497 = vmatpush1.bf16.xpose.msra.mxu0 0
      %1498 = vmatprep.subr.bf16.mxu0 0
      %1499 = vmatpush1.bf16.xpose.msra.mxu0 0
      %1500 = vmatprep.subr.bf16.mxu0 0
      %1501 = vmatpush1.bf16.xpose.msra.mxu0 0
      %1502 = vmatprep.subr.bf16.mxu0 0
      %1503 = vmatpush1.bf16.xpose.msra.mxu0 0
      %1504 = vmatprep.subr.bf16.mxu0 0
      %1505 = vmatpush1.bf16.xpose.msra.mxu0 0
      %1506 = vmatprep.subr.bf16.mxu0 0
      %1507 = vmatpush1.bf16.xpose.msra.mxu0 0
      %1508 = vmatprep.mubr.bf16.mxu0 0
      %1509 = vmatmul.mubr.bf16.gmra.mrb[0].mxu0 %v1429
      %v1510 = vpop.f32.mrb[0].mxu0
      %v1511 = vadd.f32 0.0, %v1510
      %v1512 = vpop.f32.mrb[0].mxu0
      %v1513 = vpop.f32.mrb[0].mxu0
      %v1514 = vadd.f32 0.0, %v1513
      %v1515 = vpop.f32.mrb[0].mxu0
      %1516 = vmatprep.mubr.bf16.mxu0 0
      %1517 = vmatmul.mubr.bf16.gmra.mrb[0].mxu0 %v1432
      %v1518 = vpop.f32.mrb[0].mxu0
      %v1519 = vadd.f32 0.0, %v1518
      %v1520 = vpop.f32.mrb[0].mxu0
      %v1521 = vpop.f32.mrb[0].mxu0
      %v1522 = vadd.f32 0.0, %v1521
      %v1523 = vpop.f32.mrb[0].mxu0
      %1524 = vmatprep.mubr.bf16.mxu0 0
      %1525 = vmatmul.mubr.bf16.gmra.mrb[0].mxu0 %v1435
      %v1526 = vpop.f32.mrb[0].mxu0
      %v1527 = vadd.f32 0.0, %v1526
      %v1528 = vpop.f32.mrb[0].mxu0
      %v1529 = vpop.f32.mrb[0].mxu0
      %v1530 = vadd.f32 0.0, %v1529
      %v1531 = vpop.f32.mrb[0].mxu0
      %1532 = vmatprep.mubr.bf16.mxu0 0
      %1533 = vmatmul.mubr.bf16.gmra.mrb[0].mxu0 %v1438
      %v1534 = vpop.f32.mrb[0].mxu0
      %v1535 = vadd.f32 0.0, %v1534
      %v1536 = vpop.f32.mrb[0].mxu0
      %v1537 = vpop.f32.mrb[0].mxu0
      %v1538 = vadd.f32 0.0, %v1537
      %v1539 = vpop.f32.mrb[0].mxu0
      %1540 = vmatprep.mubr.bf16.mxu0 0
      %1541 = vmatmul.mubr.bf16.gmra.mrb[0].mxu0 %v1441
      %v1542 = vpop.f32.mrb[0].mxu0
      %v1543 = vadd.f32 0.0, %v1542
      %v1544 = vpop.f32.mrb[0].mxu0
      %v1545 = vpop.f32.mrb[0].mxu0
      %v1546 = vadd.f32 0.0, %v1545
      %v1547 = vpop.f32.mrb[0].mxu0
      %1548 = vmatprep.mubr.bf16.mxu0 0
      %1549 = vmatmul.mubr.bf16.gmra.mrb[0].mxu0 %v1444
      %v1550 = vpop.f32.mrb[0].mxu0
      %v1551 = vadd.f32 0.0, %v1550
      %v1552 = vpop.f32.mrb[0].mxu0
      %v1553 = vpop.f32.mrb[0].mxu0
      %v1554 = vadd.f32 0.0, %v1553
      %v1555 = vpop.f32.mrb[0].mxu0
      %1556 = vmatprep.mubr.bf16.mxu0 0
      %1557 = vmatmul.mubr.bf16.gmra.mrb[0].mxu0 %v1447
      %v1558 = vpop.f32.mrb[0].mxu0
      %v1559 = vadd.f32 0.0, %v1558
      %v1560 = vpop.f32.mrb[0].mxu0
      %v1561 = vpop.f32.mrb[0].mxu0
      %v1562 = vadd.f32 0.0, %v1561
      %v1563 = vpop.f32.mrb[0].mxu0
      %1564 = vmatprep.mubr.bf16.mxu0 0
      %1565 = vmatmul.mubr.bf16.gmra.mrb[0].mxu0 %v1450
      %v1566 = vpop.f32.mrb[0].mxu0
      %v1567 = vadd.f32 0.0, %v1566
      %v1568 = vpop.f32.mrb[0].mxu0
      %v1569 = vpop.f32.mrb[0].mxu0
      %v1570 = vadd.f32 0.0, %v1569
      %v1571 = vpop.f32.mrb[0].mxu0
      %1572 = vdwg.mxu0
      %v1573 = vsel %vm624, %v1511, -1e+30
      %v1574 = vsel %vm624, %v1514, -1e+30
      %v1575 = vsel %vm624, %v1519, -1e+30
      %v1576 = vsel %vm624, %v1522, -1e+30
      %v1577 = vsel %vm624, %v1527, -1e+30
      %v1578 = vsel %vm624, %v1530, -1e+30
      %v1579 = vsel %vm624, %v1535, -1e+30
      %v1580 = vsel %vm624, %v1538, -1e+30
      %v1581 = vsel %vm624, %v1543, -1e+30
      %v1582 = vsel %vm624, %v1546, -1e+30
      %v1583 = vsel %vm624, %v1551, -1e+30
      %v1584 = vsel %vm624, %v1554, -1e+30
      %v1585 = vsel %vm624, %v1559, -1e+30
      %v1586 = vsel %vm624, %v1562, -1e+30
      %v1587 = vsel %vm624, %v1567, -1e+30
      %v1588 = vsel %vm624, %v1570, -1e+30
      %1589 = vmax.xlane.f32.xlu0 %v1573
      %v1590 = vpop.xlane.xlu0 %1589
      %1591 = vmax.xlane.f32.xlu0 %v1574
      %v1592 = vpop.xlane.xlu0 %1591
      %1593 = vmax.xlane.f32.xlu0 %v1575
      %v1594 = vpop.xlane.xlu0 %1593
      %1595 = vmax.xlane.f32.xlu0 %v1576
      %v1596 = vpop.xlane.xlu0 %1595
      %1597 = vmax.xlane.f32.xlu0 %v1577
      %v1598 = vpop.xlane.xlu0 %1597
      %1599 = vmax.xlane.f32.xlu0 %v1578
      %v1600 = vpop.xlane.xlu0 %1599
      %1601 = vmax.xlane.f32.xlu0 %v1579
      %v1602 = vpop.xlane.xlu0 %1601
      %1603 = vmax.xlane.f32.xlu0 %v1580
      %v1604 = vpop.xlane.xlu0 %1603
      %1605 = vmax.xlane.f32.xlu0 %v1581
      %v1606 = vpop.xlane.xlu0 %1605
      %1607 = vmax.xlane.f32.xlu0 %v1582
      %v1608 = vpop.xlane.xlu0 %1607
      %1609 = vmax.xlane.f32.xlu0 %v1583
      %v1610 = vpop.xlane.xlu0 %1609
      %1611 = vmax.xlane.f32.xlu0 %v1584
      %v1612 = vpop.xlane.xlu0 %1611
      %1613 = vmax.xlane.f32.xlu0 %v1585
      %v1614 = vpop.xlane.xlu0 %1613
      %1615 = vmax.xlane.f32.xlu0 %v1586
      %v1616 = vpop.xlane.xlu0 %1615
      %1617 = vmax.xlane.f32.xlu0 %v1587
      %v1618 = vpop.xlane.xlu0 %1617
      %1619 = vmax.xlane.f32.xlu0 %v1588
      %v1620 = vpop.xlane.xlu0 %1619
      %v1621 = vsub.f32 %v1573, %v1590
      %v1622 = vsub.f32 %v1574, %v1592
      %v1623 = vsub.f32 %v1575, %v1594
      %v1624 = vsub.f32 %v1576, %v1596
      %v1625 = vsub.f32 %v1577, %v1598
      %v1626 = vsub.f32 %v1578, %v1600
      %v1627 = vsub.f32 %v1579, %v1602
      %v1628 = vsub.f32 %v1580, %v1604
      %v1629 = vsub.f32 %v1581, %v1606
      %v1630 = vsub.f32 %v1582, %v1608
      %v1631 = vsub.f32 %v1583, %v1610
      %v1632 = vsub.f32 %v1584, %v1612
      %v1633 = vsub.f32 %v1585, %v1614
      %v1634 = vsub.f32 %v1586, %v1616
      %v1635 = vsub.f32 %v1587, %v1618
      %v1636 = vsub.f32 %v1588, %v1620
      %v1637 = vmul.f32 %v1621, 1.442695
      %v1638 = vpow.pop %v1637
      %v1639 = vmul.f32 %v1622, 1.442695
      %v1640 = vpow.pop %v1639
      %v1641 = vmul.f32 %v1623, 1.442695
      %v1642 = vpow.pop %v1641
      %v1643 = vmul.f32 %v1624, 1.442695
      %v1644 = vpow.pop %v1643
      %v1645 = vmul.f32 %v1625, 1.442695
      %v1646 = vpow.pop %v1645
      %v1647 = vmul.f32 %v1626, 1.442695
      %v1648 = vpow.pop %v1647
      %v1649 = vmul.f32 %v1627, 1.442695
      %v1650 = vpow.pop %v1649
      %v1651 = vmul.f32 %v1628, 1.442695
      %v1652 = vpow.pop %v1651
      %v1653 = vmul.f32 %v1629, 1.442695
      %v1654 = vpow.pop %v1653
      %v1655 = vmul.f32 %v1630, 1.442695
      %v1656 = vpow.pop %v1655
      %v1657 = vmul.f32 %v1631, 1.442695
      %v1658 = vpow.pop %v1657
      %v1659 = vmul.f32 %v1632, 1.442695
      %v1660 = vpow.pop %v1659
      %v1661 = vmul.f32 %v1633, 1.442695
      %v1662 = vpow.pop %v1661
      %v1663 = vmul.f32 %v1634, 1.442695
      %v1664 = vpow.pop %v1663
      %v1665 = vmul.f32 %v1635, 1.442695
      %v1666 = vpow.pop %v1665
      %v1667 = vmul.f32 %v1636, 1.442695
      %v1668 = vpow.pop %v1667
      %1669 = vadd.xlane.f32.xlu0 %v1638
      %v1670 = vpop.xlane.xlu0 %1669
      %1671 = vadd.xlane.f32.xlu0 %v1640
      %v1672 = vpop.xlane.xlu0 %1671
      %1673 = vadd.xlane.f32.xlu0 %v1642
      %v1674 = vpop.xlane.xlu0 %1673
      %1675 = vadd.xlane.f32.xlu0 %v1644
      %v1676 = vpop.xlane.xlu0 %1675
      %1677 = vadd.xlane.f32.xlu0 %v1646
      %v1678 = vpop.xlane.xlu0 %1677
      %1679 = vadd.xlane.f32.xlu0 %v1648
      %v1680 = vpop.xlane.xlu0 %1679
      %1681 = vadd.xlane.f32.xlu0 %v1650
      %v1682 = vpop.xlane.xlu0 %1681
      %1683 = vadd.xlane.f32.xlu0 %v1652
      %v1684 = vpop.xlane.xlu0 %1683
      %1685 = vadd.xlane.f32.xlu0 %v1654
      %v1686 = vpop.xlane.xlu0 %1685
      %1687 = vadd.xlane.f32.xlu0 %v1656
      %v1688 = vpop.xlane.xlu0 %1687
      %1689 = vadd.xlane.f32.xlu0 %v1658
      %v1690 = vpop.xlane.xlu0 %1689
      %1691 = vadd.xlane.f32.xlu0 %v1660
      %v1692 = vpop.xlane.xlu0 %1691
      %1693 = vadd.xlane.f32.xlu0 %v1662
      %v1694 = vpop.xlane.xlu0 %1693
      %1695 = vadd.xlane.f32.xlu0 %v1664
      %v1696 = vpop.xlane.xlu0 %1695
      %1697 = vadd.xlane.f32.xlu0 %v1666
      %v1698 = vpop.xlane.xlu0 %1697
      %1699 = vadd.xlane.f32.xlu0 %v1668
      %v1700 = vpop.xlane.xlu0 %1699
      %v1701 = vrcp.pop %v1670
      %v1702 = vrcp.pop %v1672
      %v1703 = vrcp.pop %v1674
      %v1704 = vrcp.pop %v1676
      %v1705 = vrcp.pop %v1678
      %v1706 = vrcp.pop %v1680
      %v1707 = vrcp.pop %v1682
      %v1708 = vrcp.pop %v1684
      %v1709 = vrcp.pop %v1686
      %v1710 = vrcp.pop %v1688
      %v1711 = vrcp.pop %v1690
      %v1712 = vrcp.pop %v1692
      %v1713 = vrcp.pop %v1694
      %v1714 = vrcp.pop %v1696
      %v1715 = vrcp.pop %v1698
      %v1716 = vrcp.pop %v1700
      %v1717 = vmul.f32 %v1638, %v1701
      %v1718 = vmul.f32 %v1640, %v1702
      %v1719 = vmul.f32 %v1642, %v1703
      %v1720 = vmul.f32 %v1644, %v1704
      %v1721 = vmul.f32 %v1646, %v1705
      %v1722 = vmul.f32 %v1648, %v1706
      %v1723 = vmul.f32 %v1650, %v1707
      %v1724 = vmul.f32 %v1652, %v1708
      %v1725 = vmul.f32 %v1654, %v1709
      %v1726 = vmul.f32 %v1656, %v1710
      %v1727 = vmul.f32 %v1658, %v1711
      %v1728 = vmul.f32 %v1660, %v1712
      %v1729 = vmul.f32 %v1662, %v1713
      %v1730 = vmul.f32 %v1664, %v1714
      %v1731 = vmul.f32 %v1666, %v1715
      %v1732 = vmul.f32 %v1668, %v1716
      %v1733 = vpack.c.bf16 %v1718, %v1717
      %v1734 = vpack.c.bf16 %v1720, %v1719
      %v1735 = vpack.c.bf16 %v1722, %v1721
      %v1736 = vpack.c.bf16 %v1724, %v1723
      %v1737 = vpack.c.bf16 %v1726, %v1725
      %v1738 = vpack.c.bf16 %v1728, %v1727
      %v1739 = vpack.c.bf16 %v1730, %v1729
      %v1740 = vpack.c.bf16 %v1732, %v1731
      %1741 = vrot.lane.b32.xlu0 %v445, 56
      %v1742 = vpop.permute.xlu0 %1741
      %1743 = vrot.lane.b32.xlu0 %v446, 56
      %v1744 = vpop.permute.xlu0 %1743
      %1745 = vrot.lane.b32.xlu0 %v447, 56
      %v1746 = vpop.permute.xlu0 %1745
      %1747 = vrot.lane.b32.xlu0 %v448, 56
      %v1748 = vpop.permute.xlu0 %1747
      %1749 = vrot.lane.b32.xlu0 %v449, 56
      %v1750 = vpop.permute.xlu0 %1749
      %1751 = vrot.lane.b32.xlu0 %v450, 56
      %v1752 = vpop.permute.xlu0 %1751
      %1753 = vrot.lane.b32.xlu0 %v451, 56
      %v1754 = vpop.permute.xlu0 %1753
      %1755 = vrot.lane.b32.xlu0 %v452, 56
      %v1756 = vpop.permute.xlu0 %1755
      %1765 = vmatprep.subr.bf16.mxu0 0
      %1766 = vmatpush1.bf16.msra.mxu0 %v1742
      %1767 = vmatprep.subr.bf16.mxu0 0
      %1768 = vmatpush1.bf16.msra.mxu0 %v1744
      %1769 = vmatprep.subr.bf16.mxu0 0
      %1770 = vmatpush1.bf16.msra.mxu0 %v1746
      %1771 = vmatprep.subr.bf16.mxu0 0
      %1772 = vmatpush1.bf16.msra.mxu0 %v1748
      %1773 = vmatprep.subr.bf16.mxu0 0
      %1774 = vmatpush1.bf16.msra.mxu0 %v1750
      %1775 = vmatprep.subr.bf16.mxu0 0
      %1776 = vmatpush1.bf16.msra.mxu0 %v1752
      %1777 = vmatprep.subr.bf16.mxu0 0
      %1778 = vmatpush1.bf16.msra.mxu0 %v1754
      %1779 = vmatprep.subr.bf16.mxu0 0
      %1780 = vmatpush1.bf16.msra.mxu0 %v1756
      %1781 = vmatprep.subr.bf16.mxu0 0
      %1782 = vmatpush1.bf16.msra.mxu0 0
      %1783 = vmatprep.subr.bf16.mxu0 0
      %1784 = vmatpush1.bf16.msra.mxu0 0
      %1785 = vmatprep.subr.bf16.mxu0 0
      %1786 = vmatpush1.bf16.msra.mxu0 0
      %1787 = vmatprep.subr.bf16.mxu0 0
      %1788 = vmatpush1.bf16.msra.mxu0 0
      %1789 = vmatprep.subr.bf16.mxu0 0
      %1790 = vmatpush1.bf16.msra.mxu0 0
      %1791 = vmatprep.subr.bf16.mxu0 0
      %1792 = vmatpush1.bf16.msra.mxu0 0
      %1793 = vmatprep.subr.bf16.mxu0 0
      %1794 = vmatpush1.bf16.msra.mxu0 0
      %1795 = vmatprep.subr.bf16.mxu0 0
      %1796 = vmatpush1.bf16.msra.mxu0 0
      %1797 = vmatprep.mubr.bf16.mxu0 0
      %1798 = vmatmul.mubr.bf16.gmra.mrb[0].mxu0 %v1733
      %v1799 = vpop.f32.mrb[0].mxu0
      %v1800 = vadd.f32 0.0, %v1799
      %v1801 = vpop.f32.mrb[0].mxu0
      %v1802 = vpop.f32.mrb[0].mxu0
      %v1803 = vadd.f32 0.0, %v1802
      %v1804 = vpop.f32.mrb[0].mxu0
      %1805 = vmatprep.mubr.bf16.mxu0 0
      %1806 = vmatmul.mubr.bf16.gmra.mrb[0].mxu0 %v1734
      %v1807 = vpop.f32.mrb[0].mxu0
      %v1808 = vadd.f32 0.0, %v1807
      %v1809 = vpop.f32.mrb[0].mxu0
      %v1810 = vpop.f32.mrb[0].mxu0
      %v1811 = vadd.f32 0.0, %v1810
      %v1812 = vpop.f32.mrb[0].mxu0
      %1813 = vmatprep.mubr.bf16.mxu0 0
      %1814 = vmatmul.mubr.bf16.gmra.mrb[0].mxu0 %v1735
      %v1815 = vpop.f32.mrb[0].mxu0
      %v1816 = vadd.f32 0.0, %v1815
      %v1817 = vpop.f32.mrb[0].mxu0
      %v1818 = vpop.f32.mrb[0].mxu0
      %v1819 = vadd.f32 0.0, %v1818
      %v1820 = vpop.f32.mrb[0].mxu0
      %1821 = vmatprep.mubr.bf16.mxu0 0
      %1822 = vmatmul.mubr.bf16.gmra.mrb[0].mxu0 %v1736
      %v1823 = vpop.f32.mrb[0].mxu0
      %v1824 = vadd.f32 0.0, %v1823
      %v1825 = vpop.f32.mrb[0].mxu0
      %v1826 = vpop.f32.mrb[0].mxu0
      %v1827 = vadd.f32 0.0, %v1826
      %v1828 = vpop.f32.mrb[0].mxu0
      %1829 = vmatprep.mubr.bf16.mxu0 0
      %1830 = vmatmul.mubr.bf16.gmra.mrb[0].mxu0 %v1737
      %v1831 = vpop.f32.mrb[0].mxu0
      %v1832 = vadd.f32 0.0, %v1831
      %v1833 = vpop.f32.mrb[0].mxu0
      %v1834 = vpop.f32.mrb[0].mxu0
      %v1835 = vadd.f32 0.0, %v1834
      %v1836 = vpop.f32.mrb[0].mxu0
      %1837 = vmatprep.mubr.bf16.mxu0 0
      %1838 = vmatmul.mubr.bf16.gmra.mrb[0].mxu0 %v1738
      %v1839 = vpop.f32.mrb[0].mxu0
      %v1840 = vadd.f32 0.0, %v1839
      %v1841 = vpop.f32.mrb[0].mxu0
      %v1842 = vpop.f32.mrb[0].mxu0
      %v1843 = vadd.f32 0.0, %v1842
      %v1844 = vpop.f32.mrb[0].mxu0
      %1845 = vmatprep.mubr.bf16.mxu0 0
      %1846 = vmatmul.mubr.bf16.gmra.mrb[0].mxu0 %v1739
      %v1847 = vpop.f32.mrb[0].mxu0
      %v1848 = vadd.f32 0.0, %v1847
      %v1849 = vpop.f32.mrb[0].mxu0
      %v1850 = vpop.f32.mrb[0].mxu0
      %v1851 = vadd.f32 0.0, %v1850
      %v1852 = vpop.f32.mrb[0].mxu0
      %1853 = vmatprep.mubr.bf16.mxu0 0
      %1854 = vmatmul.mubr.bf16.gmra.mrb[0].mxu0 %v1740
      %v1855 = vpop.f32.mrb[0].mxu0
      %v1856 = vadd.f32 0.0, %v1855
      %v1857 = vpop.f32.mrb[0].mxu0
      %v1858 = vpop.f32.mrb[0].mxu0
      %v1859 = vadd.f32 0.0, %v1858
      %v1860 = vpop.f32.mrb[0].mxu0
      %1861 = vdwg.mxu0
      %v1862 = vpack.c.bf16 %v1803, %v1800
      %v1863 = vpack.c.bf16 %v1811, %v1808
      %v1864 = vpack.c.bf16 %v1819, %v1816
      %v1865 = vpack.c.bf16 %v1827, %v1824
      %v1866 = vpack.c.bf16 %v1835, %v1832
      %v1867 = vpack.c.bf16 %v1843, %v1840
      %v1868 = vpack.c.bf16 %v1851, %v1848
      %v1869 = vpack.c.bf16 %v1859, %v1856
      %1870 = vrot.lane.b32.xlu0 %v445, 116
      %v1871 = vpop.permute.xlu0 %1870
      %1872 = vrot.lane.b32.xlu0 %v446, 116
      %v1873 = vpop.permute.xlu0 %1872
      %1874 = vrot.lane.b32.xlu0 %v447, 116
      %v1875 = vpop.permute.xlu0 %1874
      %1876 = vrot.lane.b32.xlu0 %v448, 116
      %v1877 = vpop.permute.xlu0 %1876
      %1878 = vrot.lane.b32.xlu0 %v449, 116
      %v1879 = vpop.permute.xlu0 %1878
      %1880 = vrot.lane.b32.xlu0 %v450, 116
      %v1881 = vpop.permute.xlu0 %1880
      %1882 = vrot.lane.b32.xlu0 %v451, 116
      %v1883 = vpop.permute.xlu0 %1882
      %1884 = vrot.lane.b32.xlu0 %v452, 116
      %v1885 = vpop.permute.xlu0 %1884
      %1886 = vrot.lane.b32.xlu0 %v445, 84
      %v1887 = vpop.permute.xlu0 %1886
      %1888 = vrot.lane.b32.xlu0 %v446, 84
      %v1889 = vpop.permute.xlu0 %1888
      %1890 = vrot.lane.b32.xlu0 %v447, 84
      %v1891 = vpop.permute.xlu0 %1890
      %1892 = vrot.lane.b32.xlu0 %v448, 84
      %v1893 = vpop.permute.xlu0 %1892
      %1894 = vrot.lane.b32.xlu0 %v449, 84
      %v1895 = vpop.permute.xlu0 %1894
      %1896 = vrot.lane.b32.xlu0 %v450, 84
      %v1897 = vpop.permute.xlu0 %1896
      %1898 = vrot.lane.b32.xlu0 %v451, 84
      %v1899 = vpop.permute.xlu0 %1898
      %1900 = vrot.lane.b32.xlu0 %v452, 84
      %v1901 = vpop.permute.xlu0 %1900
      %v1903 = vsel %vm477, %v1871, 0
      %v1906 = vsel %vm477, %v1873, 0
      %v1909 = vsel %vm477, %v1875, 0
      %v1912 = vsel %vm477, %v1877, 0
      %v1915 = vsel %vm477, %v1879, 0
      %v1918 = vsel %vm477, %v1881, 0
      %v1921 = vsel %vm477, %v1883, 0
      %v1924 = vsel %vm477, %v1885, 0
      %v1927 = vsel %vm477, %v1887, 0
      %v1930 = vsel %vm477, %v1889, 0
      %v1933 = vsel %vm477, %v1891, 0
      %v1936 = vsel %vm477, %v1893, 0
      %v1939 = vsel %vm477, %v1895, 0
      %v1942 = vsel %vm477, %v1897, 0
      %v1945 = vsel %vm477, %v1899, 0
      %v1948 = vsel %vm477, %v1901, 0
      %1950 = vmatprep.subr.bf16.mxu0 0
      %1951 = vmatpush1.bf16.xpose.msra.mxu0 %v1927
      %1952 = vmatprep.subr.bf16.mxu0 0
      %1953 = vmatpush1.bf16.xpose.msra.mxu0 %v1930
      %1954 = vmatprep.subr.bf16.mxu0 0
      %1955 = vmatpush1.bf16.xpose.msra.mxu0 %v1933
      %1956 = vmatprep.subr.bf16.mxu0 0
      %1957 = vmatpush1.bf16.xpose.msra.mxu0 %v1936
      %1958 = vmatprep.subr.bf16.mxu0 0
      %1959 = vmatpush1.bf16.xpose.msra.mxu0 %v1939
      %1960 = vmatprep.subr.bf16.mxu0 0
      %1961 = vmatpush1.bf16.xpose.msra.mxu0 %v1942
      %1962 = vmatprep.subr.bf16.mxu0 0
      %1963 = vmatpush1.bf16.xpose.msra.mxu0 %v1945
      %1964 = vmatprep.subr.bf16.mxu0 0
      %1965 = vmatpush1.bf16.xpose.msra.mxu0 %v1948
      %1966 = vmatprep.subr.bf16.mxu0 0
      %1967 = vmatpush1.bf16.xpose.msra.mxu0 0
      %1968 = vmatprep.subr.bf16.mxu0 0
      %1969 = vmatpush1.bf16.xpose.msra.mxu0 0
      %1970 = vmatprep.subr.bf16.mxu0 0
      %1971 = vmatpush1.bf16.xpose.msra.mxu0 0
      %1972 = vmatprep.subr.bf16.mxu0 0
      %1973 = vmatpush1.bf16.xpose.msra.mxu0 0
      %1974 = vmatprep.subr.bf16.mxu0 0
      %1975 = vmatpush1.bf16.xpose.msra.mxu0 0
      %1976 = vmatprep.subr.bf16.mxu0 0
      %1977 = vmatpush1.bf16.xpose.msra.mxu0 0
      %1978 = vmatprep.subr.bf16.mxu0 0
      %1979 = vmatpush1.bf16.xpose.msra.mxu0 0
      %1980 = vmatprep.subr.bf16.mxu0 0
      %1981 = vmatpush1.bf16.xpose.msra.mxu0 0
      %1982 = vmatprep.mubr.bf16.mxu0 0
      %1983 = vmatmul.mubr.bf16.gmra.mrb[0].mxu0 %v1903
      %v1984 = vpop.f32.mrb[0].mxu0
      %v1985 = vadd.f32 0.0, %v1984
      %v1986 = vpop.f32.mrb[0].mxu0
      %v1987 = vpop.f32.mrb[0].mxu0
      %v1988 = vadd.f32 0.0, %v1987
      %v1989 = vpop.f32.mrb[0].mxu0
      %1990 = vmatprep.mubr.bf16.mxu0 0
      %1991 = vmatmul.mubr.bf16.gmra.mrb[0].mxu0 %v1906
      %v1992 = vpop.f32.mrb[0].mxu0
      %v1993 = vadd.f32 0.0, %v1992
      %v1994 = vpop.f32.mrb[0].mxu0
      %v1995 = vpop.f32.mrb[0].mxu0
      %v1996 = vadd.f32 0.0, %v1995
      %v1997 = vpop.f32.mrb[0].mxu0
      %1998 = vmatprep.mubr.bf16.mxu0 0
      %1999 = vmatmul.mubr.bf16.gmra.mrb[0].mxu0 %v1909
      %v2000 = vpop.f32.mrb[0].mxu0
      %v2001 = vadd.f32 0.0, %v2000
      %v2002 = vpop.f32.mrb[0].mxu0
      %v2003 = vpop.f32.mrb[0].mxu0
      %v2004 = vadd.f32 0.0, %v2003
      %v2005 = vpop.f32.mrb[0].mxu0
      %2006 = vmatprep.mubr.bf16.mxu0 0
      %2007 = vmatmul.mubr.bf16.gmra.mrb[0].mxu0 %v1912
      %v2008 = vpop.f32.mrb[0].mxu0
      %v2009 = vadd.f32 0.0, %v2008
      %v2010 = vpop.f32.mrb[0].mxu0
      %v2011 = vpop.f32.mrb[0].mxu0
      %v2012 = vadd.f32 0.0, %v2011
      %v2013 = vpop.f32.mrb[0].mxu0
      %2014 = vmatprep.mubr.bf16.mxu0 0
      %2015 = vmatmul.mubr.bf16.gmra.mrb[0].mxu0 %v1915
      %v2016 = vpop.f32.mrb[0].mxu0
      %v2017 = vadd.f32 0.0, %v2016
      %v2018 = vpop.f32.mrb[0].mxu0
      %v2019 = vpop.f32.mrb[0].mxu0
      %v2020 = vadd.f32 0.0, %v2019
      %v2021 = vpop.f32.mrb[0].mxu0
      %2022 = vmatprep.mubr.bf16.mxu0 0
      %2023 = vmatmul.mubr.bf16.gmra.mrb[0].mxu0 %v1918
      %v2024 = vpop.f32.mrb[0].mxu0
      %v2025 = vadd.f32 0.0, %v2024
      %v2026 = vpop.f32.mrb[0].mxu0
      %v2027 = vpop.f32.mrb[0].mxu0
      %v2028 = vadd.f32 0.0, %v2027
      %v2029 = vpop.f32.mrb[0].mxu0
      %2030 = vmatprep.mubr.bf16.mxu0 0
      %2031 = vmatmul.mubr.bf16.gmra.mrb[0].mxu0 %v1921
      %v2032 = vpop.f32.mrb[0].mxu0
      %v2033 = vadd.f32 0.0, %v2032
      %v2034 = vpop.f32.mrb[0].mxu0
      %v2035 = vpop.f32.mrb[0].mxu0
      %v2036 = vadd.f32 0.0, %v2035
      %v2037 = vpop.f32.mrb[0].mxu0
      %2038 = vmatprep.mubr.bf16.mxu0 0
      %2039 = vmatmul.mubr.bf16.gmra.mrb[0].mxu0 %v1924
      %v2040 = vpop.f32.mrb[0].mxu0
      %v2041 = vadd.f32 0.0, %v2040
      %v2042 = vpop.f32.mrb[0].mxu0
      %v2043 = vpop.f32.mrb[0].mxu0
      %v2044 = vadd.f32 0.0, %v2043
      %v2045 = vpop.f32.mrb[0].mxu0
      %2046 = vdwg.mxu0
      %v2047 = vsel %vm624, %v1985, -1e+30
      %v2048 = vsel %vm624, %v1988, -1e+30
      %v2049 = vsel %vm624, %v1993, -1e+30
      %v2050 = vsel %vm624, %v1996, -1e+30
      %v2051 = vsel %vm624, %v2001, -1e+30
      %v2052 = vsel %vm624, %v2004, -1e+30
      %v2053 = vsel %vm624, %v2009, -1e+30
      %v2054 = vsel %vm624, %v2012, -1e+30
      %v2055 = vsel %vm624, %v2017, -1e+30
      %v2056 = vsel %vm624, %v2020, -1e+30
      %v2057 = vsel %vm624, %v2025, -1e+30
      %v2058 = vsel %vm624, %v2028, -1e+30
      %v2059 = vsel %vm624, %v2033, -1e+30
      %v2060 = vsel %vm624, %v2036, -1e+30
      %v2061 = vsel %vm624, %v2041, -1e+30
      %v2062 = vsel %vm624, %v2044, -1e+30
      %2063 = vmax.xlane.f32.xlu0 %v2047
      %v2064 = vpop.xlane.xlu0 %2063
      %2065 = vmax.xlane.f32.xlu0 %v2048
      %v2066 = vpop.xlane.xlu0 %2065
      %2067 = vmax.xlane.f32.xlu0 %v2049
      %v2068 = vpop.xlane.xlu0 %2067
      %2069 = vmax.xlane.f32.xlu0 %v2050
      %v2070 = vpop.xlane.xlu0 %2069
      %2071 = vmax.xlane.f32.xlu0 %v2051
      %v2072 = vpop.xlane.xlu0 %2071
      %2073 = vmax.xlane.f32.xlu0 %v2052
      %v2074 = vpop.xlane.xlu0 %2073
      %2075 = vmax.xlane.f32.xlu0 %v2053
      %v2076 = vpop.xlane.xlu0 %2075
      %2077 = vmax.xlane.f32.xlu0 %v2054
      %v2078 = vpop.xlane.xlu0 %2077
      %2079 = vmax.xlane.f32.xlu0 %v2055
      %v2080 = vpop.xlane.xlu0 %2079
      %2081 = vmax.xlane.f32.xlu0 %v2056
      %v2082 = vpop.xlane.xlu0 %2081
      %2083 = vmax.xlane.f32.xlu0 %v2057
      %v2084 = vpop.xlane.xlu0 %2083
      %2085 = vmax.xlane.f32.xlu0 %v2058
      %v2086 = vpop.xlane.xlu0 %2085
      %2087 = vmax.xlane.f32.xlu0 %v2059
      %v2088 = vpop.xlane.xlu0 %2087
      %2089 = vmax.xlane.f32.xlu0 %v2060
      %v2090 = vpop.xlane.xlu0 %2089
      %2091 = vmax.xlane.f32.xlu0 %v2061
      %v2092 = vpop.xlane.xlu0 %2091
      %2093 = vmax.xlane.f32.xlu0 %v2062
      %v2094 = vpop.xlane.xlu0 %2093
      %v2095 = vsub.f32 %v2047, %v2064
      %v2096 = vsub.f32 %v2048, %v2066
      %v2097 = vsub.f32 %v2049, %v2068
      %v2098 = vsub.f32 %v2050, %v2070
      %v2099 = vsub.f32 %v2051, %v2072
      %v2100 = vsub.f32 %v2052, %v2074
      %v2101 = vsub.f32 %v2053, %v2076
      %v2102 = vsub.f32 %v2054, %v2078
      %v2103 = vsub.f32 %v2055, %v2080
      %v2104 = vsub.f32 %v2056, %v2082
      %v2105 = vsub.f32 %v2057, %v2084
      %v2106 = vsub.f32 %v2058, %v2086
      %v2107 = vsub.f32 %v2059, %v2088
      %v2108 = vsub.f32 %v2060, %v2090
      %v2109 = vsub.f32 %v2061, %v2092
      %v2110 = vsub.f32 %v2062, %v2094
      %v2111 = vmul.f32 %v2095, 1.442695
      %v2112 = vpow.pop %v2111
      %v2113 = vmul.f32 %v2096, 1.442695
      %v2114 = vpow.pop %v2113
      %v2115 = vmul.f32 %v2097, 1.442695
      %v2116 = vpow.pop %v2115
      %v2117 = vmul.f32 %v2098, 1.442695
      %v2118 = vpow.pop %v2117
      %v2119 = vmul.f32 %v2099, 1.442695
      %v2120 = vpow.pop %v2119
      %v2121 = vmul.f32 %v2100, 1.442695
      %v2122 = vpow.pop %v2121
      %v2123 = vmul.f32 %v2101, 1.442695
      %v2124 = vpow.pop %v2123
      %v2125 = vmul.f32 %v2102, 1.442695
      %v2126 = vpow.pop %v2125
      %v2127 = vmul.f32 %v2103, 1.442695
      %v2128 = vpow.pop %v2127
      %v2129 = vmul.f32 %v2104, 1.442695
      %v2130 = vpow.pop %v2129
      %v2131 = vmul.f32 %v2105, 1.442695
      %v2132 = vpow.pop %v2131
      %v2133 = vmul.f32 %v2106, 1.442695
      %v2134 = vpow.pop %v2133
      %v2135 = vmul.f32 %v2107, 1.442695
      %v2136 = vpow.pop %v2135
      %v2137 = vmul.f32 %v2108, 1.442695
      %v2138 = vpow.pop %v2137
      %v2139 = vmul.f32 %v2109, 1.442695
      %v2140 = vpow.pop %v2139
      %v2141 = vmul.f32 %v2110, 1.442695
      %v2142 = vpow.pop %v2141
      %2143 = vadd.xlane.f32.xlu0 %v2112
      %v2144 = vpop.xlane.xlu0 %2143
      %2145 = vadd.xlane.f32.xlu0 %v2114
      %v2146 = vpop.xlane.xlu0 %2145
      %2147 = vadd.xlane.f32.xlu0 %v2116
      %v2148 = vpop.xlane.xlu0 %2147
      %2149 = vadd.xlane.f32.xlu0 %v2118
      %v2150 = vpop.xlane.xlu0 %2149
      %2151 = vadd.xlane.f32.xlu0 %v2120
      %v2152 = vpop.xlane.xlu0 %2151
      %2153 = vadd.xlane.f32.xlu0 %v2122
      %v2154 = vpop.xlane.xlu0 %2153
      %2155 = vadd.xlane.f32.xlu0 %v2124
      %v2156 = vpop.xlane.xlu0 %2155
      %2157 = vadd.xlane.f32.xlu0 %v2126
      %v2158 = vpop.xlane.xlu0 %2157
      %2159 = vadd.xlane.f32.xlu0 %v2128
      %v2160 = vpop.xlane.xlu0 %2159
      %2161 = vadd.xlane.f32.xlu0 %v2130
      %v2162 = vpop.xlane.xlu0 %2161
      %2163 = vadd.xlane.f32.xlu0 %v2132
      %v2164 = vpop.xlane.xlu0 %2163
      %2165 = vadd.xlane.f32.xlu0 %v2134
      %v2166 = vpop.xlane.xlu0 %2165
      %2167 = vadd.xlane.f32.xlu0 %v2136
      %v2168 = vpop.xlane.xlu0 %2167
      %2169 = vadd.xlane.f32.xlu0 %v2138
      %v2170 = vpop.xlane.xlu0 %2169
      %2171 = vadd.xlane.f32.xlu0 %v2140
      %v2172 = vpop.xlane.xlu0 %2171
      %2173 = vadd.xlane.f32.xlu0 %v2142
      %v2174 = vpop.xlane.xlu0 %2173
      %v2175 = vrcp.pop %v2144
      %v2176 = vrcp.pop %v2146
      %v2177 = vrcp.pop %v2148
      %v2178 = vrcp.pop %v2150
      %v2179 = vrcp.pop %v2152
      %v2180 = vrcp.pop %v2154
      %v2181 = vrcp.pop %v2156
      %v2182 = vrcp.pop %v2158
      %v2183 = vrcp.pop %v2160
      %v2184 = vrcp.pop %v2162
      %v2185 = vrcp.pop %v2164
      %v2186 = vrcp.pop %v2166
      %v2187 = vrcp.pop %v2168
      %v2188 = vrcp.pop %v2170
      %v2189 = vrcp.pop %v2172
      %v2190 = vrcp.pop %v2174
      %v2191 = vmul.f32 %v2112, %v2175
      %v2192 = vmul.f32 %v2114, %v2176
      %v2193 = vmul.f32 %v2116, %v2177
      %v2194 = vmul.f32 %v2118, %v2178
      %v2195 = vmul.f32 %v2120, %v2179
      %v2196 = vmul.f32 %v2122, %v2180
      %v2197 = vmul.f32 %v2124, %v2181
      %v2198 = vmul.f32 %v2126, %v2182
      %v2199 = vmul.f32 %v2128, %v2183
      %v2200 = vmul.f32 %v2130, %v2184
      %v2201 = vmul.f32 %v2132, %v2185
      %v2202 = vmul.f32 %v2134, %v2186
      %v2203 = vmul.f32 %v2136, %v2187
      %v2204 = vmul.f32 %v2138, %v2188
      %v2205 = vmul.f32 %v2140, %v2189
      %v2206 = vmul.f32 %v2142, %v2190
      %v2207 = vpack.c.bf16 %v2192, %v2191
      %v2208 = vpack.c.bf16 %v2194, %v2193
      %v2209 = vpack.c.bf16 %v2196, %v2195
      %v2210 = vpack.c.bf16 %v2198, %v2197
      %v2211 = vpack.c.bf16 %v2200, %v2199
      %v2212 = vpack.c.bf16 %v2202, %v2201
      %v2213 = vpack.c.bf16 %v2204, %v2203
      %v2214 = vpack.c.bf16 %v2206, %v2205
      %2215 = vrot.lane.b32.xlu0 %v445, 52
      %v2216 = vpop.permute.xlu0 %2215
      %2217 = vrot.lane.b32.xlu0 %v446, 52
      %v2218 = vpop.permute.xlu0 %2217
      %2219 = vrot.lane.b32.xlu0 %v447, 52
      %v2220 = vpop.permute.xlu0 %2219
      %2221 = vrot.lane.b32.xlu0 %v448, 52
      %v2222 = vpop.permute.xlu0 %2221
      %2223 = vrot.lane.b32.xlu0 %v449, 52
      %v2224 = vpop.permute.xlu0 %2223
      %2225 = vrot.lane.b32.xlu0 %v450, 52
      %v2226 = vpop.permute.xlu0 %2225
      %2227 = vrot.lane.b32.xlu0 %v451, 52
      %v2228 = vpop.permute.xlu0 %2227
      %2229 = vrot.lane.b32.xlu0 %v452, 52
      %v2230 = vpop.permute.xlu0 %2229
      %2239 = vmatprep.subr.bf16.mxu0 0
      %2240 = vmatpush1.bf16.msra.mxu0 %v2216
      %2241 = vmatprep.subr.bf16.mxu0 0
      %2242 = vmatpush1.bf16.msra.mxu0 %v2218
      %2243 = vmatprep.subr.bf16.mxu0 0
      %2244 = vmatpush1.bf16.msra.mxu0 %v2220
      %2245 = vmatprep.subr.bf16.mxu0 0
      %2246 = vmatpush1.bf16.msra.mxu0 %v2222
      %2247 = vmatprep.subr.bf16.mxu0 0
      %2248 = vmatpush1.bf16.msra.mxu0 %v2224
      %2249 = vmatprep.subr.bf16.mxu0 0
      %2250 = vmatpush1.bf16.msra.mxu0 %v2226
      %2251 = vmatprep.subr.bf16.mxu0 0
      %2252 = vmatpush1.bf16.msra.mxu0 %v2228
      %2253 = vmatprep.subr.bf16.mxu0 0
      %2254 = vmatpush1.bf16.msra.mxu0 %v2230
      %2255 = vmatprep.subr.bf16.mxu0 0
      %2256 = vmatpush1.bf16.msra.mxu0 0
      %2257 = vmatprep.subr.bf16.mxu0 0
      %2258 = vmatpush1.bf16.msra.mxu0 0
      %2259 = vmatprep.subr.bf16.mxu0 0
      %2260 = vmatpush1.bf16.msra.mxu0 0
      %2261 = vmatprep.subr.bf16.mxu0 0
      %2262 = vmatpush1.bf16.msra.mxu0 0
      %2263 = vmatprep.subr.bf16.mxu0 0
      %2264 = vmatpush1.bf16.msra.mxu0 0
      %2265 = vmatprep.subr.bf16.mxu0 0
      %2266 = vmatpush1.bf16.msra.mxu0 0
      %2267 = vmatprep.subr.bf16.mxu0 0
      %2268 = vmatpush1.bf16.msra.mxu0 0
      %2269 = vmatprep.subr.bf16.mxu0 0
      %2270 = vmatpush1.bf16.msra.mxu0 0
      %2271 = vmatprep.mubr.bf16.mxu0 0
      %2272 = vmatmul.mubr.bf16.gmra.mrb[0].mxu0 %v2207
      %v2273 = vpop.f32.mrb[0].mxu0
      %v2274 = vadd.f32 0.0, %v2273
      %v2275 = vpop.f32.mrb[0].mxu0
      %v2276 = vpop.f32.mrb[0].mxu0
      %v2277 = vadd.f32 0.0, %v2276
      %v2278 = vpop.f32.mrb[0].mxu0
      %2279 = vmatprep.mubr.bf16.mxu0 0
      %2280 = vmatmul.mubr.bf16.gmra.mrb[0].mxu0 %v2208
      %v2281 = vpop.f32.mrb[0].mxu0
      %v2282 = vadd.f32 0.0, %v2281
      %v2283 = vpop.f32.mrb[0].mxu0
      %v2284 = vpop.f32.mrb[0].mxu0
      %v2285 = vadd.f32 0.0, %v2284
      %v2286 = vpop.f32.mrb[0].mxu0
      %2287 = vmatprep.mubr.bf16.mxu0 0
      %2288 = vmatmul.mubr.bf16.gmra.mrb[0].mxu0 %v2209
      %v2289 = vpop.f32.mrb[0].mxu0
      %v2290 = vadd.f32 0.0, %v2289
      %v2291 = vpop.f32.mrb[0].mxu0
      %v2292 = vpop.f32.mrb[0].mxu0
      %v2293 = vadd.f32 0.0, %v2292
      %v2294 = vpop.f32.mrb[0].mxu0
      %2295 = vmatprep.mubr.bf16.mxu0 0
      %2296 = vmatmul.mubr.bf16.gmra.mrb[0].mxu0 %v2210
      %v2297 = vpop.f32.mrb[0].mxu0
      %v2298 = vadd.f32 0.0, %v2297
      %v2299 = vpop.f32.mrb[0].mxu0
      %v2300 = vpop.f32.mrb[0].mxu0
      %v2301 = vadd.f32 0.0, %v2300
      %v2302 = vpop.f32.mrb[0].mxu0
      %2303 = vmatprep.mubr.bf16.mxu0 0
      %2304 = vmatmul.mubr.bf16.gmra.mrb[0].mxu0 %v2211
      %v2305 = vpop.f32.mrb[0].mxu0
      %v2306 = vadd.f32 0.0, %v2305
      %v2307 = vpop.f32.mrb[0].mxu0
      %v2308 = vpop.f32.mrb[0].mxu0
      %v2309 = vadd.f32 0.0, %v2308
      %v2310 = vpop.f32.mrb[0].mxu0
      %2311 = vmatprep.mubr.bf16.mxu0 0
      %2312 = vmatmul.mubr.bf16.gmra.mrb[0].mxu0 %v2212
      %v2313 = vpop.f32.mrb[0].mxu0
      %v2314 = vadd.f32 0.0, %v2313
      %v2315 = vpop.f32.mrb[0].mxu0
      %v2316 = vpop.f32.mrb[0].mxu0
      %v2317 = vadd.f32 0.0, %v2316
      %v2318 = vpop.f32.mrb[0].mxu0
      %2319 = vmatprep.mubr.bf16.mxu0 0
      %2320 = vmatmul.mubr.bf16.gmra.mrb[0].mxu0 %v2213
      %v2321 = vpop.f32.mrb[0].mxu0
      %v2322 = vadd.f32 0.0, %v2321
      %v2323 = vpop.f32.mrb[0].mxu0
      %v2324 = vpop.f32.mrb[0].mxu0
      %v2325 = vadd.f32 0.0, %v2324
      %v2326 = vpop.f32.mrb[0].mxu0
      %2327 = vmatprep.mubr.bf16.mxu0 0
      %2328 = vmatmul.mubr.bf16.gmra.mrb[0].mxu0 %v2214
      %v2329 = vpop.f32.mrb[0].mxu0
      %v2330 = vadd.f32 0.0, %v2329
      %v2331 = vpop.f32.mrb[0].mxu0
      %v2332 = vpop.f32.mrb[0].mxu0
      %v2333 = vadd.f32 0.0, %v2332
      %v2334 = vpop.f32.mrb[0].mxu0
      %2335 = vdwg.mxu0
      %v2336 = vpack.c.bf16 %v2277, %v2274
      %v2337 = vpack.c.bf16 %v2285, %v2282
      %v2338 = vpack.c.bf16 %v2293, %v2290
      %v2339 = vpack.c.bf16 %v2301, %v2298
      %v2340 = vpack.c.bf16 %v2309, %v2306
      %v2341 = vpack.c.bf16 %v2317, %v2314
      %v2342 = vpack.c.bf16 %v2325, %v2322
      %v2343 = vpack.c.bf16 %v2333, %v2330
      %2344 = vrot.lane.b32.xlu0 %v445, 112
      %v2345 = vpop.permute.xlu0 %2344
      %2346 = vrot.lane.b32.xlu0 %v446, 112
      %v2347 = vpop.permute.xlu0 %2346
      %2348 = vrot.lane.b32.xlu0 %v447, 112
      %v2349 = vpop.permute.xlu0 %2348
      %2350 = vrot.lane.b32.xlu0 %v448, 112
      %v2351 = vpop.permute.xlu0 %2350
      %2352 = vrot.lane.b32.xlu0 %v449, 112
      %v2353 = vpop.permute.xlu0 %2352
      %2354 = vrot.lane.b32.xlu0 %v450, 112
      %v2355 = vpop.permute.xlu0 %2354
      %2356 = vrot.lane.b32.xlu0 %v451, 112
      %v2357 = vpop.permute.xlu0 %2356
      %2358 = vrot.lane.b32.xlu0 %v452, 112
      %v2359 = vpop.permute.xlu0 %2358
      %2360 = vrot.lane.b32.xlu0 %v445, 80
      %v2361 = vpop.permute.xlu0 %2360
      %2362 = vrot.lane.b32.xlu0 %v446, 80
      %v2363 = vpop.permute.xlu0 %2362
      %2364 = vrot.lane.b32.xlu0 %v447, 80
      %v2365 = vpop.permute.xlu0 %2364
      %2366 = vrot.lane.b32.xlu0 %v448, 80
      %v2367 = vpop.permute.xlu0 %2366
      %2368 = vrot.lane.b32.xlu0 %v449, 80
      %v2369 = vpop.permute.xlu0 %2368
      %2370 = vrot.lane.b32.xlu0 %v450, 80
      %v2371 = vpop.permute.xlu0 %2370
      %2372 = vrot.lane.b32.xlu0 %v451, 80
      %v2373 = vpop.permute.xlu0 %2372
      %2374 = vrot.lane.b32.xlu0 %v452, 80
      %v2375 = vpop.permute.xlu0 %2374
      %v2377 = vsel %vm477, %v2345, 0
      %v2380 = vsel %vm477, %v2347, 0
      %v2383 = vsel %vm477, %v2349, 0
      %v2386 = vsel %vm477, %v2351, 0
      %v2389 = vsel %vm477, %v2353, 0
      %v2392 = vsel %vm477, %v2355, 0
      %v2395 = vsel %vm477, %v2357, 0
      %v2398 = vsel %vm477, %v2359, 0
      %v2401 = vsel %vm477, %v2361, 0
      %v2404 = vsel %vm477, %v2363, 0
      %v2407 = vsel %vm477, %v2365, 0
      %v2410 = vsel %vm477, %v2367, 0
      %v2413 = vsel %vm477, %v2369, 0
      %v2416 = vsel %vm477, %v2371, 0
      %v2419 = vsel %vm477, %v2373, 0
      %v2422 = vsel %vm477, %v2375, 0
      %2424 = vmatprep.subr.bf16.mxu0 0
      %2425 = vmatpush1.bf16.xpose.msra.mxu0 %v2401
      %2426 = vmatprep.subr.bf16.mxu0 0
      %2427 = vmatpush1.bf16.xpose.msra.mxu0 %v2404
      %2428 = vmatprep.subr.bf16.mxu0 0
      %2429 = vmatpush1.bf16.xpose.msra.mxu0 %v2407
      %2430 = vmatprep.subr.bf16.mxu0 0
      %2431 = vmatpush1.bf16.xpose.msra.mxu0 %v2410
      %2432 = vmatprep.subr.bf16.mxu0 0
      %2433 = vmatpush1.bf16.xpose.msra.mxu0 %v2413
      %2434 = vmatprep.subr.bf16.mxu0 0
      %2435 = vmatpush1.bf16.xpose.msra.mxu0 %v2416
      %2436 = vmatprep.subr.bf16.mxu0 0
      %2437 = vmatpush1.bf16.xpose.msra.mxu0 %v2419
      %2438 = vmatprep.subr.bf16.mxu0 0
      %2439 = vmatpush1.bf16.xpose.msra.mxu0 %v2422
      %2440 = vmatprep.subr.bf16.mxu0 0
      %2441 = vmatpush1.bf16.xpose.msra.mxu0 0
      %2442 = vmatprep.subr.bf16.mxu0 0
      %2443 = vmatpush1.bf16.xpose.msra.mxu0 0
      %2444 = vmatprep.subr.bf16.mxu0 0
      %2445 = vmatpush1.bf16.xpose.msra.mxu0 0
      %2446 = vmatprep.subr.bf16.mxu0 0
      %2447 = vmatpush1.bf16.xpose.msra.mxu0 0
      %2448 = vmatprep.subr.bf16.mxu0 0
      %2449 = vmatpush1.bf16.xpose.msra.mxu0 0
      %2450 = vmatprep.subr.bf16.mxu0 0
      %2451 = vmatpush1.bf16.xpose.msra.mxu0 0
      %2452 = vmatprep.subr.bf16.mxu0 0
      %2453 = vmatpush1.bf16.xpose.msra.mxu0 0
      %2454 = vmatprep.subr.bf16.mxu0 0
      %2455 = vmatpush1.bf16.xpose.msra.mxu0 0
      %2456 = vmatprep.mubr.bf16.mxu0 0
      %2457 = vmatmul.mubr.bf16.gmra.mrb[0].mxu0 %v2377
      %v2458 = vpop.f32.mrb[0].mxu0
      %v2459 = vadd.f32 0.0, %v2458
      %v2460 = vpop.f32.mrb[0].mxu0
      %v2461 = vpop.f32.mrb[0].mxu0
      %v2462 = vadd.f32 0.0, %v2461
      %v2463 = vpop.f32.mrb[0].mxu0
      %2464 = vmatprep.mubr.bf16.mxu0 0
      %2465 = vmatmul.mubr.bf16.gmra.mrb[0].mxu0 %v2380
      %v2466 = vpop.f32.mrb[0].mxu0
      %v2467 = vadd.f32 0.0, %v2466
      %v2468 = vpop.f32.mrb[0].mxu0
      %v2469 = vpop.f32.mrb[0].mxu0
      %v2470 = vadd.f32 0.0, %v2469
      %v2471 = vpop.f32.mrb[0].mxu0
      %2472 = vmatprep.mubr.bf16.mxu0 0
      %2473 = vmatmul.mubr.bf16.gmra.mrb[0].mxu0 %v2383
      %v2474 = vpop.f32.mrb[0].mxu0
      %v2475 = vadd.f32 0.0, %v2474
      %v2476 = vpop.f32.mrb[0].mxu0
      %v2477 = vpop.f32.mrb[0].mxu0
      %v2478 = vadd.f32 0.0, %v2477
      %v2479 = vpop.f32.mrb[0].mxu0
      %2480 = vmatprep.mubr.bf16.mxu0 0
      %2481 = vmatmul.mubr.bf16.gmra.mrb[0].mxu0 %v2386
      %v2482 = vpop.f32.mrb[0].mxu0
      %v2483 = vadd.f32 0.0, %v2482
      %v2484 = vpop.f32.mrb[0].mxu0
      %v2485 = vpop.f32.mrb[0].mxu0
      %v2486 = vadd.f32 0.0, %v2485
      %v2487 = vpop.f32.mrb[0].mxu0
      %2488 = vmatprep.mubr.bf16.mxu0 0
      %2489 = vmatmul.mubr.bf16.gmra.mrb[0].mxu0 %v2389
      %v2490 = vpop.f32.mrb[0].mxu0
      %v2491 = vadd.f32 0.0, %v2490
      %v2492 = vpop.f32.mrb[0].mxu0
      %v2493 = vpop.f32.mrb[0].mxu0
      %v2494 = vadd.f32 0.0, %v2493
      %v2495 = vpop.f32.mrb[0].mxu0
      %2496 = vmatprep.mubr.bf16.mxu0 0
      %2497 = vmatmul.mubr.bf16.gmra.mrb[0].mxu0 %v2392
      %v2498 = vpop.f32.mrb[0].mxu0
      %v2499 = vadd.f32 0.0, %v2498
      %v2500 = vpop.f32.mrb[0].mxu0
      %v2501 = vpop.f32.mrb[0].mxu0
      %v2502 = vadd.f32 0.0, %v2501
      %v2503 = vpop.f32.mrb[0].mxu0
      %2504 = vmatprep.mubr.bf16.mxu0 0
      %2505 = vmatmul.mubr.bf16.gmra.mrb[0].mxu0 %v2395
      %v2506 = vpop.f32.mrb[0].mxu0
      %v2507 = vadd.f32 0.0, %v2506
      %v2508 = vpop.f32.mrb[0].mxu0
      %v2509 = vpop.f32.mrb[0].mxu0
      %v2510 = vadd.f32 0.0, %v2509
      %v2511 = vpop.f32.mrb[0].mxu0
      %2512 = vmatprep.mubr.bf16.mxu0 0
      %2513 = vmatmul.mubr.bf16.gmra.mrb[0].mxu0 %v2398
      %v2514 = vpop.f32.mrb[0].mxu0
      %v2515 = vadd.f32 0.0, %v2514
      %v2516 = vpop.f32.mrb[0].mxu0
      %v2517 = vpop.f32.mrb[0].mxu0
      %v2518 = vadd.f32 0.0, %v2517
      %v2519 = vpop.f32.mrb[0].mxu0
      %2520 = vdwg.mxu0
      %v2521 = vsel %vm624, %v2459, -1e+30
      %v2522 = vsel %vm624, %v2462, -1e+30
      %v2523 = vsel %vm624, %v2467, -1e+30
      %v2524 = vsel %vm624, %v2470, -1e+30
      %v2525 = vsel %vm624, %v2475, -1e+30
      %v2526 = vsel %vm624, %v2478, -1e+30
      %v2527 = vsel %vm624, %v2483, -1e+30
      %v2528 = vsel %vm624, %v2486, -1e+30
      %v2529 = vsel %vm624, %v2491, -1e+30
      %v2530 = vsel %vm624, %v2494, -1e+30
      %v2531 = vsel %vm624, %v2499, -1e+30
      %v2532 = vsel %vm624, %v2502, -1e+30
      %v2533 = vsel %vm624, %v2507, -1e+30
      %v2534 = vsel %vm624, %v2510, -1e+30
      %v2535 = vsel %vm624, %v2515, -1e+30
      %v2536 = vsel %vm624, %v2518, -1e+30
      %2537 = vmax.xlane.f32.xlu0 %v2521
      %v2538 = vpop.xlane.xlu0 %2537
      %2539 = vmax.xlane.f32.xlu0 %v2522
      %v2540 = vpop.xlane.xlu0 %2539
      %2541 = vmax.xlane.f32.xlu0 %v2523
      %v2542 = vpop.xlane.xlu0 %2541
      %2543 = vmax.xlane.f32.xlu0 %v2524
      %v2544 = vpop.xlane.xlu0 %2543
      %2545 = vmax.xlane.f32.xlu0 %v2525
      %v2546 = vpop.xlane.xlu0 %2545
      %2547 = vmax.xlane.f32.xlu0 %v2526
      %v2548 = vpop.xlane.xlu0 %2547
      %2549 = vmax.xlane.f32.xlu0 %v2527
      %v2550 = vpop.xlane.xlu0 %2549
      %2551 = vmax.xlane.f32.xlu0 %v2528
      %v2552 = vpop.xlane.xlu0 %2551
      %2553 = vmax.xlane.f32.xlu0 %v2529
      %v2554 = vpop.xlane.xlu0 %2553
      %2555 = vmax.xlane.f32.xlu0 %v2530
      %v2556 = vpop.xlane.xlu0 %2555
      %2557 = vmax.xlane.f32.xlu0 %v2531
      %v2558 = vpop.xlane.xlu0 %2557
      %2559 = vmax.xlane.f32.xlu0 %v2532
      %v2560 = vpop.xlane.xlu0 %2559
      %2561 = vmax.xlane.f32.xlu0 %v2533
      %v2562 = vpop.xlane.xlu0 %2561
      %2563 = vmax.xlane.f32.xlu0 %v2534
      %v2564 = vpop.xlane.xlu0 %2563
      %2565 = vmax.xlane.f32.xlu0 %v2535
      %v2566 = vpop.xlane.xlu0 %2565
      %2567 = vmax.xlane.f32.xlu0 %v2536
      %v2568 = vpop.xlane.xlu0 %2567
      %v2569 = vsub.f32 %v2521, %v2538
      %v2570 = vsub.f32 %v2522, %v2540
      %v2571 = vsub.f32 %v2523, %v2542
      %v2572 = vsub.f32 %v2524, %v2544
      %v2573 = vsub.f32 %v2525, %v2546
      %v2574 = vsub.f32 %v2526, %v2548
      %v2575 = vsub.f32 %v2527, %v2550
      %v2576 = vsub.f32 %v2528, %v2552
      %v2577 = vsub.f32 %v2529, %v2554
      %v2578 = vsub.f32 %v2530, %v2556
      %v2579 = vsub.f32 %v2531, %v2558
      %v2580 = vsub.f32 %v2532, %v2560
      %v2581 = vsub.f32 %v2533, %v2562
      %v2582 = vsub.f32 %v2534, %v2564
      %v2583 = vsub.f32 %v2535, %v2566
      %v2584 = vsub.f32 %v2536, %v2568
      %v2585 = vmul.f32 %v2569, 1.442695
      %v2586 = vpow.pop %v2585
      %v2587 = vmul.f32 %v2570, 1.442695
      %v2588 = vpow.pop %v2587
      %v2589 = vmul.f32 %v2571, 1.442695
      %v2590 = vpow.pop %v2589
      %v2591 = vmul.f32 %v2572, 1.442695
      %v2592 = vpow.pop %v2591
      %v2593 = vmul.f32 %v2573, 1.442695
      %v2594 = vpow.pop %v2593
      %v2595 = vmul.f32 %v2574, 1.442695
      %v2596 = vpow.pop %v2595
      %v2597 = vmul.f32 %v2575, 1.442695
      %v2598 = vpow.pop %v2597
      %v2599 = vmul.f32 %v2576, 1.442695
      %v2600 = vpow.pop %v2599
      %v2601 = vmul.f32 %v2577, 1.442695
      %v2602 = vpow.pop %v2601
      %v2603 = vmul.f32 %v2578, 1.442695
      %v2604 = vpow.pop %v2603
      %v2605 = vmul.f32 %v2579, 1.442695
      %v2606 = vpow.pop %v2605
      %v2607 = vmul.f32 %v2580, 1.442695
      %v2608 = vpow.pop %v2607
      %v2609 = vmul.f32 %v2581, 1.442695
      %v2610 = vpow.pop %v2609
      %v2611 = vmul.f32 %v2582, 1.442695
      %v2612 = vpow.pop %v2611
      %v2613 = vmul.f32 %v2583, 1.442695
      %v2614 = vpow.pop %v2613
      %v2615 = vmul.f32 %v2584, 1.442695
      %v2616 = vpow.pop %v2615
      %2617 = vadd.xlane.f32.xlu0 %v2586
      %v2618 = vpop.xlane.xlu0 %2617
      %2619 = vadd.xlane.f32.xlu0 %v2588
      %v2620 = vpop.xlane.xlu0 %2619
      %2621 = vadd.xlane.f32.xlu0 %v2590
      %v2622 = vpop.xlane.xlu0 %2621
      %2623 = vadd.xlane.f32.xlu0 %v2592
      %v2624 = vpop.xlane.xlu0 %2623
      %2625 = vadd.xlane.f32.xlu0 %v2594
      %v2626 = vpop.xlane.xlu0 %2625
      %2627 = vadd.xlane.f32.xlu0 %v2596
      %v2628 = vpop.xlane.xlu0 %2627
      %2629 = vadd.xlane.f32.xlu0 %v2598
      %v2630 = vpop.xlane.xlu0 %2629
      %2631 = vadd.xlane.f32.xlu0 %v2600
      %v2632 = vpop.xlane.xlu0 %2631
      %2633 = vadd.xlane.f32.xlu0 %v2602
      %v2634 = vpop.xlane.xlu0 %2633
      %2635 = vadd.xlane.f32.xlu0 %v2604
      %v2636 = vpop.xlane.xlu0 %2635
      %2637 = vadd.xlane.f32.xlu0 %v2606
      %v2638 = vpop.xlane.xlu0 %2637
      %2639 = vadd.xlane.f32.xlu0 %v2608
      %v2640 = vpop.xlane.xlu0 %2639
      %2641 = vadd.xlane.f32.xlu0 %v2610
      %v2642 = vpop.xlane.xlu0 %2641
      %2643 = vadd.xlane.f32.xlu0 %v2612
      %v2644 = vpop.xlane.xlu0 %2643
      %2645 = vadd.xlane.f32.xlu0 %v2614
      %v2646 = vpop.xlane.xlu0 %2645
      %2647 = vadd.xlane.f32.xlu0 %v2616
      %v2648 = vpop.xlane.xlu0 %2647
      %v2649 = vrcp.pop %v2618
      %v2650 = vrcp.pop %v2620
      %v2651 = vrcp.pop %v2622
      %v2652 = vrcp.pop %v2624
      %v2653 = vrcp.pop %v2626
      %v2654 = vrcp.pop %v2628
      %v2655 = vrcp.pop %v2630
      %v2656 = vrcp.pop %v2632
      %v2657 = vrcp.pop %v2634
      %v2658 = vrcp.pop %v2636
      %v2659 = vrcp.pop %v2638
      %v2660 = vrcp.pop %v2640
      %v2661 = vrcp.pop %v2642
      %v2662 = vrcp.pop %v2644
      %v2663 = vrcp.pop %v2646
      %v2664 = vrcp.pop %v2648
      %v2665 = vmul.f32 %v2586, %v2649
      %v2666 = vmul.f32 %v2588, %v2650
      %v2667 = vmul.f32 %v2590, %v2651
      %v2668 = vmul.f32 %v2592, %v2652
      %v2669 = vmul.f32 %v2594, %v2653
      %v2670 = vmul.f32 %v2596, %v2654
      %v2671 = vmul.f32 %v2598, %v2655
      %v2672 = vmul.f32 %v2600, %v2656
      %v2673 = vmul.f32 %v2602, %v2657
      %v2674 = vmul.f32 %v2604, %v2658
      %v2675 = vmul.f32 %v2606, %v2659
      %v2676 = vmul.f32 %v2608, %v2660
      %v2677 = vmul.f32 %v2610, %v2661
      %v2678 = vmul.f32 %v2612, %v2662
      %v2679 = vmul.f32 %v2614, %v2663
      %v2680 = vmul.f32 %v2616, %v2664
      %v2681 = vpack.c.bf16 %v2666, %v2665
      %v2682 = vpack.c.bf16 %v2668, %v2667
      %v2683 = vpack.c.bf16 %v2670, %v2669
      %v2684 = vpack.c.bf16 %v2672, %v2671
      %v2685 = vpack.c.bf16 %v2674, %v2673
      %v2686 = vpack.c.bf16 %v2676, %v2675
      %v2687 = vpack.c.bf16 %v2678, %v2677
      %v2688 = vpack.c.bf16 %v2680, %v2679
      %2689 = vrot.lane.b32.xlu0 %v445, 48
      %v2690 = vpop.permute.xlu0 %2689
      %2691 = vrot.lane.b32.xlu0 %v446, 48
      %v2692 = vpop.permute.xlu0 %2691
      %2693 = vrot.lane.b32.xlu0 %v447, 48
      %v2694 = vpop.permute.xlu0 %2693
      %2695 = vrot.lane.b32.xlu0 %v448, 48
      %v2696 = vpop.permute.xlu0 %2695
      %2697 = vrot.lane.b32.xlu0 %v449, 48
      %v2698 = vpop.permute.xlu0 %2697
      %2699 = vrot.lane.b32.xlu0 %v450, 48
      %v2700 = vpop.permute.xlu0 %2699
      %2701 = vrot.lane.b32.xlu0 %v451, 48
      %v2702 = vpop.permute.xlu0 %2701
      %2703 = vrot.lane.b32.xlu0 %v452, 48
      %v2704 = vpop.permute.xlu0 %2703
      %2713 = vmatprep.subr.bf16.mxu0 0
      %2714 = vmatpush1.bf16.msra.mxu0 %v2690
      %2715 = vmatprep.subr.bf16.mxu0 0
      %2716 = vmatpush1.bf16.msra.mxu0 %v2692
      %2717 = vmatprep.subr.bf16.mxu0 0
      %2718 = vmatpush1.bf16.msra.mxu0 %v2694
      %2719 = vmatprep.subr.bf16.mxu0 0
      %2720 = vmatpush1.bf16.msra.mxu0 %v2696
      %2721 = vmatprep.subr.bf16.mxu0 0
      %2722 = vmatpush1.bf16.msra.mxu0 %v2698
      %2723 = vmatprep.subr.bf16.mxu0 0
      %2724 = vmatpush1.bf16.msra.mxu0 %v2700
      %2725 = vmatprep.subr.bf16.mxu0 0
      %2726 = vmatpush1.bf16.msra.mxu0 %v2702
      %2727 = vmatprep.subr.bf16.mxu0 0
      %2728 = vmatpush1.bf16.msra.mxu0 %v2704
      %2729 = vmatprep.subr.bf16.mxu0 0
      %2730 = vmatpush1.bf16.msra.mxu0 0
      %2731 = vmatprep.subr.bf16.mxu0 0
      %2732 = vmatpush1.bf16.msra.mxu0 0
      %2733 = vmatprep.subr.bf16.mxu0 0
      %2734 = vmatpush1.bf16.msra.mxu0 0
      %2735 = vmatprep.subr.bf16.mxu0 0
      %2736 = vmatpush1.bf16.msra.mxu0 0
      %2737 = vmatprep.subr.bf16.mxu0 0
      %2738 = vmatpush1.bf16.msra.mxu0 0
      %2739 = vmatprep.subr.bf16.mxu0 0
      %2740 = vmatpush1.bf16.msra.mxu0 0
      %2741 = vmatprep.subr.bf16.mxu0 0
      %2742 = vmatpush1.bf16.msra.mxu0 0
      %2743 = vmatprep.subr.bf16.mxu0 0
      %2744 = vmatpush1.bf16.msra.mxu0 0
      %2745 = vmatprep.mubr.bf16.mxu0 0
      %2746 = vmatmul.mubr.bf16.gmra.mrb[0].mxu0 %v2681
      %v2747 = vpop.f32.mrb[0].mxu0
      %v2748 = vadd.f32 0.0, %v2747
      %v2749 = vpop.f32.mrb[0].mxu0
      %v2750 = vpop.f32.mrb[0].mxu0
      %v2751 = vadd.f32 0.0, %v2750
      %v2752 = vpop.f32.mrb[0].mxu0
      %2753 = vmatprep.mubr.bf16.mxu0 0
      %2754 = vmatmul.mubr.bf16.gmra.mrb[0].mxu0 %v2682
      %v2755 = vpop.f32.mrb[0].mxu0
      %v2756 = vadd.f32 0.0, %v2755
      %v2757 = vpop.f32.mrb[0].mxu0
      %v2758 = vpop.f32.mrb[0].mxu0
      %v2759 = vadd.f32 0.0, %v2758
      %v2760 = vpop.f32.mrb[0].mxu0
      %2761 = vmatprep.mubr.bf16.mxu0 0
      %2762 = vmatmul.mubr.bf16.gmra.mrb[0].mxu0 %v2683
      %v2763 = vpop.f32.mrb[0].mxu0
      %v2764 = vadd.f32 0.0, %v2763
      %v2765 = vpop.f32.mrb[0].mxu0
      %v2766 = vpop.f32.mrb[0].mxu0
      %v2767 = vadd.f32 0.0, %v2766
      %v2768 = vpop.f32.mrb[0].mxu0
      %2769 = vmatprep.mubr.bf16.mxu0 0
      %2770 = vmatmul.mubr.bf16.gmra.mrb[0].mxu0 %v2684
      %v2771 = vpop.f32.mrb[0].mxu0
      %v2772 = vadd.f32 0.0, %v2771
      %v2773 = vpop.f32.mrb[0].mxu0
      %v2774 = vpop.f32.mrb[0].mxu0
      %v2775 = vadd.f32 0.0, %v2774
      %v2776 = vpop.f32.mrb[0].mxu0
      %2777 = vmatprep.mubr.bf16.mxu0 0
      %2778 = vmatmul.mubr.bf16.gmra.mrb[0].mxu0 %v2685
      %v2779 = vpop.f32.mrb[0].mxu0
      %v2780 = vadd.f32 0.0, %v2779
      %v2781 = vpop.f32.mrb[0].mxu0
      %v2782 = vpop.f32.mrb[0].mxu0
      %v2783 = vadd.f32 0.0, %v2782
      %v2784 = vpop.f32.mrb[0].mxu0
      %2785 = vmatprep.mubr.bf16.mxu0 0
      %2786 = vmatmul.mubr.bf16.gmra.mrb[0].mxu0 %v2686
      %v2787 = vpop.f32.mrb[0].mxu0
      %v2788 = vadd.f32 0.0, %v2787
      %v2789 = vpop.f32.mrb[0].mxu0
      %v2790 = vpop.f32.mrb[0].mxu0
      %v2791 = vadd.f32 0.0, %v2790
      %v2792 = vpop.f32.mrb[0].mxu0
      %2793 = vmatprep.mubr.bf16.mxu0 0
      %2794 = vmatmul.mubr.bf16.gmra.mrb[0].mxu0 %v2687
      %v2795 = vpop.f32.mrb[0].mxu0
      %v2796 = vadd.f32 0.0, %v2795
      %v2797 = vpop.f32.mrb[0].mxu0
      %v2798 = vpop.f32.mrb[0].mxu0
      %v2799 = vadd.f32 0.0, %v2798
      %v2800 = vpop.f32.mrb[0].mxu0
      %2801 = vmatprep.mubr.bf16.mxu0 0
      %2802 = vmatmul.mubr.bf16.gmra.mrb[0].mxu0 %v2688
      %v2803 = vpop.f32.mrb[0].mxu0
      %v2804 = vadd.f32 0.0, %v2803
      %v2805 = vpop.f32.mrb[0].mxu0
      %v2806 = vpop.f32.mrb[0].mxu0
      %v2807 = vadd.f32 0.0, %v2806
      %v2808 = vpop.f32.mrb[0].mxu0
      %2809 = vdwg.mxu0
      %v2810 = vpack.c.bf16 %v2751, %v2748
      %v2811 = vpack.c.bf16 %v2759, %v2756
      %v2812 = vpack.c.bf16 %v2767, %v2764
      %v2813 = vpack.c.bf16 %v2775, %v2772
      %v2814 = vpack.c.bf16 %v2783, %v2780
      %v2815 = vpack.c.bf16 %v2791, %v2788
      %v2816 = vpack.c.bf16 %v2799, %v2796
      %v2817 = vpack.c.bf16 %v2807, %v2804
      %2818 = vrot.lane.b32.xlu0 %v445, 108
      %v2819 = vpop.permute.xlu0 %2818
      %2820 = vrot.lane.b32.xlu0 %v446, 108
      %v2821 = vpop.permute.xlu0 %2820
      %2822 = vrot.lane.b32.xlu0 %v447, 108
      %v2823 = vpop.permute.xlu0 %2822
      %2824 = vrot.lane.b32.xlu0 %v448, 108
      %v2825 = vpop.permute.xlu0 %2824
      %2826 = vrot.lane.b32.xlu0 %v449, 108
      %v2827 = vpop.permute.xlu0 %2826
      %2828 = vrot.lane.b32.xlu0 %v450, 108
      %v2829 = vpop.permute.xlu0 %2828
      %2830 = vrot.lane.b32.xlu0 %v451, 108
      %v2831 = vpop.permute.xlu0 %2830
      %2832 = vrot.lane.b32.xlu0 %v452, 108
      %v2833 = vpop.permute.xlu0 %2832
      %2834 = vrot.lane.b32.xlu0 %v445, 76
      %v2835 = vpop.permute.xlu0 %2834
      %2836 = vrot.lane.b32.xlu0 %v446, 76
      %v2837 = vpop.permute.xlu0 %2836
      %2838 = vrot.lane.b32.xlu0 %v447, 76
      %v2839 = vpop.permute.xlu0 %2838
      %2840 = vrot.lane.b32.xlu0 %v448, 76
      %v2841 = vpop.permute.xlu0 %2840
      %2842 = vrot.lane.b32.xlu0 %v449, 76
      %v2843 = vpop.permute.xlu0 %2842
      %2844 = vrot.lane.b32.xlu0 %v450, 76
      %v2845 = vpop.permute.xlu0 %2844
      %2846 = vrot.lane.b32.xlu0 %v451, 76
      %v2847 = vpop.permute.xlu0 %2846
      %2848 = vrot.lane.b32.xlu0 %v452, 76
      %v2849 = vpop.permute.xlu0 %2848
      %v2851 = vsel %vm477, %v2819, 0
      %v2854 = vsel %vm477, %v2821, 0
      %v2857 = vsel %vm477, %v2823, 0
      %v2860 = vsel %vm477, %v2825, 0
      %v2863 = vsel %vm477, %v2827, 0
      %v2866 = vsel %vm477, %v2829, 0
      %v2869 = vsel %vm477, %v2831, 0
      %v2872 = vsel %vm477, %v2833, 0
      %v2875 = vsel %vm477, %v2835, 0
      %v2878 = vsel %vm477, %v2837, 0
      %v2881 = vsel %vm477, %v2839, 0
      %v2884 = vsel %vm477, %v2841, 0
      %v2887 = vsel %vm477, %v2843, 0
      %v2890 = vsel %vm477, %v2845, 0
      %v2893 = vsel %vm477, %v2847, 0
      %v2896 = vsel %vm477, %v2849, 0
      %2898 = vmatprep.subr.bf16.mxu0 0
      %2899 = vmatpush1.bf16.xpose.msra.mxu0 %v2875
      %2900 = vmatprep.subr.bf16.mxu0 0
      %2901 = vmatpush1.bf16.xpose.msra.mxu0 %v2878
      %2902 = vmatprep.subr.bf16.mxu0 0
      %2903 = vmatpush1.bf16.xpose.msra.mxu0 %v2881
      %2904 = vmatprep.subr.bf16.mxu0 0
      %2905 = vmatpush1.bf16.xpose.msra.mxu0 %v2884
      %2906 = vmatprep.subr.bf16.mxu0 0
      %2907 = vmatpush1.bf16.xpose.msra.mxu0 %v2887
      %2908 = vmatprep.subr.bf16.mxu0 0
      %2909 = vmatpush1.bf16.xpose.msra.mxu0 %v2890
      %2910 = vmatprep.subr.bf16.mxu0 0
      %2911 = vmatpush1.bf16.xpose.msra.mxu0 %v2893
      %2912 = vmatprep.subr.bf16.mxu0 0
      %2913 = vmatpush1.bf16.xpose.msra.mxu0 %v2896
      %2914 = vmatprep.subr.bf16.mxu0 0
      %2915 = vmatpush1.bf16.xpose.msra.mxu0 0
      %2916 = vmatprep.subr.bf16.mxu0 0
      %2917 = vmatpush1.bf16.xpose.msra.mxu0 0
      %2918 = vmatprep.subr.bf16.mxu0 0
      %2919 = vmatpush1.bf16.xpose.msra.mxu0 0
      %2920 = vmatprep.subr.bf16.mxu0 0
      %2921 = vmatpush1.bf16.xpose.msra.mxu0 0
      %2922 = vmatprep.subr.bf16.mxu0 0
      %2923 = vmatpush1.bf16.xpose.msra.mxu0 0
      %2924 = vmatprep.subr.bf16.mxu0 0
      %2925 = vmatpush1.bf16.xpose.msra.mxu0 0
      %2926 = vmatprep.subr.bf16.mxu0 0
      %2927 = vmatpush1.bf16.xpose.msra.mxu0 0
      %2928 = vmatprep.subr.bf16.mxu0 0
      %2929 = vmatpush1.bf16.xpose.msra.mxu0 0
      %2930 = vmatprep.mubr.bf16.mxu0 0
      %2931 = vmatmul.mubr.bf16.gmra.mrb[0].mxu0 %v2851
      %v2932 = vpop.f32.mrb[0].mxu0
      %v2933 = vadd.f32 0.0, %v2932
      %v2934 = vpop.f32.mrb[0].mxu0
      %v2935 = vpop.f32.mrb[0].mxu0
      %v2936 = vadd.f32 0.0, %v2935
      %v2937 = vpop.f32.mrb[0].mxu0
      %2938 = vmatprep.mubr.bf16.mxu0 0
      %2939 = vmatmul.mubr.bf16.gmra.mrb[0].mxu0 %v2854
      %v2940 = vpop.f32.mrb[0].mxu0
      %v2941 = vadd.f32 0.0, %v2940
      %v2942 = vpop.f32.mrb[0].mxu0
      %v2943 = vpop.f32.mrb[0].mxu0
      %v2944 = vadd.f32 0.0, %v2943
      %v2945 = vpop.f32.mrb[0].mxu0
      %2946 = vmatprep.mubr.bf16.mxu0 0
      %2947 = vmatmul.mubr.bf16.gmra.mrb[0].mxu0 %v2857
      %v2948 = vpop.f32.mrb[0].mxu0
      %v2949 = vadd.f32 0.0, %v2948
      %v2950 = vpop.f32.mrb[0].mxu0
      %v2951 = vpop.f32.mrb[0].mxu0
      %v2952 = vadd.f32 0.0, %v2951
      %v2953 = vpop.f32.mrb[0].mxu0
      %2954 = vmatprep.mubr.bf16.mxu0 0
      %2955 = vmatmul.mubr.bf16.gmra.mrb[0].mxu0 %v2860
      %v2956 = vpop.f32.mrb[0].mxu0
      %v2957 = vadd.f32 0.0, %v2956
      %v2958 = vpop.f32.mrb[0].mxu0
      %v2959 = vpop.f32.mrb[0].mxu0
      %v2960 = vadd.f32 0.0, %v2959
      %v2961 = vpop.f32.mrb[0].mxu0
      %2962 = vmatprep.mubr.bf16.mxu0 0
      %2963 = vmatmul.mubr.bf16.gmra.mrb[0].mxu0 %v2863
      %v2964 = vpop.f32.mrb[0].mxu0
      %v2965 = vadd.f32 0.0, %v2964
      %v2966 = vpop.f32.mrb[0].mxu0
      %v2967 = vpop.f32.mrb[0].mxu0
      %v2968 = vadd.f32 0.0, %v2967
      %v2969 = vpop.f32.mrb[0].mxu0
      %2970 = vmatprep.mubr.bf16.mxu0 0
      %2971 = vmatmul.mubr.bf16.gmra.mrb[0].mxu0 %v2866
      %v2972 = vpop.f32.mrb[0].mxu0
      %v2973 = vadd.f32 0.0, %v2972
      %v2974 = vpop.f32.mrb[0].mxu0
      %v2975 = vpop.f32.mrb[0].mxu0
      %v2976 = vadd.f32 0.0, %v2975
      %v2977 = vpop.f32.mrb[0].mxu0
      %2978 = vmatprep.mubr.bf16.mxu0 0
      %2979 = vmatmul.mubr.bf16.gmra.mrb[0].mxu0 %v2869
      %v2980 = vpop.f32.mrb[0].mxu0
      %v2981 = vadd.f32 0.0, %v2980
      %v2982 = vpop.f32.mrb[0].mxu0
      %v2983 = vpop.f32.mrb[0].mxu0
      %v2984 = vadd.f32 0.0, %v2983
      %v2985 = vpop.f32.mrb[0].mxu0
      %2986 = vmatprep.mubr.bf16.mxu0 0
      %2987 = vmatmul.mubr.bf16.gmra.mrb[0].mxu0 %v2872
      %v2988 = vpop.f32.mrb[0].mxu0
      %v2989 = vadd.f32 0.0, %v2988
      %v2990 = vpop.f32.mrb[0].mxu0
      %v2991 = vpop.f32.mrb[0].mxu0
      %v2992 = vadd.f32 0.0, %v2991
      %v2993 = vpop.f32.mrb[0].mxu0
      %2994 = vdwg.mxu0
      %v2995 = vsel %vm624, %v2933, -1e+30
      %v2996 = vsel %vm624, %v2936, -1e+30
      %v2997 = vsel %vm624, %v2941, -1e+30
      %v2998 = vsel %vm624, %v2944, -1e+30
      %v2999 = vsel %vm624, %v2949, -1e+30
      %v3000 = vsel %vm624, %v2952, -1e+30
      %v3001 = vsel %vm624, %v2957, -1e+30
      %v3002 = vsel %vm624, %v2960, -1e+30
      %v3003 = vsel %vm624, %v2965, -1e+30
      %v3004 = vsel %vm624, %v2968, -1e+30
      %v3005 = vsel %vm624, %v2973, -1e+30
      %v3006 = vsel %vm624, %v2976, -1e+30
      %v3007 = vsel %vm624, %v2981, -1e+30
      %v3008 = vsel %vm624, %v2984, -1e+30
      %v3009 = vsel %vm624, %v2989, -1e+30
      %v3010 = vsel %vm624, %v2992, -1e+30
      %3011 = vmax.xlane.f32.xlu0 %v2995
      %v3012 = vpop.xlane.xlu0 %3011
      %3013 = vmax.xlane.f32.xlu0 %v2996
      %v3014 = vpop.xlane.xlu0 %3013
      %3015 = vmax.xlane.f32.xlu0 %v2997
      %v3016 = vpop.xlane.xlu0 %3015
      %3017 = vmax.xlane.f32.xlu0 %v2998
      %v3018 = vpop.xlane.xlu0 %3017
      %3019 = vmax.xlane.f32.xlu0 %v2999
      %v3020 = vpop.xlane.xlu0 %3019
      %3021 = vmax.xlane.f32.xlu0 %v3000
      %v3022 = vpop.xlane.xlu0 %3021
      %3023 = vmax.xlane.f32.xlu0 %v3001
      %v3024 = vpop.xlane.xlu0 %3023
      %3025 = vmax.xlane.f32.xlu0 %v3002
      %v3026 = vpop.xlane.xlu0 %3025
      %3027 = vmax.xlane.f32.xlu0 %v3003
      %v3028 = vpop.xlane.xlu0 %3027
      %3029 = vmax.xlane.f32.xlu0 %v3004
      %v3030 = vpop.xlane.xlu0 %3029
      %3031 = vmax.xlane.f32.xlu0 %v3005
      %v3032 = vpop.xlane.xlu0 %3031
      %3033 = vmax.xlane.f32.xlu0 %v3006
      %v3034 = vpop.xlane.xlu0 %3033
      %3035 = vmax.xlane.f32.xlu0 %v3007
      %v3036 = vpop.xlane.xlu0 %3035
      %3037 = vmax.xlane.f32.xlu0 %v3008
      %v3038 = vpop.xlane.xlu0 %3037
      %3039 = vmax.xlane.f32.xlu0 %v3009
      %v3040 = vpop.xlane.xlu0 %3039
      %3041 = vmax.xlane.f32.xlu0 %v3010
      %v3042 = vpop.xlane.xlu0 %3041
      %v3043 = vsub.f32 %v2995, %v3012
      %v3044 = vsub.f32 %v2996, %v3014
      %v3045 = vsub.f32 %v2997, %v3016
      %v3046 = vsub.f32 %v2998, %v3018
      %v3047 = vsub.f32 %v2999, %v3020
      %v3048 = vsub.f32 %v3000, %v3022
      %v3049 = vsub.f32 %v3001, %v3024
      %v3050 = vsub.f32 %v3002, %v3026
      %v3051 = vsub.f32 %v3003, %v3028
      %v3052 = vsub.f32 %v3004, %v3030
      %v3053 = vsub.f32 %v3005, %v3032
      %v3054 = vsub.f32 %v3006, %v3034
      %v3055 = vsub.f32 %v3007, %v3036
      %v3056 = vsub.f32 %v3008, %v3038
      %v3057 = vsub.f32 %v3009, %v3040
      %v3058 = vsub.f32 %v3010, %v3042
      %v3059 = vmul.f32 %v3043, 1.442695
      %v3060 = vpow.pop %v3059
      %v3061 = vmul.f32 %v3044, 1.442695
      %v3062 = vpow.pop %v3061
      %v3063 = vmul.f32 %v3045, 1.442695
      %v3064 = vpow.pop %v3063
      %v3065 = vmul.f32 %v3046, 1.442695
      %v3066 = vpow.pop %v3065
      %v3067 = vmul.f32 %v3047, 1.442695
      %v3068 = vpow.pop %v3067
      %v3069 = vmul.f32 %v3048, 1.442695
      %v3070 = vpow.pop %v3069
      %v3071 = vmul.f32 %v3049, 1.442695
      %v3072 = vpow.pop %v3071
      %v3073 = vmul.f32 %v3050, 1.442695
      %v3074 = vpow.pop %v3073
      %v3075 = vmul.f32 %v3051, 1.442695
      %v3076 = vpow.pop %v3075
      %v3077 = vmul.f32 %v3052, 1.442695
      %v3078 = vpow.pop %v3077
      %v3079 = vmul.f32 %v3053, 1.442695
      %v3080 = vpow.pop %v3079
      %v3081 = vmul.f32 %v3054, 1.442695
      %v3082 = vpow.pop %v3081
      %v3083 = vmul.f32 %v3055, 1.442695
      %v3084 = vpow.pop %v3083
      %v3085 = vmul.f32 %v3056, 1.442695
      %v3086 = vpow.pop %v3085
      %v3087 = vmul.f32 %v3057, 1.442695
      %v3088 = vpow.pop %v3087
      %v3089 = vmul.f32 %v3058, 1.442695
      %v3090 = vpow.pop %v3089
      %3091 = vadd.xlane.f32.xlu0 %v3060
      %v3092 = vpop.xlane.xlu0 %3091
      %3093 = vadd.xlane.f32.xlu0 %v3062
      %v3094 = vpop.xlane.xlu0 %3093
      %3095 = vadd.xlane.f32.xlu0 %v3064
      %v3096 = vpop.xlane.xlu0 %3095
      %3097 = vadd.xlane.f32.xlu0 %v3066
      %v3098 = vpop.xlane.xlu0 %3097
      %3099 = vadd.xlane.f32.xlu0 %v3068
      %v3100 = vpop.xlane.xlu0 %3099
      %3101 = vadd.xlane.f32.xlu0 %v3070
      %v3102 = vpop.xlane.xlu0 %3101
      %3103 = vadd.xlane.f32.xlu0 %v3072
      %v3104 = vpop.xlane.xlu0 %3103
      %3105 = vadd.xlane.f32.xlu0 %v3074
      %v3106 = vpop.xlane.xlu0 %3105
      %3107 = vadd.xlane.f32.xlu0 %v3076
      %v3108 = vpop.xlane.xlu0 %3107
      %3109 = vadd.xlane.f32.xlu0 %v3078
      %v3110 = vpop.xlane.xlu0 %3109
      %3111 = vadd.xlane.f32.xlu0 %v3080
      %v3112 = vpop.xlane.xlu0 %3111
      %3113 = vadd.xlane.f32.xlu0 %v3082
      %v3114 = vpop.xlane.xlu0 %3113
      %3115 = vadd.xlane.f32.xlu0 %v3084
      %v3116 = vpop.xlane.xlu0 %3115
      %3117 = vadd.xlane.f32.xlu0 %v3086
      %v3118 = vpop.xlane.xlu0 %3117
      %3119 = vadd.xlane.f32.xlu0 %v3088
      %v3120 = vpop.xlane.xlu0 %3119
      %3121 = vadd.xlane.f32.xlu0 %v3090
      %v3122 = vpop.xlane.xlu0 %3121
      %v3123 = vrcp.pop %v3092
      %v3124 = vrcp.pop %v3094
      %v3125 = vrcp.pop %v3096
      %v3126 = vrcp.pop %v3098
      %v3127 = vrcp.pop %v3100
      %v3128 = vrcp.pop %v3102
      %v3129 = vrcp.pop %v3104
      %v3130 = vrcp.pop %v3106
      %v3131 = vrcp.pop %v3108
      %v3132 = vrcp.pop %v3110
      %v3133 = vrcp.pop %v3112
      %v3134 = vrcp.pop %v3114
      %v3135 = vrcp.pop %v3116
      %v3136 = vrcp.pop %v3118
      %v3137 = vrcp.pop %v3120
      %v3138 = vrcp.pop %v3122
      %v3139 = vmul.f32 %v3060, %v3123
      %v3140 = vmul.f32 %v3062, %v3124
      %v3141 = vmul.f32 %v3064, %v3125
      %v3142 = vmul.f32 %v3066, %v3126
      %v3143 = vmul.f32 %v3068, %v3127
      %v3144 = vmul.f32 %v3070, %v3128
      %v3145 = vmul.f32 %v3072, %v3129
      %v3146 = vmul.f32 %v3074, %v3130
      %v3147 = vmul.f32 %v3076, %v3131
      %v3148 = vmul.f32 %v3078, %v3132
      %v3149 = vmul.f32 %v3080, %v3133
      %v3150 = vmul.f32 %v3082, %v3134
      %v3151 = vmul.f32 %v3084, %v3135
      %v3152 = vmul.f32 %v3086, %v3136
      %v3153 = vmul.f32 %v3088, %v3137
      %v3154 = vmul.f32 %v3090, %v3138
      %v3155 = vpack.c.bf16 %v3140, %v3139
      %v3156 = vpack.c.bf16 %v3142, %v3141
      %v3157 = vpack.c.bf16 %v3144, %v3143
      %v3158 = vpack.c.bf16 %v3146, %v3145
      %v3159 = vpack.c.bf16 %v3148, %v3147
      %v3160 = vpack.c.bf16 %v3150, %v3149
      %v3161 = vpack.c.bf16 %v3152, %v3151
      %v3162 = vpack.c.bf16 %v3154, %v3153
      %3163 = vrot.lane.b32.xlu0 %v445, 44
      %v3164 = vpop.permute.xlu0 %3163
      %3165 = vrot.lane.b32.xlu0 %v446, 44
      %v3166 = vpop.permute.xlu0 %3165
      %3167 = vrot.lane.b32.xlu0 %v447, 44
      %v3168 = vpop.permute.xlu0 %3167
      %3169 = vrot.lane.b32.xlu0 %v448, 44
      %v3170 = vpop.permute.xlu0 %3169
      %3171 = vrot.lane.b32.xlu0 %v449, 44
      %v3172 = vpop.permute.xlu0 %3171
      %3173 = vrot.lane.b32.xlu0 %v450, 44
      %v3174 = vpop.permute.xlu0 %3173
      %3175 = vrot.lane.b32.xlu0 %v451, 44
      %v3176 = vpop.permute.xlu0 %3175
      %3177 = vrot.lane.b32.xlu0 %v452, 44
      %v3178 = vpop.permute.xlu0 %3177
      %3187 = vmatprep.subr.bf16.mxu0 0
      %3188 = vmatpush1.bf16.msra.mxu0 %v3164
      %3189 = vmatprep.subr.bf16.mxu0 0
      %3190 = vmatpush1.bf16.msra.mxu0 %v3166
      %3191 = vmatprep.subr.bf16.mxu0 0
      %3192 = vmatpush1.bf16.msra.mxu0 %v3168
      %3193 = vmatprep.subr.bf16.mxu0 0
      %3194 = vmatpush1.bf16.msra.mxu0 %v3170
      %3195 = vmatprep.subr.bf16.mxu0 0
      %3196 = vmatpush1.bf16.msra.mxu0 %v3172
      %3197 = vmatprep.subr.bf16.mxu0 0
      %3198 = vmatpush1.bf16.msra.mxu0 %v3174
      %3199 = vmatprep.subr.bf16.mxu0 0
      %3200 = vmatpush1.bf16.msra.mxu0 %v3176
      %3201 = vmatprep.subr.bf16.mxu0 0
      %3202 = vmatpush1.bf16.msra.mxu0 %v3178
      %3203 = vmatprep.subr.bf16.mxu0 0
      %3204 = vmatpush1.bf16.msra.mxu0 0
      %3205 = vmatprep.subr.bf16.mxu0 0
      %3206 = vmatpush1.bf16.msra.mxu0 0
      %3207 = vmatprep.subr.bf16.mxu0 0
      %3208 = vmatpush1.bf16.msra.mxu0 0
      %3209 = vmatprep.subr.bf16.mxu0 0
      %3210 = vmatpush1.bf16.msra.mxu0 0
      %3211 = vmatprep.subr.bf16.mxu0 0
      %3212 = vmatpush1.bf16.msra.mxu0 0
      %3213 = vmatprep.subr.bf16.mxu0 0
      %3214 = vmatpush1.bf16.msra.mxu0 0
      %3215 = vmatprep.subr.bf16.mxu0 0
      %3216 = vmatpush1.bf16.msra.mxu0 0
      %3217 = vmatprep.subr.bf16.mxu0 0
      %3218 = vmatpush1.bf16.msra.mxu0 0
      %3219 = vmatprep.mubr.bf16.mxu0 0
      %3220 = vmatmul.mubr.bf16.gmra.mrb[0].mxu0 %v3155
      %v3221 = vpop.f32.mrb[0].mxu0
      %v3222 = vadd.f32 0.0, %v3221
      %v3223 = vpop.f32.mrb[0].mxu0
      %v3224 = vpop.f32.mrb[0].mxu0
      %v3225 = vadd.f32 0.0, %v3224
      %v3226 = vpop.f32.mrb[0].mxu0
      %3227 = vmatprep.mubr.bf16.mxu0 0
      %3228 = vmatmul.mubr.bf16.gmra.mrb[0].mxu0 %v3156
      %v3229 = vpop.f32.mrb[0].mxu0
      %v3230 = vadd.f32 0.0, %v3229
      %v3231 = vpop.f32.mrb[0].mxu0
      %v3232 = vpop.f32.mrb[0].mxu0
      %v3233 = vadd.f32 0.0, %v3232
      %v3234 = vpop.f32.mrb[0].mxu0
      %3235 = vmatprep.mubr.bf16.mxu0 0
      %3236 = vmatmul.mubr.bf16.gmra.mrb[0].mxu0 %v3157
      %v3237 = vpop.f32.mrb[0].mxu0
      %v3238 = vadd.f32 0.0, %v3237
      %v3239 = vpop.f32.mrb[0].mxu0
      %v3240 = vpop.f32.mrb[0].mxu0
      %v3241 = vadd.f32 0.0, %v3240
      %v3242 = vpop.f32.mrb[0].mxu0
      %3243 = vmatprep.mubr.bf16.mxu0 0
      %3244 = vmatmul.mubr.bf16.gmra.mrb[0].mxu0 %v3158
      %v3245 = vpop.f32.mrb[0].mxu0
      %v3246 = vadd.f32 0.0, %v3245
      %v3247 = vpop.f32.mrb[0].mxu0
      %v3248 = vpop.f32.mrb[0].mxu0
      %v3249 = vadd.f32 0.0, %v3248
      %v3250 = vpop.f32.mrb[0].mxu0
      %3251 = vmatprep.mubr.bf16.mxu0 0
      %3252 = vmatmul.mubr.bf16.gmra.mrb[0].mxu0 %v3159
      %v3253 = vpop.f32.mrb[0].mxu0
      %v3254 = vadd.f32 0.0, %v3253
      %v3255 = vpop.f32.mrb[0].mxu0
      %v3256 = vpop.f32.mrb[0].mxu0
      %v3257 = vadd.f32 0.0, %v3256
      %v3258 = vpop.f32.mrb[0].mxu0
      %3259 = vmatprep.mubr.bf16.mxu0 0
      %3260 = vmatmul.mubr.bf16.gmra.mrb[0].mxu0 %v3160
      %v3261 = vpop.f32.mrb[0].mxu0
      %v3262 = vadd.f32 0.0, %v3261
      %v3263 = vpop.f32.mrb[0].mxu0
      %v3264 = vpop.f32.mrb[0].mxu0
      %v3265 = vadd.f32 0.0, %v3264
      %v3266 = vpop.f32.mrb[0].mxu0
      %3267 = vmatprep.mubr.bf16.mxu0 0
      %3268 = vmatmul.mubr.bf16.gmra.mrb[0].mxu0 %v3161
      %v3269 = vpop.f32.mrb[0].mxu0
      %v3270 = vadd.f32 0.0, %v3269
      %v3271 = vpop.f32.mrb[0].mxu0
      %v3272 = vpop.f32.mrb[0].mxu0
      %v3273 = vadd.f32 0.0, %v3272
      %v3274 = vpop.f32.mrb[0].mxu0
      %3275 = vmatprep.mubr.bf16.mxu0 0
      %3276 = vmatmul.mubr.bf16.gmra.mrb[0].mxu0 %v3162
      %v3277 = vpop.f32.mrb[0].mxu0
      %v3278 = vadd.f32 0.0, %v3277
      %v3279 = vpop.f32.mrb[0].mxu0
      %v3280 = vpop.f32.mrb[0].mxu0
      %v3281 = vadd.f32 0.0, %v3280
      %v3282 = vpop.f32.mrb[0].mxu0
      %3283 = vdwg.mxu0
      %v3284 = vpack.c.bf16 %v3225, %v3222
      %v3285 = vpack.c.bf16 %v3233, %v3230
      %v3286 = vpack.c.bf16 %v3241, %v3238
      %v3287 = vpack.c.bf16 %v3249, %v3246
      %v3288 = vpack.c.bf16 %v3257, %v3254
      %v3289 = vpack.c.bf16 %v3265, %v3262
      %v3290 = vpack.c.bf16 %v3273, %v3270
      %v3291 = vpack.c.bf16 %v3281, %v3278
      %3292 = vrot.lane.b32.xlu0 %v445, 104
      %v3293 = vpop.permute.xlu0 %3292
      %3294 = vrot.lane.b32.xlu0 %v446, 104
      %v3295 = vpop.permute.xlu0 %3294
      %3296 = vrot.lane.b32.xlu0 %v447, 104
      %v3297 = vpop.permute.xlu0 %3296
      %3298 = vrot.lane.b32.xlu0 %v448, 104
      %v3299 = vpop.permute.xlu0 %3298
      %3300 = vrot.lane.b32.xlu0 %v449, 104
      %v3301 = vpop.permute.xlu0 %3300
      %3302 = vrot.lane.b32.xlu0 %v450, 104
      %v3303 = vpop.permute.xlu0 %3302
      %3304 = vrot.lane.b32.xlu0 %v451, 104
      %v3305 = vpop.permute.xlu0 %3304
      %3306 = vrot.lane.b32.xlu0 %v452, 104
      %v3307 = vpop.permute.xlu0 %3306
      %3308 = vrot.lane.b32.xlu0 %v445, 72
      %v3309 = vpop.permute.xlu0 %3308
      %3310 = vrot.lane.b32.xlu0 %v446, 72
      %v3311 = vpop.permute.xlu0 %3310
      %3312 = vrot.lane.b32.xlu0 %v447, 72
      %v3313 = vpop.permute.xlu0 %3312
      %3314 = vrot.lane.b32.xlu0 %v448, 72
      %v3315 = vpop.permute.xlu0 %3314
      %3316 = vrot.lane.b32.xlu0 %v449, 72
      %v3317 = vpop.permute.xlu0 %3316
      %3318 = vrot.lane.b32.xlu0 %v450, 72
      %v3319 = vpop.permute.xlu0 %3318
      %3320 = vrot.lane.b32.xlu0 %v451, 72
      %v3321 = vpop.permute.xlu0 %3320
      %3322 = vrot.lane.b32.xlu0 %v452, 72
      %v3323 = vpop.permute.xlu0 %3322
      %v3325 = vsel %vm477, %v3293, 0
      %v3328 = vsel %vm477, %v3295, 0
      %v3331 = vsel %vm477, %v3297, 0
      %v3334 = vsel %vm477, %v3299, 0
      %v3337 = vsel %vm477, %v3301, 0
      %v3340 = vsel %vm477, %v3303, 0
      %v3343 = vsel %vm477, %v3305, 0
      %v3346 = vsel %vm477, %v3307, 0
      %v3349 = vsel %vm477, %v3309, 0
      %v3352 = vsel %vm477, %v3311, 0
      %v3355 = vsel %vm477, %v3313, 0
      %v3358 = vsel %vm477, %v3315, 0
      %v3361 = vsel %vm477, %v3317, 0
      %v3364 = vsel %vm477, %v3319, 0
      %v3367 = vsel %vm477, %v3321, 0
      %v3370 = vsel %vm477, %v3323, 0
      %3372 = vmatprep.subr.bf16.mxu0 0
      %3373 = vmatpush1.bf16.xpose.msra.mxu0 %v3349
      %3374 = vmatprep.subr.bf16.mxu0 0
      %3375 = vmatpush1.bf16.xpose.msra.mxu0 %v3352
      %3376 = vmatprep.subr.bf16.mxu0 0
      %3377 = vmatpush1.bf16.xpose.msra.mxu0 %v3355
      %3378 = vmatprep.subr.bf16.mxu0 0
      %3379 = vmatpush1.bf16.xpose.msra.mxu0 %v3358
      %3380 = vmatprep.subr.bf16.mxu0 0
      %3381 = vmatpush1.bf16.xpose.msra.mxu0 %v3361
      %3382 = vmatprep.subr.bf16.mxu0 0
      %3383 = vmatpush1.bf16.xpose.msra.mxu0 %v3364
      %3384 = vmatprep.subr.bf16.mxu0 0
      %3385 = vmatpush1.bf16.xpose.msra.mxu0 %v3367
      %3386 = vmatprep.subr.bf16.mxu0 0
      %3387 = vmatpush1.bf16.xpose.msra.mxu0 %v3370
      %3388 = vmatprep.subr.bf16.mxu0 0
      %3389 = vmatpush1.bf16.xpose.msra.mxu0 0
      %3390 = vmatprep.subr.bf16.mxu0 0
      %3391 = vmatpush1.bf16.xpose.msra.mxu0 0
      %3392 = vmatprep.subr.bf16.mxu0 0
      %3393 = vmatpush1.bf16.xpose.msra.mxu0 0
      %3394 = vmatprep.subr.bf16.mxu0 0
      %3395 = vmatpush1.bf16.xpose.msra.mxu0 0
      %3396 = vmatprep.subr.bf16.mxu0 0
      %3397 = vmatpush1.bf16.xpose.msra.mxu0 0
      %3398 = vmatprep.subr.bf16.mxu0 0
      %3399 = vmatpush1.bf16.xpose.msra.mxu0 0
      %3400 = vmatprep.subr.bf16.mxu0 0
      %3401 = vmatpush1.bf16.xpose.msra.mxu0 0
      %3402 = vmatprep.subr.bf16.mxu0 0
      %3403 = vmatpush1.bf16.xpose.msra.mxu0 0
      %3404 = vmatprep.mubr.bf16.mxu0 0
      %3405 = vmatmul.mubr.bf16.gmra.mrb[0].mxu0 %v3325
      %v3406 = vpop.f32.mrb[0].mxu0
      %v3407 = vadd.f32 0.0, %v3406
      %v3408 = vpop.f32.mrb[0].mxu0
      %v3409 = vpop.f32.mrb[0].mxu0
      %v3410 = vadd.f32 0.0, %v3409
      %v3411 = vpop.f32.mrb[0].mxu0
      %3412 = vmatprep.mubr.bf16.mxu0 0
      %3413 = vmatmul.mubr.bf16.gmra.mrb[0].mxu0 %v3328
      %v3414 = vpop.f32.mrb[0].mxu0
      %v3415 = vadd.f32 0.0, %v3414
      %v3416 = vpop.f32.mrb[0].mxu0
      %v3417 = vpop.f32.mrb[0].mxu0
      %v3418 = vadd.f32 0.0, %v3417
      %v3419 = vpop.f32.mrb[0].mxu0
      %3420 = vmatprep.mubr.bf16.mxu0 0
      %3421 = vmatmul.mubr.bf16.gmra.mrb[0].mxu0 %v3331
      %v3422 = vpop.f32.mrb[0].mxu0
      %v3423 = vadd.f32 0.0, %v3422
      %v3424 = vpop.f32.mrb[0].mxu0
      %v3425 = vpop.f32.mrb[0].mxu0
      %v3426 = vadd.f32 0.0, %v3425
      %v3427 = vpop.f32.mrb[0].mxu0
      %3428 = vmatprep.mubr.bf16.mxu0 0
      %3429 = vmatmul.mubr.bf16.gmra.mrb[0].mxu0 %v3334
      %v3430 = vpop.f32.mrb[0].mxu0
      %v3431 = vadd.f32 0.0, %v3430
      %v3432 = vpop.f32.mrb[0].mxu0
      %v3433 = vpop.f32.mrb[0].mxu0
      %v3434 = vadd.f32 0.0, %v3433
      %v3435 = vpop.f32.mrb[0].mxu0
      %3436 = vmatprep.mubr.bf16.mxu0 0
      %3437 = vmatmul.mubr.bf16.gmra.mrb[0].mxu0 %v3337
      %v3438 = vpop.f32.mrb[0].mxu0
      %v3439 = vadd.f32 0.0, %v3438
      %v3440 = vpop.f32.mrb[0].mxu0
      %v3441 = vpop.f32.mrb[0].mxu0
      %v3442 = vadd.f32 0.0, %v3441
      %v3443 = vpop.f32.mrb[0].mxu0
      %3444 = vmatprep.mubr.bf16.mxu0 0
      %3445 = vmatmul.mubr.bf16.gmra.mrb[0].mxu0 %v3340
      %v3446 = vpop.f32.mrb[0].mxu0
      %v3447 = vadd.f32 0.0, %v3446
      %v3448 = vpop.f32.mrb[0].mxu0
      %v3449 = vpop.f32.mrb[0].mxu0
      %v3450 = vadd.f32 0.0, %v3449
      %v3451 = vpop.f32.mrb[0].mxu0
      %3452 = vmatprep.mubr.bf16.mxu0 0
      %3453 = vmatmul.mubr.bf16.gmra.mrb[0].mxu0 %v3343
      %v3454 = vpop.f32.mrb[0].mxu0
      %v3455 = vadd.f32 0.0, %v3454
      %v3456 = vpop.f32.mrb[0].mxu0
      %v3457 = vpop.f32.mrb[0].mxu0
      %v3458 = vadd.f32 0.0, %v3457
      %v3459 = vpop.f32.mrb[0].mxu0
      %3460 = vmatprep.mubr.bf16.mxu0 0
      %3461 = vmatmul.mubr.bf16.gmra.mrb[0].mxu0 %v3346
      %v3462 = vpop.f32.mrb[0].mxu0
      %v3463 = vadd.f32 0.0, %v3462
      %v3464 = vpop.f32.mrb[0].mxu0
      %v3465 = vpop.f32.mrb[0].mxu0
      %v3466 = vadd.f32 0.0, %v3465
      %v3467 = vpop.f32.mrb[0].mxu0
      %3468 = vdwg.mxu0
      %v3469 = vsel %vm624, %v3407, -1e+30
      %v3470 = vsel %vm624, %v3410, -1e+30
      %v3471 = vsel %vm624, %v3415, -1e+30
      %v3472 = vsel %vm624, %v3418, -1e+30
      %v3473 = vsel %vm624, %v3423, -1e+30
      %v3474 = vsel %vm624, %v3426, -1e+30
      %v3475 = vsel %vm624, %v3431, -1e+30
      %v3476 = vsel %vm624, %v3434, -1e+30
      %v3477 = vsel %vm624, %v3439, -1e+30
      %v3478 = vsel %vm624, %v3442, -1e+30
      %v3479 = vsel %vm624, %v3447, -1e+30
      %v3480 = vsel %vm624, %v3450, -1e+30
      %v3481 = vsel %vm624, %v3455, -1e+30
      %v3482 = vsel %vm624, %v3458, -1e+30
      %v3483 = vsel %vm624, %v3463, -1e+30
      %v3484 = vsel %vm624, %v3466, -1e+30
      %3485 = vmax.xlane.f32.xlu0 %v3469
      %v3486 = vpop.xlane.xlu0 %3485
      %3487 = vmax.xlane.f32.xlu0 %v3470
      %v3488 = vpop.xlane.xlu0 %3487
      %3489 = vmax.xlane.f32.xlu0 %v3471
      %v3490 = vpop.xlane.xlu0 %3489
      %3491 = vmax.xlane.f32.xlu0 %v3472
      %v3492 = vpop.xlane.xlu0 %3491
      %3493 = vmax.xlane.f32.xlu0 %v3473
      %v3494 = vpop.xlane.xlu0 %3493
      %3495 = vmax.xlane.f32.xlu0 %v3474
      %v3496 = vpop.xlane.xlu0 %3495
      %3497 = vmax.xlane.f32.xlu0 %v3475
      %v3498 = vpop.xlane.xlu0 %3497
      %3499 = vmax.xlane.f32.xlu0 %v3476
      %v3500 = vpop.xlane.xlu0 %3499
      %3501 = vmax.xlane.f32.xlu0 %v3477
      %v3502 = vpop.xlane.xlu0 %3501
      %3503 = vmax.xlane.f32.xlu0 %v3478
      %v3504 = vpop.xlane.xlu0 %3503
      %3505 = vmax.xlane.f32.xlu0 %v3479
      %v3506 = vpop.xlane.xlu0 %3505
      %3507 = vmax.xlane.f32.xlu0 %v3480
      %v3508 = vpop.xlane.xlu0 %3507
      %3509 = vmax.xlane.f32.xlu0 %v3481
      %v3510 = vpop.xlane.xlu0 %3509
      %3511 = vmax.xlane.f32.xlu0 %v3482
      %v3512 = vpop.xlane.xlu0 %3511
      %3513 = vmax.xlane.f32.xlu0 %v3483
      %v3514 = vpop.xlane.xlu0 %3513
      %3515 = vmax.xlane.f32.xlu0 %v3484
      %v3516 = vpop.xlane.xlu0 %3515
      %v3517 = vsub.f32 %v3469, %v3486
      %v3518 = vsub.f32 %v3470, %v3488
      %v3519 = vsub.f32 %v3471, %v3490
      %v3520 = vsub.f32 %v3472, %v3492
      %v3521 = vsub.f32 %v3473, %v3494
      %v3522 = vsub.f32 %v3474, %v3496
      %v3523 = vsub.f32 %v3475, %v3498
      %v3524 = vsub.f32 %v3476, %v3500
      %v3525 = vsub.f32 %v3477, %v3502
      %v3526 = vsub.f32 %v3478, %v3504
      %v3527 = vsub.f32 %v3479, %v3506
      %v3528 = vsub.f32 %v3480, %v3508
      %v3529 = vsub.f32 %v3481, %v3510
      %v3530 = vsub.f32 %v3482, %v3512
      %v3531 = vsub.f32 %v3483, %v3514
      %v3532 = vsub.f32 %v3484, %v3516
      %v3533 = vmul.f32 %v3517, 1.442695
      %v3534 = vpow.pop %v3533
      %v3535 = vmul.f32 %v3518, 1.442695
      %v3536 = vpow.pop %v3535
      %v3537 = vmul.f32 %v3519, 1.442695
      %v3538 = vpow.pop %v3537
      %v3539 = vmul.f32 %v3520, 1.442695
      %v3540 = vpow.pop %v3539
      %v3541 = vmul.f32 %v3521, 1.442695
      %v3542 = vpow.pop %v3541
      %v3543 = vmul.f32 %v3522, 1.442695
      %v3544 = vpow.pop %v3543
      %v3545 = vmul.f32 %v3523, 1.442695
      %v3546 = vpow.pop %v3545
      %v3547 = vmul.f32 %v3524, 1.442695
      %v3548 = vpow.pop %v3547
      %v3549 = vmul.f32 %v3525, 1.442695
      %v3550 = vpow.pop %v3549
      %v3551 = vmul.f32 %v3526, 1.442695
      %v3552 = vpow.pop %v3551
      %v3553 = vmul.f32 %v3527, 1.442695
      %v3554 = vpow.pop %v3553
      %v3555 = vmul.f32 %v3528, 1.442695
      %v3556 = vpow.pop %v3555
      %v3557 = vmul.f32 %v3529, 1.442695
      %v3558 = vpow.pop %v3557
      %v3559 = vmul.f32 %v3530, 1.442695
      %v3560 = vpow.pop %v3559
      %v3561 = vmul.f32 %v3531, 1.442695
      %v3562 = vpow.pop %v3561
      %v3563 = vmul.f32 %v3532, 1.442695
      %v3564 = vpow.pop %v3563
      %3565 = vadd.xlane.f32.xlu0 %v3534
      %v3566 = vpop.xlane.xlu0 %3565
      %3567 = vadd.xlane.f32.xlu0 %v3536
      %v3568 = vpop.xlane.xlu0 %3567
      %3569 = vadd.xlane.f32.xlu0 %v3538
      %v3570 = vpop.xlane.xlu0 %3569
      %3571 = vadd.xlane.f32.xlu0 %v3540
      %v3572 = vpop.xlane.xlu0 %3571
      %3573 = vadd.xlane.f32.xlu0 %v3542
      %v3574 = vpop.xlane.xlu0 %3573
      %3575 = vadd.xlane.f32.xlu0 %v3544
      %v3576 = vpop.xlane.xlu0 %3575
      %3577 = vadd.xlane.f32.xlu0 %v3546
      %v3578 = vpop.xlane.xlu0 %3577
      %3579 = vadd.xlane.f32.xlu0 %v3548
      %v3580 = vpop.xlane.xlu0 %3579
      %3581 = vadd.xlane.f32.xlu0 %v3550
      %v3582 = vpop.xlane.xlu0 %3581
      %3583 = vadd.xlane.f32.xlu0 %v3552
      %v3584 = vpop.xlane.xlu0 %3583
      %3585 = vadd.xlane.f32.xlu0 %v3554
      %v3586 = vpop.xlane.xlu0 %3585
      %3587 = vadd.xlane.f32.xlu0 %v3556
      %v3588 = vpop.xlane.xlu0 %3587
      %3589 = vadd.xlane.f32.xlu0 %v3558
      %v3590 = vpop.xlane.xlu0 %3589
      %3591 = vadd.xlane.f32.xlu0 %v3560
      %v3592 = vpop.xlane.xlu0 %3591
      %3593 = vadd.xlane.f32.xlu0 %v3562
      %v3594 = vpop.xlane.xlu0 %3593
      %3595 = vadd.xlane.f32.xlu0 %v3564
      %v3596 = vpop.xlane.xlu0 %3595
      %v3597 = vrcp.pop %v3566
      %v3598 = vrcp.pop %v3568
      %v3599 = vrcp.pop %v3570
      %v3600 = vrcp.pop %v3572
      %v3601 = vrcp.pop %v3574
      %v3602 = vrcp.pop %v3576
      %v3603 = vrcp.pop %v3578
      %v3604 = vrcp.pop %v3580
      %v3605 = vrcp.pop %v3582
      %v3606 = vrcp.pop %v3584
      %v3607 = vrcp.pop %v3586
      %v3608 = vrcp.pop %v3588
      %v3609 = vrcp.pop %v3590
      %v3610 = vrcp.pop %v3592
      %v3611 = vrcp.pop %v3594
      %v3612 = vrcp.pop %v3596
      %v3613 = vmul.f32 %v3534, %v3597
      %v3614 = vmul.f32 %v3536, %v3598
      %v3615 = vmul.f32 %v3538, %v3599
      %v3616 = vmul.f32 %v3540, %v3600
      %v3617 = vmul.f32 %v3542, %v3601
      %v3618 = vmul.f32 %v3544, %v3602
      %v3619 = vmul.f32 %v3546, %v3603
      %v3620 = vmul.f32 %v3548, %v3604
      %v3621 = vmul.f32 %v3550, %v3605
      %v3622 = vmul.f32 %v3552, %v3606
      %v3623 = vmul.f32 %v3554, %v3607
      %v3624 = vmul.f32 %v3556, %v3608
      %v3625 = vmul.f32 %v3558, %v3609
      %v3626 = vmul.f32 %v3560, %v3610
      %v3627 = vmul.f32 %v3562, %v3611
      %v3628 = vmul.f32 %v3564, %v3612
      %v3629 = vpack.c.bf16 %v3614, %v3613
      %v3630 = vpack.c.bf16 %v3616, %v3615
      %v3631 = vpack.c.bf16 %v3618, %v3617
      %v3632 = vpack.c.bf16 %v3620, %v3619
      %v3633 = vpack.c.bf16 %v3622, %v3621
      %v3634 = vpack.c.bf16 %v3624, %v3623
      %v3635 = vpack.c.bf16 %v3626, %v3625
      %v3636 = vpack.c.bf16 %v3628, %v3627
      %3637 = vrot.lane.b32.xlu0 %v445, 40
      %v3638 = vpop.permute.xlu0 %3637
      %3639 = vrot.lane.b32.xlu0 %v446, 40
      %v3640 = vpop.permute.xlu0 %3639
      %3641 = vrot.lane.b32.xlu0 %v447, 40
      %v3642 = vpop.permute.xlu0 %3641
      %3643 = vrot.lane.b32.xlu0 %v448, 40
      %v3644 = vpop.permute.xlu0 %3643
      %3645 = vrot.lane.b32.xlu0 %v449, 40
      %v3646 = vpop.permute.xlu0 %3645
      %3647 = vrot.lane.b32.xlu0 %v450, 40
      %v3648 = vpop.permute.xlu0 %3647
      %3649 = vrot.lane.b32.xlu0 %v451, 40
      %v3650 = vpop.permute.xlu0 %3649
      %3651 = vrot.lane.b32.xlu0 %v452, 40
      %v3652 = vpop.permute.xlu0 %3651
      %3661 = vmatprep.subr.bf16.mxu0 0
      %3662 = vmatpush1.bf16.msra.mxu0 %v3638
      %3663 = vmatprep.subr.bf16.mxu0 0
      %3664 = vmatpush1.bf16.msra.mxu0 %v3640
      %3665 = vmatprep.subr.bf16.mxu0 0
      %3666 = vmatpush1.bf16.msra.mxu0 %v3642
      %3667 = vmatprep.subr.bf16.mxu0 0
      %3668 = vmatpush1.bf16.msra.mxu0 %v3644
      %3669 = vmatprep.subr.bf16.mxu0 0
      %3670 = vmatpush1.bf16.msra.mxu0 %v3646
      %3671 = vmatprep.subr.bf16.mxu0 0
      %3672 = vmatpush1.bf16.msra.mxu0 %v3648
      %3673 = vmatprep.subr.bf16.mxu0 0
      %3674 = vmatpush1.bf16.msra.mxu0 %v3650
      %3675 = vmatprep.subr.bf16.mxu0 0
      %3676 = vmatpush1.bf16.msra.mxu0 %v3652
      %3677 = vmatprep.subr.bf16.mxu0 0
      %3678 = vmatpush1.bf16.msra.mxu0 0
      %3679 = vmatprep.subr.bf16.mxu0 0
      %3680 = vmatpush1.bf16.msra.mxu0 0
      %3681 = vmatprep.subr.bf16.mxu0 0
      %3682 = vmatpush1.bf16.msra.mxu0 0
      %3683 = vmatprep.subr.bf16.mxu0 0
      %3684 = vmatpush1.bf16.msra.mxu0 0
      %3685 = vmatprep.subr.bf16.mxu0 0
      %3686 = vmatpush1.bf16.msra.mxu0 0
      %3687 = vmatprep.subr.bf16.mxu0 0
      %3688 = vmatpush1.bf16.msra.mxu0 0
      %3689 = vmatprep.subr.bf16.mxu0 0
      %3690 = vmatpush1.bf16.msra.mxu0 0
      %3691 = vmatprep.subr.bf16.mxu0 0
      %3692 = vmatpush1.bf16.msra.mxu0 0
      %3693 = vmatprep.mubr.bf16.mxu0 0
      %3694 = vmatmul.mubr.bf16.gmra.mrb[0].mxu0 %v3629
      %v3695 = vpop.f32.mrb[0].mxu0
      %v3696 = vadd.f32 0.0, %v3695
      %v3697 = vpop.f32.mrb[0].mxu0
      %v3698 = vpop.f32.mrb[0].mxu0
      %v3699 = vadd.f32 0.0, %v3698
      %v3700 = vpop.f32.mrb[0].mxu0
      %3701 = vmatprep.mubr.bf16.mxu0 0
      %3702 = vmatmul.mubr.bf16.gmra.mrb[0].mxu0 %v3630
      %v3703 = vpop.f32.mrb[0].mxu0
      %v3704 = vadd.f32 0.0, %v3703
      %v3705 = vpop.f32.mrb[0].mxu0
      %v3706 = vpop.f32.mrb[0].mxu0
      %v3707 = vadd.f32 0.0, %v3706
      %v3708 = vpop.f32.mrb[0].mxu0
      %3709 = vmatprep.mubr.bf16.mxu0 0
      %3710 = vmatmul.mubr.bf16.gmra.mrb[0].mxu0 %v3631
      %v3711 = vpop.f32.mrb[0].mxu0
      %v3712 = vadd.f32 0.0, %v3711
      %v3713 = vpop.f32.mrb[0].mxu0
      %v3714 = vpop.f32.mrb[0].mxu0
      %v3715 = vadd.f32 0.0, %v3714
      %v3716 = vpop.f32.mrb[0].mxu0
      %3717 = vmatprep.mubr.bf16.mxu0 0
      %3718 = vmatmul.mubr.bf16.gmra.mrb[0].mxu0 %v3632
      %v3719 = vpop.f32.mrb[0].mxu0
      %v3720 = vadd.f32 0.0, %v3719
      %v3721 = vpop.f32.mrb[0].mxu0
      %v3722 = vpop.f32.mrb[0].mxu0
      %v3723 = vadd.f32 0.0, %v3722
      %v3724 = vpop.f32.mrb[0].mxu0
      %3725 = vmatprep.mubr.bf16.mxu0 0
      %3726 = vmatmul.mubr.bf16.gmra.mrb[0].mxu0 %v3633
      %v3727 = vpop.f32.mrb[0].mxu0
      %v3728 = vadd.f32 0.0, %v3727
      %v3729 = vpop.f32.mrb[0].mxu0
      %v3730 = vpop.f32.mrb[0].mxu0
      %v3731 = vadd.f32 0.0, %v3730
      %v3732 = vpop.f32.mrb[0].mxu0
      %3733 = vmatprep.mubr.bf16.mxu0 0
      %3734 = vmatmul.mubr.bf16.gmra.mrb[0].mxu0 %v3634
      %v3735 = vpop.f32.mrb[0].mxu0
      %v3736 = vadd.f32 0.0, %v3735
      %v3737 = vpop.f32.mrb[0].mxu0
      %v3738 = vpop.f32.mrb[0].mxu0
      %v3739 = vadd.f32 0.0, %v3738
      %v3740 = vpop.f32.mrb[0].mxu0
      %3741 = vmatprep.mubr.bf16.mxu0 0
      %3742 = vmatmul.mubr.bf16.gmra.mrb[0].mxu0 %v3635
      %v3743 = vpop.f32.mrb[0].mxu0
      %v3744 = vadd.f32 0.0, %v3743
      %v3745 = vpop.f32.mrb[0].mxu0
      %v3746 = vpop.f32.mrb[0].mxu0
      %v3747 = vadd.f32 0.0, %v3746
      %v3748 = vpop.f32.mrb[0].mxu0
      %3749 = vmatprep.mubr.bf16.mxu0 0
      %3750 = vmatmul.mubr.bf16.gmra.mrb[0].mxu0 %v3636
      %v3751 = vpop.f32.mrb[0].mxu0
      %v3752 = vadd.f32 0.0, %v3751
      %v3753 = vpop.f32.mrb[0].mxu0
      %v3754 = vpop.f32.mrb[0].mxu0
      %v3755 = vadd.f32 0.0, %v3754
      %v3756 = vpop.f32.mrb[0].mxu0
      %3757 = vdwg.mxu0
      %v3758 = vpack.c.bf16 %v3699, %v3696
      %v3759 = vpack.c.bf16 %v3707, %v3704
      %v3760 = vpack.c.bf16 %v3715, %v3712
      %v3761 = vpack.c.bf16 %v3723, %v3720
      %v3762 = vpack.c.bf16 %v3731, %v3728
      %v3763 = vpack.c.bf16 %v3739, %v3736
      %v3764 = vpack.c.bf16 %v3747, %v3744
      %v3765 = vpack.c.bf16 %v3755, %v3752
      %3766 = vrot.lane.b32.xlu0 %v445, 100
      %v3767 = vpop.permute.xlu0 %3766
      %3768 = vrot.lane.b32.xlu0 %v446, 100
      %v3769 = vpop.permute.xlu0 %3768
      %3770 = vrot.lane.b32.xlu0 %v447, 100
      %v3771 = vpop.permute.xlu0 %3770
      %3772 = vrot.lane.b32.xlu0 %v448, 100
      %v3773 = vpop.permute.xlu0 %3772
      %3774 = vrot.lane.b32.xlu0 %v449, 100
      %v3775 = vpop.permute.xlu0 %3774
      %3776 = vrot.lane.b32.xlu0 %v450, 100
      %v3777 = vpop.permute.xlu0 %3776
      %3778 = vrot.lane.b32.xlu0 %v451, 100
      %v3779 = vpop.permute.xlu0 %3778
      %3780 = vrot.lane.b32.xlu0 %v452, 100
      %v3781 = vpop.permute.xlu0 %3780
      %3782 = vrot.lane.b32.xlu0 %v445, 68
      %v3783 = vpop.permute.xlu0 %3782
      %3784 = vrot.lane.b32.xlu0 %v446, 68
      %v3785 = vpop.permute.xlu0 %3784
      %3786 = vrot.lane.b32.xlu0 %v447, 68
      %v3787 = vpop.permute.xlu0 %3786
      %3788 = vrot.lane.b32.xlu0 %v448, 68
      %v3789 = vpop.permute.xlu0 %3788
      %3790 = vrot.lane.b32.xlu0 %v449, 68
      %v3791 = vpop.permute.xlu0 %3790
      %3792 = vrot.lane.b32.xlu0 %v450, 68
      %v3793 = vpop.permute.xlu0 %3792
      %3794 = vrot.lane.b32.xlu0 %v451, 68
      %v3795 = vpop.permute.xlu0 %3794
      %3796 = vrot.lane.b32.xlu0 %v452, 68
      %v3797 = vpop.permute.xlu0 %3796
      %v3799 = vsel %vm477, %v3767, 0
      %v3802 = vsel %vm477, %v3769, 0
      %v3805 = vsel %vm477, %v3771, 0
      %v3808 = vsel %vm477, %v3773, 0
      %v3811 = vsel %vm477, %v3775, 0
      %v3814 = vsel %vm477, %v3777, 0
      %v3817 = vsel %vm477, %v3779, 0
      %v3820 = vsel %vm477, %v3781, 0
      %v3823 = vsel %vm477, %v3783, 0
      %v3826 = vsel %vm477, %v3785, 0
      %v3829 = vsel %vm477, %v3787, 0
      %v3832 = vsel %vm477, %v3789, 0
      %v3835 = vsel %vm477, %v3791, 0
      %v3838 = vsel %vm477, %v3793, 0
      %v3841 = vsel %vm477, %v3795, 0
      %v3844 = vsel %vm477, %v3797, 0
      %3846 = vmatprep.subr.bf16.mxu0 0
      %3847 = vmatpush1.bf16.xpose.msra.mxu0 %v3823
      %3848 = vmatprep.subr.bf16.mxu0 0
      %3849 = vmatpush1.bf16.xpose.msra.mxu0 %v3826
      %3850 = vmatprep.subr.bf16.mxu0 0
      %3851 = vmatpush1.bf16.xpose.msra.mxu0 %v3829
      %3852 = vmatprep.subr.bf16.mxu0 0
      %3853 = vmatpush1.bf16.xpose.msra.mxu0 %v3832
      %3854 = vmatprep.subr.bf16.mxu0 0
      %3855 = vmatpush1.bf16.xpose.msra.mxu0 %v3835
      %3856 = vmatprep.subr.bf16.mxu0 0
      %3857 = vmatpush1.bf16.xpose.msra.mxu0 %v3838
      %3858 = vmatprep.subr.bf16.mxu0 0
      %3859 = vmatpush1.bf16.xpose.msra.mxu0 %v3841
      %3860 = vmatprep.subr.bf16.mxu0 0
      %3861 = vmatpush1.bf16.xpose.msra.mxu0 %v3844
      %3862 = vmatprep.subr.bf16.mxu0 0
      %3863 = vmatpush1.bf16.xpose.msra.mxu0 0
      %3864 = vmatprep.subr.bf16.mxu0 0
      %3865 = vmatpush1.bf16.xpose.msra.mxu0 0
      %3866 = vmatprep.subr.bf16.mxu0 0
      %3867 = vmatpush1.bf16.xpose.msra.mxu0 0
      %3868 = vmatprep.subr.bf16.mxu0 0
      %3869 = vmatpush1.bf16.xpose.msra.mxu0 0
      %3870 = vmatprep.subr.bf16.mxu0 0
      %3871 = vmatpush1.bf16.xpose.msra.mxu0 0
      %3872 = vmatprep.subr.bf16.mxu0 0
      %3873 = vmatpush1.bf16.xpose.msra.mxu0 0
      %3874 = vmatprep.subr.bf16.mxu0 0
      %3875 = vmatpush1.bf16.xpose.msra.mxu0 0
      %3876 = vmatprep.subr.bf16.mxu0 0
      %3877 = vmatpush1.bf16.xpose.msra.mxu0 0
      %3878 = vmatprep.mubr.bf16.mxu0 0
      %3879 = vmatmul.mubr.bf16.gmra.mrb[0].mxu0 %v3799
      %v3880 = vpop.f32.mrb[0].mxu0
      %v3881 = vadd.f32 0.0, %v3880
      %v3882 = vpop.f32.mrb[0].mxu0
      %v3883 = vpop.f32.mrb[0].mxu0
      %v3884 = vadd.f32 0.0, %v3883
      %v3885 = vpop.f32.mrb[0].mxu0
      %3886 = vmatprep.mubr.bf16.mxu0 0
      %3887 = vmatmul.mubr.bf16.gmra.mrb[0].mxu0 %v3802
      %v3888 = vpop.f32.mrb[0].mxu0
      %v3889 = vadd.f32 0.0, %v3888
      %v3890 = vpop.f32.mrb[0].mxu0
      %v3891 = vpop.f32.mrb[0].mxu0
      %v3892 = vadd.f32 0.0, %v3891
      %v3893 = vpop.f32.mrb[0].mxu0
      %3894 = vmatprep.mubr.bf16.mxu0 0
      %3895 = vmatmul.mubr.bf16.gmra.mrb[0].mxu0 %v3805
      %v3896 = vpop.f32.mrb[0].mxu0
      %v3897 = vadd.f32 0.0, %v3896
      %v3898 = vpop.f32.mrb[0].mxu0
      %v3899 = vpop.f32.mrb[0].mxu0
      %v3900 = vadd.f32 0.0, %v3899
      %v3901 = vpop.f32.mrb[0].mxu0
      %3902 = vmatprep.mubr.bf16.mxu0 0
      %3903 = vmatmul.mubr.bf16.gmra.mrb[0].mxu0 %v3808
      %v3904 = vpop.f32.mrb[0].mxu0
      %v3905 = vadd.f32 0.0, %v3904
      %v3906 = vpop.f32.mrb[0].mxu0
      %v3907 = vpop.f32.mrb[0].mxu0
      %v3908 = vadd.f32 0.0, %v3907
      %v3909 = vpop.f32.mrb[0].mxu0
      %3910 = vmatprep.mubr.bf16.mxu0 0
      %3911 = vmatmul.mubr.bf16.gmra.mrb[0].mxu0 %v3811
      %v3912 = vpop.f32.mrb[0].mxu0
      %v3913 = vadd.f32 0.0, %v3912
      %v3914 = vpop.f32.mrb[0].mxu0
      %v3915 = vpop.f32.mrb[0].mxu0
      %v3916 = vadd.f32 0.0, %v3915
      %v3917 = vpop.f32.mrb[0].mxu0
      %3918 = vmatprep.mubr.bf16.mxu0 0
      %3919 = vmatmul.mubr.bf16.gmra.mrb[0].mxu0 %v3814
      %v3920 = vpop.f32.mrb[0].mxu0
      %v3921 = vadd.f32 0.0, %v3920
      %v3922 = vpop.f32.mrb[0].mxu0
      %v3923 = vpop.f32.mrb[0].mxu0
      %v3924 = vadd.f32 0.0, %v3923
      %v3925 = vpop.f32.mrb[0].mxu0
      %3926 = vmatprep.mubr.bf16.mxu0 0
      %3927 = vmatmul.mubr.bf16.gmra.mrb[0].mxu0 %v3817
      %v3928 = vpop.f32.mrb[0].mxu0
      %v3929 = vadd.f32 0.0, %v3928
      %v3930 = vpop.f32.mrb[0].mxu0
      %v3931 = vpop.f32.mrb[0].mxu0
      %v3932 = vadd.f32 0.0, %v3931
      %v3933 = vpop.f32.mrb[0].mxu0
      %3934 = vmatprep.mubr.bf16.mxu0 0
      %3935 = vmatmul.mubr.bf16.gmra.mrb[0].mxu0 %v3820
      %v3936 = vpop.f32.mrb[0].mxu0
      %v3937 = vadd.f32 0.0, %v3936
      %v3938 = vpop.f32.mrb[0].mxu0
      %v3939 = vpop.f32.mrb[0].mxu0
      %v3940 = vadd.f32 0.0, %v3939
      %v3941 = vpop.f32.mrb[0].mxu0
      %3942 = vdwg.mxu0
      %v3943 = vsel %vm624, %v3881, -1e+30
      %v3944 = vsel %vm624, %v3884, -1e+30
      %v3945 = vsel %vm624, %v3889, -1e+30
      %v3946 = vsel %vm624, %v3892, -1e+30
      %v3947 = vsel %vm624, %v3897, -1e+30
      %v3948 = vsel %vm624, %v3900, -1e+30
      %v3949 = vsel %vm624, %v3905, -1e+30
      %v3950 = vsel %vm624, %v3908, -1e+30
      %v3951 = vsel %vm624, %v3913, -1e+30
      %v3952 = vsel %vm624, %v3916, -1e+30
      %v3953 = vsel %vm624, %v3921, -1e+30
      %v3954 = vsel %vm624, %v3924, -1e+30
      %v3955 = vsel %vm624, %v3929, -1e+30
      %v3956 = vsel %vm624, %v3932, -1e+30
      %v3957 = vsel %vm624, %v3937, -1e+30
      %v3958 = vsel %vm624, %v3940, -1e+30
      %3959 = vmax.xlane.f32.xlu0 %v3943
      %v3960 = vpop.xlane.xlu0 %3959
      %3961 = vmax.xlane.f32.xlu0 %v3944
      %v3962 = vpop.xlane.xlu0 %3961
      %3963 = vmax.xlane.f32.xlu0 %v3945
      %v3964 = vpop.xlane.xlu0 %3963
      %3965 = vmax.xlane.f32.xlu0 %v3946
      %v3966 = vpop.xlane.xlu0 %3965
      %3967 = vmax.xlane.f32.xlu0 %v3947
      %v3968 = vpop.xlane.xlu0 %3967
      %3969 = vmax.xlane.f32.xlu0 %v3948
      %v3970 = vpop.xlane.xlu0 %3969
      %3971 = vmax.xlane.f32.xlu0 %v3949
      %v3972 = vpop.xlane.xlu0 %3971
      %3973 = vmax.xlane.f32.xlu0 %v3950
      %v3974 = vpop.xlane.xlu0 %3973
      %3975 = vmax.xlane.f32.xlu0 %v3951
      %v3976 = vpop.xlane.xlu0 %3975
      %3977 = vmax.xlane.f32.xlu0 %v3952
      %v3978 = vpop.xlane.xlu0 %3977
      %3979 = vmax.xlane.f32.xlu0 %v3953
      %v3980 = vpop.xlane.xlu0 %3979
      %3981 = vmax.xlane.f32.xlu0 %v3954
      %v3982 = vpop.xlane.xlu0 %3981
      %3983 = vmax.xlane.f32.xlu0 %v3955
      %v3984 = vpop.xlane.xlu0 %3983
      %3985 = vmax.xlane.f32.xlu0 %v3956
      %v3986 = vpop.xlane.xlu0 %3985
      %3987 = vmax.xlane.f32.xlu0 %v3957
      %v3988 = vpop.xlane.xlu0 %3987
      %3989 = vmax.xlane.f32.xlu0 %v3958
      %v3990 = vpop.xlane.xlu0 %3989
      %v3991 = vsub.f32 %v3943, %v3960
      %v3992 = vsub.f32 %v3944, %v3962
      %v3993 = vsub.f32 %v3945, %v3964
      %v3994 = vsub.f32 %v3946, %v3966
      %v3995 = vsub.f32 %v3947, %v3968
      %v3996 = vsub.f32 %v3948, %v3970
      %v3997 = vsub.f32 %v3949, %v3972
      %v3998 = vsub.f32 %v3950, %v3974
      %v3999 = vsub.f32 %v3951, %v3976
      %v4000 = vsub.f32 %v3952, %v3978
      %v4001 = vsub.f32 %v3953, %v3980
      %v4002 = vsub.f32 %v3954, %v3982
      %v4003 = vsub.f32 %v3955, %v3984
      %v4004 = vsub.f32 %v3956, %v3986
      %v4005 = vsub.f32 %v3957, %v3988
      %v4006 = vsub.f32 %v3958, %v3990
      %v4007 = vmul.f32 %v3991, 1.442695
      %v4008 = vpow.pop %v4007
      %v4009 = vmul.f32 %v3992, 1.442695
      %v4010 = vpow.pop %v4009
      %v4011 = vmul.f32 %v3993, 1.442695
      %v4012 = vpow.pop %v4011
      %v4013 = vmul.f32 %v3994, 1.442695
      %v4014 = vpow.pop %v4013
      %v4015 = vmul.f32 %v3995, 1.442695
      %v4016 = vpow.pop %v4015
      %v4017 = vmul.f32 %v3996, 1.442695
      %v4018 = vpow.pop %v4017
      %v4019 = vmul.f32 %v3997, 1.442695
      %v4020 = vpow.pop %v4019
      %v4021 = vmul.f32 %v3998, 1.442695
      %v4022 = vpow.pop %v4021
      %v4023 = vmul.f32 %v3999, 1.442695
      %v4024 = vpow.pop %v4023
      %v4025 = vmul.f32 %v4000, 1.442695
      %v4026 = vpow.pop %v4025
      %v4027 = vmul.f32 %v4001, 1.442695
      %v4028 = vpow.pop %v4027
      %v4029 = vmul.f32 %v4002, 1.442695
      %v4030 = vpow.pop %v4029
      %v4031 = vmul.f32 %v4003, 1.442695
      %v4032 = vpow.pop %v4031
      %v4033 = vmul.f32 %v4004, 1.442695
      %v4034 = vpow.pop %v4033
      %v4035 = vmul.f32 %v4005, 1.442695
      %v4036 = vpow.pop %v4035
      %v4037 = vmul.f32 %v4006, 1.442695
      %v4038 = vpow.pop %v4037
      %4039 = vadd.xlane.f32.xlu0 %v4008
      %v4040 = vpop.xlane.xlu0 %4039
      %4041 = vadd.xlane.f32.xlu0 %v4010
      %v4042 = vpop.xlane.xlu0 %4041
      %4043 = vadd.xlane.f32.xlu0 %v4012
      %v4044 = vpop.xlane.xlu0 %4043
      %4045 = vadd.xlane.f32.xlu0 %v4014
      %v4046 = vpop.xlane.xlu0 %4045
      %4047 = vadd.xlane.f32.xlu0 %v4016
      %v4048 = vpop.xlane.xlu0 %4047
      %4049 = vadd.xlane.f32.xlu0 %v4018
      %v4050 = vpop.xlane.xlu0 %4049
      %4051 = vadd.xlane.f32.xlu0 %v4020
      %v4052 = vpop.xlane.xlu0 %4051
      %4053 = vadd.xlane.f32.xlu0 %v4022
      %v4054 = vpop.xlane.xlu0 %4053
      %4055 = vadd.xlane.f32.xlu0 %v4024
      %v4056 = vpop.xlane.xlu0 %4055
      %4057 = vadd.xlane.f32.xlu0 %v4026
      %v4058 = vpop.xlane.xlu0 %4057
      %4059 = vadd.xlane.f32.xlu0 %v4028
      %v4060 = vpop.xlane.xlu0 %4059
      %4061 = vadd.xlane.f32.xlu0 %v4030
      %v4062 = vpop.xlane.xlu0 %4061
      %4063 = vadd.xlane.f32.xlu0 %v4032
      %v4064 = vpop.xlane.xlu0 %4063
      %4065 = vadd.xlane.f32.xlu0 %v4034
      %v4066 = vpop.xlane.xlu0 %4065
      %4067 = vadd.xlane.f32.xlu0 %v4036
      %v4068 = vpop.xlane.xlu0 %4067
      %4069 = vadd.xlane.f32.xlu0 %v4038
      %v4070 = vpop.xlane.xlu0 %4069
      %v4071 = vrcp.pop %v4040
      %v4072 = vrcp.pop %v4042
      %v4073 = vrcp.pop %v4044
      %v4074 = vrcp.pop %v4046
      %v4075 = vrcp.pop %v4048
      %v4076 = vrcp.pop %v4050
      %v4077 = vrcp.pop %v4052
      %v4078 = vrcp.pop %v4054
      %v4079 = vrcp.pop %v4056
      %v4080 = vrcp.pop %v4058
      %v4081 = vrcp.pop %v4060
      %v4082 = vrcp.pop %v4062
      %v4083 = vrcp.pop %v4064
      %v4084 = vrcp.pop %v4066
      %v4085 = vrcp.pop %v4068
      %v4086 = vrcp.pop %v4070
      %v4087 = vmul.f32 %v4008, %v4071
      %v4088 = vmul.f32 %v4010, %v4072
      %v4089 = vmul.f32 %v4012, %v4073
      %v4090 = vmul.f32 %v4014, %v4074
      %v4091 = vmul.f32 %v4016, %v4075
      %v4092 = vmul.f32 %v4018, %v4076
      %v4093 = vmul.f32 %v4020, %v4077
      %v4094 = vmul.f32 %v4022, %v4078
      %v4095 = vmul.f32 %v4024, %v4079
      %v4096 = vmul.f32 %v4026, %v4080
      %v4097 = vmul.f32 %v4028, %v4081
      %v4098 = vmul.f32 %v4030, %v4082
      %v4099 = vmul.f32 %v4032, %v4083
      %v4100 = vmul.f32 %v4034, %v4084
      %v4101 = vmul.f32 %v4036, %v4085
      %v4102 = vmul.f32 %v4038, %v4086
      %v4103 = vpack.c.bf16 %v4088, %v4087
      %v4104 = vpack.c.bf16 %v4090, %v4089
      %v4105 = vpack.c.bf16 %v4092, %v4091
      %v4106 = vpack.c.bf16 %v4094, %v4093
      %v4107 = vpack.c.bf16 %v4096, %v4095
      %v4108 = vpack.c.bf16 %v4098, %v4097
      %v4109 = vpack.c.bf16 %v4100, %v4099
      %v4110 = vpack.c.bf16 %v4102, %v4101
      %4111 = vrot.lane.b32.xlu0 %v445, 36
      %v4112 = vpop.permute.xlu0 %4111
      %4113 = vrot.lane.b32.xlu0 %v446, 36
      %v4114 = vpop.permute.xlu0 %4113
      %4115 = vrot.lane.b32.xlu0 %v447, 36
      %v4116 = vpop.permute.xlu0 %4115
      %4117 = vrot.lane.b32.xlu0 %v448, 36
      %v4118 = vpop.permute.xlu0 %4117
      %4119 = vrot.lane.b32.xlu0 %v449, 36
      %v4120 = vpop.permute.xlu0 %4119
      %4121 = vrot.lane.b32.xlu0 %v450, 36
      %v4122 = vpop.permute.xlu0 %4121
      %4123 = vrot.lane.b32.xlu0 %v451, 36
      %v4124 = vpop.permute.xlu0 %4123
      %4125 = vrot.lane.b32.xlu0 %v452, 36
      %v4126 = vpop.permute.xlu0 %4125
      %4135 = vmatprep.subr.bf16.mxu0 0
      %4136 = vmatpush1.bf16.msra.mxu0 %v4112
      %4137 = vmatprep.subr.bf16.mxu0 0
      %4138 = vmatpush1.bf16.msra.mxu0 %v4114
      %4139 = vmatprep.subr.bf16.mxu0 0
      %4140 = vmatpush1.bf16.msra.mxu0 %v4116
      %4141 = vmatprep.subr.bf16.mxu0 0
      %4142 = vmatpush1.bf16.msra.mxu0 %v4118
      %4143 = vmatprep.subr.bf16.mxu0 0
      %4144 = vmatpush1.bf16.msra.mxu0 %v4120
      %4145 = vmatprep.subr.bf16.mxu0 0
      %4146 = vmatpush1.bf16.msra.mxu0 %v4122
      %4147 = vmatprep.subr.bf16.mxu0 0
      %4148 = vmatpush1.bf16.msra.mxu0 %v4124
      %4149 = vmatprep.subr.bf16.mxu0 0
      %4150 = vmatpush1.bf16.msra.mxu0 %v4126
      %4151 = vmatprep.subr.bf16.mxu0 0
      %4152 = vmatpush1.bf16.msra.mxu0 0
      %4153 = vmatprep.subr.bf16.mxu0 0
      %4154 = vmatpush1.bf16.msra.mxu0 0
      %4155 = vmatprep.subr.bf16.mxu0 0
      %4156 = vmatpush1.bf16.msra.mxu0 0
      %4157 = vmatprep.subr.bf16.mxu0 0
      %4158 = vmatpush1.bf16.msra.mxu0 0
      %4159 = vmatprep.subr.bf16.mxu0 0
      %4160 = vmatpush1.bf16.msra.mxu0 0
      %4161 = vmatprep.subr.bf16.mxu0 0
      %4162 = vmatpush1.bf16.msra.mxu0 0
      %4163 = vmatprep.subr.bf16.mxu0 0
      %4164 = vmatpush1.bf16.msra.mxu0 0
      %4165 = vmatprep.subr.bf16.mxu0 0
      %4166 = vmatpush1.bf16.msra.mxu0 0
      %4167 = vmatprep.mubr.bf16.mxu0 0
      %4168 = vmatmul.mubr.bf16.gmra.mrb[0].mxu0 %v4103
      %v4169 = vpop.f32.mrb[0].mxu0
      %v4170 = vadd.f32 0.0, %v4169
      %v4171 = vpop.f32.mrb[0].mxu0
      %v4172 = vpop.f32.mrb[0].mxu0
      %v4173 = vadd.f32 0.0, %v4172
      %v4174 = vpop.f32.mrb[0].mxu0
      %4175 = vmatprep.mubr.bf16.mxu0 0
      %4176 = vmatmul.mubr.bf16.gmra.mrb[0].mxu0 %v4104
      %v4177 = vpop.f32.mrb[0].mxu0
      %v4178 = vadd.f32 0.0, %v4177
      %v4179 = vpop.f32.mrb[0].mxu0
      %v4180 = vpop.f32.mrb[0].mxu0
      %v4181 = vadd.f32 0.0, %v4180
      %v4182 = vpop.f32.mrb[0].mxu0
      %4183 = vmatprep.mubr.bf16.mxu0 0
      %4184 = vmatmul.mubr.bf16.gmra.mrb[0].mxu0 %v4105
      %v4185 = vpop.f32.mrb[0].mxu0
      %v4186 = vadd.f32 0.0, %v4185
      %v4187 = vpop.f32.mrb[0].mxu0
      %v4188 = vpop.f32.mrb[0].mxu0
      %v4189 = vadd.f32 0.0, %v4188
      %v4190 = vpop.f32.mrb[0].mxu0
      %4191 = vmatprep.mubr.bf16.mxu0 0
      %4192 = vmatmul.mubr.bf16.gmra.mrb[0].mxu0 %v4106
      %v4193 = vpop.f32.mrb[0].mxu0
      %v4194 = vadd.f32 0.0, %v4193
      %v4195 = vpop.f32.mrb[0].mxu0
      %v4196 = vpop.f32.mrb[0].mxu0
      %v4197 = vadd.f32 0.0, %v4196
      %v4198 = vpop.f32.mrb[0].mxu0
      %4199 = vmatprep.mubr.bf16.mxu0 0
      %4200 = vmatmul.mubr.bf16.gmra.mrb[0].mxu0 %v4107
      %v4201 = vpop.f32.mrb[0].mxu0
      %v4202 = vadd.f32 0.0, %v4201
      %v4203 = vpop.f32.mrb[0].mxu0
      %v4204 = vpop.f32.mrb[0].mxu0
      %v4205 = vadd.f32 0.0, %v4204
      %v4206 = vpop.f32.mrb[0].mxu0
      %4207 = vmatprep.mubr.bf16.mxu0 0
      %4208 = vmatmul.mubr.bf16.gmra.mrb[0].mxu0 %v4108
      %v4209 = vpop.f32.mrb[0].mxu0
      %v4210 = vadd.f32 0.0, %v4209
      %v4211 = vpop.f32.mrb[0].mxu0
      %v4212 = vpop.f32.mrb[0].mxu0
      %v4213 = vadd.f32 0.0, %v4212
      %v4214 = vpop.f32.mrb[0].mxu0
      %4215 = vmatprep.mubr.bf16.mxu0 0
      %4216 = vmatmul.mubr.bf16.gmra.mrb[0].mxu0 %v4109
      %v4217 = vpop.f32.mrb[0].mxu0
      %v4218 = vadd.f32 0.0, %v4217
      %v4219 = vpop.f32.mrb[0].mxu0
      %v4220 = vpop.f32.mrb[0].mxu0
      %v4221 = vadd.f32 0.0, %v4220
      %v4222 = vpop.f32.mrb[0].mxu0
      %4223 = vmatprep.mubr.bf16.mxu0 0
      %4224 = vmatmul.mubr.bf16.gmra.mrb[0].mxu0 %v4110
      %v4225 = vpop.f32.mrb[0].mxu0
      %v4226 = vadd.f32 0.0, %v4225
      %v4227 = vpop.f32.mrb[0].mxu0
      %v4228 = vpop.f32.mrb[0].mxu0
      %v4229 = vadd.f32 0.0, %v4228
      %v4230 = vpop.f32.mrb[0].mxu0
      %4231 = vdwg.mxu0
      %v4232 = vpack.c.bf16 %v4173, %v4170
      %v4233 = vpack.c.bf16 %v4181, %v4178
      %v4234 = vpack.c.bf16 %v4189, %v4186
      %v4235 = vpack.c.bf16 %v4197, %v4194
      %v4236 = vpack.c.bf16 %v4205, %v4202
      %v4237 = vpack.c.bf16 %v4213, %v4210
      %v4238 = vpack.c.bf16 %v4221, %v4218
      %v4239 = vpack.c.bf16 %v4229, %v4226
      %4248 = vrot.lane.b32.xlu0 %v1388, 4
      %v4249 = vpop.permute.xlu0 %4248
      %4250 = vrot.lane.b32.xlu0 %v1389, 4
      %v4251 = vpop.permute.xlu0 %4250
      %4252 = vrot.lane.b32.xlu0 %v1390, 4
      %v4253 = vpop.permute.xlu0 %4252
      %4254 = vrot.lane.b32.xlu0 %v1391, 4
      %v4255 = vpop.permute.xlu0 %4254
      %4256 = vrot.lane.b32.xlu0 %v1392, 4
      %v4257 = vpop.permute.xlu0 %4256
      %4258 = vrot.lane.b32.xlu0 %v1393, 4
      %v4259 = vpop.permute.xlu0 %4258
      %4260 = vrot.lane.b32.xlu0 %v1394, 4
      %v4261 = vpop.permute.xlu0 %4260
      %4262 = vrot.lane.b32.xlu0 %v1395, 4
      %v4263 = vpop.permute.xlu0 %4262
      %4272 = vrot.lane.b32.xlu0 %v1862, 8
      %v4273 = vpop.permute.xlu0 %4272
      %4274 = vrot.lane.b32.xlu0 %v1863, 8
      %v4275 = vpop.permute.xlu0 %4274
      %4276 = vrot.lane.b32.xlu0 %v1864, 8
      %v4277 = vpop.permute.xlu0 %4276
      %4278 = vrot.lane.b32.xlu0 %v1865, 8
      %v4279 = vpop.permute.xlu0 %4278
      %4280 = vrot.lane.b32.xlu0 %v1866, 8
      %v4281 = vpop.permute.xlu0 %4280
      %4282 = vrot.lane.b32.xlu0 %v1867, 8
      %v4283 = vpop.permute.xlu0 %4282
      %4284 = vrot.lane.b32.xlu0 %v1868, 8
      %v4285 = vpop.permute.xlu0 %4284
      %4286 = vrot.lane.b32.xlu0 %v1869, 8
      %v4287 = vpop.permute.xlu0 %4286
      %4296 = vrot.lane.b32.xlu0 %v2336, 12
      %v4297 = vpop.permute.xlu0 %4296
      %4298 = vrot.lane.b32.xlu0 %v2337, 12
      %v4299 = vpop.permute.xlu0 %4298
      %4300 = vrot.lane.b32.xlu0 %v2338, 12
      %v4301 = vpop.permute.xlu0 %4300
      %4302 = vrot.lane.b32.xlu0 %v2339, 12
      %v4303 = vpop.permute.xlu0 %4302
      %4304 = vrot.lane.b32.xlu0 %v2340, 12
      %v4305 = vpop.permute.xlu0 %4304
      %4306 = vrot.lane.b32.xlu0 %v2341, 12
      %v4307 = vpop.permute.xlu0 %4306
      %4308 = vrot.lane.b32.xlu0 %v2342, 12
      %v4309 = vpop.permute.xlu0 %4308
      %4310 = vrot.lane.b32.xlu0 %v2343, 12
      %v4311 = vpop.permute.xlu0 %4310
      %4320 = vrot.lane.b32.xlu0 %v2810, 16
      %v4321 = vpop.permute.xlu0 %4320
      %4322 = vrot.lane.b32.xlu0 %v2811, 16
      %v4323 = vpop.permute.xlu0 %4322
      %4324 = vrot.lane.b32.xlu0 %v2812, 16
      %v4325 = vpop.permute.xlu0 %4324
      %4326 = vrot.lane.b32.xlu0 %v2813, 16
      %v4327 = vpop.permute.xlu0 %4326
      %4328 = vrot.lane.b32.xlu0 %v2814, 16
      %v4329 = vpop.permute.xlu0 %4328
      %4330 = vrot.lane.b32.xlu0 %v2815, 16
      %v4331 = vpop.permute.xlu0 %4330
      %4332 = vrot.lane.b32.xlu0 %v2816, 16
      %v4333 = vpop.permute.xlu0 %4332
      %4334 = vrot.lane.b32.xlu0 %v2817, 16
      %v4335 = vpop.permute.xlu0 %4334
      %4344 = vrot.lane.b32.xlu0 %v3284, 20
      %v4345 = vpop.permute.xlu0 %4344
      %4346 = vrot.lane.b32.xlu0 %v3285, 20
      %v4347 = vpop.permute.xlu0 %4346
      %4348 = vrot.lane.b32.xlu0 %v3286, 20
      %v4349 = vpop.permute.xlu0 %4348
      %4350 = vrot.lane.b32.xlu0 %v3287, 20
      %v4351 = vpop.permute.xlu0 %4350
      %4352 = vrot.lane.b32.xlu0 %v3288, 20
      %v4353 = vpop.permute.xlu0 %4352
      %4354 = vrot.lane.b32.xlu0 %v3289, 20
      %v4355 = vpop.permute.xlu0 %4354
      %4356 = vrot.lane.b32.xlu0 %v3290, 20
      %v4357 = vpop.permute.xlu0 %4356
      %4358 = vrot.lane.b32.xlu0 %v3291, 20
      %v4359 = vpop.permute.xlu0 %4358
      %4368 = vrot.lane.b32.xlu0 %v3758, 24
      %v4369 = vpop.permute.xlu0 %4368
      %4370 = vrot.lane.b32.xlu0 %v3759, 24
      %v4371 = vpop.permute.xlu0 %4370
      %4372 = vrot.lane.b32.xlu0 %v3760, 24
      %v4373 = vpop.permute.xlu0 %4372
      %4374 = vrot.lane.b32.xlu0 %v3761, 24
      %v4375 = vpop.permute.xlu0 %4374
      %4376 = vrot.lane.b32.xlu0 %v3762, 24
      %v4377 = vpop.permute.xlu0 %4376
      %4378 = vrot.lane.b32.xlu0 %v3763, 24
      %v4379 = vpop.permute.xlu0 %4378
      %4380 = vrot.lane.b32.xlu0 %v3764, 24
      %v4381 = vpop.permute.xlu0 %4380
      %4382 = vrot.lane.b32.xlu0 %v3765, 24
      %v4383 = vpop.permute.xlu0 %4382
      %4392 = vrot.lane.b32.xlu0 %v4232, 28
      %v4393 = vpop.permute.xlu0 %4392
      %4394 = vrot.lane.b32.xlu0 %v4233, 28
      %v4395 = vpop.permute.xlu0 %4394
      %4396 = vrot.lane.b32.xlu0 %v4234, 28
      %v4397 = vpop.permute.xlu0 %4396
      %4398 = vrot.lane.b32.xlu0 %v4235, 28
      %v4399 = vpop.permute.xlu0 %4398
      %4400 = vrot.lane.b32.xlu0 %v4236, 28
      %v4401 = vpop.permute.xlu0 %4400
      %4402 = vrot.lane.b32.xlu0 %v4237, 28
      %v4403 = vpop.permute.xlu0 %4402
      %4404 = vrot.lane.b32.xlu0 %v4238, 28
      %v4405 = vpop.permute.xlu0 %4404
      %4406 = vrot.lane.b32.xlu0 %v4239, 28
      %v4407 = vpop.permute.xlu0 %4406
      %v4410 = vsel %vm477, %v914, %v4249
      %v4413 = vsel %vm477, %v915, %v4251
      %v4416 = vsel %vm477, %v916, %v4253
      %v4419 = vsel %vm477, %v917, %v4255
      %v4422 = vsel %vm477, %v918, %v4257
      %v4425 = vsel %vm477, %v919, %v4259
      %v4428 = vsel %vm477, %v920, %v4261
      %v4431 = vsel %vm477, %v921, %v4263
      %vm4432 = vcmask 64512
      %v4434 = vsel %vm4432, %v4410, %v4273
      %v4436 = vsel %vm4432, %v4413, %v4275
      %v4438 = vsel %vm4432, %v4416, %v4277
      %v4440 = vsel %vm4432, %v4419, %v4279
      %v4442 = vsel %vm4432, %v4422, %v4281
      %v4444 = vsel %vm4432, %v4425, %v4283
      %v4446 = vsel %vm4432, %v4428, %v4285
      %v4448 = vsel %vm4432, %v4431, %v4287
      %vm4449 = vcmask 97280
      %v4451 = vsel %vm4449, %v4434, %v4297
      %v4453 = vsel %vm4449, %v4436, %v4299
      %v4455 = vsel %vm4449, %v4438, %v4301
      %v4457 = vsel %vm4449, %v4440, %v4303
      %v4459 = vsel %vm4449, %v4442, %v4305
      %v4461 = vsel %vm4449, %v4444, %v4307
      %v4463 = vsel %vm4449, %v4446, %v4309
      %v4465 = vsel %vm4449, %v4448, %v4311
      %vm4466 = vcmask 130048
      %v4468 = vsel %vm4466, %v4451, %v4321
      %v4470 = vsel %vm4466, %v4453, %v4323
      %v4472 = vsel %vm4466, %v4455, %v4325
      %v4474 = vsel %vm4466, %v4457, %v4327
      %v4476 = vsel %vm4466, %v4459, %v4329
      %v4478 = vsel %vm4466, %v4461, %v4331
      %v4480 = vsel %vm4466, %v4463, %v4333
      %v4482 = vsel %vm4466, %v4465, %v4335
      %vm4483 = vcmask 162816
      %v4485 = vsel %vm4483, %v4468, %v4345
      %v4487 = vsel %vm4483, %v4470, %v4347
      %v4489 = vsel %vm4483, %v4472, %v4349
      %v4491 = vsel %vm4483, %v4474, %v4351
      %v4493 = vsel %vm4483, %v4476, %v4353
      %v4495 = vsel %vm4483, %v4478, %v4355
      %v4497 = vsel %vm4483, %v4480, %v4357
      %v4499 = vsel %vm4483, %v4482, %v4359
      %vm4500 = vcmask 195584
      %v4502 = vsel %vm4500, %v4485, %v4369
      %v4504 = vsel %vm4500, %v4487, %v4371
      %v4506 = vsel %vm4500, %v4489, %v4373
      %v4508 = vsel %vm4500, %v4491, %v4375
      %v4510 = vsel %vm4500, %v4493, %v4377
      %v4512 = vsel %vm4500, %v4495, %v4379
      %v4514 = vsel %vm4500, %v4497, %v4381
      %v4516 = vsel %vm4500, %v4499, %v4383
      %vm4517 = vcmask 228352
      %v4519 = vsel %vm4517, %v4502, %v4393
      %v4521 = vsel %vm4517, %v4504, %v4395
      %v4523 = vsel %vm4517, %v4506, %v4397
      %v4525 = vsel %vm4517, %v4508, %v4399
      %v4527 = vsel %vm4517, %v4510, %v4401
      %v4529 = vsel %vm4517, %v4512, %v4403
      %v4531 = vsel %vm4517, %v4514, %v4405
      %v4533 = vsel %vm4517, %v4516, %v4407
      %v4534 = vld [vmem:[%s2] sm:$0xf]
      %v4535 = vld [vmem:[%s2 + $0x4] sm:$0xf]
      %v4536 = vld [vmem:[%s2 + $0x8] sm:$0xf]
      %v4537 = vld [vmem:[%s2 + $0xc] sm:$0xf]
      %v4538 = vld [vmem:[%s3] sm:$0x1]
      %v4540 = vlaneseq
      %v4541 = vshrl.u32 %v4540, 7
      %v4542 = vsub.s32 0, %v4541
      %v4543 = vrot.slane %v4538, %v4542
      %v4549 = vunpack.c.l.b16 %v4534
      %v4550 = vunpack.c.l.b16 %v4535
      %v4551 = vunpack.c.l.b16 %v4536
      %v4552 = vunpack.c.l.b16 %v4537
      %v4553 = vpack.c.b16 %v4550, %v4549
      %v4554 = vpack.c.b16 %v4552, %v4551
      %v4557 = vsel %vm271, %v4519, 0
      %v4559 = vsel %vm271, %v4521, 0
      %v4561 = vsel %vm271, %v4523, 0
      %v4563 = vsel %vm271, %v4525, 0
      %v4565 = vsel %vm271, %v4527, 0
      %v4567 = vsel %vm271, %v4529, 0
      %v4569 = vsel %vm271, %v4531, 0
      %v4571 = vsel %vm271, %v4533, 0
      %4573 = vmatprep.subr.bf16.mxu0 0
      %4574 = vmatpush1.bf16.msra.mxu0 %v4553
      %4575 = vmatprep.subr.bf16.mxu0 0
      %4576 = vmatpush1.bf16.msra.mxu0 %v4554
      %4577 = vmatprep.subr.bf16.mxu0 0
      %4578 = vmatpush1.bf16.msra.mxu0 0
      %4579 = vmatprep.subr.bf16.mxu0 0
      %4580 = vmatpush1.bf16.msra.mxu0 0
      %4581 = vmatprep.subr.bf16.mxu0 0
      %4582 = vmatpush1.bf16.msra.mxu0 0
      %4583 = vmatprep.subr.bf16.mxu0 0
      %4584 = vmatpush1.bf16.msra.mxu0 0
      %4585 = vmatprep.subr.bf16.mxu0 0
      %4586 = vmatpush1.bf16.msra.mxu0 0
      %4587 = vmatprep.subr.bf16.mxu0 0
      %4588 = vmatpush1.bf16.msra.mxu0 0
      %4589 = vmatprep.subr.bf16.mxu0 0
      %4590 = vmatpush1.bf16.msra.mxu0 0
      %4591 = vmatprep.subr.bf16.mxu0 0
      %4592 = vmatpush1.bf16.msra.mxu0 0
      %4593 = vmatprep.subr.bf16.mxu0 0
      %4594 = vmatpush1.bf16.msra.mxu0 0
      %4595 = vmatprep.subr.bf16.mxu0 0
      %4596 = vmatpush1.bf16.msra.mxu0 0
      %4597 = vmatprep.subr.bf16.mxu0 0
      %4598 = vmatpush1.bf16.msra.mxu0 0
      %4599 = vmatprep.subr.bf16.mxu0 0
      %4600 = vmatpush1.bf16.msra.mxu0 0
      %4601 = vmatprep.subr.bf16.mxu0 0
      %4602 = vmatpush1.bf16.msra.mxu0 0
      %4603 = vmatprep.subr.bf16.mxu0 0
      %4604 = vmatpush1.bf16.msra.mxu0 0
      %4605 = vmatprep.mubr.bf16.mxu0 0
      %4606 = vmatmul.mubr.bf16.gmra.mrb[0].mxu0 %v4557
      %v4607 = vpop.f32.mrb[0].mxu0
      %v4608 = vadd.f32 %v4543, %v4607
      %v4609 = vpop.f32.mrb[0].mxu0
      %v4610 = vpop.f32.mrb[0].mxu0
      %v4611 = vadd.f32 %v4543, %v4610
      %v4612 = vpop.f32.mrb[0].mxu0
      %4613 = vmatprep.mubr.bf16.mxu0 0
      %4614 = vmatmul.mubr.bf16.gmra.mrb[0].mxu0 %v4559
      %v4615 = vpop.f32.mrb[0].mxu0
      %v4616 = vadd.f32 %v4543, %v4615
      %v4617 = vpop.f32.mrb[0].mxu0
      %v4618 = vpop.f32.mrb[0].mxu0
      %v4619 = vadd.f32 %v4543, %v4618
      %v4620 = vpop.f32.mrb[0].mxu0
      %4621 = vmatprep.mubr.bf16.mxu0 0
      %4622 = vmatmul.mubr.bf16.gmra.mrb[0].mxu0 %v4561
      %v4623 = vpop.f32.mrb[0].mxu0
      %v4624 = vadd.f32 %v4543, %v4623
      %v4625 = vpop.f32.mrb[0].mxu0
      %v4626 = vpop.f32.mrb[0].mxu0
      %v4627 = vadd.f32 %v4543, %v4626
      %v4628 = vpop.f32.mrb[0].mxu0
      %4629 = vmatprep.mubr.bf16.mxu0 0
      %4630 = vmatmul.mubr.bf16.gmra.mrb[0].mxu0 %v4563
      %v4631 = vpop.f32.mrb[0].mxu0
      %v4632 = vadd.f32 %v4543, %v4631
      %v4633 = vpop.f32.mrb[0].mxu0
      %v4634 = vpop.f32.mrb[0].mxu0
      %v4635 = vadd.f32 %v4543, %v4634
      %v4636 = vpop.f32.mrb[0].mxu0
      %4637 = vmatprep.mubr.bf16.mxu0 0
      %4638 = vmatmul.mubr.bf16.gmra.mrb[0].mxu0 %v4565
      %v4639 = vpop.f32.mrb[0].mxu0
      %v4640 = vadd.f32 %v4543, %v4639
      %v4641 = vpop.f32.mrb[0].mxu0
      %v4642 = vpop.f32.mrb[0].mxu0
      %v4643 = vadd.f32 %v4543, %v4642
      %v4644 = vpop.f32.mrb[0].mxu0
      %4645 = vmatprep.mubr.bf16.mxu0 0
      %4646 = vmatmul.mubr.bf16.gmra.mrb[0].mxu0 %v4567
      %v4647 = vpop.f32.mrb[0].mxu0
      %v4648 = vadd.f32 %v4543, %v4647
      %v4649 = vpop.f32.mrb[0].mxu0
      %v4650 = vpop.f32.mrb[0].mxu0
      %v4651 = vadd.f32 %v4543, %v4650
      %v4652 = vpop.f32.mrb[0].mxu0
      %4653 = vmatprep.mubr.bf16.mxu0 0
      %4654 = vmatmul.mubr.bf16.gmra.mrb[0].mxu0 %v4569
      %v4655 = vpop.f32.mrb[0].mxu0
      %v4656 = vadd.f32 %v4543, %v4655
      %v4657 = vpop.f32.mrb[0].mxu0
      %v4658 = vpop.f32.mrb[0].mxu0
      %v4659 = vadd.f32 %v4543, %v4658
      %v4660 = vpop.f32.mrb[0].mxu0
      %4661 = vmatprep.mubr.bf16.mxu0 0
      %4662 = vmatmul.mubr.bf16.gmra.mrb[0].mxu0 %v4571
      %v4663 = vpop.f32.mrb[0].mxu0
      %v4664 = vadd.f32 %v4543, %v4663
      %v4665 = vpop.f32.mrb[0].mxu0
      %v4666 = vpop.f32.mrb[0].mxu0
      %v4667 = vadd.f32 %v4543, %v4666
      %v4668 = vpop.f32.mrb[0].mxu0
      %4669 = vdwg.mxu0
      %4670 = vst.msk [vmem:[%s197] sm:$0xff] %vm271, %v4608
      %4671 = vst.msk [vmem:[%s197 + $0x8] sm:$0xff] %vm271, %v4611
      %4672 = vst.msk [vmem:[%s197 + $0x10] sm:$0xff] %vm271, %v4616
      %4673 = vst.msk [vmem:[%s197 + $0x18] sm:$0xff] %vm271, %v4619
      %4674 = vst.msk [vmem:[%s197 + $0x20] sm:$0xff] %vm271, %v4624
      %4675 = vst.msk [vmem:[%s197 + $0x28] sm:$0xff] %vm271, %v4627
      %4676 = vst.msk [vmem:[%s197 + $0x30] sm:$0xff] %vm271, %v4632
      %4677 = vst.msk [vmem:[%s197 + $0x38] sm:$0xff] %vm271, %v4635
      %4678 = vst.msk [vmem:[%s197 + $0x40] sm:$0xff] %vm271, %v4640
      %4679 = vst.msk [vmem:[%s197 + $0x48] sm:$0xff] %vm271, %v4643
      %4680 = vst.msk [vmem:[%s197 + $0x50] sm:$0xff] %vm271, %v4648
      %4681 = vst.msk [vmem:[%s197 + $0x58] sm:$0xff] %vm271, %v4651
      %4682 = vst.msk [vmem:[%s197 + $0x60] sm:$0xff] %vm271, %v4656
      %4683 = vst.msk [vmem:[%s197 + $0x68] sm:$0xff] %vm271, %v4659
      %4684 = vst.msk [vmem:[%s197 + $0x70] sm:$0xff] %vm271, %v4664
      %4685 = vst.msk [vmem:[%s197 + $0x78] sm:$0xff] %vm271, %v4667
      %p4686 = scmp.lt.s32.totalorder %s15, 1
      %s4687 = scalar_select %p4686, %s15, 1
      %s4688 = smul.addr %s4687, 16
      %s4689 = smul.addr %s4688, 8
      %s4690 = scalar_lea.vmem %s4, %s4689
      // Predicated region
      $region37: #{tpu_custom_call.1} parent=35 // pred_check
        %p4691 = pneg %p122
      $region38: #{tpu_custom_call.1} parent=35 // pred_check_branch
        %4693 = sbr.rel (%p4691) target = $region40
      $region39: #{tpu_custom_call.1} parent=35 // pred_region
        _
      $region40: #{tpu_custom_call.1} parent=35 // pred_fallthru
        _
    $region36: #{tpu_custom_call.1} parent=5 // pred_fallthru
      _
    %p4694 = scmp.le.s32.totalorder 2, %s10
    // Predicated region
    $region41: #{tpu_custom_call.1} parent=5 // pred_check
      %p4695 = pneg %p4694
    $region42: #{tpu_custom_call.1} parent=5 // pred_check_branch
      %4697 = sbr.rel (%p4695) target = $region44
    $region43: #{tpu_custom_call.1} parent=5 // pred_region
      %s4698 = ssub.s32 %s10, 2
      // Predicated region
      $region45: #{tpu_custom_call.1} parent=43 // pred_check
        %p4699 = pneg %p128
      $region46: #{tpu_custom_call.1} parent=43 // pred_check_branch
        %4701 = sbr.rel (%p4699) target = $region48
      $region47: #{tpu_custom_call.1} parent=43 // pred_region
        %p4702 = scmp.lt.s32.totalorder %s16, 1
        %s4703 = scalar_select %p4702, %s16, 1
        %s4704 = smul.addr %s4703, 16
        %s4705 = smul.addr %s4704, 8
        %s4706 = scalar_lea.vmem %s4, %s4705
      $region48: #{tpu_custom_call.1} parent=43 // pred_fallthru
        _
    $region44: #{tpu_custom_call.1} parent=5 // pred_fallthru
      _
  $region6: #{tpu_custom_call.1} parent=0 // loop_footer
    %s14 = sadd.s32 1, %s10
  $region7: #{tpu_custom_call.1} parent=0 // loop_footer_branch
    %9 = sbr.rel target = $region3
  $region8: #{tpu_custom_call.1} parent=0 // loop_exit
    _

// kernel: tpu_custom_call.1
$region0: #{tpu_custom_call.1}
  #allocation0 [shape = 'u32[]', space=smem, size = 0x4, offset = 0x4, fixed_abs, tag = 'smem constant byte address 0x4 - core index']
  #allocation1 [shape = 'u32[144,128]{1,0:T(1,128)}', space=vmem, size = 0x12000, scoped, tag = 'internal scratch']
  #allocation2 [shape = 'bf16[128,96]{1,0:T(16,128)(2,1)}', space=vmem, size = 0x8000, scoped, tag = 'scratch operand']
  %s0 = inlined_call_operand.vmem [shape: bf16[2,128,32], index: 0, kind: input, shape index: {}]
  %s1 = inlined_call_operand.vmem [shape: bf16[32,96], index: 1, kind: input, shape index: {}]
  %s2 = inlined_call_operand.vmem [shape: bf16[32,32], index: 2, kind: input, shape index: {}]
  %s3 = inlined_call_operand.vmem [shape: f32[1,32], index: 3, kind: input, shape index: {}]
  %s4 = inlined_call_operand.vmem [shape: f32[2,128,32], index: 4, kind: output, shape index: {}]
  %s5 = sld [smem:[#allocation0]]
  $region49: #{tpu_custom_call.1} parent=0
    _
  %s7 = ssub.s32 1, %s5
  %s8 = scalar_select 0, %s7, %s5
  loop: start=0, step=1, limit=4
  $region2: #{tpu_custom_call.1} parent=0 // loop_pre_header
    _
  $region3: #{tpu_custom_call.1} parent=0 // loop_header
    %s10 = sphi 0, %s14
    %p11 = scmp.ge.s32.totalorder %s10, 4
    %s20 = sphi 0, %s22
    %s23 = sphi 0, %s20
    %s24 = sphi 0, %s23
    %s40 = sphi 0, %s24
    %s44 = sphi 0, %s44
    %s46 = sphi 0, %s44
    %s47 = sphi 0, %s46
    %s61 = sphi 0, %s47
    %s65 = sphi 0, %s65
    %s67 = sphi 0, %s65
    %s68 = sphi 0, %s67
    %s82 = sphi 0, %s68
    %s86 = sphi 0, %s86
    %s88 = sphi 0, %s86
    %s89 = sphi 0, %s88
    %s103 = sphi 0, %s89
    %s109 = sphi 0, %s111
    %s112 = sphi 0, %s109
    %s113 = sphi 0, %s112
    %s129 = sphi 0, %s113
  $region4: #{tpu_custom_call.1} parent=0 // loop_header_branch
    %13 = sbr.rel (%p11) target = $region8
  $region5: #{tpu_custom_call.1} parent=0 // loop_body
    %s15 = ssub.s32 %s10, 1
    %s16 = ssub.s32 %s10, 2
    %s17 = sadd.s32 %s10, 1
    %s18 = ssub.s32 %s10, %s17
    %p19 = scmp.eq.s32.totalorder %s18, 0
    %s21 = sadd.s32 %s20, 1
    %s22 = scalar_select %p19, %s20, %s21
    %p25 = pneg %p19
    %p26 = scmp.eq.s32.totalorder %s10, 1
    %p27 = por %p25, %p26
    %p28 = scmp.ne.s32.totalorder %s20, %s23
    %p29 = scmp.eq.s32.totalorder %s10, 0
    %p30 = por %p28, %p29
    %p31 = scmp.ne.s32.totalorder %s20, %s23
    %p32 = scmp.eq.s32.totalorder %s15, 1
    %p33 = por %p31, %p32
    %p34 = scmp.ne.s32.totalorder %s23, %s24
    %p35 = scmp.eq.s32.totalorder %s15, 0
    %p36 = por %p34, %p35
    %p37 = scmp.ne.s32.totalorder %s23, %s24
    %p38 = scmp.eq.s32.totalorder %s16, 1
    %p39 = por %p37, %p38
    %p41 = scmp.ne.s32.totalorder %s24, %s40
    %p42 = scmp.eq.s32.totalorder %s16, 0
    %p43 = por %p41, %p42
    %s45 = sadd.s32 %s44, 1
    %p48 = scmp.eq.s32.totalorder %s10, 1
    %p49 = scmp.ne.s32.totalorder %s44, %s46
    %p50 = scmp.eq.s32.totalorder %s10, 0
    %p51 = por %p49, %p50
    %p52 = scmp.ne.s32.totalorder %s44, %s46
    %p53 = scmp.eq.s32.totalorder %s15, 1
    %p54 = por %p52, %p53
    %p55 = scmp.ne.s32.totalorder %s46, %s47
    %p56 = scmp.eq.s32.totalorder %s15, 0
    %p57 = por %p55, %p56
    %p58 = scmp.ne.s32.totalorder %s46, %s47
    %p59 = scmp.eq.s32.totalorder %s16, 1
    %p60 = por %p58, %p59
    %p62 = scmp.ne.s32.totalorder %s47, %s61
    %p63 = scmp.eq.s32.totalorder %s16, 0
    %p64 = por %p62, %p63
    %s66 = sadd.s32 %s65, 1
    %p69 = scmp.eq.s32.totalorder %s10, 1
    %p70 = scmp.ne.s32.totalorder %s65, %s67
    %p71 = scmp.eq.s32.totalorder %s10, 0
    %p72 = por %p70, %p71
    %p73 = scmp.ne.s32.totalorder %s65, %s67
    %p74 = scmp.eq.s32.totalorder %s15, 1
    %p75 = por %p73, %p74
    %p76 = scmp.ne.s32.totalorder %s67, %s68
    %p77 = scmp.eq.s32.totalorder %s15, 0
    %p78 = por %p76, %p77
    %p79 = scmp.ne.s32.totalorder %s67, %s68
    %p80 = scmp.eq.s32.totalorder %s16, 1
    %p81 = por %p79, %p80
    %p83 = scmp.ne.s32.totalorder %s68, %s82
    %p84 = scmp.eq.s32.totalorder %s16, 0
    %p85 = por %p83, %p84
    %s87 = sadd.s32 %s86, 1
    %p90 = scmp.eq.s32.totalorder %s10, 1
    %p91 = scmp.ne.s32.totalorder %s86, %s88
    %p92 = scmp.eq.s32.totalorder %s10, 0
    %p93 = por %p91, %p92
    %p94 = scmp.ne.s32.totalorder %s86, %s88
    %p95 = scmp.eq.s32.totalorder %s15, 1
    %p96 = por %p94, %p95
    %p97 = scmp.ne.s32.totalorder %s88, %s89
    %p98 = scmp.eq.s32.totalorder %s15, 0
    %p99 = por %p97, %p98
    %p100 = scmp.ne.s32.totalorder %s88, %s89
    %p101 = scmp.eq.s32.totalorder %s16, 1
    %p102 = por %p100, %p101
    %p104 = scmp.ne.s32.totalorder %s89, %s103
    %p105 = scmp.eq.s32.totalorder %s16, 0
    %p106 = por %p104, %p105
    %s107 = ssub.s32 %s10, %s17
    %p108 = scmp.eq.s32.totalorder %s107, 0
    %s110 = sadd.s32 %s109, 1
    %s111 = scalar_select %p108, %s109, %s110
    %p114 = pneg %p108
    %p115 = scmp.eq.s32.totalorder %s10, 1
    %p116 = por %p114, %p115
    %p117 = scmp.ne.s32.totalorder %s109, %s112
    %p118 = scmp.eq.s32.totalorder %s10, 0
    %p119 = por %p117, %p118
    %p120 = scmp.ne.s32.totalorder %s109, %s112
    %p121 = scmp.eq.s32.totalorder %s15, 1
    %p122 = por %p120, %p121
    %p123 = scmp.ne.s32.totalorder %s112, %s113
    %p124 = scmp.eq.s32.totalorder %s15, 0
    %p125 = por %p123, %p124
    %p126 = scmp.ne.s32.totalorder %s112, %s113
    %p127 = scmp.eq.s32.totalorder %s16, 1
    %p128 = por %p126, %p127
    %p130 = scmp.ne.s32.totalorder %s113, %s129
    %p131 = scmp.eq.s32.totalorder %s16, 0
    %p132 = por %p130, %p131
    %p133 = scmp.le.s32.totalorder 1, %s10
    %p134 = scmp.lt.s32.totalorder %s10, 3
    %p135 = pnand %p133, %p134
    %p136 = pneg %p135
    // Predicated region
    $region9: #{tpu_custom_call.1} parent=5 // pred_check
      _
    $region10: #{tpu_custom_call.1} parent=5 // pred_check_branch
      %138 = sbr.rel (%p135) target = $region12
    $region11: #{tpu_custom_call.1} parent=5 // pred_region
      %s139 = ssub.s32 %s10, 1
      // Predicated region
      $region13: #{tpu_custom_call.1} parent=11 // pred_check
        %p140 = pneg %p57
      $region14: #{tpu_custom_call.1} parent=11 // pred_check_branch
        %142 = sbr.rel (%p140) target = $region16
      $region15: #{tpu_custom_call.1} parent=11 // pred_region
        _
      $region16: #{tpu_custom_call.1} parent=11 // pred_fallthru
        _
      // Predicated region
      $region17: #{tpu_custom_call.1} parent=11 // pred_check
        %p143 = pneg %p78
      $region18: #{tpu_custom_call.1} parent=11 // pred_check_branch
        %145 = sbr.rel (%p143) target = $region20
      $region19: #{tpu_custom_call.1} parent=11 // pred_region
        _
      $region20: #{tpu_custom_call.1} parent=11 // pred_fallthru
        _
      // Predicated region
      $region21: #{tpu_custom_call.1} parent=11 // pred_check
        %p146 = pneg %p99
      $region22: #{tpu_custom_call.1} parent=11 // pred_check_branch
        %148 = sbr.rel (%p146) target = $region24
      $region23: #{tpu_custom_call.1} parent=11 // pred_region
        _
      $region24: #{tpu_custom_call.1} parent=11 // pred_fallthru
        _
    $region12: #{tpu_custom_call.1} parent=5 // pred_fallthru
      _
    %p149 = scmp.lt.s32.totalorder %s10, 2
    // Predicated region
    $region25: #{tpu_custom_call.1} parent=5 // pred_check
      %p150 = pneg %p149
    $region26: #{tpu_custom_call.1} parent=5 // pred_check_branch
      %152 = sbr.rel (%p150) target = $region28
    $region27: #{tpu_custom_call.1} parent=5 // pred_region
      // Predicated region
      $region29: #{tpu_custom_call.1} parent=27 // pred_check
        %p153 = pneg %p30
      $region30: #{tpu_custom_call.1} parent=27 // pred_check_branch
        %155 = sbr.rel (%p153) target = $region32
      $region31: #{tpu_custom_call.1} parent=27 // pred_region
        %p156 = scmp.lt.s32.totalorder %s10, 1
        %s157 = scalar_select %p156, %s10, 1
        %s158 = smul.addr %s157, 16
        %s159 = smul.addr %s158, 4
        %s160 = scalar_lea.vmem %s0, %s159
      $region32: #{tpu_custom_call.1} parent=27 // pred_fallthru
        _
    $region28: #{tpu_custom_call.1} parent=5 // pred_fallthru
      _
    %p161 = scmp.le.s32.totalorder 1, %s10
    %p162 = scmp.lt.s32.totalorder %s10, 3
    %p163 = pnand %p161, %p162
    %p164 = pneg %p163
    // Predicated region
    $region33: #{tpu_custom_call.1} parent=5 // pred_check
      _
    $region34: #{tpu_custom_call.1} parent=5 // pred_check_branch
      %166 = sbr.rel (%p163) target = $region36
    $region35: #{tpu_custom_call.1} parent=5 // pred_region
      %s167 = ssub.s32 %s10, 1
      %p168 = scmp.lt.s32.totalorder %s15, 1
      %s169 = scalar_select %p168, %s15, 1
      %s170 = smul.addr %s169, 16
      %s171 = smul.addr %s170, 4
      %s172 = scalar_lea.vmem %s0, %s171
      %p173 = pneg %p36
      %p174 = pneg %p33
      %p175 = pneg %p57
      %p176 = pneg %p54
      %p177 = pneg %p78
      %p178 = pneg %p75
      %p179 = pneg %p99
      %p180 = pneg %p96
      %p181 = pneg %p125
      %p182 = pneg %p122
      %p183 = scmp.lt.s32.totalorder %s15, 1
      %s184 = scalar_select %p183, %s15, 1
      %s185 = smul.addr %s184, 16
      %s186 = smul.addr %s185, 8
      %s187 = scalar_lea.vmem %s4, %s186
      %p188 = scmp.lt.s32.totalorder %s15, 1
      %s189 = scalar_select %p188, %s15, 1
      %s190 = smul.addr %s189, 16
      %s191 = smul.addr %s190, 4
      %s192 = scalar_lea.vmem %s0, %s191
      %p193 = scmp.lt.s32.totalorder %s15, 1
      %s194 = scalar_select %p193, %s15, 1
      %s195 = smul.addr %s194, 16
      %s196 = smul.addr %s195, 8
      %s197 = scalar_lea.vmem %s4, %s196
      %v199 = vld [vmem:[%s192] sm:$0xf]
      %v200 = vld [vmem:[%s192 + $0x4] sm:$0xf]
      %v201 = vld [vmem:[%s192 + $0x8] sm:$0xf]
      %v202 = vld [vmem:[%s192 + $0xc] sm:$0xf]
      %v203 = vld [vmem:[%s192 + $0x10] sm:$0xf]
      %v204 = vld [vmem:[%s192 + $0x14] sm:$0xf]
      %v205 = vld [vmem:[%s192 + $0x18] sm:$0xf]
      %v206 = vld [vmem:[%s192 + $0x1c] sm:$0xf]
      %v207 = vld [vmem:[%s192 + $0x20] sm:$0xf]
      %v208 = vld [vmem:[%s192 + $0x24] sm:$0xf]
      %v209 = vld [vmem:[%s192 + $0x28] sm:$0xf]
      %v210 = vld [vmem:[%s192 + $0x2c] sm:$0xf]
      %v211 = vld [vmem:[%s192 + $0x30] sm:$0xf]
      %v212 = vld [vmem:[%s192 + $0x34] sm:$0xf]
      %v213 = vld [vmem:[%s192 + $0x38] sm:$0xf]
      %v214 = vld [vmem:[%s192 + $0x3c] sm:$0xf]
      %v215 = vld [vmem:[%s1] sm:$0xf]
      %v216 = vld [vmem:[%s1 + $0x4] sm:$0xf]
      %v217 = vld [vmem:[%s1 + $0x8] sm:$0xf]
      %v218 = vld [vmem:[%s1 + $0xc] sm:$0xf]
      %v235 = vunpack.c.l.b16 %v199
      %v236 = vunpack.c.l.b16 %v200
      %v237 = vunpack.c.l.b16 %v201
      %v238 = vunpack.c.l.b16 %v202
      %v239 = vunpack.c.l.b16 %v203
      %v240 = vunpack.c.l.b16 %v204
      %v241 = vunpack.c.l.b16 %v205
      %v242 = vunpack.c.l.b16 %v206
      %v243 = vunpack.c.l.b16 %v207
      %v244 = vunpack.c.l.b16 %v208
      %v245 = vunpack.c.l.b16 %v209
      %v246 = vunpack.c.l.b16 %v210
      %v247 = vunpack.c.l.b16 %v211
      %v248 = vunpack.c.l.b16 %v212
      %v249 = vunpack.c.l.b16 %v213
      %v250 = vunpack.c.l.b16 %v214
      %v251 = vpack.c.b16 %v236, %v235
      %v252 = vpack.c.b16 %v238, %v237
      %v253 = vpack.c.b16 %v240, %v239
      %v254 = vpack.c.b16 %v242, %v241
      %v255 = vpack.c.b16 %v244, %v243
      %v256 = vpack.c.b16 %v246, %v245
      %v257 = vpack.c.b16 %v248, %v247
      %v258 = vpack.c.b16 %v250, %v249
      %v263 = vunpack.c.l.b16 %v215
      %v264 = vunpack.c.l.b16 %v216
      %v265 = vunpack.c.l.b16 %v217
      %v266 = vunpack.c.l.b16 %v218
      %v267 = vpack.c.b16 %v264, %v263
      %v268 = vpack.c.b16 %v266, %v265
      %vm271 = vcmask 261120
      %v273 = vsel %vm271, %v251, 0
      %v276 = vsel %vm271, %v252, 0
      %v279 = vsel %vm271, %v253, 0
      %v282 = vsel %vm271, %v254, 0
      %v285 = vsel %vm271, %v255, 0
      %v288 = vsel %vm271, %v256, 0
      %v291 = vsel %vm271, %v257, 0
      %v294 = vsel %vm271, %v258, 0
      %296 = vmatprep.subr.bf16.mxu0 0
      %297 = vmatpush1.bf16.msra.mxu0 %v267
      %298 = vmatprep.subr.bf16.mxu0 0
      %299 = vmatpush1.bf16.msra.mxu0 %v268
      %300 = vmatprep.subr.bf16.mxu0 0
      %301 = vmatpush1.bf16.msra.mxu0 0
      %302 = vmatprep.subr.bf16.mxu0 0
      %303 = vmatpush1.bf16.msra.mxu0 0
      %304 = vmatprep.subr.bf16.mxu0 0
      %305 = vmatpush1.bf16.msra.mxu0 0
      %306 = vmatprep.subr.bf16.mxu0 0
      %307 = vmatpush1.bf16.msra.mxu0 0
      %308 = vmatprep.subr.bf16.mxu0 0
      %309 = vmatpush1.bf16.msra.mxu0 0
      %310 = vmatprep.subr.bf16.mxu0 0
      %311 = vmatpush1.bf16.msra.mxu0 0
      %312 = vmatprep.subr.bf16.mxu0 0
      %313 = vmatpush1.bf16.msra.mxu0 0
      %314 = vmatprep.subr.bf16.mxu0 0
      %315 = vmatpush1.bf16.msra.mxu0 0
      %316 = vmatprep.subr.bf16.mxu0 0
      %317 = vmatpush1.bf16.msra.mxu0 0
      %318 = vmatprep.subr.bf16.mxu0 0
      %319 = vmatpush1.bf16.msra.mxu0 0
      %320 = vmatprep.subr.bf16.mxu0 0
      %321 = vmatpush1.bf16.msra.mxu0 0
      %322 = vmatprep.subr.bf16.mxu0 0
      %323 = vmatpush1.bf16.msra.mxu0 0
      %324 = vmatprep.subr.bf16.mxu0 0
      %325 = vmatpush1.bf16.msra.mxu0 0
      %326 = vmatprep.subr.bf16.mxu0 0
      %327 = vmatpush1.bf16.msra.mxu0 0
      %328 = vmatprep.mubr.bf16.mxu0 0
      %329 = vmatmul.mubr.bf16.gmra.mrb[0].mxu0 %v273
      %v330 = vpop.f32.mrb[0].mxu0
      %v331 = vadd.f32 0.0, %v330
      %v332 = vpop.f32.mrb[0].mxu0
      %v333 = vpop.f32.mrb[0].mxu0
      %v334 = vadd.f32 0.0, %v333
      %v335 = vpop.f32.mrb[0].mxu0
      %336 = vmatprep.mubr.bf16.mxu0 0
      %337 = vmatmul.mubr.bf16.gmra.mrb[0].mxu0 %v276
      %v338 = vpop.f32.mrb[0].mxu0
      %v339 = vadd.f32 0.0, %v338
      %v340 = vpop.f32.mrb[0].mxu0
      %v341 = vpop.f32.mrb[0].mxu0
      %v342 = vadd.f32 0.0, %v341
      %v343 = vpop.f32.mrb[0].mxu0
      %344 = vmatprep.mubr.bf16.mxu0 0
      %345 = vmatmul.mubr.bf16.gmra.mrb[0].mxu0 %v279
      %v346 = vpop.f32.mrb[0].mxu0
      %v347 = vadd.f32 0.0, %v346
      %v348 = vpop.f32.mrb[0].mxu0
      %v349 = vpop.f32.mrb[0].mxu0
      %v350 = vadd.f32 0.0, %v349
      %v351 = vpop.f32.mrb[0].mxu0
      %352 = vmatprep.mubr.bf16.mxu0 0
      %353 = vmatmul.mubr.bf16.gmra.mrb[0].mxu0 %v282
      %v354 = vpop.f32.mrb[0].mxu0
      %v355 = vadd.f32 0.0, %v354
      %v356 = vpop.f32.mrb[0].mxu0
      %v357 = vpop.f32.mrb[0].mxu0
      %v358 = vadd.f32 0.0, %v357
      %v359 = vpop.f32.mrb[0].mxu0
      %360 = vmatprep.mubr.bf16.mxu0 0
      %361 = vmatmul.mubr.bf16.gmra.mrb[0].mxu0 %v285
      %v362 = vpop.f32.mrb[0].mxu0
      %v363 = vadd.f32 0.0, %v362
      %v364 = vpop.f32.mrb[0].mxu0
      %v365 = vpop.f32.mrb[0].mxu0
      %v366 = vadd.f32 0.0, %v365
      %v367 = vpop.f32.mrb[0].mxu0
      %368 = vmatprep.mubr.bf16.mxu0 0
      %369 = vmatmul.mubr.bf16.gmra.mrb[0].mxu0 %v288
      %v370 = vpop.f32.mrb[0].mxu0
      %v371 = vadd.f32 0.0, %v370
      %v372 = vpop.f32.mrb[0].mxu0
      %v373 = vpop.f32.mrb[0].mxu0
      %v374 = vadd.f32 0.0, %v373
      %v375 = vpop.f32.mrb[0].mxu0
      %376 = vmatprep.mubr.bf16.mxu0 0
      %377 = vmatmul.mubr.bf16.gmra.mrb[0].mxu0 %v291
      %v378 = vpop.f32.mrb[0].mxu0
      %v379 = vadd.f32 0.0, %v378
      %v380 = vpop.f32.mrb[0].mxu0
      %v381 = vpop.f32.mrb[0].mxu0
      %v382 = vadd.f32 0.0, %v381
      %v383 = vpop.f32.mrb[0].mxu0
      %384 = vmatprep.mubr.bf16.mxu0 0
      %385 = vmatmul.mubr.bf16.gmra.mrb[0].mxu0 %v294
      %v386 = vpop.f32.mrb[0].mxu0
      %v387 = vadd.f32 0.0, %v386
      %v388 = vpop.f32.mrb[0].mxu0
      %v389 = vpop.f32.mrb[0].mxu0
      %v390 = vadd.f32 0.0, %v389
      %v391 = vpop.f32.mrb[0].mxu0
      %392 = vdwg.mxu0
      %v393 = vmul.f32 %v331, 0.5
      %v394 = vmul.f32 %v334, 0.5
      %v395 = vmul.f32 %v339, 0.5
      %v396 = vmul.f32 %v342, 0.5
      %v397 = vmul.f32 %v347, 0.5
      %v398 = vmul.f32 %v350, 0.5
      %v399 = vmul.f32 %v355, 0.5
      %v400 = vmul.f32 %v358, 0.5
      %v401 = vmul.f32 %v363, 0.5
      %v402 = vmul.f32 %v366, 0.5
      %v403 = vmul.f32 %v371, 0.5
      %v404 = vmul.f32 %v374, 0.5
      %v405 = vmul.f32 %v379, 0.5
      %v406 = vmul.f32 %v382, 0.5
      %v407 = vmul.f32 %v387, 0.5
      %v408 = vmul.f32 %v390, 0.5
      %v409 = vpack.c.bf16 %v394, %v393
      %v410 = vpack.c.bf16 %v396, %v395
      %v411 = vpack.c.bf16 %v398, %v397
      %v412 = vpack.c.bf16 %v400, %v399
      %v413 = vpack.c.bf16 %v402, %v401
      %v414 = vpack.c.bf16 %v404, %v403
      %v415 = vpack.c.bf16 %v406, %v405
      %v416 = vpack.c.bf16 %v408, %v407
      %417 = vst.msk [vmem:[#allocation2] sm:$0xff] %vm271, %v409
      %418 = vst.msk [vmem:[#allocation2 + $0x8] sm:$0xff] %vm271, %v410
      %419 = vst.msk [vmem:[#allocation2 + $0x10] sm:$0xff] %vm271, %v411
      %420 = vst.msk [vmem:[#allocation2 + $0x18] sm:$0xff] %vm271, %v412
      %421 = vst.msk [vmem:[#allocation2 + $0x20] sm:$0xff] %vm271, %v413
      %422 = vst.msk [vmem:[#allocation2 + $0x28] sm:$0xff] %vm271, %v414
      %423 = vst.msk [vmem:[#allocation2 + $0x30] sm:$0xff] %vm271, %v415
      %424 = vst.msk [vmem:[#allocation2 + $0x38] sm:$0xff] %vm271, %v416
      %v425 = vpack.c.bf16 %v334, %v331
      %v426 = vpack.c.bf16 %v342, %v339
      %v427 = vpack.c.bf16 %v350, %v347
      %v428 = vpack.c.bf16 %v358, %v355
      %v429 = vpack.c.bf16 %v366, %v363
      %v430 = vpack.c.bf16 %v374, %v371
      %v431 = vpack.c.bf16 %v382, %v379
      %v432 = vpack.c.bf16 %v390, %v387
      %vm433 = vcmask 785664
      %434 = vst.msk [vmem:[#allocation2] sm:$0xff] %vm433, %v425
      %435 = vst.msk [vmem:[#allocation2 + $0x8] sm:$0xff] %vm433, %v426
      %436 = vst.msk [vmem:[#allocation2 + $0x10] sm:$0xff] %vm433, %v427
      %437 = vst.msk [vmem:[#allocation2 + $0x18] sm:$0xff] %vm433, %v428
      %438 = vst.msk [vmem:[#allocation2 + $0x20] sm:$0xff] %vm433, %v429
      %439 = vst.msk [vmem:[#allocation2 + $0x28] sm:$0xff] %vm433, %v430
      %440 = vst.msk [vmem:[#allocation2 + $0x30] sm:$0xff] %vm433, %v431
      %441 = vst.msk [vmem:[#allocation2 + $0x38] sm:$0xff] %vm433, %v432
      %v442 = vlaneseq
      %v443 = vand.u32 %v442, 127
      %vm444 = vcmp.lt.s32.totalorder %v443, 8
      %v445 = vld [vmem:[#allocation2] sm:$0xff]
      %v446 = vld [vmem:[#allocation2 + $0x8] sm:$0xff]
      %v447 = vld [vmem:[#allocation2 + $0x10] sm:$0xff]
      %v448 = vld [vmem:[#allocation2 + $0x18] sm:$0xff]
      %v449 = vld [vmem:[#allocation2 + $0x20] sm:$0xff]
      %v450 = vld [vmem:[#allocation2 + $0x28] sm:$0xff]
      %v451 = vld [vmem:[#allocation2 + $0x30] sm:$0xff]
      %v452 = vld [vmem:[#allocation2 + $0x38] sm:$0xff]
      %461 = vrot.lane.b32.xlu0 %v445, 96
      %v462 = vpop.permute.xlu0 %461
      %463 = vrot.lane.b32.xlu0 %v446, 96
      %v464 = vpop.permute.xlu0 %463
      %465 = vrot.lane.b32.xlu0 %v447, 96
      %v466 = vpop.permute.xlu0 %465
      %467 = vrot.lane.b32.xlu0 %v448, 96
      %v468 = vpop.permute.xlu0 %467
      %469 = vrot.lane.b32.xlu0 %v449, 96
      %v470 = vpop.permute.xlu0 %469
      %471 = vrot.lane.b32.xlu0 %v450, 96
      %v472 = vpop.permute.xlu0 %471
      %473 = vrot.lane.b32.xlu0 %v451, 96
      %v474 = vpop.permute.xlu0 %473
      %475 = vrot.lane.b32.xlu0 %v452, 96
      %v476 = vpop.permute.xlu0 %475
      %vm477 = vcmask 31744
      %v479 = vsel %vm477, %v445, 0
      %v482 = vsel %vm477, %v446, 0
      %v485 = vsel %vm477, %v447, 0
      %v488 = vsel %vm477, %v448, 0
      %v491 = vsel %vm477, %v449, 0
      %v494 = vsel %vm477, %v450, 0
      %v497 = vsel %vm477, %v451, 0
      %v500 = vsel %vm477, %v452, 0
      %v503 = vsel %vm477, %v462, 0
      %v506 = vsel %vm477, %v464, 0
      %v509 = vsel %vm477, %v466, 0
      %v512 = vsel %vm477, %v468, 0
      %v515 = vsel %vm477, %v470, 0
      %v518 = vsel %vm477, %v472, 0
      %v521 = vsel %vm477, %v474, 0
      %v524 = vsel %vm477, %v476, 0
      %526 = vmatprep.subr.bf16.mxu0 0
      %527 = vmatpush1.bf16.xpose.msra.mxu0 %v503
      %528 = vmatprep.subr.bf16.mxu0 0
      %529 = vmatpush1.bf16.xpose.msra.mxu0 %v506
      %530 = vmatprep.subr.bf16.mxu0 0
      %531 = vmatpush1.bf16.xpose.msra.mxu0 %v509
      %532 = vmatprep.subr.bf16.mxu0 0
      %533 = vmatpush1.bf16.xpose.msra.mxu0 %v512
      %534 = vmatprep.subr.bf16.mxu0 0
      %535 = vmatpush1.bf16.xpose.msra.mxu0 %v515
      %536 = vmatprep.subr.bf16.mxu0 0
      %537 = vmatpush1.bf16.xpose.msra.mxu0 %v518
      %538 = vmatprep.subr.bf16.mxu0 0
      %539 = vmatpush1.bf16.xpose.msra.mxu0 %v521
      %540 = vmatprep.subr.bf16.mxu0 0
      %541 = vmatpush1.bf16.xpose.msra.mxu0 %v524
      %542 = vmatprep.subr.bf16.mxu0 0
      %543 = vmatpush1.bf16.xpose.msra.mxu0 0
      %544 = vmatprep.subr.bf16.mxu0 0
      %545 = vmatpush1.bf16.xpose.msra.mxu0 0
      %546 = vmatprep.subr.bf16.mxu0 0
      %547 = vmatpush1.bf16.xpose.msra.mxu0 0
      %548 = vmatprep.subr.bf16.mxu0 0
      %549 = vmatpush1.bf16.xpose.msra.mxu0 0
      %550 = vmatprep.subr.bf16.mxu0 0
      %551 = vmatpush1.bf16.xpose.msra.mxu0 0
      %552 = vmatprep.subr.bf16.mxu0 0
      %553 = vmatpush1.bf16.xpose.msra.mxu0 0
      %554 = vmatprep.subr.bf16.mxu0 0
      %555 = vmatpush1.bf16.xpose.msra.mxu0 0
      %556 = vmatprep.subr.bf16.mxu0 0
      %557 = vmatpush1.bf16.xpose.msra.mxu0 0
      %558 = vmatprep.mubr.bf16.mxu0 0
      %559 = vmatmul.mubr.bf16.gmra.mrb[0].mxu0 %v479
      %v560 = vpop.f32.mrb[0].mxu0
      %v561 = vadd.f32 0.0, %v560
      %v562 = vpop.f32.mrb[0].mxu0
      %v563 = vpop.f32.mrb[0].mxu0
      %v564 = vadd.f32 0.0, %v563
      %v565 = vpop.f32.mrb[0].mxu0
      %566 = vmatprep.mubr.bf16.mxu0 0
      %567 = vmatmul.mubr.bf16.gmra.mrb[0].mxu0 %v482
      %v568 = vpop.f32.mrb[0].mxu0
      %v569 = vadd.f32 0.0, %v568
      %v570 = vpop.f32.mrb[0].mxu0
      %v571 = vpop.f32.mrb[0].mxu0
      %v572 = vadd.f32 0.0, %v571
      %v573 = vpop.f32.mrb[0].mxu0
      %574 = vmatprep.mubr.bf16.mxu0 0
      %575 = vmatmul.mubr.bf16.gmra.mrb[0].mxu0 %v485
      %v576 = vpop.f32.mrb[0].mxu0
      %v577 = vadd.f32 0.0, %v576
      %v578 = vpop.f32.mrb[0].mxu0
      %v579 = vpop.f32.mrb[0].mxu0
      %v580 = vadd.f32 0.0, %v579
      %v581 = vpop.f32.mrb[0].mxu0
      %582 = vmatprep.mubr.bf16.mxu0 0
      %583 = vmatmul.mubr.bf16.gmra.mrb[0].mxu0 %v488
      %v584 = vpop.f32.mrb[0].mxu0
      %v585 = vadd.f32 0.0, %v584
      %v586 = vpop.f32.mrb[0].mxu0
      %v587 = vpop.f32.mrb[0].mxu0
      %v588 = vadd.f32 0.0, %v587
      %v589 = vpop.f32.mrb[0].mxu0
      %590 = vmatprep.mubr.bf16.mxu0 0
      %591 = vmatmul.mubr.bf16.gmra.mrb[0].mxu0 %v491
      %v592 = vpop.f32.mrb[0].mxu0
      %v593 = vadd.f32 0.0, %v592
      %v594 = vpop.f32.mrb[0].mxu0
      %v595 = vpop.f32.mrb[0].mxu0
      %v596 = vadd.f32 0.0, %v595
      %v597 = vpop.f32.mrb[0].mxu0
      %598 = vmatprep.mubr.bf16.mxu0 0
      %599 = vmatmul.mubr.bf16.gmra.mrb[0].mxu0 %v494
      %v600 = vpop.f32.mrb[0].mxu0
      %v601 = vadd.f32 0.0, %v600
      %v602 = vpop.f32.mrb[0].mxu0
      %v603 = vpop.f32.mrb[0].mxu0
      %v604 = vadd.f32 0.0, %v603
      %v605 = vpop.f32.mrb[0].mxu0
      %606 = vmatprep.mubr.bf16.mxu0 0
      %607 = vmatmul.mubr.bf16.gmra.mrb[0].mxu0 %v497
      %v608 = vpop.f32.mrb[0].mxu0
      %v609 = vadd.f32 0.0, %v608
      %v610 = vpop.f32.mrb[0].mxu0
      %v611 = vpop.f32.mrb[0].mxu0
      %v612 = vadd.f32 0.0, %v611
      %v613 = vpop.f32.mrb[0].mxu0
      %614 = vmatprep.mubr.bf16.mxu0 0
      %615 = vmatmul.mubr.bf16.gmra.mrb[0].mxu0 %v500
      %v616 = vpop.f32.mrb[0].mxu0
      %v617 = vadd.f32 0.0, %v616
      %v618 = vpop.f32.mrb[0].mxu0
      %v619 = vpop.f32.mrb[0].mxu0
      %v620 = vadd.f32 0.0, %v619
      %v621 = vpop.f32.mrb[0].mxu0
      %622 = vdwg.mxu0
      %v623 = vsel %vm444, 1, 0
      %vm624 = vcmp.eq.s32.totalorder %v623, 1
      %v625 = vsel %vm624, %v561, -1e+30
      %v626 = vsel %vm624, %v564, -1e+30
      %v627 = vsel %vm624, %v569, -1e+30
      %v628 = vsel %vm624, %v572, -1e+30
      %v629 = vsel %vm624, %v577, -1e+30
      %v630 = vsel %vm624, %v580, -1e+30
      %v631 = vsel %vm624, %v585, -1e+30
      %v632 = vsel %vm624, %v588, -1e+30
      %v633 = vsel %vm624, %v593, -1e+30
      %v634 = vsel %vm624, %v596, -1e+30
      %v635 = vsel %vm624, %v601, -1e+30
      %v636 = vsel %vm624, %v604, -1e+30
      %v637 = vsel %vm624, %v609, -1e+30
      %v638 = vsel %vm624, %v612, -1e+30
      %v639 = vsel %vm624, %v617, -1e+30
      %v640 = vsel %vm624, %v620, -1e+30
      %641 = vmax.xlane.f32.xlu0 %v625
      %v642 = vpop.xlane.xlu0 %641
      %643 = vmax.xlane.f32.xlu0 %v626
      %v644 = vpop.xlane.xlu0 %643
      %645 = vmax.xlane.f32.xlu0 %v627
      %v646 = vpop.xlane.xlu0 %645
      %647 = vmax.xlane.f32.xlu0 %v628
      %v648 = vpop.xlane.xlu0 %647
      %649 = vmax.xlane.f32.xlu0 %v629
      %v650 = vpop.xlane.xlu0 %649
      %651 = vmax.xlane.f32.xlu0 %v630
      %v652 = vpop.xlane.xlu0 %651
      %653 = vmax.xlane.f32.xlu0 %v631
      %v654 = vpop.xlane.xlu0 %653
      %655 = vmax.xlane.f32.xlu0 %v632
      %v656 = vpop.xlane.xlu0 %655
      %657 = vmax.xlane.f32.xlu0 %v633
      %v658 = vpop.xlane.xlu0 %657
      %659 = vmax.xlane.f32.xlu0 %v634
      %v660 = vpop.xlane.xlu0 %659
      %661 = vmax.xlane.f32.xlu0 %v635
      %v662 = vpop.xlane.xlu0 %661
      %663 = vmax.xlane.f32.xlu0 %v636
      %v664 = vpop.xlane.xlu0 %663
      %665 = vmax.xlane.f32.xlu0 %v637
      %v666 = vpop.xlane.xlu0 %665
      %667 = vmax.xlane.f32.xlu0 %v638
      %v668 = vpop.xlane.xlu0 %667
      %669 = vmax.xlane.f32.xlu0 %v639
      %v670 = vpop.xlane.xlu0 %669
      %671 = vmax.xlane.f32.xlu0 %v640
      %v672 = vpop.xlane.xlu0 %671
      %v673 = vsub.f32 %v625, %v642
      %v674 = vsub.f32 %v626, %v644
      %v675 = vsub.f32 %v627, %v646
      %v676 = vsub.f32 %v628, %v648
      %v677 = vsub.f32 %v629, %v650
      %v678 = vsub.f32 %v630, %v652
      %v679 = vsub.f32 %v631, %v654
      %v680 = vsub.f32 %v632, %v656
      %v681 = vsub.f32 %v633, %v658
      %v682 = vsub.f32 %v634, %v660
      %v683 = vsub.f32 %v635, %v662
      %v684 = vsub.f32 %v636, %v664
      %v685 = vsub.f32 %v637, %v666
      %v686 = vsub.f32 %v638, %v668
      %v687 = vsub.f32 %v639, %v670
      %v688 = vsub.f32 %v640, %v672
      %v689 = vmul.f32 %v673, 1.442695
      %v690 = vpow.pop %v689
      %v691 = vmul.f32 %v674, 1.442695
      %v692 = vpow.pop %v691
      %v693 = vmul.f32 %v675, 1.442695
      %v694 = vpow.pop %v693
      %v695 = vmul.f32 %v676, 1.442695
      %v696 = vpow.pop %v695
      %v697 = vmul.f32 %v677, 1.442695
      %v698 = vpow.pop %v697
      %v699 = vmul.f32 %v678, 1.442695
      %v700 = vpow.pop %v699
      %v701 = vmul.f32 %v679, 1.442695
      %v702 = vpow.pop %v701
      %v703 = vmul.f32 %v680, 1.442695
      %v704 = vpow.pop %v703
      %v705 = vmul.f32 %v681, 1.442695
      %v706 = vpow.pop %v705
      %v707 = vmul.f32 %v682, 1.442695
      %v708 = vpow.pop %v707
      %v709 = vmul.f32 %v683, 1.442695
      %v710 = vpow.pop %v709
      %v711 = vmul.f32 %v684, 1.442695
      %v712 = vpow.pop %v711
      %v713 = vmul.f32 %v685, 1.442695
      %v714 = vpow.pop %v713
      %v715 = vmul.f32 %v686, 1.442695
      %v716 = vpow.pop %v715
      %v717 = vmul.f32 %v687, 1.442695
      %v718 = vpow.pop %v717
      %v719 = vmul.f32 %v688, 1.442695
      %v720 = vpow.pop %v719
      %721 = vadd.xlane.f32.xlu0 %v690
      %v722 = vpop.xlane.xlu0 %721
      %723 = vadd.xlane.f32.xlu0 %v692
      %v724 = vpop.xlane.xlu0 %723
      %725 = vadd.xlane.f32.xlu0 %v694
      %v726 = vpop.xlane.xlu0 %725
      %727 = vadd.xlane.f32.xlu0 %v696
      %v728 = vpop.xlane.xlu0 %727
      %729 = vadd.xlane.f32.xlu0 %v698
      %v730 = vpop.xlane.xlu0 %729
      %731 = vadd.xlane.f32.xlu0 %v700
      %v732 = vpop.xlane.xlu0 %731
      %733 = vadd.xlane.f32.xlu0 %v702
      %v734 = vpop.xlane.xlu0 %733
      %735 = vadd.xlane.f32.xlu0 %v704
      %v736 = vpop.xlane.xlu0 %735
      %737 = vadd.xlane.f32.xlu0 %v706
      %v738 = vpop.xlane.xlu0 %737
      %739 = vadd.xlane.f32.xlu0 %v708
      %v740 = vpop.xlane.xlu0 %739
      %741 = vadd.xlane.f32.xlu0 %v710
      %v742 = vpop.xlane.xlu0 %741
      %743 = vadd.xlane.f32.xlu0 %v712
      %v744 = vpop.xlane.xlu0 %743
      %745 = vadd.xlane.f32.xlu0 %v714
      %v746 = vpop.xlane.xlu0 %745
      %747 = vadd.xlane.f32.xlu0 %v716
      %v748 = vpop.xlane.xlu0 %747
      %749 = vadd.xlane.f32.xlu0 %v718
      %v750 = vpop.xlane.xlu0 %749
      %751 = vadd.xlane.f32.xlu0 %v720
      %v752 = vpop.xlane.xlu0 %751
      %v753 = vrcp.pop %v722
      %v754 = vrcp.pop %v724
      %v755 = vrcp.pop %v726
      %v756 = vrcp.pop %v728
      %v757 = vrcp.pop %v730
      %v758 = vrcp.pop %v732
      %v759 = vrcp.pop %v734
      %v760 = vrcp.pop %v736
      %v761 = vrcp.pop %v738
      %v762 = vrcp.pop %v740
      %v763 = vrcp.pop %v742
      %v764 = vrcp.pop %v744
      %v765 = vrcp.pop %v746
      %v766 = vrcp.pop %v748
      %v767 = vrcp.pop %v750
      %v768 = vrcp.pop %v752
      %v769 = vmul.f32 %v690, %v753
      %v770 = vmul.f32 %v692, %v754
      %v771 = vmul.f32 %v694, %v755
      %v772 = vmul.f32 %v696, %v756
      %v773 = vmul.f32 %v698, %v757
      %v774 = vmul.f32 %v700, %v758
      %v775 = vmul.f32 %v702, %v759
      %v776 = vmul.f32 %v704, %v760
      %v777 = vmul.f32 %v706, %v761
      %v778 = vmul.f32 %v708, %v762
      %v779 = vmul.f32 %v710, %v763
      %v780 = vmul.f32 %v712, %v764
      %v781 = vmul.f32 %v714, %v765
      %v782 = vmul.f32 %v716, %v766
      %v783 = vmul.f32 %v718, %v767
      %v784 = vmul.f32 %v720, %v768
      %v785 = vpack.c.bf16 %v770, %v769
      %v786 = vpack.c.bf16 %v772, %v771
      %v787 = vpack.c.bf16 %v774, %v773
      %v788 = vpack.c.bf16 %v776, %v775
      %v789 = vpack.c.bf16 %v778, %v777
      %v790 = vpack.c.bf16 %v780, %v779
      %v791 = vpack.c.bf16 %v782, %v781
      %v792 = vpack.c.bf16 %v784, %v783
      %793 = vrot.lane.b32.xlu0 %v445, 64
      %v794 = vpop.permute.xlu0 %793
      %795 = vrot.lane.b32.xlu0 %v446, 64
      %v796 = vpop.permute.xlu0 %795
      %797 = vrot.lane.b32.xlu0 %v447, 64
      %v798 = vpop.permute.xlu0 %797
      %799 = vrot.lane.b32.xlu0 %v448, 64
      %v800 = vpop.permute.xlu0 %799
      %801 = vrot.lane.b32.xlu0 %v449, 64
      %v802 = vpop.permute.xlu0 %801
      %803 = vrot.lane.b32.xlu0 %v450, 64
      %v804 = vpop.permute.xlu0 %803
      %805 = vrot.lane.b32.xlu0 %v451, 64
      %v806 = vpop.permute.xlu0 %805
      %807 = vrot.lane.b32.xlu0 %v452, 64
      %v808 = vpop.permute.xlu0 %807
      %817 = vmatprep.subr.bf16.mxu0 0
      %818 = vmatpush1.bf16.msra.mxu0 %v794
      %819 = vmatprep.subr.bf16.mxu0 0
      %820 = vmatpush1.bf16.msra.mxu0 %v796
      %821 = vmatprep.subr.bf16.mxu0 0
      %822 = vmatpush1.bf16.msra.mxu0 %v798
      %823 = vmatprep.subr.bf16.mxu0 0
      %824 = vmatpush1.bf16.msra.mxu0 %v800
      %825 = vmatprep.subr.bf16.mxu0 0
      %826 = vmatpush1.bf16.msra.mxu0 %v802
      %827 = vmatprep.subr.bf16.mxu0 0
      %828 = vmatpush1.bf16.msra.mxu0 %v804
      %829 = vmatprep.subr.bf16.mxu0 0
      %830 = vmatpush1.bf16.msra.mxu0 %v806
      %831 = vmatprep.subr.bf16.mxu0 0
      %832 = vmatpush1.bf16.msra.mxu0 %v808
      %833 = vmatprep.subr.bf16.mxu0 0
      %834 = vmatpush1.bf16.msra.mxu0 0
      %835 = vmatprep.subr.bf16.mxu0 0
      %836 = vmatpush1.bf16.msra.mxu0 0
      %837 = vmatprep.subr.bf16.mxu0 0
      %838 = vmatpush1.bf16.msra.mxu0 0
      %839 = vmatprep.subr.bf16.mxu0 0
      %840 = vmatpush1.bf16.msra.mxu0 0
      %841 = vmatprep.subr.bf16.mxu0 0
      %842 = vmatpush1.bf16.msra.mxu0 0
      %843 = vmatprep.subr.bf16.mxu0 0
      %844 = vmatpush1.bf16.msra.mxu0 0
      %845 = vmatprep.subr.bf16.mxu0 0
      %846 = vmatpush1.bf16.msra.mxu0 0
      %847 = vmatprep.subr.bf16.mxu0 0
      %848 = vmatpush1.bf16.msra.mxu0 0
      %849 = vmatprep.mubr.bf16.mxu0 0
      %850 = vmatmul.mubr.bf16.gmra.mrb[0].mxu0 %v785
      %v851 = vpop.f32.mrb[0].mxu0
      %v852 = vadd.f32 0.0, %v851
      %v853 = vpop.f32.mrb[0].mxu0
      %v854 = vpop.f32.mrb[0].mxu0
      %v855 = vadd.f32 0.0, %v854
      %v856 = vpop.f32.mrb[0].mxu0
      %857 = vmatprep.mubr.bf16.mxu0 0
      %858 = vmatmul.mubr.bf16.gmra.mrb[0].mxu0 %v786
      %v859 = vpop.f32.mrb[0].mxu0
      %v860 = vadd.f32 0.0, %v859
      %v861 = vpop.f32.mrb[0].mxu0
      %v862 = vpop.f32.mrb[0].mxu0
      %v863 = vadd.f32 0.0, %v862
      %v864 = vpop.f32.mrb[0].mxu0
      %865 = vmatprep.mubr.bf16.mxu0 0
      %866 = vmatmul.mubr.bf16.gmra.mrb[0].mxu0 %v787
      %v867 = vpop.f32.mrb[0].mxu0
      %v868 = vadd.f32 0.0, %v867
      %v869 = vpop.f32.mrb[0].mxu0
      %v870 = vpop.f32.mrb[0].mxu0
      %v871 = vadd.f32 0.0, %v870
      %v872 = vpop.f32.mrb[0].mxu0
      %873 = vmatprep.mubr.bf16.mxu0 0
      %874 = vmatmul.mubr.bf16.gmra.mrb[0].mxu0 %v788
      %v875 = vpop.f32.mrb[0].mxu0
      %v876 = vadd.f32 0.0, %v875
      %v877 = vpop.f32.mrb[0].mxu0
      %v878 = vpop.f32.mrb[0].mxu0
      %v879 = vadd.f32 0.0, %v878
      %v880 = vpop.f32.mrb[0].mxu0
      %881 = vmatprep.mubr.bf16.mxu0 0
      %882 = vmatmul.mubr.bf16.gmra.mrb[0].mxu0 %v789
      %v883 = vpop.f32.mrb[0].mxu0
      %v884 = vadd.f32 0.0, %v883
      %v885 = vpop.f32.mrb[0].mxu0
      %v886 = vpop.f32.mrb[0].mxu0
      %v887 = vadd.f32 0.0, %v886
      %v888 = vpop.f32.mrb[0].mxu0
      %889 = vmatprep.mubr.bf16.mxu0 0
      %890 = vmatmul.mubr.bf16.gmra.mrb[0].mxu0 %v790
      %v891 = vpop.f32.mrb[0].mxu0
      %v892 = vadd.f32 0.0, %v891
      %v893 = vpop.f32.mrb[0].mxu0
      %v894 = vpop.f32.mrb[0].mxu0
      %v895 = vadd.f32 0.0, %v894
      %v896 = vpop.f32.mrb[0].mxu0
      %897 = vmatprep.mubr.bf16.mxu0 0
      %898 = vmatmul.mubr.bf16.gmra.mrb[0].mxu0 %v791
      %v899 = vpop.f32.mrb[0].mxu0
      %v900 = vadd.f32 0.0, %v899
      %v901 = vpop.f32.mrb[0].mxu0
      %v902 = vpop.f32.mrb[0].mxu0
      %v903 = vadd.f32 0.0, %v902
      %v904 = vpop.f32.mrb[0].mxu0
      %905 = vmatprep.mubr.bf16.mxu0 0
      %906 = vmatmul.mubr.bf16.gmra.mrb[0].mxu0 %v792
      %v907 = vpop.f32.mrb[0].mxu0
      %v908 = vadd.f32 0.0, %v907
      %v909 = vpop.f32.mrb[0].mxu0
      %v910 = vpop.f32.mrb[0].mxu0
      %v911 = vadd.f32 0.0, %v910
      %v912 = vpop.f32.mrb[0].mxu0
      %913 = vdwg.mxu0
      %v914 = vpack.c.bf16 %v855, %v852
      %v915 = vpack.c.bf16 %v863, %v860
      %v916 = vpack.c.bf16 %v871, %v868
      %v917 = vpack.c.bf16 %v879, %v876
      %v918 = vpack.c.bf16 %v887, %v884
      %v919 = vpack.c.bf16 %v895, %v892
      %v920 = vpack.c.bf16 %v903, %v900
      %v921 = vpack.c.bf16 %v911, %v908
      %922 = vrot.lane.b32.xlu0 %v445, 124
      %v923 = vpop.permute.xlu0 %922
      %924 = vrot.lane.b32.xlu0 %v446, 124
      %v925 = vpop.permute.xlu0 %924
      %926 = vrot.lane.b32.xlu0 %v447, 124
      %v927 = vpop.permute.xlu0 %926
      %928 = vrot.lane.b32.xlu0 %v448, 124
      %v929 = vpop.permute.xlu0 %928
      %930 = vrot.lane.b32.xlu0 %v449, 124
      %v931 = vpop.permute.xlu0 %930
      %932 = vrot.lane.b32.xlu0 %v450, 124
      %v933 = vpop.permute.xlu0 %932
      %934 = vrot.lane.b32.xlu0 %v451, 124
      %v935 = vpop.permute.xlu0 %934
      %936 = vrot.lane.b32.xlu0 %v452, 124
      %v937 = vpop.permute.xlu0 %936
      %938 = vrot.lane.b32.xlu0 %v445, 92
      %v939 = vpop.permute.xlu0 %938
      %940 = vrot.lane.b32.xlu0 %v446, 92
      %v941 = vpop.permute.xlu0 %940
      %942 = vrot.lane.b32.xlu0 %v447, 92
      %v943 = vpop.permute.xlu0 %942
      %944 = vrot.lane.b32.xlu0 %v448, 92
      %v945 = vpop.permute.xlu0 %944
      %946 = vrot.lane.b32.xlu0 %v449, 92
      %v947 = vpop.permute.xlu0 %946
      %948 = vrot.lane.b32.xlu0 %v450, 92
      %v949 = vpop.permute.xlu0 %948
      %950 = vrot.lane.b32.xlu0 %v451, 92
      %v951 = vpop.permute.xlu0 %950
      %952 = vrot.lane.b32.xlu0 %v452, 92
      %v953 = vpop.permute.xlu0 %952
      %v955 = vsel %vm477, %v923, 0
      %v958 = vsel %vm477, %v925, 0
      %v961 = vsel %vm477, %v927, 0
      %v964 = vsel %vm477, %v929, 0
      %v967 = vsel %vm477, %v931, 0
      %v970 = vsel %vm477, %v933, 0
      %v973 = vsel %vm477, %v935, 0
      %v976 = vsel %vm477, %v937, 0
      %v979 = vsel %vm477, %v939, 0
      %v982 = vsel %vm477, %v941, 0
      %v985 = vsel %vm477, %v943, 0
      %v988 = vsel %vm477, %v945, 0
      %v991 = vsel %vm477, %v947, 0
      %v994 = vsel %vm477, %v949, 0
      %v997 = vsel %vm477, %v951, 0
      %v1000 = vsel %vm477, %v953, 0
      %1002 = vmatprep.subr.bf16.mxu0 0
      %1003 = vmatpush1.bf16.xpose.msra.mxu0 %v979
      %1004 = vmatprep.subr.bf16.mxu0 0
      %1005 = vmatpush1.bf16.xpose.msra.mxu0 %v982
      %1006 = vmatprep.subr.bf16.mxu0 0
      %1007 = vmatpush1.bf16.xpose.msra.mxu0 %v985
      %1008 = vmatprep.subr.bf16.mxu0 0
      %1009 = vmatpush1.bf16.xpose.msra.mxu0 %v988
      %1010 = vmatprep.subr.bf16.mxu0 0
      %1011 = vmatpush1.bf16.xpose.msra.mxu0 %v991
      %1012 = vmatprep.subr.bf16.mxu0 0
      %1013 = vmatpush1.bf16.xpose.msra.mxu0 %v994
      %1014 = vmatprep.subr.bf16.mxu0 0
      %1015 = vmatpush1.bf16.xpose.msra.mxu0 %v997
      %1016 = vmatprep.subr.bf16.mxu0 0
      %1017 = vmatpush1.bf16.xpose.msra.mxu0 %v1000
      %1018 = vmatprep.subr.bf16.mxu0 0
      %1019 = vmatpush1.bf16.xpose.msra.mxu0 0
      %1020 = vmatprep.subr.bf16.mxu0 0
      %1021 = vmatpush1.bf16.xpose.msra.mxu0 0
      %1022 = vmatprep.subr.bf16.mxu0 0
      %1023 = vmatpush1.bf16.xpose.msra.mxu0 0
      %1024 = vmatprep.subr.bf16.mxu0 0
      %1025 = vmatpush1.bf16.xpose.msra.mxu0 0
      %1026 = vmatprep.subr.bf16.mxu0 0
      %1027 = vmatpush1.bf16.xpose.msra.mxu0 0
      %1028 = vmatprep.subr.bf16.mxu0 0
      %1029 = vmatpush1.bf16.xpose.msra.mxu0 0
      %1030 = vmatprep.subr.bf16.mxu0 0
      %1031 = vmatpush1.bf16.xpose.msra.mxu0 0
      %1032 = vmatprep.subr.bf16.mxu0 0
      %1033 = vmatpush1.bf16.xpose.msra.mxu0 0
      %1034 = vmatprep.mubr.bf16.mxu0 0
      %1035 = vmatmul.mubr.bf16.gmra.mrb[0].mxu0 %v955
      %v1036 = vpop.f32.mrb[0].mxu0
      %v1037 = vadd.f32 0.0, %v1036
      %v1038 = vpop.f32.mrb[0].mxu0
      %v1039 = vpop.f32.mrb[0].mxu0
      %v1040 = vadd.f32 0.0, %v1039
      %v1041 = vpop.f32.mrb[0].mxu0
      %1042 = vmatprep.mubr.bf16.mxu0 0
      %1043 = vmatmul.mubr.bf16.gmra.mrb[0].mxu0 %v958
      %v1044 = vpop.f32.mrb[0].mxu0
      %v1045 = vadd.f32 0.0, %v1044
      %v1046 = vpop.f32.mrb[0].mxu0
      %v1047 = vpop.f32.mrb[0].mxu0
      %v1048 = vadd.f32 0.0, %v1047
      %v1049 = vpop.f32.mrb[0].mxu0
      %1050 = vmatprep.mubr.bf16.mxu0 0
      %1051 = vmatmul.mubr.bf16.gmra.mrb[0].mxu0 %v961
      %v1052 = vpop.f32.mrb[0].mxu0
      %v1053 = vadd.f32 0.0, %v1052
      %v1054 = vpop.f32.mrb[0].mxu0
      %v1055 = vpop.f32.mrb[0].mxu0
      %v1056 = vadd.f32 0.0, %v1055
      %v1057 = vpop.f32.mrb[0].mxu0
      %1058 = vmatprep.mubr.bf16.mxu0 0
      %1059 = vmatmul.mubr.bf16.gmra.mrb[0].mxu0 %v964
      %v1060 = vpop.f32.mrb[0].mxu0
      %v1061 = vadd.f32 0.0, %v1060
      %v1062 = vpop.f32.mrb[0].mxu0
      %v1063 = vpop.f32.mrb[0].mxu0
      %v1064 = vadd.f32 0.0, %v1063
      %v1065 = vpop.f32.mrb[0].mxu0
      %1066 = vmatprep.mubr.bf16.mxu0 0
      %1067 = vmatmul.mubr.bf16.gmra.mrb[0].mxu0 %v967
      %v1068 = vpop.f32.mrb[0].mxu0
      %v1069 = vadd.f32 0.0, %v1068
      %v1070 = vpop.f32.mrb[0].mxu0
      %v1071 = vpop.f32.mrb[0].mxu0
      %v1072 = vadd.f32 0.0, %v1071
      %v1073 = vpop.f32.mrb[0].mxu0
      %1074 = vmatprep.mubr.bf16.mxu0 0
      %1075 = vmatmul.mubr.bf16.gmra.mrb[0].mxu0 %v970
      %v1076 = vpop.f32.mrb[0].mxu0
      %v1077 = vadd.f32 0.0, %v1076
      %v1078 = vpop.f32.mrb[0].mxu0
      %v1079 = vpop.f32.mrb[0].mxu0
      %v1080 = vadd.f32 0.0, %v1079
      %v1081 = vpop.f32.mrb[0].mxu0
      %1082 = vmatprep.mubr.bf16.mxu0 0
      %1083 = vmatmul.mubr.bf16.gmra.mrb[0].mxu0 %v973
      %v1084 = vpop.f32.mrb[0].mxu0
      %v1085 = vadd.f32 0.0, %v1084
      %v1086 = vpop.f32.mrb[0].mxu0
      %v1087 = vpop.f32.mrb[0].mxu0
      %v1088 = vadd.f32 0.0, %v1087
      %v1089 = vpop.f32.mrb[0].mxu0
      %1090 = vmatprep.mubr.bf16.mxu0 0
      %1091 = vmatmul.mubr.bf16.gmra.mrb[0].mxu0 %v976
      %v1092 = vpop.f32.mrb[0].mxu0
      %v1093 = vadd.f32 0.0, %v1092
      %v1094 = vpop.f32.mrb[0].mxu0
      %v1095 = vpop.f32.mrb[0].mxu0
      %v1096 = vadd.f32 0.0, %v1095
      %v1097 = vpop.f32.mrb[0].mxu0
      %1098 = vdwg.mxu0
      %v1099 = vsel %vm624, %v1037, -1e+30
      %v1100 = vsel %vm624, %v1040, -1e+30
      %v1101 = vsel %vm624, %v1045, -1e+30
      %v1102 = vsel %vm624, %v1048, -1e+30
      %v1103 = vsel %vm624, %v1053, -1e+30
      %v1104 = vsel %vm624, %v1056, -1e+30
      %v1105 = vsel %vm624, %v1061, -1e+30
      %v1106 = vsel %vm624, %v1064, -1e+30
      %v1107 = vsel %vm624, %v1069, -1e+30
      %v1108 = vsel %vm624, %v1072, -1e+30
      %v1109 = vsel %vm624, %v1077, -1e+30
      %v1110 = vsel %vm624, %v1080, -1e+30
      %v1111 = vsel %vm624, %v1085, -1e+30
      %v1112 = vsel %vm624, %v1088, -1e+30
      %v1113 = vsel %vm624, %v1093, -1e+30
      %v1114 = vsel %vm624, %v1096, -1e+30
      %1115 = vmax.xlane.f32.xlu0 %v1099
      %v1116 = vpop.xlane.xlu0 %1115
      %1117 = vmax.xlane.f32.xlu0 %v1100
      %v1118 = vpop.xlane.xlu0 %1117
      %1119 = vmax.xlane.f32.xlu0 %v1101
      %v1120 = vpop.xlane.xlu0 %1119
      %1121 = vmax.xlane.f32.xlu0 %v1102
      %v1122 = vpop.xlane.xlu0 %1121
      %1123 = vmax.xlane.f32.xlu0 %v1103
      %v1124 = vpop.xlane.xlu0 %1123
      %1125 = vmax.xlane.f32.xlu0 %v1104
      %v1126 = vpop.xlane.xlu0 %1125
      %1127 = vmax.xlane.f32.xlu0 %v1105
      %v1128 = vpop.xlane.xlu0 %1127
      %1129 = vmax.xlane.f32.xlu0 %v1106
      %v1130 = vpop.xlane.xlu0 %1129
      %1131 = vmax.xlane.f32.xlu0 %v1107
      %v1132 = vpop.xlane.xlu0 %1131
      %1133 = vmax.xlane.f32.xlu0 %v1108
      %v1134 = vpop.xlane.xlu0 %1133
      %1135 = vmax.xlane.f32.xlu0 %v1109
      %v1136 = vpop.xlane.xlu0 %1135
      %1137 = vmax.xlane.f32.xlu0 %v1110
      %v1138 = vpop.xlane.xlu0 %1137
      %1139 = vmax.xlane.f32.xlu0 %v1111
      %v1140 = vpop.xlane.xlu0 %1139
      %1141 = vmax.xlane.f32.xlu0 %v1112
      %v1142 = vpop.xlane.xlu0 %1141
      %1143 = vmax.xlane.f32.xlu0 %v1113
      %v1144 = vpop.xlane.xlu0 %1143
      %1145 = vmax.xlane.f32.xlu0 %v1114
      %v1146 = vpop.xlane.xlu0 %1145
      %v1147 = vsub.f32 %v1099, %v1116
      %v1148 = vsub.f32 %v1100, %v1118
      %v1149 = vsub.f32 %v1101, %v1120
      %v1150 = vsub.f32 %v1102, %v1122
      %v1151 = vsub.f32 %v1103, %v1124
      %v1152 = vsub.f32 %v1104, %v1126
      %v1153 = vsub.f32 %v1105, %v1128
      %v1154 = vsub.f32 %v1106, %v1130
      %v1155 = vsub.f32 %v1107, %v1132
      %v1156 = vsub.f32 %v1108, %v1134
      %v1157 = vsub.f32 %v1109, %v1136
      %v1158 = vsub.f32 %v1110, %v1138
      %v1159 = vsub.f32 %v1111, %v1140
      %v1160 = vsub.f32 %v1112, %v1142
      %v1161 = vsub.f32 %v1113, %v1144
      %v1162 = vsub.f32 %v1114, %v1146
      %v1163 = vmul.f32 %v1147, 1.442695
      %v1164 = vpow.pop %v1163
      %v1165 = vmul.f32 %v1148, 1.442695
      %v1166 = vpow.pop %v1165
      %v1167 = vmul.f32 %v1149, 1.442695
      %v1168 = vpow.pop %v1167
      %v1169 = vmul.f32 %v1150, 1.442695
      %v1170 = vpow.pop %v1169
      %v1171 = vmul.f32 %v1151, 1.442695
      %v1172 = vpow.pop %v1171
      %v1173 = vmul.f32 %v1152, 1.442695
      %v1174 = vpow.pop %v1173
      %v1175 = vmul.f32 %v1153, 1.442695
      %v1176 = vpow.pop %v1175
      %v1177 = vmul.f32 %v1154, 1.442695
      %v1178 = vpow.pop %v1177
      %v1179 = vmul.f32 %v1155, 1.442695
      %v1180 = vpow.pop %v1179
      %v1181 = vmul.f32 %v1156, 1.442695
      %v1182 = vpow.pop %v1181
      %v1183 = vmul.f32 %v1157, 1.442695
      %v1184 = vpow.pop %v1183
      %v1185 = vmul.f32 %v1158, 1.442695
      %v1186 = vpow.pop %v1185
      %v1187 = vmul.f32 %v1159, 1.442695
      %v1188 = vpow.pop %v1187
      %v1189 = vmul.f32 %v1160, 1.442695
      %v1190 = vpow.pop %v1189
      %v1191 = vmul.f32 %v1161, 1.442695
      %v1192 = vpow.pop %v1191
      %v1193 = vmul.f32 %v1162, 1.442695
      %v1194 = vpow.pop %v1193
      %1195 = vadd.xlane.f32.xlu0 %v1164
      %v1196 = vpop.xlane.xlu0 %1195
      %1197 = vadd.xlane.f32.xlu0 %v1166
      %v1198 = vpop.xlane.xlu0 %1197
      %1199 = vadd.xlane.f32.xlu0 %v1168
      %v1200 = vpop.xlane.xlu0 %1199
      %1201 = vadd.xlane.f32.xlu0 %v1170
      %v1202 = vpop.xlane.xlu0 %1201
      %1203 = vadd.xlane.f32.xlu0 %v1172
      %v1204 = vpop.xlane.xlu0 %1203
      %1205 = vadd.xlane.f32.xlu0 %v1174
      %v1206 = vpop.xlane.xlu0 %1205
      %1207 = vadd.xlane.f32.xlu0 %v1176
      %v1208 = vpop.xlane.xlu0 %1207
      %1209 = vadd.xlane.f32.xlu0 %v1178
      %v1210 = vpop.xlane.xlu0 %1209
      %1211 = vadd.xlane.f32.xlu0 %v1180
      %v1212 = vpop.xlane.xlu0 %1211
      %1213 = vadd.xlane.f32.xlu0 %v1182
      %v1214 = vpop.xlane.xlu0 %1213
      %1215 = vadd.xlane.f32.xlu0 %v1184
      %v1216 = vpop.xlane.xlu0 %1215
      %1217 = vadd.xlane.f32.xlu0 %v1186
      %v1218 = vpop.xlane.xlu0 %1217
      %1219 = vadd.xlane.f32.xlu0 %v1188
      %v1220 = vpop.xlane.xlu0 %1219
      %1221 = vadd.xlane.f32.xlu0 %v1190
      %v1222 = vpop.xlane.xlu0 %1221
      %1223 = vadd.xlane.f32.xlu0 %v1192
      %v1224 = vpop.xlane.xlu0 %1223
      %1225 = vadd.xlane.f32.xlu0 %v1194
      %v1226 = vpop.xlane.xlu0 %1225
      %v1227 = vrcp.pop %v1196
      %v1228 = vrcp.pop %v1198
      %v1229 = vrcp.pop %v1200
      %v1230 = vrcp.pop %v1202
      %v1231 = vrcp.pop %v1204
      %v1232 = vrcp.pop %v1206
      %v1233 = vrcp.pop %v1208
      %v1234 = vrcp.pop %v1210
      %v1235 = vrcp.pop %v1212
      %v1236 = vrcp.pop %v1214
      %v1237 = vrcp.pop %v1216
      %v1238 = vrcp.pop %v1218
      %v1239 = vrcp.pop %v1220
      %v1240 = vrcp.pop %v1222
      %v1241 = vrcp.pop %v1224
      %v1242 = vrcp.pop %v1226
      %v1243 = vmul.f32 %v1164, %v1227
      %v1244 = vmul.f32 %v1166, %v1228
      %v1245 = vmul.f32 %v1168, %v1229
      %v1246 = vmul.f32 %v1170, %v1230
      %v1247 = vmul.f32 %v1172, %v1231
      %v1248 = vmul.f32 %v1174, %v1232
      %v1249 = vmul.f32 %v1176, %v1233
      %v1250 = vmul.f32 %v1178, %v1234
      %v1251 = vmul.f32 %v1180, %v1235
      %v1252 = vmul.f32 %v1182, %v1236
      %v1253 = vmul.f32 %v1184, %v1237
      %v1254 = vmul.f32 %v1186, %v1238
      %v1255 = vmul.f32 %v1188, %v1239
      %v1256 = vmul.f32 %v1190, %v1240
      %v1257 = vmul.f32 %v1192, %v1241
      %v1258 = vmul.f32 %v1194, %v1242
      %v1259 = vpack.c.bf16 %v1244, %v1243
      %v1260 = vpack.c.bf16 %v1246, %v1245
      %v1261 = vpack.c.bf16 %v1248, %v1247
      %v1262 = vpack.c.bf16 %v1250, %v1249
      %v1263 = vpack.c.bf16 %v1252, %v1251
      %v1264 = vpack.c.bf16 %v1254, %v1253
      %v1265 = vpack.c.bf16 %v1256, %v1255
      %v1266 = vpack.c.bf16 %v1258, %v1257
      %1267 = vrot.lane.b32.xlu0 %v445, 60
      %v1268 = vpop.permute.xlu0 %1267
      %1269 = vrot.lane.b32.xlu0 %v446, 60
      %v1270 = vpop.permute.xlu0 %1269
      %1271 = vrot.lane.b32.xlu0 %v447, 60
      %v1272 = vpop.permute.xlu0 %1271
      %1273 = vrot.lane.b32.xlu0 %v448, 60
      %v1274 = vpop.permute.xlu0 %1273
      %1275 = vrot.lane.b32.xlu0 %v449, 60
      %v1276 = vpop.permute.xlu0 %1275
      %1277 = vrot.lane.b32.xlu0 %v450, 60
      %v1278 = vpop.permute.xlu0 %1277
      %1279 = vrot.lane.b32.xlu0 %v451, 60
      %v1280 = vpop.permute.xlu0 %1279
      %1281 = vrot.lane.b32.xlu0 %v452, 60
      %v1282 = vpop.permute.xlu0 %1281
      %1291 = vmatprep.subr.bf16.mxu0 0
      %1292 = vmatpush1.bf16.msra.mxu0 %v1268
      %1293 = vmatprep.subr.bf16.mxu0 0
      %1294 = vmatpush1.bf16.msra.mxu0 %v1270
      %1295 = vmatprep.subr.bf16.mxu0 0
      %1296 = vmatpush1.bf16.msra.mxu0 %v1272
      %1297 = vmatprep.subr.bf16.mxu0 0
      %1298 = vmatpush1.bf16.msra.mxu0 %v1274
      %1299 = vmatprep.subr.bf16.mxu0 0
      %1300 = vmatpush1.bf16.msra.mxu0 %v1276
      %1301 = vmatprep.subr.bf16.mxu0 0
      %1302 = vmatpush1.bf16.msra.mxu0 %v1278
      %1303 = vmatprep.subr.bf16.mxu0 0
      %1304 = vmatpush1.bf16.msra.mxu0 %v1280
      %1305 = vmatprep.subr.bf16.mxu0 0
      %1306 = vmatpush1.bf16.msra.mxu0 %v1282
      %1307 = vmatprep.subr.bf16.mxu0 0
      %1308 = vmatpush1.bf16.msra.mxu0 0
      %1309 = vmatprep.subr.bf16.mxu0 0
      %1310 = vmatpush1.bf16.msra.mxu0 0
      %1311 = vmatprep.subr.bf16.mxu0 0
      %1312 = vmatpush1.bf16.msra.mxu0 0
      %1313 = vmatprep.subr.bf16.mxu0 0
      %1314 = vmatpush1.bf16.msra.mxu0 0
      %1315 = vmatprep.subr.bf16.mxu0 0
      %1316 = vmatpush1.bf16.msra.mxu0 0
      %1317 = vmatprep.subr.bf16.mxu0 0
      %1318 = vmatpush1.bf16.msra.mxu0 0
      %1319 = vmatprep.subr.bf16.mxu0 0
      %1320 = vmatpush1.bf16.msra.mxu0 0
      %1321 = vmatprep.subr.bf16.mxu0 0
      %1322 = vmatpush1.bf16.msra.mxu0 0
      %1323 = vmatprep.mubr.bf16.mxu0 0
      %1324 = vmatmul.mubr.bf16.gmra.mrb[0].mxu0 %v1259
      %v1325 = vpop.f32.mrb[0].mxu0
      %v1326 = vadd.f32 0.0, %v1325
      %v1327 = vpop.f32.mrb[0].mxu0
      %v1328 = vpop.f32.mrb[0].mxu0
      %v1329 = vadd.f32 0.0, %v1328
      %v1330 = vpop.f32.mrb[0].mxu0
      %1331 = vmatprep.mubr.bf16.mxu0 0
      %1332 = vmatmul.mubr.bf16.gmra.mrb[0].mxu0 %v1260
      %v1333 = vpop.f32.mrb[0].mxu0
      %v1334 = vadd.f32 0.0, %v1333
      %v1335 = vpop.f32.mrb[0].mxu0
      %v1336 = vpop.f32.mrb[0].mxu0
      %v1337 = vadd.f32 0.0, %v1336
      %v1338 = vpop.f32.mrb[0].mxu0
      %1339 = vmatprep.mubr.bf16.mxu0 0
      %1340 = vmatmul.mubr.bf16.gmra.mrb[0].mxu0 %v1261
      %v1341 = vpop.f32.mrb[0].mxu0
      %v1342 = vadd.f32 0.0, %v1341
      %v1343 = vpop.f32.mrb[0].mxu0
      %v1344 = vpop.f32.mrb[0].mxu0
      %v1345 = vadd.f32 0.0, %v1344
      %v1346 = vpop.f32.mrb[0].mxu0
      %1347 = vmatprep.mubr.bf16.mxu0 0
      %1348 = vmatmul.mubr.bf16.gmra.mrb[0].mxu0 %v1262
      %v1349 = vpop.f32.mrb[0].mxu0
      %v1350 = vadd.f32 0.0, %v1349
      %v1351 = vpop.f32.mrb[0].mxu0
      %v1352 = vpop.f32.mrb[0].mxu0
      %v1353 = vadd.f32 0.0, %v1352
      %v1354 = vpop.f32.mrb[0].mxu0
      %1355 = vmatprep.mubr.bf16.mxu0 0
      %1356 = vmatmul.mubr.bf16.gmra.mrb[0].mxu0 %v1263
      %v1357 = vpop.f32.mrb[0].mxu0
      %v1358 = vadd.f32 0.0, %v1357
      %v1359 = vpop.f32.mrb[0].mxu0
      %v1360 = vpop.f32.mrb[0].mxu0
      %v1361 = vadd.f32 0.0, %v1360
      %v1362 = vpop.f32.mrb[0].mxu0
      %1363 = vmatprep.mubr.bf16.mxu0 0
      %1364 = vmatmul.mubr.bf16.gmra.mrb[0].mxu0 %v1264
      %v1365 = vpop.f32.mrb[0].mxu0
      %v1366 = vadd.f32 0.0, %v1365
      %v1367 = vpop.f32.mrb[0].mxu0
      %v1368 = vpop.f32.mrb[0].mxu0
      %v1369 = vadd.f32 0.0, %v1368
      %v1370 = vpop.f32.mrb[0].mxu0
      %1371 = vmatprep.mubr.bf16.mxu0 0
      %1372 = vmatmul.mubr.bf16.gmra.mrb[0].mxu0 %v1265
      %v1373 = vpop.f32.mrb[0].mxu0
      %v1374 = vadd.f32 0.0, %v1373
      %v1375 = vpop.f32.mrb[0].mxu0
      %v1376 = vpop.f32.mrb[0].mxu0
      %v1377 = vadd.f32 0.0, %v1376
      %v1378 = vpop.f32.mrb[0].mxu0
      %1379 = vmatprep.mubr.bf16.mxu0 0
      %1380 = vmatmul.mubr.bf16.gmra.mrb[0].mxu0 %v1266
      %v1381 = vpop.f32.mrb[0].mxu0
      %v1382 = vadd.f32 0.0, %v1381
      %v1383 = vpop.f32.mrb[0].mxu0
      %v1384 = vpop.f32.mrb[0].mxu0
      %v1385 = vadd.f32 0.0, %v1384
      %v1386 = vpop.f32.mrb[0].mxu0
      %1387 = vdwg.mxu0
      %v1388 = vpack.c.bf16 %v1329, %v1326
      %v1389 = vpack.c.bf16 %v1337, %v1334
      %v1390 = vpack.c.bf16 %v1345, %v1342
      %v1391 = vpack.c.bf16 %v1353, %v1350
      %v1392 = vpack.c.bf16 %v1361, %v1358
      %v1393 = vpack.c.bf16 %v1369, %v1366
      %v1394 = vpack.c.bf16 %v1377, %v1374
      %v1395 = vpack.c.bf16 %v1385, %v1382
      %1396 = vrot.lane.b32.xlu0 %v445, 120
      %v1397 = vpop.permute.xlu0 %1396
      %1398 = vrot.lane.b32.xlu0 %v446, 120
      %v1399 = vpop.permute.xlu0 %1398
      %1400 = vrot.lane.b32.xlu0 %v447, 120
      %v1401 = vpop.permute.xlu0 %1400
      %1402 = vrot.lane.b32.xlu0 %v448, 120
      %v1403 = vpop.permute.xlu0 %1402
      %1404 = vrot.lane.b32.xlu0 %v449, 120
      %v1405 = vpop.permute.xlu0 %1404
      %1406 = vrot.lane.b32.xlu0 %v450, 120
      %v1407 = vpop.permute.xlu0 %1406
      %1408 = vrot.lane.b32.xlu0 %v451, 120
      %v1409 = vpop.permute.xlu0 %1408
      %1410 = vrot.lane.b32.xlu0 %v452, 120
      %v1411 = vpop.permute.xlu0 %1410
      %1412 = vrot.lane.b32.xlu0 %v445, 88
      %v1413 = vpop.permute.xlu0 %1412
      %1414 = vrot.lane.b32.xlu0 %v446, 88
      %v1415 = vpop.permute.xlu0 %1414
      %1416 = vrot.lane.b32.xlu0 %v447, 88
      %v1417 = vpop.permute.xlu0 %1416
      %1418 = vrot.lane.b32.xlu0 %v448, 88
      %v1419 = vpop.permute.xlu0 %1418
      %1420 = vrot.lane.b32.xlu0 %v449, 88
      %v1421 = vpop.permute.xlu0 %1420
      %1422 = vrot.lane.b32.xlu0 %v450, 88
      %v1423 = vpop.permute.xlu0 %1422
      %1424 = vrot.lane.b32.xlu0 %v451, 88
      %v1425 = vpop.permute.xlu0 %1424
      %1426 = vrot.lane.b32.xlu0 %v452, 88
      %v1427 = vpop.permute.xlu0 %1426
      %v1429 = vsel %vm477, %v1397, 0
      %v1432 = vsel %vm477, %v1399, 0
      %v1435 = vsel %vm477, %v1401, 0
      %v1438 = vsel %vm477, %v1403, 0
      %v1441 = vsel %vm477, %v1405, 0
      %v1444 = vsel %vm477, %v1407, 0
      %v1447 = vsel %vm477, %v1409, 0
      %v1450 = vsel %vm477, %v1411, 0
      %v1453 = vsel %vm477, %v1413, 0
      %v1456 = vsel %vm477, %v1415, 0
      %v1459 = vsel %vm477, %v1417, 0
      %v1462 = vsel %vm477, %v1419, 0
      %v1465 = vsel %vm477, %v1421, 0
      %v1468 = vsel %vm477, %v1423, 0
      %v1471 = vsel %vm477, %v1425, 0
      %v1474 = vsel %vm477, %v1427, 0
      %1476 = vmatprep.subr.bf16.mxu0 0
      %1477 = vmatpush1.bf16.xpose.msra.mxu0 %v1453
      %1478 = vmatprep.subr.bf16.mxu0 0
      %1479 = vmatpush1.bf16.xpose.msra.mxu0 %v1456
      %1480 = vmatprep.subr.bf16.mxu0 0
      %1481 = vmatpush1.bf16.xpose.msra.mxu0 %v1459
      %1482 = vmatprep.subr.bf16.mxu0 0
      %1483 = vmatpush1.bf16.xpose.msra.mxu0 %v1462
      %1484 = vmatprep.subr.bf16.mxu0 0
      %1485 = vmatpush1.bf16.xpose.msra.mxu0 %v1465
      %1486 = vmatprep.subr.bf16.mxu0 0
      %1487 = vmatpush1.bf16.xpose.msra.mxu0 %v1468
      %1488 = vmatprep.subr.bf16.mxu0 0
      %1489 = vmatpush1.bf16.xpose.msra.mxu0 %v1471
      %1490 = vmatprep.subr.bf16.mxu0 0
      %1491 = vmatpush1.bf16.xpose.msra.mxu0 %v1474
      %1492 = vmatprep.subr.bf16.mxu0 0
      %1493 = vmatpush1.bf16.xpose.msra.mxu0 0
      %1494 = vmatprep.subr.bf16.mxu0 0
      %1495 = vmatpush1.bf16.xpose.msra.mxu0 0
      %1496 = vmatprep.subr.bf16.mxu0 0
      %1497 = vmatpush1.bf16.xpose.msra.mxu0 0
      %1498 = vmatprep.subr.bf16.mxu0 0
      %1499 = vmatpush1.bf16.xpose.msra.mxu0 0
      %1500 = vmatprep.subr.bf16.mxu0 0
      %1501 = vmatpush1.bf16.xpose.msra.mxu0 0
      %1502 = vmatprep.subr.bf16.mxu0 0
      %1503 = vmatpush1.bf16.xpose.msra.mxu0 0
      %1504 = vmatprep.subr.bf16.mxu0 0
      %1505 = vmatpush1.bf16.xpose.msra.mxu0 0
      %1506 = vmatprep.subr.bf16.mxu0 0
      %1507 = vmatpush1.bf16.xpose.msra.mxu0 0
      %1508 = vmatprep.mubr.bf16.mxu0 0
      %1509 = vmatmul.mubr.bf16.gmra.mrb[0].mxu0 %v1429
      %v1510 = vpop.f32.mrb[0].mxu0
      %v1511 = vadd.f32 0.0, %v1510
      %v1512 = vpop.f32.mrb[0].mxu0
      %v1513 = vpop.f32.mrb[0].mxu0
      %v1514 = vadd.f32 0.0, %v1513
      %v1515 = vpop.f32.mrb[0].mxu0
      %1516 = vmatprep.mubr.bf16.mxu0 0
      %1517 = vmatmul.mubr.bf16.gmra.mrb[0].mxu0 %v1432
      %v1518 = vpop.f32.mrb[0].mxu0
      %v1519 = vadd.f32 0.0, %v1518
      %v1520 = vpop.f32.mrb[0].mxu0
      %v1521 = vpop.f32.mrb[0].mxu0
      %v1522 = vadd.f32 0.0, %v1521
      %v1523 = vpop.f32.mrb[0].mxu0
      %1524 = vmatprep.mubr.bf16.mxu0 0
      %1525 = vmatmul.mubr.bf16.gmra.mrb[0].mxu0 %v1435
      %v1526 = vpop.f32.mrb[0].mxu0
      %v1527 = vadd.f32 0.0, %v1526
      %v1528 = vpop.f32.mrb[0].mxu0
      %v1529 = vpop.f32.mrb[0].mxu0
      %v1530 = vadd.f32 0.0, %v1529
      %v1531 = vpop.f32.mrb[0].mxu0
      %1532 = vmatprep.mubr.bf16.mxu0 0
      %1533 = vmatmul.mubr.bf16.gmra.mrb[0].mxu0 %v1438
      %v1534 = vpop.f32.mrb[0].mxu0
      %v1535 = vadd.f32 0.0, %v1534
      %v1536 = vpop.f32.mrb[0].mxu0
      %v1537 = vpop.f32.mrb[0].mxu0
      %v1538 = vadd.f32 0.0, %v1537
      %v1539 = vpop.f32.mrb[0].mxu0
      %1540 = vmatprep.mubr.bf16.mxu0 0
      %1541 = vmatmul.mubr.bf16.gmra.mrb[0].mxu0 %v1441
      %v1542 = vpop.f32.mrb[0].mxu0
      %v1543 = vadd.f32 0.0, %v1542
      %v1544 = vpop.f32.mrb[0].mxu0
      %v1545 = vpop.f32.mrb[0].mxu0
      %v1546 = vadd.f32 0.0, %v1545
      %v1547 = vpop.f32.mrb[0].mxu0
      %1548 = vmatprep.mubr.bf16.mxu0 0
      %1549 = vmatmul.mubr.bf16.gmra.mrb[0].mxu0 %v1444
      %v1550 = vpop.f32.mrb[0].mxu0
      %v1551 = vadd.f32 0.0, %v1550
      %v1552 = vpop.f32.mrb[0].mxu0
      %v1553 = vpop.f32.mrb[0].mxu0
      %v1554 = vadd.f32 0.0, %v1553
      %v1555 = vpop.f32.mrb[0].mxu0
      %1556 = vmatprep.mubr.bf16.mxu0 0
      %1557 = vmatmul.mubr.bf16.gmra.mrb[0].mxu0 %v1447
      %v1558 = vpop.f32.mrb[0].mxu0
      %v1559 = vadd.f32 0.0, %v1558
      %v1560 = vpop.f32.mrb[0].mxu0
      %v1561 = vpop.f32.mrb[0].mxu0
      %v1562 = vadd.f32 0.0, %v1561
      %v1563 = vpop.f32.mrb[0].mxu0
      %1564 = vmatprep.mubr.bf16.mxu0 0
      %1565 = vmatmul.mubr.bf16.gmra.mrb[0].mxu0 %v1450
      %v1566 = vpop.f32.mrb[0].mxu0
      %v1567 = vadd.f32 0.0, %v1566
      %v1568 = vpop.f32.mrb[0].mxu0
      %v1569 = vpop.f32.mrb[0].mxu0
      %v1570 = vadd.f32 0.0, %v1569
      %v1571 = vpop.f32.mrb[0].mxu0
      %1572 = vdwg.mxu0
      %v1573 = vsel %vm624, %v1511, -1e+30
      %v1574 = vsel %vm624, %v1514, -1e+30
      %v1575 = vsel %vm624, %v1519, -1e+30
      %v1576 = vsel %vm624, %v1522, -1e+30
      %v1577 = vsel %vm624, %v1527, -1e+30
      %v1578 = vsel %vm624, %v1530, -1e+30
      %v1579 = vsel %vm624, %v1535, -1e+30
      %v1580 = vsel %vm624, %v1538, -1e+30
      %v1581 = vsel %vm624, %v1543, -1e+30
      %v1582 = vsel %vm624, %v1546, -1e+30
      %v1583 = vsel %vm624, %v1551, -1e+30
      %v1584 = vsel %vm624, %v1554, -1e+30
      %v1585 = vsel %vm624, %v1559, -1e+30
      %v1586 = vsel %vm624, %v1562, -1e+30
      %v1587 = vsel %vm624, %v1567, -1e+30
      %v1588 = vsel %vm624, %v1570, -1e+30
      %1589 = vmax.xlane.f32.xlu0 %v1573
      %v1590 = vpop.xlane.xlu0 %1589
      %1591 = vmax.xlane.f32.xlu0 %v1574
      %v1592 = vpop.xlane.xlu0 %1591
      %1593 = vmax.xlane.f32.xlu0 %v1575
      %v1594 = vpop.xlane.xlu0 %1593
      %1595 = vmax.xlane.f32.xlu0 %v1576
      %v1596 = vpop.xlane.xlu0 %1595
      %1597 = vmax.xlane.f32.xlu0 %v1577
      %v1598 = vpop.xlane.xlu0 %1597
      %1599 = vmax.xlane.f32.xlu0 %v1578
      %v1600 = vpop.xlane.xlu0 %1599
      %1601 = vmax.xlane.f32.xlu0 %v1579
      %v1602 = vpop.xlane.xlu0 %1601
      %1603 = vmax.xlane.f32.xlu0 %v1580
      %v1604 = vpop.xlane.xlu0 %1603
      %1605 = vmax.xlane.f32.xlu0 %v1581
      %v1606 = vpop.xlane.xlu0 %1605
      %1607 = vmax.xlane.f32.xlu0 %v1582
      %v1608 = vpop.xlane.xlu0 %1607
      %1609 = vmax.xlane.f32.xlu0 %v1583
      %v1610 = vpop.xlane.xlu0 %1609
      %1611 = vmax.xlane.f32.xlu0 %v1584
      %v1612 = vpop.xlane.xlu0 %1611
      %1613 = vmax.xlane.f32.xlu0 %v1585
      %v1614 = vpop.xlane.xlu0 %1613
      %1615 = vmax.xlane.f32.xlu0 %v1586
      %v1616 = vpop.xlane.xlu0 %1615
      %1617 = vmax.xlane.f32.xlu0 %v1587
      %v1618 = vpop.xlane.xlu0 %1617
      %1619 = vmax.xlane.f32.xlu0 %v1588
      %v1620 = vpop.xlane.xlu0 %1619
      %v1621 = vsub.f32 %v1573, %v1590
      %v1622 = vsub.f32 %v1574, %v1592
      %v1623 = vsub.f32 %v1575, %v1594
      %v1624 = vsub.f32 %v1576, %v1596
      %v1625 = vsub.f32 %v1577, %v1598
      %v1626 = vsub.f32 %v1578, %v1600
      %v1627 = vsub.f32 %v1579, %v1602
      %v1628 = vsub.f32 %v1580, %v1604
      %v1629 = vsub.f32 %v1581, %v1606
      %v1630 = vsub.f32 %v1582, %v1608
      %v1631 = vsub.f32 %v1583, %v1610
      %v1632 = vsub.f32 %v1584, %v1612
      %v1633 = vsub.f32 %v1585, %v1614
      %v1634 = vsub.f32 %v1586, %v1616
      %v1635 = vsub.f32 %v1587, %v1618
      %v1636 = vsub.f32 %v1588, %v1620
      %v1637 = vmul.f32 %v1621, 1.442695
      %v1638 = vpow.pop %v1637
      %v1639 = vmul.f32 %v1622, 1.442695
      %v1640 = vpow.pop %v1639
      %v1641 = vmul.f32 %v1623, 1.442695
      %v1642 = vpow.pop %v1641
      %v1643 = vmul.f32 %v1624, 1.442695
      %v1644 = vpow.pop %v1643
      %v1645 = vmul.f32 %v1625, 1.442695
      %v1646 = vpow.pop %v1645
      %v1647 = vmul.f32 %v1626, 1.442695
      %v1648 = vpow.pop %v1647
      %v1649 = vmul.f32 %v1627, 1.442695
      %v1650 = vpow.pop %v1649
      %v1651 = vmul.f32 %v1628, 1.442695
      %v1652 = vpow.pop %v1651
      %v1653 = vmul.f32 %v1629, 1.442695
      %v1654 = vpow.pop %v1653
      %v1655 = vmul.f32 %v1630, 1.442695
      %v1656 = vpow.pop %v1655
      %v1657 = vmul.f32 %v1631, 1.442695
      %v1658 = vpow.pop %v1657
      %v1659 = vmul.f32 %v1632, 1.442695
      %v1660 = vpow.pop %v1659
      %v1661 = vmul.f32 %v1633, 1.442695
      %v1662 = vpow.pop %v1661
      %v1663 = vmul.f32 %v1634, 1.442695
      %v1664 = vpow.pop %v1663
      %v1665 = vmul.f32 %v1635, 1.442695
      %v1666 = vpow.pop %v1665
      %v1667 = vmul.f32 %v1636, 1.442695
      %v1668 = vpow.pop %v1667
      %1669 = vadd.xlane.f32.xlu0 %v1638
      %v1670 = vpop.xlane.xlu0 %1669
      %1671 = vadd.xlane.f32.xlu0 %v1640
      %v1672 = vpop.xlane.xlu0 %1671
      %1673 = vadd.xlane.f32.xlu0 %v1642
      %v1674 = vpop.xlane.xlu0 %1673
      %1675 = vadd.xlane.f32.xlu0 %v1644
      %v1676 = vpop.xlane.xlu0 %1675
      %1677 = vadd.xlane.f32.xlu0 %v1646
      %v1678 = vpop.xlane.xlu0 %1677
      %1679 = vadd.xlane.f32.xlu0 %v1648
      %v1680 = vpop.xlane.xlu0 %1679
      %1681 = vadd.xlane.f32.xlu0 %v1650
      %v1682 = vpop.xlane.xlu0 %1681
      %1683 = vadd.xlane.f32.xlu0 %v1652
      %v1684 = vpop.xlane.xlu0 %1683
      %1685 = vadd.xlane.f32.xlu0 %v1654
      %v1686 = vpop.xlane.xlu0 %1685
      %1687 = vadd.xlane.f32.xlu0 %v1656
      %v1688 = vpop.xlane.xlu0 %1687
      %1689 = vadd.xlane.f32.xlu0 %v1658
      %v1690 = vpop.xlane.xlu0 %1689
      %1691 = vadd.xlane.f32.xlu0 %v1660
      %v1692 = vpop.xlane.xlu0 %1691
      %1693 = vadd.xlane.f32.xlu0 %v1662
      %v1694 = vpop.xlane.xlu0 %1693
      %1695 = vadd.xlane.f32.xlu0 %v1664
      %v1696 = vpop.xlane.xlu0 %1695
      %1697 = vadd.xlane.f32.xlu0 %v1666
      %v1698 = vpop.xlane.xlu0 %1697
      %1699 = vadd.xlane.f32.xlu0 %v1668
      %v1700 = vpop.xlane.xlu0 %1699
      %v1701 = vrcp.pop %v1670
      %v1702 = vrcp.pop %v1672
      %v1703 = vrcp.pop %v1674
      %v1704 = vrcp.pop %v1676
      %v1705 = vrcp.pop %v1678
      %v1706 = vrcp.pop %v1680
      %v1707 = vrcp.pop %v1682
      %v1708 = vrcp.pop %v1684
      %v1709 = vrcp.pop %v1686
      %v1710 = vrcp.pop %v1688
      %v1711 = vrcp.pop %v1690
      %v1712 = vrcp.pop %v1692
      %v1713 = vrcp.pop %v1694
      %v1714 = vrcp.pop %v1696
      %v1715 = vrcp.pop %v1698
      %v1716 = vrcp.pop %v1700
      %v1717 = vmul.f32 %v1638, %v1701
      %v1718 = vmul.f32 %v1640, %v1702
      %v1719 = vmul.f32 %v1642, %v1703
      %v1720 = vmul.f32 %v1644, %v1704
      %v1721 = vmul.f32 %v1646, %v1705
      %v1722 = vmul.f32 %v1648, %v1706
      %v1723 = vmul.f32 %v1650, %v1707
      %v1724 = vmul.f32 %v1652, %v1708
      %v1725 = vmul.f32 %v1654, %v1709
      %v1726 = vmul.f32 %v1656, %v1710
      %v1727 = vmul.f32 %v1658, %v1711
      %v1728 = vmul.f32 %v1660, %v1712
      %v1729 = vmul.f32 %v1662, %v1713
      %v1730 = vmul.f32 %v1664, %v1714
      %v1731 = vmul.f32 %v1666, %v1715
      %v1732 = vmul.f32 %v1668, %v1716
      %v1733 = vpack.c.bf16 %v1718, %v1717
      %v1734 = vpack.c.bf16 %v1720, %v1719
      %v1735 = vpack.c.bf16 %v1722, %v1721
      %v1736 = vpack.c.bf16 %v1724, %v1723
      %v1737 = vpack.c.bf16 %v1726, %v1725
      %v1738 = vpack.c.bf16 %v1728, %v1727
      %v1739 = vpack.c.bf16 %v1730, %v1729
      %v1740 = vpack.c.bf16 %v1732, %v1731
      %1741 = vrot.lane.b32.xlu0 %v445, 56
      %v1742 = vpop.permute.xlu0 %1741
      %1743 = vrot.lane.b32.xlu0 %v446, 56
      %v1744 = vpop.permute.xlu0 %1743
      %1745 = vrot.lane.b32.xlu0 %v447, 56
      %v1746 = vpop.permute.xlu0 %1745
      %1747 = vrot.lane.b32.xlu0 %v448, 56
      %v1748 = vpop.permute.xlu0 %1747
      %1749 = vrot.lane.b32.xlu0 %v449, 56
      %v1750 = vpop.permute.xlu0 %1749
      %1751 = vrot.lane.b32.xlu0 %v450, 56
      %v1752 = vpop.permute.xlu0 %1751
      %1753 = vrot.lane.b32.xlu0 %v451, 56
      %v1754 = vpop.permute.xlu0 %1753
      %1755 = vrot.lane.b32.xlu0 %v452, 56
      %v1756 = vpop.permute.xlu0 %1755
      %1765 = vmatprep.subr.bf16.mxu0 0
      %1766 = vmatpush1.bf16.msra.mxu0 %v1742
      %1767 = vmatprep.subr.bf16.mxu0 0
      %1768 = vmatpush1.bf16.msra.mxu0 %v1744
      %1769 = vmatprep.subr.bf16.mxu0 0
      %1770 = vmatpush1.bf16.msra.mxu0 %v1746
      %1771 = vmatprep.subr.bf16.mxu0 0
      %1772 = vmatpush1.bf16.msra.mxu0 %v1748
      %1773 = vmatprep.subr.bf16.mxu0 0
      %1774 = vmatpush1.bf16.msra.mxu0 %v1750
      %1775 = vmatprep.subr.bf16.mxu0 0
      %1776 = vmatpush1.bf16.msra.mxu0 %v1752
      %1777 = vmatprep.subr.bf16.mxu0 0
      %1778 = vmatpush1.bf16.msra.mxu0 %v1754
      %1779 = vmatprep.subr.bf16.mxu0 0
      %1780 = vmatpush1.bf16.msra.mxu0 %v1756
      %1781 = vmatprep.subr.bf16.mxu0 0
      %1782 = vmatpush1.bf16.msra.mxu0 0
      %1783 = vmatprep.subr.bf16.mxu0 0
      %1784 = vmatpush1.bf16.msra.mxu0 0
      %1785 = vmatprep.subr.bf16.mxu0 0
      %1786 = vmatpush1.bf16.msra.mxu0 0
      %1787 = vmatprep.subr.bf16.mxu0 0
      %1788 = vmatpush1.bf16.msra.mxu0 0
      %1789 = vmatprep.subr.bf16.mxu0 0
      %1790 = vmatpush1.bf16.msra.mxu0 0
      %1791 = vmatprep.subr.bf16.mxu0 0
      %1792 = vmatpush1.bf16.msra.mxu0 0
      %1793 = vmatprep.subr.bf16.mxu0 0
      %1794 = vmatpush1.bf16.msra.mxu0 0
      %1795 = vmatprep.subr.bf16.mxu0 0
      %1796 = vmatpush1.bf16.msra.mxu0 0
      %1797 = vmatprep.mubr.bf16.mxu0 0
      %1798 = vmatmul.mubr.bf16.gmra.mrb[0].mxu0 %v1733
      %v1799 = vpop.f32.mrb[0].mxu0
      %v1800 = vadd.f32 0.0, %v1799
      %v1801 = vpop.f32.mrb[0].mxu0
      %v1802 = vpop.f32.mrb[0].mxu0
      %v1803 = vadd.f32 0.0, %v1802
      %v1804 = vpop.f32.mrb[0].mxu0
      %1805 = vmatprep.mubr.bf16.mxu0 0
      %1806 = vmatmul.mubr.bf16.gmra.mrb[0].mxu0 %v1734
      %v1807 = vpop.f32.mrb[0].mxu0
      %v1808 = vadd.f32 0.0, %v1807
      %v1809 = vpop.f32.mrb[0].mxu0
      %v1810 = vpop.f32.mrb[0].mxu0
      %v1811 = vadd.f32 0.0, %v1810
      %v1812 = vpop.f32.mrb[0].mxu0
      %1813 = vmatprep.mubr.bf16.mxu0 0
      %1814 = vmatmul.mubr.bf16.gmra.mrb[0].mxu0 %v1735
      %v1815 = vpop.f32.mrb[0].mxu0
      %v1816 = vadd.f32 0.0, %v1815
      %v1817 = vpop.f32.mrb[0].mxu0
      %v1818 = vpop.f32.mrb[0].mxu0
      %v1819 = vadd.f32 0.0, %v1818
      %v1820 = vpop.f32.mrb[0].mxu0
      %1821 = vmatprep.mubr.bf16.mxu0 0
      %1822 = vmatmul.mubr.bf16.gmra.mrb[0].mxu0 %v1736
      %v1823 = vpop.f32.mrb[0].mxu0
      %v1824 = vadd.f32 0.0, %v1823
      %v1825 = vpop.f32.mrb[0].mxu0
      %v1826 = vpop.f32.mrb[0].mxu0
      %v1827 = vadd.f32 0.0, %v1826
      %v1828 = vpop.f32.mrb[0].mxu0
      %1829 = vmatprep.mubr.bf16.mxu0 0
      %1830 = vmatmul.mubr.bf16.gmra.mrb[0].mxu0 %v1737
      %v1831 = vpop.f32.mrb[0].mxu0
      %v1832 = vadd.f32 0.0, %v1831
      %v1833 = vpop.f32.mrb[0].mxu0
      %v1834 = vpop.f32.mrb[0].mxu0
      %v1835 = vadd.f32 0.0, %v1834
      %v1836 = vpop.f32.mrb[0].mxu0
      %1837 = vmatprep.mubr.bf16.mxu0 0
      %1838 = vmatmul.mubr.bf16.gmra.mrb[0].mxu0 %v1738
      %v1839 = vpop.f32.mrb[0].mxu0
      %v1840 = vadd.f32 0.0, %v1839
      %v1841 = vpop.f32.mrb[0].mxu0
      %v1842 = vpop.f32.mrb[0].mxu0
      %v1843 = vadd.f32 0.0, %v1842
      %v1844 = vpop.f32.mrb[0].mxu0
      %1845 = vmatprep.mubr.bf16.mxu0 0
      %1846 = vmatmul.mubr.bf16.gmra.mrb[0].mxu0 %v1739
      %v1847 = vpop.f32.mrb[0].mxu0
      %v1848 = vadd.f32 0.0, %v1847
      %v1849 = vpop.f32.mrb[0].mxu0
      %v1850 = vpop.f32.mrb[0].mxu0
      %v1851 = vadd.f32 0.0, %v1850
      %v1852 = vpop.f32.mrb[0].mxu0
      %1853 = vmatprep.mubr.bf16.mxu0 0
      %1854 = vmatmul.mubr.bf16.gmra.mrb[0].mxu0 %v1740
      %v1855 = vpop.f32.mrb[0].mxu0
      %v1856 = vadd.f32 0.0, %v1855
      %v1857 = vpop.f32.mrb[0].mxu0
      %v1858 = vpop.f32.mrb[0].mxu0
      %v1859 = vadd.f32 0.0, %v1858
      %v1860 = vpop.f32.mrb[0].mxu0
      %1861 = vdwg.mxu0
      %v1862 = vpack.c.bf16 %v1803, %v1800
      %v1863 = vpack.c.bf16 %v1811, %v1808
      %v1864 = vpack.c.bf16 %v1819, %v1816
      %v1865 = vpack.c.bf16 %v1827, %v1824
      %v1866 = vpack.c.bf16 %v1835, %v1832
      %v1867 = vpack.c.bf16 %v1843, %v1840
      %v1868 = vpack.c.bf16 %v1851, %v1848
      %v1869 = vpack.c.bf16 %v1859, %v1856
      %1870 = vrot.lane.b32.xlu0 %v445, 116
      %v1871 = vpop.permute.xlu0 %1870
      %1872 = vrot.lane.b32.xlu0 %v446, 116
      %v1873 = vpop.permute.xlu0 %1872
      %1874 = vrot.lane.b32.xlu0 %v447, 116
      %v1875 = vpop.permute.xlu0 %1874
      %1876 = vrot.lane.b32.xlu0 %v448, 116
      %v1877 = vpop.permute.xlu0 %1876
      %1878 = vrot.lane.b32.xlu0 %v449, 116
      %v1879 = vpop.permute.xlu0 %1878
      %1880 = vrot.lane.b32.xlu0 %v450, 116
      %v1881 = vpop.permute.xlu0 %1880
      %1882 = vrot.lane.b32.xlu0 %v451, 116
      %v1883 = vpop.permute.xlu0 %1882
      %1884 = vrot.lane.b32.xlu0 %v452, 116
      %v1885 = vpop.permute.xlu0 %1884
      %1886 = vrot.lane.b32.xlu0 %v445, 84
      %v1887 = vpop.permute.xlu0 %1886
      %1888 = vrot.lane.b32.xlu0 %v446, 84
      %v1889 = vpop.permute.xlu0 %1888
      %1890 = vrot.lane.b32.xlu0 %v447, 84
      %v1891 = vpop.permute.xlu0 %1890
      %1892 = vrot.lane.b32.xlu0 %v448, 84
      %v1893 = vpop.permute.xlu0 %1892
      %1894 = vrot.lane.b32.xlu0 %v449, 84
      %v1895 = vpop.permute.xlu0 %1894
      %1896 = vrot.lane.b32.xlu0 %v450, 84
      %v1897 = vpop.permute.xlu0 %1896
      %1898 = vrot.lane.b32.xlu0 %v451, 84
      %v1899 = vpop.permute.xlu0 %1898
      %1900 = vrot.lane.b32.xlu0 %v452, 84
      %v1901 = vpop.permute.xlu0 %1900
      %v1903 = vsel %vm477, %v1871, 0
      %v1906 = vsel %vm477, %v1873, 0
      %v1909 = vsel %vm477, %v1875, 0
      %v1912 = vsel %vm477, %v1877, 0
      %v1915 = vsel %vm477, %v1879, 0
      %v1918 = vsel %vm477, %v1881, 0
      %v1921 = vsel %vm477, %v1883, 0
      %v1924 = vsel %vm477, %v1885, 0
      %v1927 = vsel %vm477, %v1887, 0
      %v1930 = vsel %vm477, %v1889, 0
      %v1933 = vsel %vm477, %v1891, 0
      %v1936 = vsel %vm477, %v1893, 0
      %v1939 = vsel %vm477, %v1895, 0
      %v1942 = vsel %vm477, %v1897, 0
      %v1945 = vsel %vm477, %v1899, 0
      %v1948 = vsel %vm477, %v1901, 0
      %1950 = vmatprep.subr.bf16.mxu0 0
      %1951 = vmatpush1.bf16.xpose.msra.mxu0 %v1927
      %1952 = vmatprep.subr.bf16.mxu0 0
      %1953 = vmatpush1.bf16.xpose.msra.mxu0 %v1930
      %1954 = vmatprep.subr.bf16.mxu0 0
      %1955 = vmatpush1.bf16.xpose.msra.mxu0 %v1933
      %1956 = vmatprep.subr.bf16.mxu0 0
      %1957 = vmatpush1.bf16.xpose.msra.mxu0 %v1936
      %1958 = vmatprep.subr.bf16.mxu0 0
      %1959 = vmatpush1.bf16.xpose.msra.mxu0 %v1939
      %1960 = vmatprep.subr.bf16.mxu0 0
      %1961 = vmatpush1.bf16.xpose.msra.mxu0 %v1942
      %1962 = vmatprep.subr.bf16.mxu0 0
      %1963 = vmatpush1.bf16.xpose.msra.mxu0 %v1945
      %1964 = vmatprep.subr.bf16.mxu0 0
      %1965 = vmatpush1.bf16.xpose.msra.mxu0 %v1948
      %1966 = vmatprep.subr.bf16.mxu0 0
      %1967 = vmatpush1.bf16.xpose.msra.mxu0 0
      %1968 = vmatprep.subr.bf16.mxu0 0
      %1969 = vmatpush1.bf16.xpose.msra.mxu0 0
      %1970 = vmatprep.subr.bf16.mxu0 0
      %1971 = vmatpush1.bf16.xpose.msra.mxu0 0
      %1972 = vmatprep.subr.bf16.mxu0 0
      %1973 = vmatpush1.bf16.xpose.msra.mxu0 0
      %1974 = vmatprep.subr.bf16.mxu0 0
      %1975 = vmatpush1.bf16.xpose.msra.mxu0 0
      %1976 = vmatprep.subr.bf16.mxu0 0
      %1977 = vmatpush1.bf16.xpose.msra.mxu0 0
      %1978 = vmatprep.subr.bf16.mxu0 0
      %1979 = vmatpush1.bf16.xpose.msra.mxu0 0
      %1980 = vmatprep.subr.bf16.mxu0 0
      %1981 = vmatpush1.bf16.xpose.msra.mxu0 0
      %1982 = vmatprep.mubr.bf16.mxu0 0
      %1983 = vmatmul.mubr.bf16.gmra.mrb[0].mxu0 %v1903
      %v1984 = vpop.f32.mrb[0].mxu0
      %v1985 = vadd.f32 0.0, %v1984
      %v1986 = vpop.f32.mrb[0].mxu0
      %v1987 = vpop.f32.mrb[0].mxu0
      %v1988 = vadd.f32 0.0, %v1987
      %v1989 = vpop.f32.mrb[0].mxu0
      %1990 = vmatprep.mubr.bf16.mxu0 0
      %1991 = vmatmul.mubr.bf16.gmra.mrb[0].mxu0 %v1906
      %v1992 = vpop.f32.mrb[0].mxu0
      %v1993 = vadd.f32 0.0, %v1992
      %v1994 = vpop.f32.mrb[0].mxu0
      %v1995 = vpop.f32.mrb[0].mxu0
      %v1996 = vadd.f32 0.0, %v1995
      %v1997 = vpop.f32.mrb[0].mxu0
      %1998 = vmatprep.mubr.bf16.mxu0 0
      %1999 = vmatmul.mubr.bf16.gmra.mrb[0].mxu0 %v1909
      %v2000 = vpop.f32.mrb[0].mxu0
      %v2001 = vadd.f32 0.0, %v2000
      %v2002 = vpop.f32.mrb[0].mxu0
      %v2003 = vpop.f32.mrb[0].mxu0
      %v2004 = vadd.f32 0.0, %v2003
      %v2005 = vpop.f32.mrb[0].mxu0
      %2006 = vmatprep.mubr.bf16.mxu0 0
      %2007 = vmatmul.mubr.bf16.gmra.mrb[0].mxu0 %v1912
      %v2008 = vpop.f32.mrb[0].mxu0
      %v2009 = vadd.f32 0.0, %v2008
      %v2010 = vpop.f32.mrb[0].mxu0
      %v2011 = vpop.f32.mrb[0].mxu0
      %v2012 = vadd.f32 0.0, %v2011
      %v2013 = vpop.f32.mrb[0].mxu0
      %2014 = vmatprep.mubr.bf16.mxu0 0
      %2015 = vmatmul.mubr.bf16.gmra.mrb[0].mxu0 %v1915
      %v2016 = vpop.f32.mrb[0].mxu0
      %v2017 = vadd.f32 0.0, %v2016
      %v2018 = vpop.f32.mrb[0].mxu0
      %v2019 = vpop.f32.mrb[0].mxu0
      %v2020 = vadd.f32 0.0, %v2019
      %v2021 = vpop.f32.mrb[0].mxu0
      %2022 = vmatprep.mubr.bf16.mxu0 0
      %2023 = vmatmul.mubr.bf16.gmra.mrb[0].mxu0 %v1918
      %v2024 = vpop.f32.mrb[0].mxu0
      %v2025 = vadd.f32 0.0, %v2024
      %v2026 = vpop.f32.mrb[0].mxu0
      %v2027 = vpop.f32.mrb[0].mxu0
      %v2028 = vadd.f32 0.0, %v2027
      %v2029 = vpop.f32.mrb[0].mxu0
      %2030 = vmatprep.mubr.bf16.mxu0 0
      %2031 = vmatmul.mubr.bf16.gmra.mrb[0].mxu0 %v1921
      %v2032 = vpop.f32.mrb[0].mxu0
      %v2033 = vadd.f32 0.0, %v2032
      %v2034 = vpop.f32.mrb[0].mxu0
      %v2035 = vpop.f32.mrb[0].mxu0
      %v2036 = vadd.f32 0.0, %v2035
      %v2037 = vpop.f32.mrb[0].mxu0
      %2038 = vmatprep.mubr.bf16.mxu0 0
      %2039 = vmatmul.mubr.bf16.gmra.mrb[0].mxu0 %v1924
      %v2040 = vpop.f32.mrb[0].mxu0
      %v2041 = vadd.f32 0.0, %v2040
      %v2042 = vpop.f32.mrb[0].mxu0
      %v2043 = vpop.f32.mrb[0].mxu0
      %v2044 = vadd.f32 0.0, %v2043
      %v2045 = vpop.f32.mrb[0].mxu0
      %2046 = vdwg.mxu0
      %v2047 = vsel %vm624, %v1985, -1e+30
      %v2048 = vsel %vm624, %v1988, -1e+30
      %v2049 = vsel %vm624, %v1993, -1e+30
      %v2050 = vsel %vm624, %v1996, -1e+30
      %v2051 = vsel %vm624, %v2001, -1e+30
      %v2052 = vsel %vm624, %v2004, -1e+30
      %v2053 = vsel %vm624, %v2009, -1e+30
      %v2054 = vsel %vm624, %v2012, -1e+30
      %v2055 = vsel %vm624, %v2017, -1e+30
      %v2056 = vsel %vm624, %v2020, -1e+30
      %v2057 = vsel %vm624, %v2025, -1e+30
      %v2058 = vsel %vm624, %v2028, -1e+30
      %v2059 = vsel %vm624, %v2033, -1e+30
      %v2060 = vsel %vm624, %v2036, -1e+30
      %v2061 = vsel %vm624, %v2041, -1e+30
      %v2062 = vsel %vm624, %v2044, -1e+30
      %2063 = vmax.xlane.f32.xlu0 %v2047
      %v2064 = vpop.xlane.xlu0 %2063
      %2065 = vmax.xlane.f32.xlu0 %v2048
      %v2066 = vpop.xlane.xlu0 %2065
      %2067 = vmax.xlane.f32.xlu0 %v2049
      %v2068 = vpop.xlane.xlu0 %2067
      %2069 = vmax.xlane.f32.xlu0 %v2050
      %v2070 = vpop.xlane.xlu0 %2069
      %2071 = vmax.xlane.f32.xlu0 %v2051
      %v2072 = vpop.xlane.xlu0 %2071
      %2073 = vmax.xlane.f32.xlu0 %v2052
      %v2074 = vpop.xlane.xlu0 %2073
      %2075 = vmax.xlane.f32.xlu0 %v2053
      %v2076 = vpop.xlane.xlu0 %2075
      %2077 = vmax.xlane.f32.xlu0 %v2054
      %v2078 = vpop.xlane.xlu0 %2077
      %2079 = vmax.xlane.f32.xlu0 %v2055
      %v2080 = vpop.xlane.xlu0 %2079
      %2081 = vmax.xlane.f32.xlu0 %v2056
      %v2082 = vpop.xlane.xlu0 %2081
      %2083 = vmax.xlane.f32.xlu0 %v2057
      %v2084 = vpop.xlane.xlu0 %2083
      %2085 = vmax.xlane.f32.xlu0 %v2058
      %v2086 = vpop.xlane.xlu0 %2085
      %2087 = vmax.xlane.f32.xlu0 %v2059
      %v2088 = vpop.xlane.xlu0 %2087
      %2089 = vmax.xlane.f32.xlu0 %v2060
      %v2090 = vpop.xlane.xlu0 %2089
      %2091 = vmax.xlane.f32.xlu0 %v2061
      %v2092 = vpop.xlane.xlu0 %2091
      %2093 = vmax.xlane.f32.xlu0 %v2062
      %v2094 = vpop.xlane.xlu0 %2093
      %v2095 = vsub.f32 %v2047, %v2064
      %v2096 = vsub.f32 %v2048, %v2066
      %v2097 = vsub.f32 %v2049, %v2068
      %v2098 = vsub.f32 %v2050, %v2070
      %v2099 = vsub.f32 %v2051, %v2072
      %v2100 = vsub.f32 %v2052, %v2074
      %v2101 = vsub.f32 %v2053, %v2076
      %v2102 = vsub.f32 %v2054, %v2078
      %v2103 = vsub.f32 %v2055, %v2080
      %v2104 = vsub.f32 %v2056, %v2082
      %v2105 = vsub.f32 %v2057, %v2084
      %v2106 = vsub.f32 %v2058, %v2086
      %v2107 = vsub.f32 %v2059, %v2088
      %v2108 = vsub.f32 %v2060, %v2090
      %v2109 = vsub.f32 %v2061, %v2092
      %v2110 = vsub.f32 %v2062, %v2094
      %v2111 = vmul.f32 %v2095, 1.442695
      %v2112 = vpow.pop %v2111
      %v2113 = vmul.f32 %v2096, 1.442695
      %v2114 = vpow.pop %v2113
      %v2115 = vmul.f32 %v2097, 1.442695
      %v2116 = vpow.pop %v2115
      %v2117 = vmul.f32 %v2098, 1.442695
      %v2118 = vpow.pop %v2117
      %v2119 = vmul.f32 %v2099, 1.442695
      %v2120 = vpow.pop %v2119
      %v2121 = vmul.f32 %v2100, 1.442695
      %v2122 = vpow.pop %v2121
      %v2123 = vmul.f32 %v2101, 1.442695
      %v2124 = vpow.pop %v2123
      %v2125 = vmul.f32 %v2102, 1.442695
      %v2126 = vpow.pop %v2125
      %v2127 = vmul.f32 %v2103, 1.442695
      %v2128 = vpow.pop %v2127
      %v2129 = vmul.f32 %v2104, 1.442695
      %v2130 = vpow.pop %v2129
      %v2131 = vmul.f32 %v2105, 1.442695
      %v2132 = vpow.pop %v2131
      %v2133 = vmul.f32 %v2106, 1.442695
      %v2134 = vpow.pop %v2133
      %v2135 = vmul.f32 %v2107, 1.442695
      %v2136 = vpow.pop %v2135
      %v2137 = vmul.f32 %v2108, 1.442695
      %v2138 = vpow.pop %v2137
      %v2139 = vmul.f32 %v2109, 1.442695
      %v2140 = vpow.pop %v2139
      %v2141 = vmul.f32 %v2110, 1.442695
      %v2142 = vpow.pop %v2141
      %2143 = vadd.xlane.f32.xlu0 %v2112
      %v2144 = vpop.xlane.xlu0 %2143
      %2145 = vadd.xlane.f32.xlu0 %v2114
      %v2146 = vpop.xlane.xlu0 %2145
      %2147 = vadd.xlane.f32.xlu0 %v2116
      %v2148 = vpop.xlane.xlu0 %2147
      %2149 = vadd.xlane.f32.xlu0 %v2118
      %v2150 = vpop.xlane.xlu0 %2149
      %2151 = vadd.xlane.f32.xlu0 %v2120
      %v2152 = vpop.xlane.xlu0 %2151
      %2153 = vadd.xlane.f32.xlu0 %v2122
      %v2154 = vpop.xlane.xlu0 %2153
      %2155 = vadd.xlane.f32.xlu0 %v2124
      %v2156 = vpop.xlane.xlu0 %2155
      %2157 = vadd.xlane.f32.xlu0 %v2126
      %v2158 = vpop.xlane.xlu0 %2157
      %2159 = vadd.xlane.f32.xlu0 %v2128
      %v2160 = vpop.xlane.xlu0 %2159
      %2161 = vadd.xlane.f32.xlu0 %v2130
      %v2162 = vpop.xlane.xlu0 %2161
      %2163 = vadd.xlane.f32.xlu0 %v2132
      %v2164 = vpop.xlane.xlu0 %2163
      %2165 = vadd.xlane.f32.xlu0 %v2134
      %v2166 = vpop.xlane.xlu0 %2165
      %2167 = vadd.xlane.f32.xlu0 %v2136
      %v2168 = vpop.xlane.xlu0 %2167
      %2169 = vadd.xlane.f32.xlu0 %v2138
      %v2170 = vpop.xlane.xlu0 %2169
      %2171 = vadd.xlane.f32.xlu0 %v2140
      %v2172 = vpop.xlane.xlu0 %2171
      %2173 = vadd.xlane.f32.xlu0 %v2142
      %v2174 = vpop.xlane.xlu0 %2173
      %v2175 = vrcp.pop %v2144
      %v2176 = vrcp.pop %v2146
      %v2177 = vrcp.pop %v2148
      %v2178 = vrcp.pop %v2150
      %v2179 = vrcp.pop %v2152
      %v2180 = vrcp.pop %v2154
      %v2181 = vrcp.pop %v2156
      %v2182 = vrcp.pop %v2158
      %v2183 = vrcp.pop %v2160
      %v2184 = vrcp.pop %v2162
      %v2185 = vrcp.pop %v2164
      %v2186 = vrcp.pop %v2166
      %v2187 = vrcp.pop %v2168
      %v2188 = vrcp.pop %v2170
      %v2189 = vrcp.pop %v2172
      %v2190 = vrcp.pop %v2174
      %v2191 = vmul.f32 %v2112, %v2175
      %v2192 = vmul.f32 %v2114, %v2176
      %v2193 = vmul.f32 %v2116, %v2177
      %v2194 = vmul.f32 %v2118, %v2178
      %v2195 = vmul.f32 %v2120, %v2179
      %v2196 = vmul.f32 %v2122, %v2180
      %v2197 = vmul.f32 %v2124, %v2181
      %v2198 = vmul.f32 %v2126, %v2182
      %v2199 = vmul.f32 %v2128, %v2183
      %v2200 = vmul.f32 %v2130, %v2184
      %v2201 = vmul.f32 %v2132, %v2185
      %v2202 = vmul.f32 %v2134, %v2186
      %v2203 = vmul.f32 %v2136, %v2187
      %v2204 = vmul.f32 %v2138, %v2188
      %v2205 = vmul.f32 %v2140, %v2189
      %v2206 = vmul.f32 %v2142, %v2190
      %v2207 = vpack.c.bf16 %v2192, %v2191
      %v2208 = vpack.c.bf16 %v2194, %v2193
      %v2209 = vpack.c.bf16 %v2196, %v2195
      %v2210 = vpack.c.bf16 %v2198, %v2197
      %v2211 = vpack.c.bf16 %v2200, %v2199
      %v2212 = vpack.c.bf16 %v2202, %v2201
      %v2213 = vpack.c.bf16 %v2204, %v2203
      %v2214 = vpack.c.bf16 %v2206, %v2205
      %2215 = vrot.lane.b32.xlu0 %v445, 52
      %v2216 = vpop.permute.xlu0 %2215
      %2217 = vrot.lane.b32.xlu0 %v446, 52
      %v2218 = vpop.permute.xlu0 %2217
      %2219 = vrot.lane.b32.xlu0 %v447, 52
      %v2220 = vpop.permute.xlu0 %2219
      %2221 = vrot.lane.b32.xlu0 %v448, 52
      %v2222 = vpop.permute.xlu0 %2221
      %2223 = vrot.lane.b32.xlu0 %v449, 52
      %v2224 = vpop.permute.xlu0 %2223
      %2225 = vrot.lane.b32.xlu0 %v450, 52
      %v2226 = vpop.permute.xlu0 %2225
      %2227 = vrot.lane.b32.xlu0 %v451, 52
      %v2228 = vpop.permute.xlu0 %2227
      %2229 = vrot.lane.b32.xlu0 %v452, 52
      %v2230 = vpop.permute.xlu0 %2229
      %2239 = vmatprep.subr.bf16.mxu0 0
      %2240 = vmatpush1.bf16.msra.mxu0 %v2216
      %2241 = vmatprep.subr.bf16.mxu0 0
      %2242 = vmatpush1.bf16.msra.mxu0 %v2218
      %2243 = vmatprep.subr.bf16.mxu0 0
      %2244 = vmatpush1.bf16.msra.mxu0 %v2220
      %2245 = vmatprep.subr.bf16.mxu0 0
      %2246 = vmatpush1.bf16.msra.mxu0 %v2222
      %2247 = vmatprep.subr.bf16.mxu0 0
      %2248 = vmatpush1.bf16.msra.mxu0 %v2224
      %2249 = vmatprep.subr.bf16.mxu0 0
      %2250 = vmatpush1.bf16.msra.mxu0 %v2226
      %2251 = vmatprep.subr.bf16.mxu0 0
      %2252 = vmatpush1.bf16.msra.mxu0 %v2228
      %2253 = vmatprep.subr.bf16.mxu0 0
      %2254 = vmatpush1.bf16.msra.mxu0 %v2230
      %2255 = vmatprep.subr.bf16.mxu0 0
      %2256 = vmatpush1.bf16.msra.mxu0 0
      %2257 = vmatprep.subr.bf16.mxu0 0
      %2258 = vmatpush1.bf16.msra.mxu0 0
      %2259 = vmatprep.subr.bf16.mxu0 0
      %2260 = vmatpush1.bf16.msra.mxu0 0
      %2261 = vmatprep.subr.bf16.mxu0 0
      %2262 = vmatpush1.bf16.msra.mxu0 0
      %2263 = vmatprep.subr.bf16.mxu0 0
      %2264 = vmatpush1.bf16.msra.mxu0 0
      %2265 = vmatprep.subr.bf16.mxu0 0
      %2266 = vmatpush1.bf16.msra.mxu0 0
      %2267 = vmatprep.subr.bf16.mxu0 0
      %2268 = vmatpush1.bf16.msra.mxu0 0
      %2269 = vmatprep.subr.bf16.mxu0 0
      %2270 = vmatpush1.bf16.msra.mxu0 0
      %2271 = vmatprep.mubr.bf16.mxu0 0
      %2272 = vmatmul.mubr.bf16.gmra.mrb[0].mxu0 %v2207
      %v2273 = vpop.f32.mrb[0].mxu0
      %v2274 = vadd.f32 0.0, %v2273
      %v2275 = vpop.f32.mrb[0].mxu0
      %v2276 = vpop.f32.mrb[0].mxu0
      %v2277 = vadd.f32 0.0, %v2276
      %v2278 = vpop.f32.mrb[0].mxu0
      %2279 = vmatprep.mubr.bf16.mxu0 0
      %2280 = vmatmul.mubr.bf16.gmra.mrb[0].mxu0 %v2208
      %v2281 = vpop.f32.mrb[0].mxu0
      %v2282 = vadd.f32 0.0, %v2281
      %v2283 = vpop.f32.mrb[0].mxu0
      %v2284 = vpop.f32.mrb[0].mxu0
      %v2285 = vadd.f32 0.0, %v2284
      %v2286 = vpop.f32.mrb[0].mxu0
      %2287 = vmatprep.mubr.bf16.mxu0 0
      %2288 = vmatmul.mubr.bf16.gmra.mrb[0].mxu0 %v2209
      %v2289 = vpop.f32.mrb[0].mxu0
      %v2290 = vadd.f32 0.0, %v2289
      %v2291 = vpop.f32.mrb[0].mxu0
      %v2292 = vpop.f32.mrb[0].mxu0
      %v2293 = vadd.f32 0.0, %v2292
      %v2294 = vpop.f32.mrb[0].mxu0
      %2295 = vmatprep.mubr.bf16.mxu0 0
      %2296 = vmatmul.mubr.bf16.gmra.mrb[0].mxu0 %v2210
      %v2297 = vpop.f32.mrb[0].mxu0
      %v2298 = vadd.f32 0.0, %v2297
      %v2299 = vpop.f32.mrb[0].mxu0
      %v2300 = vpop.f32.mrb[0].mxu0
      %v2301 = vadd.f32 0.0, %v2300
      %v2302 = vpop.f32.mrb[0].mxu0
      %2303 = vmatprep.mubr.bf16.mxu0 0
      %2304 = vmatmul.mubr.bf16.gmra.mrb[0].mxu0 %v2211
      %v2305 = vpop.f32.mrb[0].mxu0
      %v2306 = vadd.f32 0.0, %v2305
      %v2307 = vpop.f32.mrb[0].mxu0
      %v2308 = vpop.f32.mrb[0].mxu0
      %v2309 = vadd.f32 0.0, %v2308
      %v2310 = vpop.f32.mrb[0].mxu0
      %2311 = vmatprep.mubr.bf16.mxu0 0
      %2312 = vmatmul.mubr.bf16.gmra.mrb[0].mxu0 %v2212
      %v2313 = vpop.f32.mrb[0].mxu0
      %v2314 = vadd.f32 0.0, %v2313
      %v2315 = vpop.f32.mrb[0].mxu0
      %v2316 = vpop.f32.mrb[0].mxu0
      %v2317 = vadd.f32 0.0, %v2316
      %v2318 = vpop.f32.mrb[0].mxu0
      %2319 = vmatprep.mubr.bf16.mxu0 0
      %2320 = vmatmul.mubr.bf16.gmra.mrb[0].mxu0 %v2213
      %v2321 = vpop.f32.mrb[0].mxu0
      %v2322 = vadd.f32 0.0, %v2321
      %v2323 = vpop.f32.mrb[0].mxu0
      %v2324 = vpop.f32.mrb[0].mxu0
      %v2325 = vadd.f32 0.0, %v2324
      %v2326 = vpop.f32.mrb[0].mxu0
      %2327 = vmatprep.mubr.bf16.mxu0 0
      %2328 = vmatmul.mubr.bf16.gmra.mrb[0].mxu0 %v2214
      %v2329 = vpop.f32.mrb[0].mxu0
      %v2330 = vadd.f32 0.0, %v2329
      %v2331 = vpop.f32.mrb[0].mxu0
      %v2332 = vpop.f32.mrb[0].mxu0
      %v2333 = vadd.f32 0.0, %v2332
      %v2334 = vpop.f32.mrb[0].mxu0
      %2335 = vdwg.mxu0
      %v2336 = vpack.c.bf16 %v2277, %v2274
      %v2337 = vpack.c.bf16 %v2285, %v2282
      %v2338 = vpack.c.bf16 %v2293, %v2290
      %v2339 = vpack.c.bf16 %v2301, %v2298
      %v2340 = vpack.c.bf16 %v2309, %v2306
      %v2341 = vpack.c.bf16 %v2317, %v2314
      %v2342 = vpack.c.bf16 %v2325, %v2322
      %v2343 = vpack.c.bf16 %v2333, %v2330
      %2344 = vrot.lane.b32.xlu0 %v445, 112
      %v2345 = vpop.permute.xlu0 %2344
      %2346 = vrot.lane.b32.xlu0 %v446, 112
      %v2347 = vpop.permute.xlu0 %2346
      %2348 = vrot.lane.b32.xlu0 %v447, 112
      %v2349 = vpop.permute.xlu0 %2348
      %2350 = vrot.lane.b32.xlu0 %v448, 112
      %v2351 = vpop.permute.xlu0 %2350
      %2352 = vrot.lane.b32.xlu0 %v449, 112
      %v2353 = vpop.permute.xlu0 %2352
      %2354 = vrot.lane.b32.xlu0 %v450, 112
      %v2355 = vpop.permute.xlu0 %2354
      %2356 = vrot.lane.b32.xlu0 %v451, 112
      %v2357 = vpop.permute.xlu0 %2356
      %2358 = vrot.lane.b32.xlu0 %v452, 112
      %v2359 = vpop.permute.xlu0 %2358
      %2360 = vrot.lane.b32.xlu0 %v445, 80
      %v2361 = vpop.permute.xlu0 %2360
      %2362 = vrot.lane.b32.xlu0 %v446, 80
      %v2363 = vpop.permute.xlu0 %2362
      %2364 = vrot.lane.b32.xlu0 %v447, 80
      %v2365 = vpop.permute.xlu0 %2364
      %2366 = vrot.lane.b32.xlu0 %v448, 80
      %v2367 = vpop.permute.xlu0 %2366
      %2368 = vrot.lane.b32.xlu0 %v449, 80
      %v2369 = vpop.permute.xlu0 %2368
      %2370 = vrot.lane.b32.xlu0 %v450, 80
      %v2371 = vpop.permute.xlu0 %2370
      %2372 = vrot.lane.b32.xlu0 %v451, 80
      %v2373 = vpop.permute.xlu0 %2372
      %2374 = vrot.lane.b32.xlu0 %v452, 80
      %v2375 = vpop.permute.xlu0 %2374
      %v2377 = vsel %vm477, %v2345, 0
      %v2380 = vsel %vm477, %v2347, 0
      %v2383 = vsel %vm477, %v2349, 0
      %v2386 = vsel %vm477, %v2351, 0
      %v2389 = vsel %vm477, %v2353, 0
      %v2392 = vsel %vm477, %v2355, 0
      %v2395 = vsel %vm477, %v2357, 0
      %v2398 = vsel %vm477, %v2359, 0
      %v2401 = vsel %vm477, %v2361, 0
      %v2404 = vsel %vm477, %v2363, 0
      %v2407 = vsel %vm477, %v2365, 0
      %v2410 = vsel %vm477, %v2367, 0
      %v2413 = vsel %vm477, %v2369, 0
      %v2416 = vsel %vm477, %v2371, 0
      %v2419 = vsel %vm477, %v2373, 0
      %v2422 = vsel %vm477, %v2375, 0
      %2424 = vmatprep.subr.bf16.mxu0 0
      %2425 = vmatpush1.bf16.xpose.msra.mxu0 %v2401
      %2426 = vmatprep.subr.bf16.mxu0 0
      %2427 = vmatpush1.bf16.xpose.msra.mxu0 %v2404
      %2428 = vmatprep.subr.bf16.mxu0 0
      %2429 = vmatpush1.bf16.xpose.msra.mxu0 %v2407
      %2430 = vmatprep.subr.bf16.mxu0 0
      %2431 = vmatpush1.bf16.xpose.msra.mxu0 %v2410
      %2432 = vmatprep.subr.bf16.mxu0 0
      %2433 = vmatpush1.bf16.xpose.msra.mxu0 %v2413
      %2434 = vmatprep.subr.bf16.mxu0 0
      %2435 = vmatpush1.bf16.xpose.msra.mxu0 %v2416
      %2436 = vmatprep.subr.bf16.mxu0 0
      %2437 = vmatpush1.bf16.xpose.msra.mxu0 %v2419
      %2438 = vmatprep.subr.bf16.mxu0 0
      %2439 = vmatpush1.bf16.xpose.msra.mxu0 %v2422
      %2440 = vmatprep.subr.bf16.mxu0 0
      %2441 = vmatpush1.bf16.xpose.msra.mxu0 0
      %2442 = vmatprep.subr.bf16.mxu0 0
      %2443 = vmatpush1.bf16.xpose.msra.mxu0 0
      %2444 = vmatprep.subr.bf16.mxu0 0
      %2445 = vmatpush1.bf16.xpose.msra.mxu0 0
      %2446 = vmatprep.subr.bf16.mxu0 0
      %2447 = vmatpush1.bf16.xpose.msra.mxu0 0
      %2448 = vmatprep.subr.bf16.mxu0 0
      %2449 = vmatpush1.bf16.xpose.msra.mxu0 0
      %2450 = vmatprep.subr.bf16.mxu0 0
      %2451 = vmatpush1.bf16.xpose.msra.mxu0 0
      %2452 = vmatprep.subr.bf16.mxu0 0
      %2453 = vmatpush1.bf16.xpose.msra.mxu0 0
      %2454 = vmatprep.subr.bf16.mxu0 0
      %2455 = vmatpush1.bf16.xpose.msra.mxu0 0
      %2456 = vmatprep.mubr.bf16.mxu0 0
      %2457 = vmatmul.mubr.bf16.gmra.mrb[0].mxu0 %v2377
      %v2458 = vpop.f32.mrb[0].mxu0
      %v2459 = vadd.f32 0.0, %v2458
      %v2460 = vpop.f32.mrb[0].mxu0
      %v2461 = vpop.f32.mrb[0].mxu0
      %v2462 = vadd.f32 0.0, %v2461
      %v2463 = vpop.f32.mrb[0].mxu0
      %2464 = vmatprep.mubr.bf16.mxu0 0
      %2465 = vmatmul.mubr.bf16.gmra.mrb[0].mxu0 %v2380
      %v2466 = vpop.f32.mrb[0].mxu0
      %v2467 = vadd.f32 0.0, %v2466
      %v2468 = vpop.f32.mrb[0].mxu0
      %v2469 = vpop.f32.mrb[0].mxu0
      %v2470 = vadd.f32 0.0, %v2469
      %v2471 = vpop.f32.mrb[0].mxu0
      %2472 = vmatprep.mubr.bf16.mxu0 0
      %2473 = vmatmul.mubr.bf16.gmra.mrb[0].mxu0 %v2383
      %v2474 = vpop.f32.mrb[0].mxu0
      %v2475 = vadd.f32 0.0, %v2474
      %v2476 = vpop.f32.mrb[0].mxu0
      %v2477 = vpop.f32.mrb[0].mxu0
      %v2478 = vadd.f32 0.0, %v2477
      %v2479 = vpop.f32.mrb[0].mxu0
      %2480 = vmatprep.mubr.bf16.mxu0 0
      %2481 = vmatmul.mubr.bf16.gmra.mrb[0].mxu0 %v2386
      %v2482 = vpop.f32.mrb[0].mxu0
      %v2483 = vadd.f32 0.0, %v2482
      %v2484 = vpop.f32.mrb[0].mxu0
      %v2485 = vpop.f32.mrb[0].mxu0
      %v2486 = vadd.f32 0.0, %v2485
      %v2487 = vpop.f32.mrb[0].mxu0
      %2488 = vmatprep.mubr.bf16.mxu0 0
      %2489 = vmatmul.mubr.bf16.gmra.mrb[0].mxu0 %v2389
      %v2490 = vpop.f32.mrb[0].mxu0
      %v2491 = vadd.f32 0.0, %v2490
      %v2492 = vpop.f32.mrb[0].mxu0
      %v2493 = vpop.f32.mrb[0].mxu0
      %v2494 = vadd.f32 0.0, %v2493
      %v2495 = vpop.f32.mrb[0].mxu0
      %2496 = vmatprep.mubr.bf16.mxu0 0
      %2497 = vmatmul.mubr.bf16.gmra.mrb[0].mxu0 %v2392
      %v2498 = vpop.f32.mrb[0].mxu0
      %v2499 = vadd.f32 0.0, %v2498
      %v2500 = vpop.f32.mrb[0].mxu0
      %v2501 = vpop.f32.mrb[0].mxu0
      %v2502 = vadd.f32 0.0, %v2501
      %v2503 = vpop.f32.mrb[0].mxu0
      %2504 = vmatprep.mubr.bf16.mxu0 0
      %2505 = vmatmul.mubr.bf16.gmra.mrb[0].mxu0 %v2395
      %v2506 = vpop.f32.mrb[0].mxu0
      %v2507 = vadd.f32 0.0, %v2506
      %v2508 = vpop.f32.mrb[0].mxu0
      %v2509 = vpop.f32.mrb[0].mxu0
      %v2510 = vadd.f32 0.0, %v2509
      %v2511 = vpop.f32.mrb[0].mxu0
      %2512 = vmatprep.mubr.bf16.mxu0 0
      %2513 = vmatmul.mubr.bf16.gmra.mrb[0].mxu0 %v2398
      %v2514 = vpop.f32.mrb[0].mxu0
      %v2515 = vadd.f32 0.0, %v2514
      %v2516 = vpop.f32.mrb[0].mxu0
      %v2517 = vpop.f32.mrb[0].mxu0
      %v2518 = vadd.f32 0.0, %v2517
      %v2519 = vpop.f32.mrb[0].mxu0
      %2520 = vdwg.mxu0
      %v2521 = vsel %vm624, %v2459, -1e+30
      %v2522 = vsel %vm624, %v2462, -1e+30
      %v2523 = vsel %vm624, %v2467, -1e+30
      %v2524 = vsel %vm624, %v2470, -1e+30
      %v2525 = vsel %vm624, %v2475, -1e+30
      %v2526 = vsel %vm624, %v2478, -1e+30
      %v2527 = vsel %vm624, %v2483, -1e+30
      %v2528 = vsel %vm624, %v2486, -1e+30
      %v2529 = vsel %vm624, %v2491, -1e+30
      %v2530 = vsel %vm624, %v2494, -1e+30
      %v2531 = vsel %vm624, %v2499, -1e+30
      %v2532 = vsel %vm624, %v2502, -1e+30
      %v2533 = vsel %vm624, %v2507, -1e+30
      %v2534 = vsel %vm624, %v2510, -1e+30
      %v2535 = vsel %vm624, %v2515, -1e+30
      %v2536 = vsel %vm624, %v2518, -1e+30
      %2537 = vmax.xlane.f32.xlu0 %v2521
      %v2538 = vpop.xlane.xlu0 %2537
      %2539 = vmax.xlane.f32.xlu0 %v2522
      %v2540 = vpop.xlane.xlu0 %2539
      %2541 = vmax.xlane.f32.xlu0 %v2523
      %v2542 = vpop.xlane.xlu0 %2541
      %2543 = vmax.xlane.f32.xlu0 %v2524
      %v2544 = vpop.xlane.xlu0 %2543
      %2545 = vmax.xlane.f32.xlu0 %v2525
      %v2546 = vpop.xlane.xlu0 %2545
      %2547 = vmax.xlane.f32.xlu0 %v2526
      %v2548 = vpop.xlane.xlu0 %2547
      %2549 = vmax.xlane.f32.xlu0 %v2527
      %v2550 = vpop.xlane.xlu0 %2549
      %2551 = vmax.xlane.f32.xlu0 %v2528
      %v2552 = vpop.xlane.xlu0 %2551
      %2553 = vmax.xlane.f32.xlu0 %v2529
      %v2554 = vpop.xlane.xlu0 %2553
      %2555 = vmax.xlane.f32.xlu0 %v2530
      %v2556 = vpop.xlane.xlu0 %2555
      %2557 = vmax.xlane.f32.xlu0 %v2531
      %v2558 = vpop.xlane.xlu0 %2557
      %2559 = vmax.xlane.f32.xlu0 %v2532
      %v2560 = vpop.xlane.xlu0 %2559
      %2561 = vmax.xlane.f32.xlu0 %v2533
      %v2562 = vpop.xlane.xlu0 %2561
      %2563 = vmax.xlane.f32.xlu0 %v2534
      %v2564 = vpop.xlane.xlu0 %2563
      %2565 = vmax.xlane.f32.xlu0 %v2535
      %v2566 = vpop.xlane.xlu0 %2565
      %2567 = vmax.xlane.f32.xlu0 %v2536
      %v2568 = vpop.xlane.xlu0 %2567
      %v2569 = vsub.f32 %v2521, %v2538
      %v2570 = vsub.f32 %v2522, %v2540
      %v2571 = vsub.f32 %v2523, %v2542
      %v2572 = vsub.f32 %v2524, %v2544
      %v2573 = vsub.f32 %v2525, %v2546
      %v2574 = vsub.f32 %v2526, %v2548
      %v2575 = vsub.f32 %v2527, %v2550
      %v2576 = vsub.f32 %v2528, %v2552
      %v2577 = vsub.f32 %v2529, %v2554
      %v2578 = vsub.f32 %v2530, %v2556
      %v2579 = vsub.f32 %v2531, %v2558
      %v2580 = vsub.f32 %v2532, %v2560
      %v2581 = vsub.f32 %v2533, %v2562
      %v2582 = vsub.f32 %v2534, %v2564
      %v2583 = vsub.f32 %v2535, %v2566
      %v2584 = vsub.f32 %v2536, %v2568
      %v2585 = vmul.f32 %v2569, 1.442695
      %v2586 = vpow.pop %v2585
      %v2587 = vmul.f32 %v2570, 1.442695
      %v2588 = vpow.pop %v2587
      %v2589 = vmul.f32 %v2571, 1.442695
      %v2590 = vpow.pop %v2589
      %v2591 = vmul.f32 %v2572, 1.442695
      %v2592 = vpow.pop %v2591
      %v2593 = vmul.f32 %v2573, 1.442695
      %v2594 = vpow.pop %v2593
      %v2595 = vmul.f32 %v2574, 1.442695
      %v2596 = vpow.pop %v2595
      %v2597 = vmul.f32 %v2575, 1.442695
      %v2598 = vpow.pop %v2597
      %v2599 = vmul.f32 %v2576, 1.442695
      %v2600 = vpow.pop %v2599
      %v2601 = vmul.f32 %v2577, 1.442695
      %v2602 = vpow.pop %v2601
      %v2603 = vmul.f32 %v2578, 1.442695
      %v2604 = vpow.pop %v2603
      %v2605 = vmul.f32 %v2579, 1.442695
      %v2606 = vpow.pop %v2605
      %v2607 = vmul.f32 %v2580, 1.442695
      %v2608 = vpow.pop %v2607
      %v2609 = vmul.f32 %v2581, 1.442695
      %v2610 = vpow.pop %v2609
      %v2611 = vmul.f32 %v2582, 1.442695
      %v2612 = vpow.pop %v2611
      %v2613 = vmul.f32 %v2583, 1.442695
      %v2614 = vpow.pop %v2613
      %v2615 = vmul.f32 %v2584, 1.442695
      %v2616 = vpow.pop %v2615
      %2617 = vadd.xlane.f32.xlu0 %v2586
      %v2618 = vpop.xlane.xlu0 %2617
      %2619 = vadd.xlane.f32.xlu0 %v2588
      %v2620 = vpop.xlane.xlu0 %2619
      %2621 = vadd.xlane.f32.xlu0 %v2590
      %v2622 = vpop.xlane.xlu0 %2621
      %2623 = vadd.xlane.f32.xlu0 %v2592
      %v2624 = vpop.xlane.xlu0 %2623
      %2625 = vadd.xlane.f32.xlu0 %v2594
      %v2626 = vpop.xlane.xlu0 %2625
      %2627 = vadd.xlane.f32.xlu0 %v2596
      %v2628 = vpop.xlane.xlu0 %2627
      %2629 = vadd.xlane.f32.xlu0 %v2598
      %v2630 = vpop.xlane.xlu0 %2629
      %2631 = vadd.xlane.f32.xlu0 %v2600
      %v2632 = vpop.xlane.xlu0 %2631
      %2633 = vadd.xlane.f32.xlu0 %v2602
      %v2634 = vpop.xlane.xlu0 %2633
      %2635 = vadd.xlane.f32.xlu0 %v2604
      %v2636 = vpop.xlane.xlu0 %2635
      %2637 = vadd.xlane.f32.xlu0 %v2606
      %v2638 = vpop.xlane.xlu0 %2637
      %2639 = vadd.xlane.f32.xlu0 %v2608
      %v2640 = vpop.xlane.xlu0 %2639
      %2641 = vadd.xlane.f32.xlu0 %v2610
      %v2642 = vpop.xlane.xlu0 %2641
      %2643 = vadd.xlane.f32.xlu0 %v2612
      %v2644 = vpop.xlane.xlu0 %2643
      %2645 = vadd.xlane.f32.xlu0 %v2614
      %v2646 = vpop.xlane.xlu0 %2645
      %2647 = vadd.xlane.f32.xlu0 %v2616
      %v2648 = vpop.xlane.xlu0 %2647
      %v2649 = vrcp.pop %v2618
      %v2650 = vrcp.pop %v2620
      %v2651 = vrcp.pop %v2622
      %v2652 = vrcp.pop %v2624
      %v2653 = vrcp.pop %v2626
      %v2654 = vrcp.pop %v2628
      %v2655 = vrcp.pop %v2630
      %v2656 = vrcp.pop %v2632
      %v2657 = vrcp.pop %v2634
      %v2658 = vrcp.pop %v2636
      %v2659 = vrcp.pop %v2638
      %v2660 = vrcp.pop %v2640
      %v2661 = vrcp.pop %v2642
      %v2662 = vrcp.pop %v2644
      %v2663 = vrcp.pop %v2646
      %v2664 = vrcp.pop %v2648
      %v2665 = vmul.f32 %v2586, %v2649
      %v2666 = vmul.f32 %v2588, %v2650
      %v2667 = vmul.f32 %v2590, %v2651
      %v2668 = vmul.f32 %v2592, %v2652
      %v2669 = vmul.f32 %v2594, %v2653
      %v2670 = vmul.f32 %v2596, %v2654
      %v2671 = vmul.f32 %v2598, %v2655
      %v2672 = vmul.f32 %v2600, %v2656
      %v2673 = vmul.f32 %v2602, %v2657
      %v2674 = vmul.f32 %v2604, %v2658
      %v2675 = vmul.f32 %v2606, %v2659
      %v2676 = vmul.f32 %v2608, %v2660
      %v2677 = vmul.f32 %v2610, %v2661
      %v2678 = vmul.f32 %v2612, %v2662
      %v2679 = vmul.f32 %v2614, %v2663
      %v2680 = vmul.f32 %v2616, %v2664
      %v2681 = vpack.c.bf16 %v2666, %v2665
      %v2682 = vpack.c.bf16 %v2668, %v2667
      %v2683 = vpack.c.bf16 %v2670, %v2669
      %v2684 = vpack.c.bf16 %v2672, %v2671
      %v2685 = vpack.c.bf16 %v2674, %v2673
      %v2686 = vpack.c.bf16 %v2676, %v2675
      %v2687 = vpack.c.bf16 %v2678, %v2677
      %v2688 = vpack.c.bf16 %v2680, %v2679
      %2689 = vrot.lane.b32.xlu0 %v445, 48
      %v2690 = vpop.permute.xlu0 %2689
      %2691 = vrot.lane.b32.xlu0 %v446, 48
      %v2692 = vpop.permute.xlu0 %2691
      %2693 = vrot.lane.b32.xlu0 %v447, 48
      %v2694 = vpop.permute.xlu0 %2693
      %2695 = vrot.lane.b32.xlu0 %v448, 48
      %v2696 = vpop.permute.xlu0 %2695
      %2697 = vrot.lane.b32.xlu0 %v449, 48
      %v2698 = vpop.permute.xlu0 %2697
      %2699 = vrot.lane.b32.xlu0 %v450, 48
      %v2700 = vpop.permute.xlu0 %2699
      %2701 = vrot.lane.b32.xlu0 %v451, 48
      %v2702 = vpop.permute.xlu0 %2701
      %2703 = vrot.lane.b32.xlu0 %v452, 48
      %v2704 = vpop.permute.xlu0 %2703
      %2713 = vmatprep.subr.bf16.mxu0 0
      %2714 = vmatpush1.bf16.msra.mxu0 %v2690
      %2715 = vmatprep.subr.bf16.mxu0 0
      %2716 = vmatpush1.bf16.msra.mxu0 %v2692
      %2717 = vmatprep.subr.bf16.mxu0 0
      %2718 = vmatpush1.bf16.msra.mxu0 %v2694
      %2719 = vmatprep.subr.bf16.mxu0 0
      %2720 = vmatpush1.bf16.msra.mxu0 %v2696
      %2721 = vmatprep.subr.bf16.mxu0 0
      %2722 = vmatpush1.bf16.msra.mxu0 %v2698
      %2723 = vmatprep.subr.bf16.mxu0 0
      %2724 = vmatpush1.bf16.msra.mxu0 %v2700
      %2725 = vmatprep.subr.bf16.mxu0 0
      %2726 = vmatpush1.bf16.msra.mxu0 %v2702
      %2727 = vmatprep.subr.bf16.mxu0 0
      %2728 = vmatpush1.bf16.msra.mxu0 %v2704
      %2729 = vmatprep.subr.bf16.mxu0 0
      %2730 = vmatpush1.bf16.msra.mxu0 0
      %2731 = vmatprep.subr.bf16.mxu0 0
      %2732 = vmatpush1.bf16.msra.mxu0 0
      %2733 = vmatprep.subr.bf16.mxu0 0
      %2734 = vmatpush1.bf16.msra.mxu0 0
      %2735 = vmatprep.subr.bf16.mxu0 0
      %2736 = vmatpush1.bf16.msra.mxu0 0
      %2737 = vmatprep.subr.bf16.mxu0 0
      %2738 = vmatpush1.bf16.msra.mxu0 0
      %2739 = vmatprep.subr.bf16.mxu0 0
      %2740 = vmatpush1.bf16.msra.mxu0 0
      %2741 = vmatprep.subr.bf16.mxu0 0
      %2742 = vmatpush1.bf16.msra.mxu0 0
      %2743 = vmatprep.subr.bf16.mxu0 0
      %2744 = vmatpush1.bf16.msra.mxu0 0
      %2745 = vmatprep.mubr.bf16.mxu0 0
      %2746 = vmatmul.mubr.bf16.gmra.mrb[0].mxu0 %v2681
      %v2747 = vpop.f32.mrb[0].mxu0
      %v2748 = vadd.f32 0.0, %v2747
      %v2749 = vpop.f32.mrb[0].mxu0
      %v2750 = vpop.f32.mrb[0].mxu0
      %v2751 = vadd.f32 0.0, %v2750
      %v2752 = vpop.f32.mrb[0].mxu0
      %2753 = vmatprep.mubr.bf16.mxu0 0
      %2754 = vmatmul.mubr.bf16.gmra.mrb[0].mxu0 %v2682
      %v2755 = vpop.f32.mrb[0].mxu0
      %v2756 = vadd.f32 0.0, %v2755
      %v2757 = vpop.f32.mrb[0].mxu0
      %v2758 = vpop.f32.mrb[0].mxu0
      %v2759 = vadd.f32 0.0, %v2758
      %v2760 = vpop.f32.mrb[0].mxu0
      %2761 = vmatprep.mubr.bf16.mxu0 0
      %2762 = vmatmul.mubr.bf16.gmra.mrb[0].mxu0 %v2683
      %v2763 = vpop.f32.mrb[0].mxu0
      %v2764 = vadd.f32 0.0, %v2763
      %v2765 = vpop.f32.mrb[0].mxu0
      %v2766 = vpop.f32.mrb[0].mxu0
      %v2767 = vadd.f32 0.0, %v2766
      %v2768 = vpop.f32.mrb[0].mxu0
      %2769 = vmatprep.mubr.bf16.mxu0 0
      %2770 = vmatmul.mubr.bf16.gmra.mrb[0].mxu0 %v2684
      %v2771 = vpop.f32.mrb[0].mxu0
      %v2772 = vadd.f32 0.0, %v2771
      %v2773 = vpop.f32.mrb[0].mxu0
      %v2774 = vpop.f32.mrb[0].mxu0
      %v2775 = vadd.f32 0.0, %v2774
      %v2776 = vpop.f32.mrb[0].mxu0
      %2777 = vmatprep.mubr.bf16.mxu0 0
      %2778 = vmatmul.mubr.bf16.gmra.mrb[0].mxu0 %v2685
      %v2779 = vpop.f32.mrb[0].mxu0
      %v2780 = vadd.f32 0.0, %v2779
      %v2781 = vpop.f32.mrb[0].mxu0
      %v2782 = vpop.f32.mrb[0].mxu0
      %v2783 = vadd.f32 0.0, %v2782
      %v2784 = vpop.f32.mrb[0].mxu0
      %2785 = vmatprep.mubr.bf16.mxu0 0
      %2786 = vmatmul.mubr.bf16.gmra.mrb[0].mxu0 %v2686
      %v2787 = vpop.f32.mrb[0].mxu0
      %v2788 = vadd.f32 0.0, %v2787
      %v2789 = vpop.f32.mrb[0].mxu0
      %v2790 = vpop.f32.mrb[0].mxu0
      %v2791 = vadd.f32 0.0, %v2790
      %v2792 = vpop.f32.mrb[0].mxu0
      %2793 = vmatprep.mubr.bf16.mxu0 0
      %2794 = vmatmul.mubr.bf16.gmra.mrb[0].mxu0 %v2687
      %v2795 = vpop.f32.mrb[0].mxu0
      %v2796 = vadd.f32 0.0, %v2795
      %v2797 = vpop.f32.mrb[0].mxu0
      %v2798 = vpop.f32.mrb[0].mxu0
      %v2799 = vadd.f32 0.0, %v2798
      %v2800 = vpop.f32.mrb[0].mxu0
      %2801 = vmatprep.mubr.bf16.mxu0 0
      %2802 = vmatmul.mubr.bf16.gmra.mrb[0].mxu0 %v2688
      %v2803 = vpop.f32.mrb[0].mxu0
      %v2804 = vadd.f32 0.0, %v2803
      %v2805 = vpop.f32.mrb[0].mxu0
      %v2806 = vpop.f32.mrb[0].mxu0
      %v2807 = vadd.f32 0.0, %v2806
      %v2808 = vpop.f32.mrb[0].mxu0
      %2809 = vdwg.mxu0
      %v2810 = vpack.c.bf16 %v2751, %v2748
      %v2811 = vpack.c.bf16 %v2759, %v2756
      %v2812 = vpack.c.bf16 %v2767, %v2764
      %v2813 = vpack.c.bf16 %v2775, %v2772
      %v2814 = vpack.c.bf16 %v2783, %v2780
      %v2815 = vpack.c.bf16 %v2791, %v2788
      %v2816 = vpack.c.bf16 %v2799, %v2796
      %v2817 = vpack.c.bf16 %v2807, %v2804
      %2818 = vrot.lane.b32.xlu0 %v445, 108
      %v2819 = vpop.permute.xlu0 %2818
      %2820 = vrot.lane.b32.xlu0 %v446, 108
      %v2821 = vpop.permute.xlu0 %2820
      %2822 = vrot.lane.b32.xlu0 %v447, 108
      %v2823 = vpop.permute.xlu0 %2822
      %2824 = vrot.lane.b32.xlu0 %v448, 108
      %v2825 = vpop.permute.xlu0 %2824
      %2826 = vrot.lane.b32.xlu0 %v449, 108
      %v2827 = vpop.permute.xlu0 %2826
      %2828 = vrot.lane.b32.xlu0 %v450, 108
      %v2829 = vpop.permute.xlu0 %2828
      %2830 = vrot.lane.b32.xlu0 %v451, 108
      %v2831 = vpop.permute.xlu0 %2830
      %2832 = vrot.lane.b32.xlu0 %v452, 108
      %v2833 = vpop.permute.xlu0 %2832
      %2834 = vrot.lane.b32.xlu0 %v445, 76
      %v2835 = vpop.permute.xlu0 %2834
      %2836 = vrot.lane.b32.xlu0 %v446, 76
      %v2837 = vpop.permute.xlu0 %2836
      %2838 = vrot.lane.b32.xlu0 %v447, 76
      %v2839 = vpop.permute.xlu0 %2838
      %2840 = vrot.lane.b32.xlu0 %v448, 76
      %v2841 = vpop.permute.xlu0 %2840
      %2842 = vrot.lane.b32.xlu0 %v449, 76
      %v2843 = vpop.permute.xlu0 %2842
      %2844 = vrot.lane.b32.xlu0 %v450, 76
      %v2845 = vpop.permute.xlu0 %2844
      %2846 = vrot.lane.b32.xlu0 %v451, 76
      %v2847 = vpop.permute.xlu0 %2846
      %2848 = vrot.lane.b32.xlu0 %v452, 76
      %v2849 = vpop.permute.xlu0 %2848
      %v2851 = vsel %vm477, %v2819, 0
      %v2854 = vsel %vm477, %v2821, 0
      %v2857 = vsel %vm477, %v2823, 0
      %v2860 = vsel %vm477, %v2825, 0
      %v2863 = vsel %vm477, %v2827, 0
      %v2866 = vsel %vm477, %v2829, 0
      %v2869 = vsel %vm477, %v2831, 0
      %v2872 = vsel %vm477, %v2833, 0
      %v2875 = vsel %vm477, %v2835, 0
      %v2878 = vsel %vm477, %v2837, 0
      %v2881 = vsel %vm477, %v2839, 0
      %v2884 = vsel %vm477, %v2841, 0
      %v2887 = vsel %vm477, %v2843, 0
      %v2890 = vsel %vm477, %v2845, 0
      %v2893 = vsel %vm477, %v2847, 0
      %v2896 = vsel %vm477, %v2849, 0
      %2898 = vmatprep.subr.bf16.mxu0 0
      %2899 = vmatpush1.bf16.xpose.msra.mxu0 %v2875
      %2900 = vmatprep.subr.bf16.mxu0 0
      %2901 = vmatpush1.bf16.xpose.msra.mxu0 %v2878
      %2902 = vmatprep.subr.bf16.mxu0 0
      %2903 = vmatpush1.bf16.xpose.msra.mxu0 %v2881
      %2904 = vmatprep.subr.bf16.mxu0 0
      %2905 = vmatpush1.bf16.xpose.msra.mxu0 %v2884
      %2906 = vmatprep.subr.bf16.mxu0 0
      %2907 = vmatpush1.bf16.xpose.msra.mxu0 %v2887
      %2908 = vmatprep.subr.bf16.mxu0 0
      %2909 = vmatpush1.bf16.xpose.msra.mxu0 %v2890
      %2910 = vmatprep.subr.bf16.mxu0 0
      %2911 = vmatpush1.bf16.xpose.msra.mxu0 %v2893
      %2912 = vmatprep.subr.bf16.mxu0 0
      %2913 = vmatpush1.bf16.xpose.msra.mxu0 %v2896
      %2914 = vmatprep.subr.bf16.mxu0 0
      %2915 = vmatpush1.bf16.xpose.msra.mxu0 0
      %2916 = vmatprep.subr.bf16.mxu0 0
      %2917 = vmatpush1.bf16.xpose.msra.mxu0 0
      %2918 = vmatprep.subr.bf16.mxu0 0
      %2919 = vmatpush1.bf16.xpose.msra.mxu0 0
      %2920 = vmatprep.subr.bf16.mxu0 0
      %2921 = vmatpush1.bf16.xpose.msra.mxu0 0
      %2922 = vmatprep.subr.bf16.mxu0 0
      %2923 = vmatpush1.bf16.xpose.msra.mxu0 0
      %2924 = vmatprep.subr.bf16.mxu0 0
      %2925 = vmatpush1.bf16.xpose.msra.mxu0 0
      %2926 = vmatprep.subr.bf16.mxu0 0
      %2927 = vmatpush1.bf16.xpose.msra.mxu0 0
      %2928 = vmatprep.subr.bf16.mxu0 0
      %2929 = vmatpush1.bf16.xpose.msra.mxu0 0
      %2930 = vmatprep.mubr.bf16.mxu0 0
      %2931 = vmatmul.mubr.bf16.gmra.mrb[0].mxu0 %v2851
      %v2932 = vpop.f32.mrb[0].mxu0
      %v2933 = vadd.f32 0.0, %v2932
      %v2934 = vpop.f32.mrb[0].mxu0
      %v2935 = vpop.f32.mrb[0].mxu0
      %v2936 = vadd.f32 0.0, %v2935
      %v2937 = vpop.f32.mrb[0].mxu0
      %2938 = vmatprep.mubr.bf16.mxu0 0
      %2939 = vmatmul.mubr.bf16.gmra.mrb[0].mxu0 %v2854
      %v2940 = vpop.f32.mrb[0].mxu0
      %v2941 = vadd.f32 0.0, %v2940
      %v2942 = vpop.f32.mrb[0].mxu0
      %v2943 = vpop.f32.mrb[0].mxu0
      %v2944 = vadd.f32 0.0, %v2943
      %v2945 = vpop.f32.mrb[0].mxu0
      %2946 = vmatprep.mubr.bf16.mxu0 0
      %2947 = vmatmul.mubr.bf16.gmra.mrb[0].mxu0 %v2857
      %v2948 = vpop.f32.mrb[0].mxu0
      %v2949 = vadd.f32 0.0, %v2948
      %v2950 = vpop.f32.mrb[0].mxu0
      %v2951 = vpop.f32.mrb[0].mxu0
      %v2952 = vadd.f32 0.0, %v2951
      %v2953 = vpop.f32.mrb[0].mxu0
      %2954 = vmatprep.mubr.bf16.mxu0 0
      %2955 = vmatmul.mubr.bf16.gmra.mrb[0].mxu0 %v2860
      %v2956 = vpop.f32.mrb[0].mxu0
      %v2957 = vadd.f32 0.0, %v2956
      %v2958 = vpop.f32.mrb[0].mxu0
      %v2959 = vpop.f32.mrb[0].mxu0
      %v2960 = vadd.f32 0.0, %v2959
      %v2961 = vpop.f32.mrb[0].mxu0
      %2962 = vmatprep.mubr.bf16.mxu0 0
      %2963 = vmatmul.mubr.bf16.gmra.mrb[0].mxu0 %v2863
      %v2964 = vpop.f32.mrb[0].mxu0
      %v2965 = vadd.f32 0.0, %v2964
      %v2966 = vpop.f32.mrb[0].mxu0
      %v2967 = vpop.f32.mrb[0].mxu0
      %v2968 = vadd.f32 0.0, %v2967
      %v2969 = vpop.f32.mrb[0].mxu0
      %2970 = vmatprep.mubr.bf16.mxu0 0
      %2971 = vmatmul.mubr.bf16.gmra.mrb[0].mxu0 %v2866
      %v2972 = vpop.f32.mrb[0].mxu0
      %v2973 = vadd.f32 0.0, %v2972
      %v2974 = vpop.f32.mrb[0].mxu0
      %v2975 = vpop.f32.mrb[0].mxu0
      %v2976 = vadd.f32 0.0, %v2975
      %v2977 = vpop.f32.mrb[0].mxu0
      %2978 = vmatprep.mubr.bf16.mxu0 0
      %2979 = vmatmul.mubr.bf16.gmra.mrb[0].mxu0 %v2869
      %v2980 = vpop.f32.mrb[0].mxu0
      %v2981 = vadd.f32 0.0, %v2980
      %v2982 = vpop.f32.mrb[0].mxu0
      %v2983 = vpop.f32.mrb[0].mxu0
      %v2984 = vadd.f32 0.0, %v2983
      %v2985 = vpop.f32.mrb[0].mxu0
      %2986 = vmatprep.mubr.bf16.mxu0 0
      %2987 = vmatmul.mubr.bf16.gmra.mrb[0].mxu0 %v2872
      %v2988 = vpop.f32.mrb[0].mxu0
      %v2989 = vadd.f32 0.0, %v2988
      %v2990 = vpop.f32.mrb[0].mxu0
      %v2991 = vpop.f32.mrb[0].mxu0
      %v2992 = vadd.f32 0.0, %v2991
      %v2993 = vpop.f32.mrb[0].mxu0
      %2994 = vdwg.mxu0
      %v2995 = vsel %vm624, %v2933, -1e+30
      %v2996 = vsel %vm624, %v2936, -1e+30
      %v2997 = vsel %vm624, %v2941, -1e+30
      %v2998 = vsel %vm624, %v2944, -1e+30
      %v2999 = vsel %vm624, %v2949, -1e+30
      %v3000 = vsel %vm624, %v2952, -1e+30
      %v3001 = vsel %vm624, %v2957, -1e+30
      %v3002 = vsel %vm624, %v2960, -1e+30
      %v3003 = vsel %vm624, %v2965, -1e+30
      %v3004 = vsel %vm624, %v2968, -1e+30
      %v3005 = vsel %vm624, %v2973, -1e+30
      %v3006 = vsel %vm624, %v2976, -1e+30
      %v3007 = vsel %vm624, %v2981, -1e+30
      %v3008 = vsel %vm624, %v2984, -1e+30
      %v3009 = vsel %vm624, %v2989, -1e+30
      %v3010 = vsel %vm624, %v2992, -1e+30
      %3011 = vmax.xlane.f32.xlu0 %v2995
      %v3012 = vpop.xlane.xlu0 %3011
      %3013 = vmax.xlane.f32.xlu0 %v2996
      %v3014 = vpop.xlane.xlu0 %3013
      %3015 = vmax.xlane.f32.xlu0 %v2997
      %v3016 = vpop.xlane.xlu0 %3015
      %3017 = vmax.xlane.f32.xlu0 %v2998
      %v3018 = vpop.xlane.xlu0 %3017
      %3019 = vmax.xlane.f32.xlu0 %v2999
      %v3020 = vpop.xlane.xlu0 %3019
      %3021 = vmax.xlane.f32.xlu0 %v3000
      %v3022 = vpop.xlane.xlu0 %3021
      %3023 = vmax.xlane.f32.xlu0 %v3001
      %v3024 = vpop.xlane.xlu0 %3023
      %3025 = vmax.xlane.f32.xlu0 %v3002
      %v3026 = vpop.xlane.xlu0 %3025
      %3027 = vmax.xlane.f32.xlu0 %v3003
      %v3028 = vpop.xlane.xlu0 %3027
      %3029 = vmax.xlane.f32.xlu0 %v3004
      %v3030 = vpop.xlane.xlu0 %3029
      %3031 = vmax.xlane.f32.xlu0 %v3005
      %v3032 = vpop.xlane.xlu0 %3031
      %3033 = vmax.xlane.f32.xlu0 %v3006
      %v3034 = vpop.xlane.xlu0 %3033
      %3035 = vmax.xlane.f32.xlu0 %v3007
      %v3036 = vpop.xlane.xlu0 %3035
      %3037 = vmax.xlane.f32.xlu0 %v3008
      %v3038 = vpop.xlane.xlu0 %3037
      %3039 = vmax.xlane.f32.xlu0 %v3009
      %v3040 = vpop.xlane.xlu0 %3039
      %3041 = vmax.xlane.f32.xlu0 %v3010
      %v3042 = vpop.xlane.xlu0 %3041
      %v3043 = vsub.f32 %v2995, %v3012
      %v3044 = vsub.f32 %v2996, %v3014
      %v3045 = vsub.f32 %v2997, %v3016
      %v3046 = vsub.f32 %v2998, %v3018
      %v3047 = vsub.f32 %v2999, %v3020
      %v3048 = vsub.f32 %v3000, %v3022
      %v3049 = vsub.f32 %v3001, %v3024
      %v3050 = vsub.f32 %v3002, %v3026
      %v3051 = vsub.f32 %v3003, %v3028
      %v3052 = vsub.f32 %v3004, %v3030
      %v3053 = vsub.f32 %v3005, %v3032
      %v3054 = vsub.f32 %v3006, %v3034
      %v3055 = vsub.f32 %v3007, %v3036
      %v3056 = vsub.f32 %v3008, %v3038
      %v3057 = vsub.f32 %v3009, %v3040
      %v3058 = vsub.f32 %v3010, %v3042
      %v3059 = vmul.f32 %v3043, 1.442695
      %v3060 = vpow.pop %v3059
      %v3061 = vmul.f32 %v3044, 1.442695
      %v3062 = vpow.pop %v3061
      %v3063 = vmul.f32 %v3045, 1.442695
      %v3064 = vpow.pop %v3063
      %v3065 = vmul.f32 %v3046, 1.442695
      %v3066 = vpow.pop %v3065
      %v3067 = vmul.f32 %v3047, 1.442695
      %v3068 = vpow.pop %v3067
      %v3069 = vmul.f32 %v3048, 1.442695
      %v3070 = vpow.pop %v3069
      %v3071 = vmul.f32 %v3049, 1.442695
      %v3072 = vpow.pop %v3071
      %v3073 = vmul.f32 %v3050, 1.442695
      %v3074 = vpow.pop %v3073
      %v3075 = vmul.f32 %v3051, 1.442695
      %v3076 = vpow.pop %v3075
      %v3077 = vmul.f32 %v3052, 1.442695
      %v3078 = vpow.pop %v3077
      %v3079 = vmul.f32 %v3053, 1.442695
      %v3080 = vpow.pop %v3079
      %v3081 = vmul.f32 %v3054, 1.442695
      %v3082 = vpow.pop %v3081
      %v3083 = vmul.f32 %v3055, 1.442695
      %v3084 = vpow.pop %v3083
      %v3085 = vmul.f32 %v3056, 1.442695
      %v3086 = vpow.pop %v3085
      %v3087 = vmul.f32 %v3057, 1.442695
      %v3088 = vpow.pop %v3087
      %v3089 = vmul.f32 %v3058, 1.442695
      %v3090 = vpow.pop %v3089
      %3091 = vadd.xlane.f32.xlu0 %v3060
      %v3092 = vpop.xlane.xlu0 %3091
      %3093 = vadd.xlane.f32.xlu0 %v3062
      %v3094 = vpop.xlane.xlu0 %3093
      %3095 = vadd.xlane.f32.xlu0 %v3064
      %v3096 = vpop.xlane.xlu0 %3095
      %3097 = vadd.xlane.f32.xlu0 %v3066
      %v3098 = vpop.xlane.xlu0 %3097
      %3099 = vadd.xlane.f32.xlu0 %v3068
      %v3100 = vpop.xlane.xlu0 %3099
      %3101 = vadd.xlane.f32.xlu0 %v3070
      %v3102 = vpop.xlane.xlu0 %3101
      %3103 = vadd.xlane.f32.xlu0 %v3072
      %v3104 = vpop.xlane.xlu0 %3103
      %3105 = vadd.xlane.f32.xlu0 %v3074
      %v3106 = vpop.xlane.xlu0 %3105
      %3107 = vadd.xlane.f32.xlu0 %v3076
      %v3108 = vpop.xlane.xlu0 %3107
      %3109 = vadd.xlane.f32.xlu0 %v3078
      %v3110 = vpop.xlane.xlu0 %3109
      %3111 = vadd.xlane.f32.xlu0 %v3080
      %v3112 = vpop.xlane.xlu0 %3111
      %3113 = vadd.xlane.f32.xlu0 %v3082
      %v3114 = vpop.xlane.xlu0 %3113
      %3115 = vadd.xlane.f32.xlu0 %v3084
      %v3116 = vpop.xlane.xlu0 %3115
      %3117 = vadd.xlane.f32.xlu0 %v3086
      %v3118 = vpop.xlane.xlu0 %3117
      %3119 = vadd.xlane.f32.xlu0 %v3088
      %v3120 = vpop.xlane.xlu0 %3119
      %3121 = vadd.xlane.f32.xlu0 %v3090
      %v3122 = vpop.xlane.xlu0 %3121
      %v3123 = vrcp.pop %v3092
      %v3124 = vrcp.pop %v3094
      %v3125 = vrcp.pop %v3096
      %v3126 = vrcp.pop %v3098
      %v3127 = vrcp.pop %v3100
      %v3128 = vrcp.pop %v3102
      %v3129 = vrcp.pop %v3104
      %v3130 = vrcp.pop %v3106
      %v3131 = vrcp.pop %v3108
      %v3132 = vrcp.pop %v3110
      %v3133 = vrcp.pop %v3112
      %v3134 = vrcp.pop %v3114
      %v3135 = vrcp.pop %v3116
      %v3136 = vrcp.pop %v3118
      %v3137 = vrcp.pop %v3120
      %v3138 = vrcp.pop %v3122
      %v3139 = vmul.f32 %v3060, %v3123
      %v3140 = vmul.f32 %v3062, %v3124
      %v3141 = vmul.f32 %v3064, %v3125
      %v3142 = vmul.f32 %v3066, %v3126
      %v3143 = vmul.f32 %v3068, %v3127
      %v3144 = vmul.f32 %v3070, %v3128
      %v3145 = vmul.f32 %v3072, %v3129
      %v3146 = vmul.f32 %v3074, %v3130
      %v3147 = vmul.f32 %v3076, %v3131
      %v3148 = vmul.f32 %v3078, %v3132
      %v3149 = vmul.f32 %v3080, %v3133
      %v3150 = vmul.f32 %v3082, %v3134
      %v3151 = vmul.f32 %v3084, %v3135
      %v3152 = vmul.f32 %v3086, %v3136
      %v3153 = vmul.f32 %v3088, %v3137
      %v3154 = vmul.f32 %v3090, %v3138
      %v3155 = vpack.c.bf16 %v3140, %v3139
      %v3156 = vpack.c.bf16 %v3142, %v3141
      %v3157 = vpack.c.bf16 %v3144, %v3143
      %v3158 = vpack.c.bf16 %v3146, %v3145
      %v3159 = vpack.c.bf16 %v3148, %v3147
      %v3160 = vpack.c.bf16 %v3150, %v3149
      %v3161 = vpack.c.bf16 %v3152, %v3151
      %v3162 = vpack.c.bf16 %v3154, %v3153
      %3163 = vrot.lane.b32.xlu0 %v445, 44
      %v3164 = vpop.permute.xlu0 %3163
      %3165 = vrot.lane.b32.xlu0 %v446, 44
      %v3166 = vpop.permute.xlu0 %3165
      %3167 = vrot.lane.b32.xlu0 %v447, 44
      %v3168 = vpop.permute.xlu0 %3167
      %3169 = vrot.lane.b32.xlu0 %v448, 44
      %v3170 = vpop.permute.xlu0 %3169
      %3171 = vrot.lane.b32.xlu0 %v449, 44
      %v3172 = vpop.permute.xlu0 %3171
      %3173 = vrot.lane.b32.xlu0 %v450, 44
      %v3174 = vpop.permute.xlu0 %3173
      %3175 = vrot.lane.b32.xlu0 %v451, 44
      %v3176 = vpop.permute.xlu0 %3175
      %3177 = vrot.lane.b32.xlu0 %v452, 44
      %v3178 = vpop.permute.xlu0 %3177
      %3187 = vmatprep.subr.bf16.mxu0 0
      %3188 = vmatpush1.bf16.msra.mxu0 %v3164
      %3189 = vmatprep.subr.bf16.mxu0 0
      %3190 = vmatpush1.bf16.msra.mxu0 %v3166
      %3191 = vmatprep.subr.bf16.mxu0 0
      %3192 = vmatpush1.bf16.msra.mxu0 %v3168
      %3193 = vmatprep.subr.bf16.mxu0 0
      %3194 = vmatpush1.bf16.msra.mxu0 %v3170
      %3195 = vmatprep.subr.bf16.mxu0 0
      %3196 = vmatpush1.bf16.msra.mxu0 %v3172
      %3197 = vmatprep.subr.bf16.mxu0 0
      %3198 = vmatpush1.bf16.msra.mxu0 %v3174
      %3199 = vmatprep.subr.bf16.mxu0 0
      %3200 = vmatpush1.bf16.msra.mxu0 %v3176
      %3201 = vmatprep.subr.bf16.mxu0 0
      %3202 = vmatpush1.bf16.msra.mxu0 %v3178
      %3203 = vmatprep.subr.bf16.mxu0 0
      %3204 = vmatpush1.bf16.msra.mxu0 0
      %3205 = vmatprep.subr.bf16.mxu0 0
      %3206 = vmatpush1.bf16.msra.mxu0 0
      %3207 = vmatprep.subr.bf16.mxu0 0
      %3208 = vmatpush1.bf16.msra.mxu0 0
      %3209 = vmatprep.subr.bf16.mxu0 0
      %3210 = vmatpush1.bf16.msra.mxu0 0
      %3211 = vmatprep.subr.bf16.mxu0 0
      %3212 = vmatpush1.bf16.msra.mxu0 0
      %3213 = vmatprep.subr.bf16.mxu0 0
      %3214 = vmatpush1.bf16.msra.mxu0 0
      %3215 = vmatprep.subr.bf16.mxu0 0
      %3216 = vmatpush1.bf16.msra.mxu0 0
      %3217 = vmatprep.subr.bf16.mxu0 0
      %3218 = vmatpush1.bf16.msra.mxu0 0
      %3219 = vmatprep.mubr.bf16.mxu0 0
      %3220 = vmatmul.mubr.bf16.gmra.mrb[0].mxu0 %v3155
      %v3221 = vpop.f32.mrb[0].mxu0
      %v3222 = vadd.f32 0.0, %v3221
      %v3223 = vpop.f32.mrb[0].mxu0
      %v3224 = vpop.f32.mrb[0].mxu0
      %v3225 = vadd.f32 0.0, %v3224
      %v3226 = vpop.f32.mrb[0].mxu0
      %3227 = vmatprep.mubr.bf16.mxu0 0
      %3228 = vmatmul.mubr.bf16.gmra.mrb[0].mxu0 %v3156
      %v3229 = vpop.f32.mrb[0].mxu0
      %v3230 = vadd.f32 0.0, %v3229
      %v3231 = vpop.f32.mrb[0].mxu0
      %v3232 = vpop.f32.mrb[0].mxu0
      %v3233 = vadd.f32 0.0, %v3232
      %v3234 = vpop.f32.mrb[0].mxu0
      %3235 = vmatprep.mubr.bf16.mxu0 0
      %3236 = vmatmul.mubr.bf16.gmra.mrb[0].mxu0 %v3157
      %v3237 = vpop.f32.mrb[0].mxu0
      %v3238 = vadd.f32 0.0, %v3237
      %v3239 = vpop.f32.mrb[0].mxu0
      %v3240 = vpop.f32.mrb[0].mxu0
      %v3241 = vadd.f32 0.0, %v3240
      %v3242 = vpop.f32.mrb[0].mxu0
      %3243 = vmatprep.mubr.bf16.mxu0 0
      %3244 = vmatmul.mubr.bf16.gmra.mrb[0].mxu0 %v3158
      %v3245 = vpop.f32.mrb[0].mxu0
      %v3246 = vadd.f32 0.0, %v3245
      %v3247 = vpop.f32.mrb[0].mxu0
      %v3248 = vpop.f32.mrb[0].mxu0
      %v3249 = vadd.f32 0.0, %v3248
      %v3250 = vpop.f32.mrb[0].mxu0
      %3251 = vmatprep.mubr.bf16.mxu0 0
      %3252 = vmatmul.mubr.bf16.gmra.mrb[0].mxu0 %v3159
      %v3253 = vpop.f32.mrb[0].mxu0
      %v3254 = vadd.f32 0.0, %v3253
      %v3255 = vpop.f32.mrb[0].mxu0
      %v3256 = vpop.f32.mrb[0].mxu0
      %v3257 = vadd.f32 0.0, %v3256
      %v3258 = vpop.f32.mrb[0].mxu0
      %3259 = vmatprep.mubr.bf16.mxu0 0
      %3260 = vmatmul.mubr.bf16.gmra.mrb[0].mxu0 %v3160
      %v3261 = vpop.f32.mrb[0].mxu0
      %v3262 = vadd.f32 0.0, %v3261
      %v3263 = vpop.f32.mrb[0].mxu0
      %v3264 = vpop.f32.mrb[0].mxu0
      %v3265 = vadd.f32 0.0, %v3264
      %v3266 = vpop.f32.mrb[0].mxu0
      %3267 = vmatprep.mubr.bf16.mxu0 0
      %3268 = vmatmul.mubr.bf16.gmra.mrb[0].mxu0 %v3161
      %v3269 = vpop.f32.mrb[0].mxu0
      %v3270 = vadd.f32 0.0, %v3269
      %v3271 = vpop.f32.mrb[0].mxu0
      %v3272 = vpop.f32.mrb[0].mxu0
      %v3273 = vadd.f32 0.0, %v3272
      %v3274 = vpop.f32.mrb[0].mxu0
      %3275 = vmatprep.mubr.bf16.mxu0 0
      %3276 = vmatmul.mubr.bf16.gmra.mrb[0].mxu0 %v3162
      %v3277 = vpop.f32.mrb[0].mxu0
      %v3278 = vadd.f32 0.0, %v3277
      %v3279 = vpop.f32.mrb[0].mxu0
      %v3280 = vpop.f32.mrb[0].mxu0
      %v3281 = vadd.f32 0.0, %v3280
      %v3282 = vpop.f32.mrb[0].mxu0
      %3283 = vdwg.mxu0
      %v3284 = vpack.c.bf16 %v3225, %v3222
      %v3285 = vpack.c.bf16 %v3233, %v3230
      %v3286 = vpack.c.bf16 %v3241, %v3238
      %v3287 = vpack.c.bf16 %v3249, %v3246
      %v3288 = vpack.c.bf16 %v3257, %v3254
      %v3289 = vpack.c.bf16 %v3265, %v3262
      %v3290 = vpack.c.bf16 %v3273, %v3270
      %v3291 = vpack.c.bf16 %v3281, %v3278
      %3292 = vrot.lane.b32.xlu0 %v445, 104
      %v3293 = vpop.permute.xlu0 %3292
      %3294 = vrot.lane.b32.xlu0 %v446, 104
      %v3295 = vpop.permute.xlu0 %3294
      %3296 = vrot.lane.b32.xlu0 %v447, 104
      %v3297 = vpop.permute.xlu0 %3296
      %3298 = vrot.lane.b32.xlu0 %v448, 104
      %v3299 = vpop.permute.xlu0 %3298
      %3300 = vrot.lane.b32.xlu0 %v449, 104
      %v3301 = vpop.permute.xlu0 %3300
      %3302 = vrot.lane.b32.xlu0 %v450, 104
      %v3303 = vpop.permute.xlu0 %3302
      %3304 = vrot.lane.b32.xlu0 %v451, 104
      %v3305 = vpop.permute.xlu0 %3304
      %3306 = vrot.lane.b32.xlu0 %v452, 104
      %v3307 = vpop.permute.xlu0 %3306
      %3308 = vrot.lane.b32.xlu0 %v445, 72
      %v3309 = vpop.permute.xlu0 %3308
      %3310 = vrot.lane.b32.xlu0 %v446, 72
      %v3311 = vpop.permute.xlu0 %3310
      %3312 = vrot.lane.b32.xlu0 %v447, 72
      %v3313 = vpop.permute.xlu0 %3312
      %3314 = vrot.lane.b32.xlu0 %v448, 72
      %v3315 = vpop.permute.xlu0 %3314
      %3316 = vrot.lane.b32.xlu0 %v449, 72
      %v3317 = vpop.permute.xlu0 %3316
      %3318 = vrot.lane.b32.xlu0 %v450, 72
      %v3319 = vpop.permute.xlu0 %3318
      %3320 = vrot.lane.b32.xlu0 %v451, 72
      %v3321 = vpop.permute.xlu0 %3320
      %3322 = vrot.lane.b32.xlu0 %v452, 72
      %v3323 = vpop.permute.xlu0 %3322
      %v3325 = vsel %vm477, %v3293, 0
      %v3328 = vsel %vm477, %v3295, 0
      %v3331 = vsel %vm477, %v3297, 0
      %v3334 = vsel %vm477, %v3299, 0
      %v3337 = vsel %vm477, %v3301, 0
      %v3340 = vsel %vm477, %v3303, 0
      %v3343 = vsel %vm477, %v3305, 0
      %v3346 = vsel %vm477, %v3307, 0
      %v3349 = vsel %vm477, %v3309, 0
      %v3352 = vsel %vm477, %v3311, 0
      %v3355 = vsel %vm477, %v3313, 0
      %v3358 = vsel %vm477, %v3315, 0
      %v3361 = vsel %vm477, %v3317, 0
      %v3364 = vsel %vm477, %v3319, 0
      %v3367 = vsel %vm477, %v3321, 0
      %v3370 = vsel %vm477, %v3323, 0
      %3372 = vmatprep.subr.bf16.mxu0 0
      %3373 = vmatpush1.bf16.xpose.msra.mxu0 %v3349
      %3374 = vmatprep.subr.bf16.mxu0 0
      %3375 = vmatpush1.bf16.xpose.msra.mxu0 %v3352
      %3376 = vmatprep.subr.bf16.mxu0 0
      %3377 = vmatpush1.bf16.xpose.msra.mxu0 %v3355
      %3378 = vmatprep.subr.bf16.mxu0 0
      %3379 = vmatpush1.bf16.xpose.msra.mxu0 %v3358
      %3380 = vmatprep.subr.bf16.mxu0 0
      %3381 = vmatpush1.bf16.xpose.msra.mxu0 %v3361
      %3382 = vmatprep.subr.bf16.mxu0 0
      %3383 = vmatpush1.bf16.xpose.msra.mxu0 %v3364
      %3384 = vmatprep.subr.bf16.mxu0 0
      %3385 = vmatpush1.bf16.xpose.msra.mxu0 %v3367
      %3386 = vmatprep.subr.bf16.mxu0 0
      %3387 = vmatpush1.bf16.xpose.msra.mxu0 %v3370
      %3388 = vmatprep.subr.bf16.mxu0 0
      %3389 = vmatpush1.bf16.xpose.msra.mxu0 0
      %3390 = vmatprep.subr.bf16.mxu0 0
      %3391 = vmatpush1.bf16.xpose.msra.mxu0 0
      %3392 = vmatprep.subr.bf16.mxu0 0
      %3393 = vmatpush1.bf16.xpose.msra.mxu0 0
      %3394 = vmatprep.subr.bf16.mxu0 0
      %3395 = vmatpush1.bf16.xpose.msra.mxu0 0
      %3396 = vmatprep.subr.bf16.mxu0 0
      %3397 = vmatpush1.bf16.xpose.msra.mxu0 0
      %3398 = vmatprep.subr.bf16.mxu0 0
      %3399 = vmatpush1.bf16.xpose.msra.mxu0 0
      %3400 = vmatprep.subr.bf16.mxu0 0
      %3401 = vmatpush1.bf16.xpose.msra.mxu0 0
      %3402 = vmatprep.subr.bf16.mxu0 0
      %3403 = vmatpush1.bf16.xpose.msra.mxu0 0
      %3404 = vmatprep.mubr.bf16.mxu0 0
      %3405 = vmatmul.mubr.bf16.gmra.mrb[0].mxu0 %v3325
      %v3406 = vpop.f32.mrb[0].mxu0
      %v3407 = vadd.f32 0.0, %v3406
      %v3408 = vpop.f32.mrb[0].mxu0
      %v3409 = vpop.f32.mrb[0].mxu0
      %v3410 = vadd.f32 0.0, %v3409
      %v3411 = vpop.f32.mrb[0].mxu0
      %3412 = vmatprep.mubr.bf16.mxu0 0
      %3413 = vmatmul.mubr.bf16.gmra.mrb[0].mxu0 %v3328
      %v3414 = vpop.f32.mrb[0].mxu0
      %v3415 = vadd.f32 0.0, %v3414
      %v3416 = vpop.f32.mrb[0].mxu0
      %v3417 = vpop.f32.mrb[0].mxu0
      %v3418 = vadd.f32 0.0, %v3417
      %v3419 = vpop.f32.mrb[0].mxu0
      %3420 = vmatprep.mubr.bf16.mxu0 0
      %3421 = vmatmul.mubr.bf16.gmra.mrb[0].mxu0 %v3331
      %v3422 = vpop.f32.mrb[0].mxu0
      %v3423 = vadd.f32 0.0, %v3422
      %v3424 = vpop.f32.mrb[0].mxu0
      %v3425 = vpop.f32.mrb[0].mxu0
      %v3426 = vadd.f32 0.0, %v3425
      %v3427 = vpop.f32.mrb[0].mxu0
      %3428 = vmatprep.mubr.bf16.mxu0 0
      %3429 = vmatmul.mubr.bf16.gmra.mrb[0].mxu0 %v3334
      %v3430 = vpop.f32.mrb[0].mxu0
      %v3431 = vadd.f32 0.0, %v3430
      %v3432 = vpop.f32.mrb[0].mxu0
      %v3433 = vpop.f32.mrb[0].mxu0
      %v3434 = vadd.f32 0.0, %v3433
      %v3435 = vpop.f32.mrb[0].mxu0
      %3436 = vmatprep.mubr.bf16.mxu0 0
      %3437 = vmatmul.mubr.bf16.gmra.mrb[0].mxu0 %v3337
      %v3438 = vpop.f32.mrb[0].mxu0
      %v3439 = vadd.f32 0.0, %v3438
      %v3440 = vpop.f32.mrb[0].mxu0
      %v3441 = vpop.f32.mrb[0].mxu0
      %v3442 = vadd.f32 0.0, %v3441
      %v3443 = vpop.f32.mrb[0].mxu0
      %3444 = vmatprep.mubr.bf16.mxu0 0
      %3445 = vmatmul.mubr.bf16.gmra.mrb[0].mxu0 %v3340
      %v3446 = vpop.f32.mrb[0].mxu0
      %v3447 = vadd.f32 0.0, %v3446
      %v3448 = vpop.f32.mrb[0].mxu0
      %v3449 = vpop.f32.mrb[0].mxu0
      %v3450 = vadd.f32 0.0, %v3449
      %v3451 = vpop.f32.mrb[0].mxu0
      %3452 = vmatprep.mubr.bf16.mxu0 0
      %3453 = vmatmul.mubr.bf16.gmra.mrb[0].mxu0 %v3343
      %v3454 = vpop.f32.mrb[0].mxu0
      %v3455 = vadd.f32 0.0, %v3454
      %v3456 = vpop.f32.mrb[0].mxu0
      %v3457 = vpop.f32.mrb[0].mxu0
      %v3458 = vadd.f32 0.0, %v3457
      %v3459 = vpop.f32.mrb[0].mxu0
      %3460 = vmatprep.mubr.bf16.mxu0 0
      %3461 = vmatmul.mubr.bf16.gmra.mrb[0].mxu0 %v3346
      %v3462 = vpop.f32.mrb[0].mxu0
      %v3463 = vadd.f32 0.0, %v3462
      %v3464 = vpop.f32.mrb[0].mxu0
      %v3465 = vpop.f32.mrb[0].mxu0
      %v3466 = vadd.f32 0.0, %v3465
      %v3467 = vpop.f32.mrb[0].mxu0
      %3468 = vdwg.mxu0
      %v3469 = vsel %vm624, %v3407, -1e+30
      %v3470 = vsel %vm624, %v3410, -1e+30
      %v3471 = vsel %vm624, %v3415, -1e+30
      %v3472 = vsel %vm624, %v3418, -1e+30
      %v3473 = vsel %vm624, %v3423, -1e+30
      %v3474 = vsel %vm624, %v3426, -1e+30
      %v3475 = vsel %vm624, %v3431, -1e+30
      %v3476 = vsel %vm624, %v3434, -1e+30
      %v3477 = vsel %vm624, %v3439, -1e+30
      %v3478 = vsel %vm624, %v3442, -1e+30
      %v3479 = vsel %vm624, %v3447, -1e+30
      %v3480 = vsel %vm624, %v3450, -1e+30
      %v3481 = vsel %vm624, %v3455, -1e+30
      %v3482 = vsel %vm624, %v3458, -1e+30
      %v3483 = vsel %vm624, %v3463, -1e+30
      %v3484 = vsel %vm624, %v3466, -1e+30
      %3485 = vmax.xlane.f32.xlu0 %v3469
      %v3486 = vpop.xlane.xlu0 %3485
      %3487 = vmax.xlane.f32.xlu0 %v3470
      %v3488 = vpop.xlane.xlu0 %3487
      %3489 = vmax.xlane.f32.xlu0 %v3471
      %v3490 = vpop.xlane.xlu0 %3489
      %3491 = vmax.xlane.f32.xlu0 %v3472
      %v3492 = vpop.xlane.xlu0 %3491
      %3493 = vmax.xlane.f32.xlu0 %v3473
      %v3494 = vpop.xlane.xlu0 %3493
      %3495 = vmax.xlane.f32.xlu0 %v3474
      %v3496 = vpop.xlane.xlu0 %3495
      %3497 = vmax.xlane.f32.xlu0 %v3475
      %v3498 = vpop.xlane.xlu0 %3497
      %3499 = vmax.xlane.f32.xlu0 %v3476
      %v3500 = vpop.xlane.xlu0 %3499
      %3501 = vmax.xlane.f32.xlu0 %v3477
      %v3502 = vpop.xlane.xlu0 %3501
      %3503 = vmax.xlane.f32.xlu0 %v3478
      %v3504 = vpop.xlane.xlu0 %3503
      %3505 = vmax.xlane.f32.xlu0 %v3479
      %v3506 = vpop.xlane.xlu0 %3505
      %3507 = vmax.xlane.f32.xlu0 %v3480
      %v3508 = vpop.xlane.xlu0 %3507
      %3509 = vmax.xlane.f32.xlu0 %v3481
      %v3510 = vpop.xlane.xlu0 %3509
      %3511 = vmax.xlane.f32.xlu0 %v3482
      %v3512 = vpop.xlane.xlu0 %3511
      %3513 = vmax.xlane.f32.xlu0 %v3483
      %v3514 = vpop.xlane.xlu0 %3513
      %3515 = vmax.xlane.f32.xlu0 %v3484
      %v3516 = vpop.xlane.xlu0 %3515
      %v3517 = vsub.f32 %v3469, %v3486
      %v3518 = vsub.f32 %v3470, %v3488
      %v3519 = vsub.f32 %v3471, %v3490
      %v3520 = vsub.f32 %v3472, %v3492
      %v3521 = vsub.f32 %v3473, %v3494
      %v3522 = vsub.f32 %v3474, %v3496
      %v3523 = vsub.f32 %v3475, %v3498
      %v3524 = vsub.f32 %v3476, %v3500
      %v3525 = vsub.f32 %v3477, %v3502
      %v3526 = vsub.f32 %v3478, %v3504
      %v3527 = vsub.f32 %v3479, %v3506
      %v3528 = vsub.f32 %v3480, %v3508
      %v3529 = vsub.f32 %v3481, %v3510
      %v3530 = vsub.f32 %v3482, %v3512
      %v3531 = vsub.f32 %v3483, %v3514
      %v3532 = vsub.f32 %v3484, %v3516
      %v3533 = vmul.f32 %v3517, 1.442695
      %v3534 = vpow.pop %v3533
      %v3535 = vmul.f32 %v3518, 1.442695
      %v3536 = vpow.pop %v3535
      %v3537 = vmul.f32 %v3519, 1.442695
      %v3538 = vpow.pop %v3537
      %v3539 = vmul.f32 %v3520, 1.442695
      %v3540 = vpow.pop %v3539
      %v3541 = vmul.f32 %v3521, 1.442695
      %v3542 = vpow.pop %v3541
      %v3543 = vmul.f32 %v3522, 1.442695
      %v3544 = vpow.pop %v3543
      %v3545 = vmul.f32 %v3523, 1.442695
      %v3546 = vpow.pop %v3545
      %v3547 = vmul.f32 %v3524, 1.442695
      %v3548 = vpow.pop %v3547
      %v3549 = vmul.f32 %v3525, 1.442695
      %v3550 = vpow.pop %v3549
      %v3551 = vmul.f32 %v3526, 1.442695
      %v3552 = vpow.pop %v3551
      %v3553 = vmul.f32 %v3527, 1.442695
      %v3554 = vpow.pop %v3553
      %v3555 = vmul.f32 %v3528, 1.442695
      %v3556 = vpow.pop %v3555
      %v3557 = vmul.f32 %v3529, 1.442695
      %v3558 = vpow.pop %v3557
      %v3559 = vmul.f32 %v3530, 1.442695
      %v3560 = vpow.pop %v3559
      %v3561 = vmul.f32 %v3531, 1.442695
      %v3562 = vpow.pop %v3561
      %v3563 = vmul.f32 %v3532, 1.442695
      %v3564 = vpow.pop %v3563
      %3565 = vadd.xlane.f32.xlu0 %v3534
      %v3566 = vpop.xlane.xlu0 %3565
      %3567 = vadd.xlane.f32.xlu0 %v3536
      %v3568 = vpop.xlane.xlu0 %3567
      %3569 = vadd.xlane.f32.xlu0 %v3538
      %v3570 = vpop.xlane.xlu0 %3569
      %3571 = vadd.xlane.f32.xlu0 %v3540
      %v3572 = vpop.xlane.xlu0 %3571
      %3573 = vadd.xlane.f32.xlu0 %v3542
      %v3574 = vpop.xlane.xlu0 %3573
      %3575 = vadd.xlane.f32.xlu0 %v3544
      %v3576 = vpop.xlane.xlu0 %3575
      %3577 = vadd.xlane.f32.xlu0 %v3546
      %v3578 = vpop.xlane.xlu0 %3577
      %3579 = vadd.xlane.f32.xlu0 %v3548
      %v3580 = vpop.xlane.xlu0 %3579
      %3581 = vadd.xlane.f32.xlu0 %v3550
      %v3582 = vpop.xlane.xlu0 %3581
      %3583 = vadd.xlane.f32.xlu0 %v3552
      %v3584 = vpop.xlane.xlu0 %3583
      %3585 = vadd.xlane.f32.xlu0 %v3554
      %v3586 = vpop.xlane.xlu0 %3585
      %3587 = vadd.xlane.f32.xlu0 %v3556
      %v3588 = vpop.xlane.xlu0 %3587
      %3589 = vadd.xlane.f32.xlu0 %v3558
      %v3590 = vpop.xlane.xlu0 %3589
      %3591 = vadd.xlane.f32.xlu0 %v3560
      %v3592 = vpop.xlane.xlu0 %3591
      %3593 = vadd.xlane.f32.xlu0 %v3562
      %v3594 = vpop.xlane.xlu0 %3593
      %3595 = vadd.xlane.f32.xlu0 %v3564
      %v3596 = vpop.xlane.xlu0 %3595
      %v3597 = vrcp.pop %v3566
      %v3598 = vrcp.pop %v3568
      %v3599 = vrcp.pop %v3570
      %v3600 = vrcp.pop %v3572
      %v3601 = vrcp.pop %v3574
      %v3602 = vrcp.pop %v3576
      %v3603 = vrcp.pop %v3578
      %v3604 = vrcp.pop %v3580
      %v3605 = vrcp.pop %v3582
      %v3606 = vrcp.pop %v3584
      %v3607 = vrcp.pop %v3586
      %v3608 = vrcp.pop %v3588
      %v3609 = vrcp.pop %v3590
      %v3610 = vrcp.pop %v3592
      %v3611 = vrcp.pop %v3594
      %v3612 = vrcp.pop %v3596
      %v3613 = vmul.f32 %v3534, %v3597
      %v3614 = vmul.f32 %v3536, %v3598
      %v3615 = vmul.f32 %v3538, %v3599
      %v3616 = vmul.f32 %v3540, %v3600
      %v3617 = vmul.f32 %v3542, %v3601
      %v3618 = vmul.f32 %v3544, %v3602
      %v3619 = vmul.f32 %v3546, %v3603
      %v3620 = vmul.f32 %v3548, %v3604
      %v3621 = vmul.f32 %v3550, %v3605
      %v3622 = vmul.f32 %v3552, %v3606
      %v3623 = vmul.f32 %v3554, %v3607
      %v3624 = vmul.f32 %v3556, %v3608
      %v3625 = vmul.f32 %v3558, %v3609
      %v3626 = vmul.f32 %v3560, %v3610
      %v3627 = vmul.f32 %v3562, %v3611
      %v3628 = vmul.f32 %v3564, %v3612
      %v3629 = vpack.c.bf16 %v3614, %v3613
      %v3630 = vpack.c.bf16 %v3616, %v3615
      %v3631 = vpack.c.bf16 %v3618, %v3617
      %v3632 = vpack.c.bf16 %v3620, %v3619
      %v3633 = vpack.c.bf16 %v3622, %v3621
      %v3634 = vpack.c.bf16 %v3624, %v3623
      %v3635 = vpack.c.bf16 %v3626, %v3625
      %v3636 = vpack.c.bf16 %v3628, %v3627
      %3637 = vrot.lane.b32.xlu0 %v445, 40
      %v3638 = vpop.permute.xlu0 %3637
      %3639 = vrot.lane.b32.xlu0 %v446, 40
      %v3640 = vpop.permute.xlu0 %3639
      %3641 = vrot.lane.b32.xlu0 %v447, 40
      %v3642 = vpop.permute.xlu0 %3641
      %3643 = vrot.lane.b32.xlu0 %v448, 40
      %v3644 = vpop.permute.xlu0 %3643
      %3645 = vrot.lane.b32.xlu0 %v449, 40
      %v3646 = vpop.permute.xlu0 %3645
      %3647 = vrot.lane.b32.xlu0 %v450, 40
      %v3648 = vpop.permute.xlu0 %3647
      %3649 = vrot.lane.b32.xlu0 %v451, 40
      %v3650 = vpop.permute.xlu0 %3649
      %3651 = vrot.lane.b32.xlu0 %v452, 40
      %v3652 = vpop.permute.xlu0 %3651
      %3661 = vmatprep.subr.bf16.mxu0 0
      %3662 = vmatpush1.bf16.msra.mxu0 %v3638
      %3663 = vmatprep.subr.bf16.mxu0 0
      %3664 = vmatpush1.bf16.msra.mxu0 %v3640
      %3665 = vmatprep.subr.bf16.mxu0 0
      %3666 = vmatpush1.bf16.msra.mxu0 %v3642
      %3667 = vmatprep.subr.bf16.mxu0 0
      %3668 = vmatpush1.bf16.msra.mxu0 %v3644
      %3669 = vmatprep.subr.bf16.mxu0 0
      %3670 = vmatpush1.bf16.msra.mxu0 %v3646
      %3671 = vmatprep.subr.bf16.mxu0 0
      %3672 = vmatpush1.bf16.msra.mxu0 %v3648
      %3673 = vmatprep.subr.bf16.mxu0 0
      %3674 = vmatpush1.bf16.msra.mxu0 %v3650
      %3675 = vmatprep.subr.bf16.mxu0 0
      %3676 = vmatpush1.bf16.msra.mxu0 %v3652
      %3677 = vmatprep.subr.bf16.mxu0 0
      %3678 = vmatpush1.bf16.msra.mxu0 0
      %3679 = vmatprep.subr.bf16.mxu0 0
      %3680 = vmatpush1.bf16.msra.mxu0 0
      %3681 = vmatprep.subr.bf16.mxu0 0
      %3682 = vmatpush1.bf16.msra.mxu0 0
      %3683 = vmatprep.subr.bf16.mxu0 0
      %3684 = vmatpush1.bf16.msra.mxu0 0
      %3685 = vmatprep.subr.bf16.mxu0 0
      %3686 = vmatpush1.bf16.msra.mxu0 0
      %3687 = vmatprep.subr.bf16.mxu0 0
      %3688 = vmatpush1.bf16.msra.mxu0 0
      %3689 = vmatprep.subr.bf16.mxu0 0
      %3690 = vmatpush1.bf16.msra.mxu0 0
      %3691 = vmatprep.subr.bf16.mxu0 0
      %3692 = vmatpush1.bf16.msra.mxu0 0
      %3693 = vmatprep.mubr.bf16.mxu0 0
      %3694 = vmatmul.mubr.bf16.gmra.mrb[0].mxu0 %v3629
      %v3695 = vpop.f32.mrb[0].mxu0
      %v3696 = vadd.f32 0.0, %v3695
      %v3697 = vpop.f32.mrb[0].mxu0
      %v3698 = vpop.f32.mrb[0].mxu0
      %v3699 = vadd.f32 0.0, %v3698
      %v3700 = vpop.f32.mrb[0].mxu0
      %3701 = vmatprep.mubr.bf16.mxu0 0
      %3702 = vmatmul.mubr.bf16.gmra.mrb[0].mxu0 %v3630
      %v3703 = vpop.f32.mrb[0].mxu0
      %v3704 = vadd.f32 0.0, %v3703
      %v3705 = vpop.f32.mrb[0].mxu0
      %v3706 = vpop.f32.mrb[0].mxu0
      %v3707 = vadd.f32 0.0, %v3706
      %v3708 = vpop.f32.mrb[0].mxu0
      %3709 = vmatprep.mubr.bf16.mxu0 0
      %3710 = vmatmul.mubr.bf16.gmra.mrb[0].mxu0 %v3631
      %v3711 = vpop.f32.mrb[0].mxu0
      %v3712 = vadd.f32 0.0, %v3711
      %v3713 = vpop.f32.mrb[0].mxu0
      %v3714 = vpop.f32.mrb[0].mxu0
      %v3715 = vadd.f32 0.0, %v3714
      %v3716 = vpop.f32.mrb[0].mxu0
      %3717 = vmatprep.mubr.bf16.mxu0 0
      %3718 = vmatmul.mubr.bf16.gmra.mrb[0].mxu0 %v3632
      %v3719 = vpop.f32.mrb[0].mxu0
      %v3720 = vadd.f32 0.0, %v3719
      %v3721 = vpop.f32.mrb[0].mxu0
      %v3722 = vpop.f32.mrb[0].mxu0
      %v3723 = vadd.f32 0.0, %v3722
      %v3724 = vpop.f32.mrb[0].mxu0
      %3725 = vmatprep.mubr.bf16.mxu0 0
      %3726 = vmatmul.mubr.bf16.gmra.mrb[0].mxu0 %v3633
      %v3727 = vpop.f32.mrb[0].mxu0
      %v3728 = vadd.f32 0.0, %v3727
      %v3729 = vpop.f32.mrb[0].mxu0
      %v3730 = vpop.f32.mrb[0].mxu0
      %v3731 = vadd.f32 0.0, %v3730
      %v3732 = vpop.f32.mrb[0].mxu0
      %3733 = vmatprep.mubr.bf16.mxu0 0
      %3734 = vmatmul.mubr.bf16.gmra.mrb[0].mxu0 %v3634
      %v3735 = vpop.f32.mrb[0].mxu0
      %v3736 = vadd.f32 0.0, %v3735
      %v3737 = vpop.f32.mrb[0].mxu0
      %v3738 = vpop.f32.mrb[0].mxu0
      %v3739 = vadd.f32 0.0, %v3738
      %v3740 = vpop.f32.mrb[0].mxu0
      %3741 = vmatprep.mubr.bf16.mxu0 0
      %3742 = vmatmul.mubr.bf16.gmra.mrb[0].mxu0 %v3635
      %v3743 = vpop.f32.mrb[0].mxu0
      %v3744 = vadd.f32 0.0, %v3743
      %v3745 = vpop.f32.mrb[0].mxu0
      %v3746 = vpop.f32.mrb[0].mxu0
      %v3747 = vadd.f32 0.0, %v3746
      %v3748 = vpop.f32.mrb[0].mxu0
      %3749 = vmatprep.mubr.bf16.mxu0 0
      %3750 = vmatmul.mubr.bf16.gmra.mrb[0].mxu0 %v3636
      %v3751 = vpop.f32.mrb[0].mxu0
      %v3752 = vadd.f32 0.0, %v3751
      %v3753 = vpop.f32.mrb[0].mxu0
      %v3754 = vpop.f32.mrb[0].mxu0
      %v3755 = vadd.f32 0.0, %v3754
      %v3756 = vpop.f32.mrb[0].mxu0
      %3757 = vdwg.mxu0
      %v3758 = vpack.c.bf16 %v3699, %v3696
      %v3759 = vpack.c.bf16 %v3707, %v3704
      %v3760 = vpack.c.bf16 %v3715, %v3712
      %v3761 = vpack.c.bf16 %v3723, %v3720
      %v3762 = vpack.c.bf16 %v3731, %v3728
      %v3763 = vpack.c.bf16 %v3739, %v3736
      %v3764 = vpack.c.bf16 %v3747, %v3744
      %v3765 = vpack.c.bf16 %v3755, %v3752
      %3766 = vrot.lane.b32.xlu0 %v445, 100
      %v3767 = vpop.permute.xlu0 %3766
      %3768 = vrot.lane.b32.xlu0 %v446, 100
      %v3769 = vpop.permute.xlu0 %3768
      %3770 = vrot.lane.b32.xlu0 %v447, 100
      %v3771 = vpop.permute.xlu0 %3770
      %3772 = vrot.lane.b32.xlu0 %v448, 100
      %v3773 = vpop.permute.xlu0 %3772
      %3774 = vrot.lane.b32.xlu0 %v449, 100
      %v3775 = vpop.permute.xlu0 %3774
      %3776 = vrot.lane.b32.xlu0 %v450, 100
      %v3777 = vpop.permute.xlu0 %3776
      %3778 = vrot.lane.b32.xlu0 %v451, 100
      %v3779 = vpop.permute.xlu0 %3778
      %3780 = vrot.lane.b32.xlu0 %v452, 100
      %v3781 = vpop.permute.xlu0 %3780
      %3782 = vrot.lane.b32.xlu0 %v445, 68
      %v3783 = vpop.permute.xlu0 %3782
      %3784 = vrot.lane.b32.xlu0 %v446, 68
      %v3785 = vpop.permute.xlu0 %3784
      %3786 = vrot.lane.b32.xlu0 %v447, 68
      %v3787 = vpop.permute.xlu0 %3786
      %3788 = vrot.lane.b32.xlu0 %v448, 68
      %v3789 = vpop.permute.xlu0 %3788
      %3790 = vrot.lane.b32.xlu0 %v449, 68
      %v3791 = vpop.permute.xlu0 %3790
      %3792 = vrot.lane.b32.xlu0 %v450, 68
      %v3793 = vpop.permute.xlu0 %3792
      %3794 = vrot.lane.b32.xlu0 %v451, 68
      %v3795 = vpop.permute.xlu0 %3794
      %3796 = vrot.lane.b32.xlu0 %v452, 68
      %v3797 = vpop.permute.xlu0 %3796
      %v3799 = vsel %vm477, %v3767, 0
      %v3802 = vsel %vm477, %v3769, 0
      %v3805 = vsel %vm477, %v3771, 0
      %v3808 = vsel %vm477, %v3773, 0
      %v3811 = vsel %vm477, %v3775, 0
      %v3814 = vsel %vm477, %v3777, 0
      %v3817 = vsel %vm477, %v3779, 0
      %v3820 = vsel %vm477, %v3781, 0
      %v3823 = vsel %vm477, %v3783, 0
      %v3826 = vsel %vm477, %v3785, 0
      %v3829 = vsel %vm477, %v3787, 0
      %v3832 = vsel %vm477, %v3789, 0
      %v3835 = vsel %vm477, %v3791, 0
      %v3838 = vsel %vm477, %v3793, 0
      %v3841 = vsel %vm477, %v3795, 0
      %v3844 = vsel %vm477, %v3797, 0
      %3846 = vmatprep.subr.bf16.mxu0 0
      %3847 = vmatpush1.bf16.xpose.msra.mxu0 %v3823
      %3848 = vmatprep.subr.bf16.mxu0 0
      %3849 = vmatpush1.bf16.xpose.msra.mxu0 %v3826
      %3850 = vmatprep.subr.bf16.mxu0 0
      %3851 = vmatpush1.bf16.xpose.msra.mxu0 %v3829
      %3852 = vmatprep.subr.bf16.mxu0 0
      %3853 = vmatpush1.bf16.xpose.msra.mxu0 %v3832
      %3854 = vmatprep.subr.bf16.mxu0 0
      %3855 = vmatpush1.bf16.xpose.msra.mxu0 %v3835
      %3856 = vmatprep.subr.bf16.mxu0 0
      %3857 = vmatpush1.bf16.xpose.msra.mxu0 %v3838
      %3858 = vmatprep.subr.bf16.mxu0 0
      %3859 = vmatpush1.bf16.xpose.msra.mxu0 %v3841
      %3860 = vmatprep.subr.bf16.mxu0 0
      %3861 = vmatpush1.bf16.xpose.msra.mxu0 %v3844
      %3862 = vmatprep.subr.bf16.mxu0 0
      %3863 = vmatpush1.bf16.xpose.msra.mxu0 0
      %3864 = vmatprep.subr.bf16.mxu0 0
      %3865 = vmatpush1.bf16.xpose.msra.mxu0 0
      %3866 = vmatprep.subr.bf16.mxu0 0
      %3867 = vmatpush1.bf16.xpose.msra.mxu0 0
      %3868 = vmatprep.subr.bf16.mxu0 0
      %3869 = vmatpush1.bf16.xpose.msra.mxu0 0
      %3870 = vmatprep.subr.bf16.mxu0 0
      %3871 = vmatpush1.bf16.xpose.msra.mxu0 0
      %3872 = vmatprep.subr.bf16.mxu0 0
      %3873 = vmatpush1.bf16.xpose.msra.mxu0 0
      %3874 = vmatprep.subr.bf16.mxu0 0
      %3875 = vmatpush1.bf16.xpose.msra.mxu0 0
      %3876 = vmatprep.subr.bf16.mxu0 0
      %3877 = vmatpush1.bf16.xpose.msra.mxu0 0
      %3878 = vmatprep.mubr.bf16.mxu0 0
      %3879 = vmatmul.mubr.bf16.gmra.mrb[0].mxu0 %v3799
      %v3880 = vpop.f32.mrb[0].mxu0
      %v3881 = vadd.f32 0.0, %v3880
      %v3882 = vpop.f32.mrb[0].mxu0
      %v3883 = vpop.f32.mrb[0].mxu0
      %v3884 = vadd.f32 0.0, %v3883
      %v3885 = vpop.f32.mrb[0].mxu0
      %3886 = vmatprep.mubr.bf16.mxu0 0
      %3887 = vmatmul.mubr.bf16.gmra.mrb[0].mxu0 %v3802
      %v3888 = vpop.f32.mrb[0].mxu0
      %v3889 = vadd.f32 0.0, %v3888
      %v3890 = vpop.f32.mrb[0].mxu0
      %v3891 = vpop.f32.mrb[0].mxu0
      %v3892 = vadd.f32 0.0, %v3891
      %v3893 = vpop.f32.mrb[0].mxu0
      %3894 = vmatprep.mubr.bf16.mxu0 0
      %3895 = vmatmul.mubr.bf16.gmra.mrb[0].mxu0 %v3805
      %v3896 = vpop.f32.mrb[0].mxu0
      %v3897 = vadd.f32 0.0, %v3896
      %v3898 = vpop.f32.mrb[0].mxu0
      %v3899 = vpop.f32.mrb[0].mxu0
      %v3900 = vadd.f32 0.0, %v3899
      %v3901 = vpop.f32.mrb[0].mxu0
      %3902 = vmatprep.mubr.bf16.mxu0 0
      %3903 = vmatmul.mubr.bf16.gmra.mrb[0].mxu0 %v3808
      %v3904 = vpop.f32.mrb[0].mxu0
      %v3905 = vadd.f32 0.0, %v3904
      %v3906 = vpop.f32.mrb[0].mxu0
      %v3907 = vpop.f32.mrb[0].mxu0
      %v3908 = vadd.f32 0.0, %v3907
      %v3909 = vpop.f32.mrb[0].mxu0
      %3910 = vmatprep.mubr.bf16.mxu0 0
      %3911 = vmatmul.mubr.bf16.gmra.mrb[0].mxu0 %v3811
      %v3912 = vpop.f32.mrb[0].mxu0
      %v3913 = vadd.f32 0.0, %v3912
      %v3914 = vpop.f32.mrb[0].mxu0
      %v3915 = vpop.f32.mrb[0].mxu0
      %v3916 = vadd.f32 0.0, %v3915
      %v3917 = vpop.f32.mrb[0].mxu0
      %3918 = vmatprep.mubr.bf16.mxu0 0
      %3919 = vmatmul.mubr.bf16.gmra.mrb[0].mxu0 %v3814
      %v3920 = vpop.f32.mrb[0].mxu0
      %v3921 = vadd.f32 0.0, %v3920
      %v3922 = vpop.f32.mrb[0].mxu0
      %v3923 = vpop.f32.mrb[0].mxu0
      %v3924 = vadd.f32 0.0, %v3923
      %v3925 = vpop.f32.mrb[0].mxu0
      %3926 = vmatprep.mubr.bf16.mxu0 0
      %3927 = vmatmul.mubr.bf16.gmra.mrb[0].mxu0 %v3817
      %v3928 = vpop.f32.mrb[0].mxu0
      %v3929 = vadd.f32 0.0, %v3928
      %v3930 = vpop.f32.mrb[0].mxu0
      %v3931 = vpop.f32.mrb[0].mxu0
      %v3932 = vadd.f32 0.0, %v3931
      %v3933 = vpop.f32.mrb[0].mxu0
      %3934 = vmatprep.mubr.bf16.mxu0 0
      %3935 = vmatmul.mubr.bf16.gmra.mrb[0].mxu0 %v3820
      %v3936 = vpop.f32.mrb[0].mxu0
      %v3937 = vadd.f32 0.0, %v3936
      %v3938 = vpop.f32.mrb[0].mxu0
      %v3939 = vpop.f32.mrb[0].mxu0
      %v3940 = vadd.f32 0.0, %v3939
      %v3941 = vpop.f32.mrb[0].mxu0
      %3942 = vdwg.mxu0
      %v3943 = vsel %vm624, %v3881, -1e+30
      %v3944 = vsel %vm624, %v3884, -1e+30
      %v3945 = vsel %vm624, %v3889, -1e+30
      %v3946 = vsel %vm624, %v3892, -1e+30
      %v3947 = vsel %vm624, %v3897, -1e+30
      %v3948 = vsel %vm624, %v3900, -1e+30
      %v3949 = vsel %vm624, %v3905, -1e+30
      %v3950 = vsel %vm624, %v3908, -1e+30
      %v3951 = vsel %vm624, %v3913, -1e+30
      %v3952 = vsel %vm624, %v3916, -1e+30
      %v3953 = vsel %vm624, %v3921, -1e+30
      %v3954 = vsel %vm624, %v3924, -1e+30
      %v3955 = vsel %vm624, %v3929, -1e+30
      %v3956 = vsel %vm624, %v3932, -1e+30
      %v3957 = vsel %vm624, %v3937, -1e+30
      %v3958 = vsel %vm624, %v3940, -1e+30
      %3959 = vmax.xlane.f32.xlu0 %v3943
      %v3960 = vpop.xlane.xlu0 %3959
      %3961 = vmax.xlane.f32.xlu0 %v3944
      %v3962 = vpop.xlane.xlu0 %3961
      %3963 = vmax.xlane.f32.xlu0 %v3945
      %v3964 = vpop.xlane.xlu0 %3963
      %3965 = vmax.xlane.f32.xlu0 %v3946
      %v3966 = vpop.xlane.xlu0 %3965
      %3967 = vmax.xlane.f32.xlu0 %v3947
      %v3968 = vpop.xlane.xlu0 %3967
      %3969 = vmax.xlane.f32.xlu0 %v3948
      %v3970 = vpop.xlane.xlu0 %3969
      %3971 = vmax.xlane.f32.xlu0 %v3949
      %v3972 = vpop.xlane.xlu0 %3971
      %3973 = vmax.xlane.f32.xlu0 %v3950
      %v3974 = vpop.xlane.xlu0 %3973
      %3975 = vmax.xlane.f32.xlu0 %v3951
      %v3976 = vpop.xlane.xlu0 %3975
      %3977 = vmax.xlane.f32.xlu0 %v3952
      %v3978 = vpop.xlane.xlu0 %3977
      %3979 = vmax.xlane.f32.xlu0 %v3953
      %v3980 = vpop.xlane.xlu0 %3979
      %3981 = vmax.xlane.f32.xlu0 %v3954
      %v3982 = vpop.xlane.xlu0 %3981
      %3983 = vmax.xlane.f32.xlu0 %v3955
      %v3984 = vpop.xlane.xlu0 %3983
      %3985 = vmax.xlane.f32.xlu0 %v3956
      %v3986 = vpop.xlane.xlu0 %3985
      %3987 = vmax.xlane.f32.xlu0 %v3957
      %v3988 = vpop.xlane.xlu0 %3987
      %3989 = vmax.xlane.f32.xlu0 %v3958
      %v3990 = vpop.xlane.xlu0 %3989
      %v3991 = vsub.f32 %v3943, %v3960
      %v3992 = vsub.f32 %v3944, %v3962
      %v3993 = vsub.f32 %v3945, %v3964
      %v3994 = vsub.f32 %v3946, %v3966
      %v3995 = vsub.f32 %v3947, %v3968
      %v3996 = vsub.f32 %v3948, %v3970
      %v3997 = vsub.f32 %v3949, %v3972
      %v3998 = vsub.f32 %v3950, %v3974
      %v3999 = vsub.f32 %v3951, %v3976
      %v4000 = vsub.f32 %v3952, %v3978
      %v4001 = vsub.f32 %v3953, %v3980
      %v4002 = vsub.f32 %v3954, %v3982
      %v4003 = vsub.f32 %v3955, %v3984
      %v4004 = vsub.f32 %v3956, %v3986
      %v4005 = vsub.f32 %v3957, %v3988
      %v4006 = vsub.f32 %v3958, %v3990
      %v4007 = vmul.f32 %v3991, 1.442695
      %v4008 = vpow.pop %v4007
      %v4009 = vmul.f32 %v3992, 1.442695
      %v4010 = vpow.pop %v4009
      %v4011 = vmul.f32 %v3993, 1.442695
      %v4012 = vpow.pop %v4011
      %v4013 = vmul.f32 %v3994, 1.442695
      %v4014 = vpow.pop %v4013
      %v4015 = vmul.f32 %v3995, 1.442695
      %v4016 = vpow.pop %v4015
      %v4017 = vmul.f32 %v3996, 1.442695
      %v4018 = vpow.pop %v4017
      %v4019 = vmul.f32 %v3997, 1.442695
      %v4020 = vpow.pop %v4019
      %v4021 = vmul.f32 %v3998, 1.442695
      %v4022 = vpow.pop %v4021
      %v4023 = vmul.f32 %v3999, 1.442695
      %v4024 = vpow.pop %v4023
      %v4025 = vmul.f32 %v4000, 1.442695
      %v4026 = vpow.pop %v4025
      %v4027 = vmul.f32 %v4001, 1.442695
      %v4028 = vpow.pop %v4027
      %v4029 = vmul.f32 %v4002, 1.442695
      %v4030 = vpow.pop %v4029
      %v4031 = vmul.f32 %v4003, 1.442695
      %v4032 = vpow.pop %v4031
      %v4033 = vmul.f32 %v4004, 1.442695
      %v4034 = vpow.pop %v4033
      %v4035 = vmul.f32 %v4005, 1.442695
      %v4036 = vpow.pop %v4035
      %v4037 = vmul.f32 %v4006, 1.442695
      %v4038 = vpow.pop %v4037
      %4039 = vadd.xlane.f32.xlu0 %v4008
      %v4040 = vpop.xlane.xlu0 %4039
      %4041 = vadd.xlane.f32.xlu0 %v4010
      %v4042 = vpop.xlane.xlu0 %4041
      %4043 = vadd.xlane.f32.xlu0 %v4012
      %v4044 = vpop.xlane.xlu0 %4043
      %4045 = vadd.xlane.f32.xlu0 %v4014
      %v4046 = vpop.xlane.xlu0 %4045
      %4047 = vadd.xlane.f32.xlu0 %v4016
      %v4048 = vpop.xlane.xlu0 %4047
      %4049 = vadd.xlane.f32.xlu0 %v4018
      %v4050 = vpop.xlane.xlu0 %4049
      %4051 = vadd.xlane.f32.xlu0 %v4020
      %v4052 = vpop.xlane.xlu0 %4051
      %4053 = vadd.xlane.f32.xlu0 %v4022
      %v4054 = vpop.xlane.xlu0 %4053
      %4055 = vadd.xlane.f32.xlu0 %v4024
      %v4056 = vpop.xlane.xlu0 %4055
      %4057 = vadd.xlane.f32.xlu0 %v4026
      %v4058 = vpop.xlane.xlu0 %4057
      %4059 = vadd.xlane.f32.xlu0 %v4028
      %v4060 = vpop.xlane.xlu0 %4059
      %4061 = vadd.xlane.f32.xlu0 %v4030
      %v4062 = vpop.xlane.xlu0 %4061
      %4063 = vadd.xlane.f32.xlu0 %v4032
      %v4064 = vpop.xlane.xlu0 %4063
      %4065 = vadd.xlane.f32.xlu0 %v4034
      %v4066 = vpop.xlane.xlu0 %4065
      %4067 = vadd.xlane.f32.xlu0 %v4036
      %v4068 = vpop.xlane.xlu0 %4067
      %4069 = vadd.xlane.f32.xlu0 %v4038
      %v4070 = vpop.xlane.xlu0 %4069
      %v4071 = vrcp.pop %v4040
      %v4072 = vrcp.pop %v4042
      %v4073 = vrcp.pop %v4044
      %v4074 = vrcp.pop %v4046
      %v4075 = vrcp.pop %v4048
      %v4076 = vrcp.pop %v4050
      %v4077 = vrcp.pop %v4052
      %v4078 = vrcp.pop %v4054
      %v4079 = vrcp.pop %v4056
      %v4080 = vrcp.pop %v4058
      %v4081 = vrcp.pop %v4060
      %v4082 = vrcp.pop %v4062
      %v4083 = vrcp.pop %v4064
      %v4084 = vrcp.pop %v4066
      %v4085 = vrcp.pop %v4068
      %v4086 = vrcp.pop %v4070
      %v4087 = vmul.f32 %v4008, %v4071
      %v4088 = vmul.f32 %v4010, %v4072
      %v4089 = vmul.f32 %v4012, %v4073
      %v4090 = vmul.f32 %v4014, %v4074
      %v4091 = vmul.f32 %v4016, %v4075
      %v4092 = vmul.f32 %v4018, %v4076
      %v4093 = vmul.f32 %v4020, %v4077
      %v4094 = vmul.f32 %v4022, %v4078
      %v4095 = vmul.f32 %v4024, %v4079
      %v4096 = vmul.f32 %v4026, %v4080
      %v4097 = vmul.f32 %v4028, %v4081
      %v4098 = vmul.f32 %v4030, %v4082
      %v4099 = vmul.f32 %v4032, %v4083
      %v4100 = vmul.f32 %v4034, %v4084
      %v4101 = vmul.f32 %v4036, %v4085
      %v4102 = vmul.f32 %v4038, %v4086
      %v4103 = vpack.c.bf16 %v4088, %v4087
      %v4104 = vpack.c.bf16 %v4090, %v4089
      %v4105 = vpack.c.bf16 %v4092, %v4091
      %v4106 = vpack.c.bf16 %v4094, %v4093
      %v4107 = vpack.c.bf16 %v4096, %v4095
      %v4108 = vpack.c.bf16 %v4098, %v4097
      %v4109 = vpack.c.bf16 %v4100, %v4099
      %v4110 = vpack.c.bf16 %v4102, %v4101
      %4111 = vrot.lane.b32.xlu0 %v445, 36
      %v4112 = vpop.permute.xlu0 %4111
      %4113 = vrot.lane.b32.xlu0 %v446, 36
      %v4114 = vpop.permute.xlu0 %4113
      %4115 = vrot.lane.b32.xlu0 %v447, 36
      %v4116 = vpop.permute.xlu0 %4115
      %4117 = vrot.lane.b32.xlu0 %v448, 36
      %v4118 = vpop.permute.xlu0 %4117
      %4119 = vrot.lane.b32.xlu0 %v449, 36
      %v4120 = vpop.permute.xlu0 %4119
      %4121 = vrot.lane.b32.xlu0 %v450, 36
      %v4122 = vpop.permute.xlu0 %4121
      %4123 = vrot.lane.b32.xlu0 %v451, 36
      %v4124 = vpop.permute.xlu0 %4123
      %4125 = vrot.lane.b32.xlu0 %v452, 36
      %v4126 = vpop.permute.xlu0 %4125
      %4135 = vmatprep.subr.bf16.mxu0 0
      %4136 = vmatpush1.bf16.msra.mxu0 %v4112
      %4137 = vmatprep.subr.bf16.mxu0 0
      %4138 = vmatpush1.bf16.msra.mxu0 %v4114
      %4139 = vmatprep.subr.bf16.mxu0 0
      %4140 = vmatpush1.bf16.msra.mxu0 %v4116
      %4141 = vmatprep.subr.bf16.mxu0 0
      %4142 = vmatpush1.bf16.msra.mxu0 %v4118
      %4143 = vmatprep.subr.bf16.mxu0 0
      %4144 = vmatpush1.bf16.msra.mxu0 %v4120
      %4145 = vmatprep.subr.bf16.mxu0 0
      %4146 = vmatpush1.bf16.msra.mxu0 %v4122
      %4147 = vmatprep.subr.bf16.mxu0 0
      %4148 = vmatpush1.bf16.msra.mxu0 %v4124
      %4149 = vmatprep.subr.bf16.mxu0 0
      %4150 = vmatpush1.bf16.msra.mxu0 %v4126
      %4151 = vmatprep.subr.bf16.mxu0 0
      %4152 = vmatpush1.bf16.msra.mxu0 0
      %4153 = vmatprep.subr.bf16.mxu0 0
      %4154 = vmatpush1.bf16.msra.mxu0 0
      %4155 = vmatprep.subr.bf16.mxu0 0
      %4156 = vmatpush1.bf16.msra.mxu0 0
      %4157 = vmatprep.subr.bf16.mxu0 0
      %4158 = vmatpush1.bf16.msra.mxu0 0
      %4159 = vmatprep.subr.bf16.mxu0 0
      %4160 = vmatpush1.bf16.msra.mxu0 0
      %4161 = vmatprep.subr.bf16.mxu0 0
      %4162 = vmatpush1.bf16.msra.mxu0 0
      %4163 = vmatprep.subr.bf16.mxu0 0
      %4164 = vmatpush1.bf16.msra.mxu0 0
      %4165 = vmatprep.subr.bf16.mxu0 0
      %4166 = vmatpush1.bf16.msra.mxu0 0
      %4167 = vmatprep.mubr.bf16.mxu0 0
      %4168 = vmatmul.mubr.bf16.gmra.mrb[0].mxu0 %v4103
      %v4169 = vpop.f32.mrb[0].mxu0
      %v4170 = vadd.f32 0.0, %v4169
      %v4171 = vpop.f32.mrb[0].mxu0
      %v4172 = vpop.f32.mrb[0].mxu0
      %v4173 = vadd.f32 0.0, %v4172
      %v4174 = vpop.f32.mrb[0].mxu0
      %4175 = vmatprep.mubr.bf16.mxu0 0
      %4176 = vmatmul.mubr.bf16.gmra.mrb[0].mxu0 %v4104
      %v4177 = vpop.f32.mrb[0].mxu0
      %v4178 = vadd.f32 0.0, %v4177
      %v4179 = vpop.f32.mrb[0].mxu0
      %v4180 = vpop.f32.mrb[0].mxu0
      %v4181 = vadd.f32 0.0, %v4180
      %v4182 = vpop.f32.mrb[0].mxu0
      %4183 = vmatprep.mubr.bf16.mxu0 0
      %4184 = vmatmul.mubr.bf16.gmra.mrb[0].mxu0 %v4105
      %v4185 = vpop.f32.mrb[0].mxu0
      %v4186 = vadd.f32 0.0, %v4185
      %v4187 = vpop.f32.mrb[0].mxu0
      %v4188 = vpop.f32.mrb[0].mxu0
      %v4189 = vadd.f32 0.0, %v4188
      %v4190 = vpop.f32.mrb[0].mxu0
      %4191 = vmatprep.mubr.bf16.mxu0 0
      %4192 = vmatmul.mubr.bf16.gmra.mrb[0].mxu0 %v4106
      %v4193 = vpop.f32.mrb[0].mxu0
      %v4194 = vadd.f32 0.0, %v4193
      %v4195 = vpop.f32.mrb[0].mxu0
      %v4196 = vpop.f32.mrb[0].mxu0
      %v4197 = vadd.f32 0.0, %v4196
      %v4198 = vpop.f32.mrb[0].mxu0
      %4199 = vmatprep.mubr.bf16.mxu0 0
      %4200 = vmatmul.mubr.bf16.gmra.mrb[0].mxu0 %v4107
      %v4201 = vpop.f32.mrb[0].mxu0
      %v4202 = vadd.f32 0.0, %v4201
      %v4203 = vpop.f32.mrb[0].mxu0
      %v4204 = vpop.f32.mrb[0].mxu0
      %v4205 = vadd.f32 0.0, %v4204
      %v4206 = vpop.f32.mrb[0].mxu0
      %4207 = vmatprep.mubr.bf16.mxu0 0
      %4208 = vmatmul.mubr.bf16.gmra.mrb[0].mxu0 %v4108
      %v4209 = vpop.f32.mrb[0].mxu0
      %v4210 = vadd.f32 0.0, %v4209
      %v4211 = vpop.f32.mrb[0].mxu0
      %v4212 = vpop.f32.mrb[0].mxu0
      %v4213 = vadd.f32 0.0, %v4212
      %v4214 = vpop.f32.mrb[0].mxu0
      %4215 = vmatprep.mubr.bf16.mxu0 0
      %4216 = vmatmul.mubr.bf16.gmra.mrb[0].mxu0 %v4109
      %v4217 = vpop.f32.mrb[0].mxu0
      %v4218 = vadd.f32 0.0, %v4217
      %v4219 = vpop.f32.mrb[0].mxu0
      %v4220 = vpop.f32.mrb[0].mxu0
      %v4221 = vadd.f32 0.0, %v4220
      %v4222 = vpop.f32.mrb[0].mxu0
      %4223 = vmatprep.mubr.bf16.mxu0 0
      %4224 = vmatmul.mubr.bf16.gmra.mrb[0].mxu0 %v4110
      %v4225 = vpop.f32.mrb[0].mxu0
      %v4226 = vadd.f32 0.0, %v4225
      %v4227 = vpop.f32.mrb[0].mxu0
      %v4228 = vpop.f32.mrb[0].mxu0
      %v4229 = vadd.f32 0.0, %v4228
      %v4230 = vpop.f32.mrb[0].mxu0
      %4231 = vdwg.mxu0
      %v4232 = vpack.c.bf16 %v4173, %v4170
      %v4233 = vpack.c.bf16 %v4181, %v4178
      %v4234 = vpack.c.bf16 %v4189, %v4186
      %v4235 = vpack.c.bf16 %v4197, %v4194
      %v4236 = vpack.c.bf16 %v4205, %v4202
      %v4237 = vpack.c.bf16 %v4213, %v4210
      %v4238 = vpack.c.bf16 %v4221, %v4218
      %v4239 = vpack.c.bf16 %v4229, %v4226
      %4248 = vrot.lane.b32.xlu0 %v1388, 4
      %v4249 = vpop.permute.xlu0 %4248
      %4250 = vrot.lane.b32.xlu0 %v1389, 4
      %v4251 = vpop.permute.xlu0 %4250
      %4252 = vrot.lane.b32.xlu0 %v1390, 4
      %v4253 = vpop.permute.xlu0 %4252
      %4254 = vrot.lane.b32.xlu0 %v1391, 4
      %v4255 = vpop.permute.xlu0 %4254
      %4256 = vrot.lane.b32.xlu0 %v1392, 4
      %v4257 = vpop.permute.xlu0 %4256
      %4258 = vrot.lane.b32.xlu0 %v1393, 4
      %v4259 = vpop.permute.xlu0 %4258
      %4260 = vrot.lane.b32.xlu0 %v1394, 4
      %v4261 = vpop.permute.xlu0 %4260
      %4262 = vrot.lane.b32.xlu0 %v1395, 4
      %v4263 = vpop.permute.xlu0 %4262
      %4272 = vrot.lane.b32.xlu0 %v1862, 8
      %v4273 = vpop.permute.xlu0 %4272
      %4274 = vrot.lane.b32.xlu0 %v1863, 8
      %v4275 = vpop.permute.xlu0 %4274
      %4276 = vrot.lane.b32.xlu0 %v1864, 8
      %v4277 = vpop.permute.xlu0 %4276
      %4278 = vrot.lane.b32.xlu0 %v1865, 8
      %v4279 = vpop.permute.xlu0 %4278
      %4280 = vrot.lane.b32.xlu0 %v1866, 8
      %v4281 = vpop.permute.xlu0 %4280
      %4282 = vrot.lane.b32.xlu0 %v1867, 8
      %v4283 = vpop.permute.xlu0 %4282
      %4284 = vrot.lane.b32.xlu0 %v1868, 8
      %v4285 = vpop.permute.xlu0 %4284
      %4286 = vrot.lane.b32.xlu0 %v1869, 8
      %v4287 = vpop.permute.xlu0 %4286
      %4296 = vrot.lane.b32.xlu0 %v2336, 12
      %v4297 = vpop.permute.xlu0 %4296
      %4298 = vrot.lane.b32.xlu0 %v2337, 12
      %v4299 = vpop.permute.xlu0 %4298
      %4300 = vrot.lane.b32.xlu0 %v2338, 12
      %v4301 = vpop.permute.xlu0 %4300
      %4302 = vrot.lane.b32.xlu0 %v2339, 12
      %v4303 = vpop.permute.xlu0 %4302
      %4304 = vrot.lane.b32.xlu0 %v2340, 12
      %v4305 = vpop.permute.xlu0 %4304
      %4306 = vrot.lane.b32.xlu0 %v2341, 12
      %v4307 = vpop.permute.xlu0 %4306
      %4308 = vrot.lane.b32.xlu0 %v2342, 12
      %v4309 = vpop.permute.xlu0 %4308
      %4310 = vrot.lane.b32.xlu0 %v2343, 12
      %v4311 = vpop.permute.xlu0 %4310
      %4320 = vrot.lane.b32.xlu0 %v2810, 16
      %v4321 = vpop.permute.xlu0 %4320
      %4322 = vrot.lane.b32.xlu0 %v2811, 16
      %v4323 = vpop.permute.xlu0 %4322
      %4324 = vrot.lane.b32.xlu0 %v2812, 16
      %v4325 = vpop.permute.xlu0 %4324
      %4326 = vrot.lane.b32.xlu0 %v2813, 16
      %v4327 = vpop.permute.xlu0 %4326
      %4328 = vrot.lane.b32.xlu0 %v2814, 16
      %v4329 = vpop.permute.xlu0 %4328
      %4330 = vrot.lane.b32.xlu0 %v2815, 16
      %v4331 = vpop.permute.xlu0 %4330
      %4332 = vrot.lane.b32.xlu0 %v2816, 16
      %v4333 = vpop.permute.xlu0 %4332
      %4334 = vrot.lane.b32.xlu0 %v2817, 16
      %v4335 = vpop.permute.xlu0 %4334
      %4344 = vrot.lane.b32.xlu0 %v3284, 20
      %v4345 = vpop.permute.xlu0 %4344
      %4346 = vrot.lane.b32.xlu0 %v3285, 20
      %v4347 = vpop.permute.xlu0 %4346
      %4348 = vrot.lane.b32.xlu0 %v3286, 20
      %v4349 = vpop.permute.xlu0 %4348
      %4350 = vrot.lane.b32.xlu0 %v3287, 20
      %v4351 = vpop.permute.xlu0 %4350
      %4352 = vrot.lane.b32.xlu0 %v3288, 20
      %v4353 = vpop.permute.xlu0 %4352
      %4354 = vrot.lane.b32.xlu0 %v3289, 20
      %v4355 = vpop.permute.xlu0 %4354
      %4356 = vrot.lane.b32.xlu0 %v3290, 20
      %v4357 = vpop.permute.xlu0 %4356
      %4358 = vrot.lane.b32.xlu0 %v3291, 20
      %v4359 = vpop.permute.xlu0 %4358
      %4368 = vrot.lane.b32.xlu0 %v3758, 24
      %v4369 = vpop.permute.xlu0 %4368
      %4370 = vrot.lane.b32.xlu0 %v3759, 24
      %v4371 = vpop.permute.xlu0 %4370
      %4372 = vrot.lane.b32.xlu0 %v3760, 24
      %v4373 = vpop.permute.xlu0 %4372
      %4374 = vrot.lane.b32.xlu0 %v3761, 24
      %v4375 = vpop.permute.xlu0 %4374
      %4376 = vrot.lane.b32.xlu0 %v3762, 24
      %v4377 = vpop.permute.xlu0 %4376
      %4378 = vrot.lane.b32.xlu0 %v3763, 24
      %v4379 = vpop.permute.xlu0 %4378
      %4380 = vrot.lane.b32.xlu0 %v3764, 24
      %v4381 = vpop.permute.xlu0 %4380
      %4382 = vrot.lane.b32.xlu0 %v3765, 24
      %v4383 = vpop.permute.xlu0 %4382
      %4392 = vrot.lane.b32.xlu0 %v4232, 28
      %v4393 = vpop.permute.xlu0 %4392
      %4394 = vrot.lane.b32.xlu0 %v4233, 28
      %v4395 = vpop.permute.xlu0 %4394
      %4396 = vrot.lane.b32.xlu0 %v4234, 28
      %v4397 = vpop.permute.xlu0 %4396
      %4398 = vrot.lane.b32.xlu0 %v4235, 28
      %v4399 = vpop.permute.xlu0 %4398
      %4400 = vrot.lane.b32.xlu0 %v4236, 28
      %v4401 = vpop.permute.xlu0 %4400
      %4402 = vrot.lane.b32.xlu0 %v4237, 28
      %v4403 = vpop.permute.xlu0 %4402
      %4404 = vrot.lane.b32.xlu0 %v4238, 28
      %v4405 = vpop.permute.xlu0 %4404
      %4406 = vrot.lane.b32.xlu0 %v4239, 28
      %v4407 = vpop.permute.xlu0 %4406
      %v4410 = vsel %vm477, %v914, %v4249
      %v4413 = vsel %vm477, %v915, %v4251
      %v4416 = vsel %vm477, %v916, %v4253
      %v4419 = vsel %vm477, %v917, %v4255
      %v4422 = vsel %vm477, %v918, %v4257
      %v4425 = vsel %vm477, %v919, %v4259
      %v4428 = vsel %vm477, %v920, %v4261
      %v4431 = vsel %vm477, %v921, %v4263
      %vm4432 = vcmask 64512
      %v4434 = vsel %vm4432, %v4410, %v4273
      %v4436 = vsel %vm4432, %v4413, %v4275
      %v4438 = vsel %vm4432, %v4416, %v4277
      %v4440 = vsel %vm4432, %v4419, %v4279
      %v4442 = vsel %vm4432, %v4422, %v4281
      %v4444 = vsel %vm4432, %v4425, %v4283
      %v4446 = vsel %vm4432, %v4428, %v4285
      %v4448 = vsel %vm4432, %v4431, %v4287
      %vm4449 = vcmask 97280
      %v4451 = vsel %vm4449, %v4434, %v4297
      %v4453 = vsel %vm4449, %v4436, %v4299
      %v4455 = vsel %vm4449, %v4438, %v4301
      %v4457 = vsel %vm4449, %v4440, %v4303
      %v4459 = vsel %vm4449, %v4442, %v4305
      %v4461 = vsel %vm4449, %v4444, %v4307
      %v4463 = vsel %vm4449, %v4446, %v4309
      %v4465 = vsel %vm4449, %v4448, %v4311
      %vm4466 = vcmask 130048
      %v4468 = vsel %vm4466, %v4451, %v4321
      %v4470 = vsel %vm4466, %v4453, %v4323
      %v4472 = vsel %vm4466, %v4455, %v4325
      %v4474 = vsel %vm4466, %v4457, %v4327
      %v4476 = vsel %vm4466, %v4459, %v4329
      %v4478 = vsel %vm4466, %v4461, %v4331
      %v4480 = vsel %vm4466, %v4463, %v4333
      %v4482 = vsel %vm4466, %v4465, %v4335
      %vm4483 = vcmask 162816
      %v4485 = vsel %vm4483, %v4468, %v4345
      %v4487 = vsel %vm4483, %v4470, %v4347
      %v4489 = vsel %vm4483, %v4472, %v4349
      %v4491 = vsel %vm4483, %v4474, %v4351
      %v4493 = vsel %vm4483, %v4476, %v4353
      %v4495 = vsel %vm4483, %v4478, %v4355
      %v4497 = vsel %vm4483, %v4480, %v4357
      %v4499 = vsel %vm4483, %v4482, %v4359
      %vm4500 = vcmask 195584
      %v4502 = vsel %vm4500, %v4485, %v4369
      %v4504 = vsel %vm4500, %v4487, %v4371
      %v4506 = vsel %vm4500, %v4489, %v4373
      %v4508 = vsel %vm4500, %v4491, %v4375
      %v4510 = vsel %vm4500, %v4493, %v4377
      %v4512 = vsel %vm4500, %v4495, %v4379
      %v4514 = vsel %vm4500, %v4497, %v4381
      %v4516 = vsel %vm4500, %v4499, %v4383
      %vm4517 = vcmask 228352
      %v4519 = vsel %vm4517, %v4502, %v4393
      %v4521 = vsel %vm4517, %v4504, %v4395
      %v4523 = vsel %vm4517, %v4506, %v4397
      %v4525 = vsel %vm4517, %v4508, %v4399
      %v4527 = vsel %vm4517, %v4510, %v4401
      %v4529 = vsel %vm4517, %v4512, %v4403
      %v4531 = vsel %vm4517, %v4514, %v4405
      %v4533 = vsel %vm4517, %v4516, %v4407
      %v4534 = vld [vmem:[%s2] sm:$0xf]
      %v4535 = vld [vmem:[%s2 + $0x4] sm:$0xf]
      %v4536 = vld [vmem:[%s2 + $0x8] sm:$0xf]
      %v4537 = vld [vmem:[%s2 + $0xc] sm:$0xf]
      %v4538 = vld [vmem:[%s3] sm:$0x1]
      %v4540 = vlaneseq
      %v4541 = vshrl.u32 %v4540, 7
      %v4542 = vsub.s32 0, %v4541
      %v4543 = vrot.slane %v4538, %v4542
      %v4549 = vunpack.c.l.b16 %v4534
      %v4550 = vunpack.c.l.b16 %v4535
      %v4551 = vunpack.c.l.b16 %v4536
      %v4552 = vunpack.c.l.b16 %v4537
      %v4553 = vpack.c.b16 %v4550, %v4549
      %v4554 = vpack.c.b16 %v4552, %v4551
      %v4557 = vsel %vm271, %v4519, 0
      %v4559 = vsel %vm271, %v4521, 0
      %v4561 = vsel %vm271, %v4523, 0
      %v4563 = vsel %vm271, %v4525, 0
      %v4565 = vsel %vm271, %v4527, 0
      %v4567 = vsel %vm271, %v4529, 0
      %v4569 = vsel %vm271, %v4531, 0
      %v4571 = vsel %vm271, %v4533, 0
      %4573 = vmatprep.subr.bf16.mxu0 0
      %4574 = vmatpush1.bf16.msra.mxu0 %v4553
      %4575 = vmatprep.subr.bf16.mxu0 0
      %4576 = vmatpush1.bf16.msra.mxu0 %v4554
      %4577 = vmatprep.subr.bf16.mxu0 0
      %4578 = vmatpush1.bf16.msra.mxu0 0
      %4579 = vmatprep.subr.bf16.mxu0 0
      %4580 = vmatpush1.bf16.msra.mxu0 0
      %4581 = vmatprep.subr.bf16.mxu0 0
      %4582 = vmatpush1.bf16.msra.mxu0 0
      %4583 = vmatprep.subr.bf16.mxu0 0
      %4584 = vmatpush1.bf16.msra.mxu0 0
      %4585 = vmatprep.subr.bf16.mxu0 0
      %4586 = vmatpush1.bf16.msra.mxu0 0
      %4587 = vmatprep.subr.bf16.mxu0 0
      %4588 = vmatpush1.bf16.msra.mxu0 0
      %4589 = vmatprep.subr.bf16.mxu0 0
      %4590 = vmatpush1.bf16.msra.mxu0 0
      %4591 = vmatprep.subr.bf16.mxu0 0
      %4592 = vmatpush1.bf16.msra.mxu0 0
      %4593 = vmatprep.subr.bf16.mxu0 0
      %4594 = vmatpush1.bf16.msra.mxu0 0
      %4595 = vmatprep.subr.bf16.mxu0 0
      %4596 = vmatpush1.bf16.msra.mxu0 0
      %4597 = vmatprep.subr.bf16.mxu0 0
      %4598 = vmatpush1.bf16.msra.mxu0 0
      %4599 = vmatprep.subr.bf16.mxu0 0
      %4600 = vmatpush1.bf16.msra.mxu0 0
      %4601 = vmatprep.subr.bf16.mxu0 0
      %4602 = vmatpush1.bf16.msra.mxu0 0
      %4603 = vmatprep.subr.bf16.mxu0 0
      %4604 = vmatpush1.bf16.msra.mxu0 0
      %4605 = vmatprep.mubr.bf16.mxu0 0
      %4606 = vmatmul.mubr.bf16.gmra.mrb[0].mxu0 %v4557
      %v4607 = vpop.f32.mrb[0].mxu0
      %v4608 = vadd.f32 %v4543, %v4607
      %v4609 = vpop.f32.mrb[0].mxu0
      %v4610 = vpop.f32.mrb[0].mxu0
      %v4611 = vadd.f32 %v4543, %v4610
      %v4612 = vpop.f32.mrb[0].mxu0
      %4613 = vmatprep.mubr.bf16.mxu0 0
      %4614 = vmatmul.mubr.bf16.gmra.mrb[0].mxu0 %v4559
      %v4615 = vpop.f32.mrb[0].mxu0
      %v4616 = vadd.f32 %v4543, %v4615
      %v4617 = vpop.f32.mrb[0].mxu0
      %v4618 = vpop.f32.mrb[0].mxu0
      %v4619 = vadd.f32 %v4543, %v4618
      %v4620 = vpop.f32.mrb[0].mxu0
      %4621 = vmatprep.mubr.bf16.mxu0 0
      %4622 = vmatmul.mubr.bf16.gmra.mrb[0].mxu0 %v4561
      %v4623 = vpop.f32.mrb[0].mxu0
      %v4624 = vadd.f32 %v4543, %v4623
      %v4625 = vpop.f32.mrb[0].mxu0
      %v4626 = vpop.f32.mrb[0].mxu0
      %v4627 = vadd.f32 %v4543, %v4626
      %v4628 = vpop.f32.mrb[0].mxu0
      %4629 = vmatprep.mubr.bf16.mxu0 0
      %4630 = vmatmul.mubr.bf16.gmra.mrb[0].mxu0 %v4563
      %v4631 = vpop.f32.mrb[0].mxu0
      %v4632 = vadd.f32 %v4543, %v4631
      %v4633 = vpop.f32.mrb[0].mxu0
      %v4634 = vpop.f32.mrb[0].mxu0
      %v4635 = vadd.f32 %v4543, %v4634
      %v4636 = vpop.f32.mrb[0].mxu0
      %4637 = vmatprep.mubr.bf16.mxu0 0
      %4638 = vmatmul.mubr.bf16.gmra.mrb[0].mxu0 %v4565
      %v4639 = vpop.f32.mrb[0].mxu0
      %v4640 = vadd.f32 %v4543, %v4639
      %v4641 = vpop.f32.mrb[0].mxu0
      %v4642 = vpop.f32.mrb[0].mxu0
      %v4643 = vadd.f32 %v4543, %v4642
      %v4644 = vpop.f32.mrb[0].mxu0
      %4645 = vmatprep.mubr.bf16.mxu0 0
      %4646 = vmatmul.mubr.bf16.gmra.mrb[0].mxu0 %v4567
      %v4647 = vpop.f32.mrb[0].mxu0
      %v4648 = vadd.f32 %v4543, %v4647
      %v4649 = vpop.f32.mrb[0].mxu0
      %v4650 = vpop.f32.mrb[0].mxu0
      %v4651 = vadd.f32 %v4543, %v4650
      %v4652 = vpop.f32.mrb[0].mxu0
      %4653 = vmatprep.mubr.bf16.mxu0 0
      %4654 = vmatmul.mubr.bf16.gmra.mrb[0].mxu0 %v4569
      %v4655 = vpop.f32.mrb[0].mxu0
      %v4656 = vadd.f32 %v4543, %v4655
      %v4657 = vpop.f32.mrb[0].mxu0
      %v4658 = vpop.f32.mrb[0].mxu0
      %v4659 = vadd.f32 %v4543, %v4658
      %v4660 = vpop.f32.mrb[0].mxu0
      %4661 = vmatprep.mubr.bf16.mxu0 0
      %4662 = vmatmul.mubr.bf16.gmra.mrb[0].mxu0 %v4571
      %v4663 = vpop.f32.mrb[0].mxu0
      %v4664 = vadd.f32 %v4543, %v4663
      %v4665 = vpop.f32.mrb[0].mxu0
      %v4666 = vpop.f32.mrb[0].mxu0
      %v4667 = vadd.f32 %v4543, %v4666
      %v4668 = vpop.f32.mrb[0].mxu0
      %4669 = vdwg.mxu0
      %4670 = vst.msk [vmem:[%s197] sm:$0xff] %vm271, %v4608
      %4671 = vst.msk [vmem:[%s197 + $0x8] sm:$0xff] %vm271, %v4611
      %4672 = vst.msk [vmem:[%s197 + $0x10] sm:$0xff] %vm271, %v4616
      %4673 = vst.msk [vmem:[%s197 + $0x18] sm:$0xff] %vm271, %v4619
      %4674 = vst.msk [vmem:[%s197 + $0x20] sm:$0xff] %vm271, %v4624
      %4675 = vst.msk [vmem:[%s197 + $0x28] sm:$0xff] %vm271, %v4627
      %4676 = vst.msk [vmem:[%s197 + $0x30] sm:$0xff] %vm271, %v4632
      %4677 = vst.msk [vmem:[%s197 + $0x38] sm:$0xff] %vm271, %v4635
      %4678 = vst.msk [vmem:[%s197 + $0x40] sm:$0xff] %vm271, %v4640
      %4679 = vst.msk [vmem:[%s197 + $0x48] sm:$0xff] %vm271, %v4643
      %4680 = vst.msk [vmem:[%s197 + $0x50] sm:$0xff] %vm271, %v4648
      %4681 = vst.msk [vmem:[%s197 + $0x58] sm:$0xff] %vm271, %v4651
      %4682 = vst.msk [vmem:[%s197 + $0x60] sm:$0xff] %vm271, %v4656
      %4683 = vst.msk [vmem:[%s197 + $0x68] sm:$0xff] %vm271, %v4659
      %4684 = vst.msk [vmem:[%s197 + $0x70] sm:$0xff] %vm271, %v4664
      %4685 = vst.msk [vmem:[%s197 + $0x78] sm:$0xff] %vm271, %v4667
      %p4686 = scmp.lt.s32.totalorder %s15, 1
      %s4687 = scalar_select %p4686, %s15, 1
      %s4688 = smul.addr %s4687, 16
      %s4689 = smul.addr %s4688, 8
      %s4690 = scalar_lea.vmem %s4, %s4689
      // Predicated region
      $region37: #{tpu_custom_call.1} parent=35 // pred_check
        %p4691 = pneg %p122
      $region38: #{tpu_custom_call.1} parent=35 // pred_check_branch
        %4693 = sbr.rel (%p4691) target = $region40
      $region39: #{tpu_custom_call.1} parent=35 // pred_region
        _
      $region40: #{tpu_custom_call.1} parent=35 // pred_fallthru
        _
    $region36: #{tpu_custom_call.1} parent=5 // pred_fallthru
      _
    %p4694 = scmp.le.s32.totalorder 2, %s10
    // Predicated region
    $region41: #{tpu_custom_call.1} parent=5 // pred_check
      %p4695 = pneg %p4694
    $region42: #{tpu_custom_call.1} parent=5 // pred_check_branch
      %4697 = sbr.rel (%p4695) target = $region44
    $region43: #{tpu_custom_call.1} parent=5 // pred_region
      %s4698 = ssub.s32 %s10, 2
      // Predicated region
      $region45: #{tpu_custom_call.1} parent=43 // pred_check
        %p4699 = pneg %p128
      $region46: #{tpu_custom_call.1} parent=43 // pred_check_branch
        %4701 = sbr.rel (%p4699) target = $region48
      $region47: #{tpu_custom_call.1} parent=43 // pred_region
        %p4702 = scmp.lt.s32.totalorder %s16, 1
        %s4703 = scalar_select %p4702, %s16, 1
        %s4704 = smul.addr %s4703, 16
        %s4705 = smul.addr %s4704, 8
        %s4706 = scalar_lea.vmem %s4, %s4705
      $region48: #{tpu_custom_call.1} parent=43 // pred_fallthru
        _
    $region44: #{tpu_custom_call.1} parent=5 // pred_fallthru
      _
  $region6: #{tpu_custom_call.1} parent=0 // loop_footer
    %s14 = sadd.s32 1, %s10
  $region7: #{tpu_custom_call.1} parent=0 // loop_footer_branch
    %9 = sbr.rel target = $region3
  $region8: #{tpu_custom_call.1} parent=0 // loop_exit
    _

</llo_original>
